<compile_context>
chip_gen: v6e
topology: v6e:2x2x1
jax: 0.10.0
libtpu: 0.0.40
codegen_flags: <defaults>
</compile_context>

<pallas_src>
import jax
import jax.numpy as jnp
from jax import lax
from jax.experimental import pallas as pl
from jax.experimental.pallas import tpu as pltpu

# ---------------- model configuration ----------------
IMAGE_CHANNELS = 4
IMAGE_SIZE = 16
FILTERS_PER_LAYER = [8, 16]
FILTER_SIZE = 3
FILTER_STRIDE = 1
FILTER_PADDING = 1
NEURONS_PER_LAYER = [32, 10]     # hidden 32, num_classes 10
POOL_SIZE = 2
POOL_STRIDE = 2

_H1 = IMAGE_SIZE                 # 16: conv1 output spatial size ("same" conv)
_HP1 = _H1 // POOL_SIZE          # 8 : after pool1  (== conv2 output size)
_HP2 = _HP1 // POOL_SIZE         # 4 : after pool2
_W_OFF = 8                       # sublane-aligned column offset of the valid
                                 # region inside the zero-padded pooled1 scratch

_REF_PREC = jax.lax.Precision.HIGHEST


# ---------------- fused Pallas kernel ----------------
def _fused_forward_kernel(xp_ref, w1_ref, b1_ref, w2_ref, b2_ref,
                          wf1_ref, bf1_ref, wf2_ref, bf2_ref,
                          o_ref,
                          hm1_ref, pad2_ref, hm2_ref, p2_ref):
    f32 = jnp.float32
    B = xp_ref.shape[0]
    cin = xp_ref.shape[3]
    c1 = w1_ref.shape[2]
    c2 = w2_ref.shape[2]

    # ---- conv1 (3x3, stride 1, pad 1) + bias + ReLU ------------------------
    # 9 shifted-window matmuls; batch folded into the M dimension (B*16*16).
    acc1 = None
    for kh in range(FILTER_SIZE):
        for kw in range(FILTER_SIZE):
            slab = xp_ref[:, kh:kh + _H1, kw:kw + _H1, :]            # (B,16,16,cin)
            slab = slab.reshape(B * _H1 * _H1, cin)
            term = jnp.dot(slab, w1_ref[kh * FILTER_SIZE + kw],
                           preferred_element_type=f32)
            acc1 = term if acc1 is None else acc1 + term
    act1 = jnp.maximum(acc1 + b1_ref[...], 0.0)                      # (B*256, c1)

    # ---- maxpool 2x2 stride 2, layer 1 -------------------------------------
    # rows of act1 are (b, h, w): split the h-parity onto a leading dim
    # (trivial reshape), max it, then pair w-parity with two stride-2 reads.
    a1 = act1.reshape(B, _HP1, 2, _H1, c1)
    hm1_ref[...] = jnp.maximum(a1[:, :, 0], a1[:, :, 1])             # (B,8,16,c1)
    p1 = jnp.maximum(hm1_ref[:, :, pl.ds(0, _HP1, stride=2), :],
                     hm1_ref[:, :, pl.ds(1, _HP1, stride=2), :])     # (B,8,8,c1)

    # ---- zero-padded (pad=1) copy of pooled1 for conv2 ---------------------
    # The valid region is placed at sublane offset _W_OFF (=8) so the store is
    # tile-aligned; the +/-1 conv windows become cheap unaligned *loads* below.
    pad2_ref[...] = jnp.zeros_like(pad2_ref)
    pad2_ref[:, 1:1 + _HP1, _W_OFF:_W_OFF + _HP1, :] = p1

    # ---- conv2 (3x3, stride 1, pad 1) + bias + ReLU ------------------------
    acc2 = None
    for kh in range(FILTER_SIZE):
        for kw in range(FILTER_SIZE):
            c0 = _W_OFF - 1 + kw
            slab = pad2_ref[:, kh:kh + _HP1, c0:c0 + _HP1, :]        # (B,8,8,c1)
            slab = slab.reshape(B * _HP1 * _HP1, c1)
            term = jnp.dot(slab, w2_ref[kh * FILTER_SIZE + kw],
                           preferred_element_type=f32)
            acc2 = term if acc2 is None else acc2 + term
    act2 = jnp.maximum(acc2 + b2_ref[...], 0.0)                      # (B*64, c2)

    # ---- maxpool 2x2 stride 2, layer 2 -------------------------------------
    a2 = act2.reshape(B, _HP2, 2, _HP1, c2)
    hm2_ref[...] = jnp.maximum(a2[:, :, 0], a2[:, :, 1])             # (B,4,8,c2)
    p2_ref[...] = jnp.maximum(hm2_ref[:, :, pl.ds(0, _HP2, stride=2), :],
                              hm2_ref[:, :, pl.ds(1, _HP2, stride=2), :])

    # ---- classifier: Linear(256->32) + ReLU + Linear(32->10) ---------------
    # FC1 is accumulated over the 16 pooled spatial positions; the PyTorch
    # NCHW-order flatten is already folded into wf1's row layout.
    h = None
    for ho in range(_HP2):
        for wo in range(_HP2):
            feat = p2_ref[:, ho, wo, :]                              # (B, c2)
            term = jnp.dot(feat, wf1_ref[ho * _HP2 + wo],
                           preferred_element_type=f32)               # (B, 32)
            h = term if h is None else h + term
    h = jnp.maximum(h + bf1_ref[...], 0.0)
    out = jnp.dot(h, wf2_ref[...], preferred_element_type=f32) + bf2_ref[...]
    o_ref[...] = out.astype(o_ref.dtype)


# ---------------- wrappers ----------------
def _full_spec(shape):
    n = len(shape)

    def idx(i):
        return (0,) * n

    return pl.BlockSpec(shape, idx)


def prepare_params(params):
    """One-time re-layout of PyTorch-convention weights for the fused kernel
    (hoisted out of the forward pass, per the performance review)."""
    (w1_pt, b1), (w2_pt, b2) = params["conv"]
    (wf1_pt, bf1), (wf2_pt, bf2) = params["fc"]
    cin = w1_pt.shape[1]
    c1 = w1_pt.shape[0]
    c2 = w2_pt.shape[0]
    hid = wf1_pt.shape[0]
    k2 = FILTER_SIZE * FILTER_SIZE
    # conv weights: (Cout, Cin, KH, KW) -> (KH*KW, Cin, Cout)
    w1 = jnp.transpose(w1_pt, (2, 3, 1, 0)).reshape(k2, cin, c1)
    w2 = jnp.transpose(w2_pt, (2, 3, 1, 0)).reshape(k2, c1, c2)
    # FC1: fold the NCHW-order flatten into the weight rows:
    # (hid, C2*H*W) -> (H*W, C2, hid), indexed [spatial_pos, channel, out]
    wf1 = (wf1_pt.reshape(hid, c2, _HP2, _HP2)
           .transpose(2, 3, 1, 0)
           .reshape(_HP2 * _HP2, c2, hid))
    wf2 = wf2_pt.T
    return {
        "w1": w1, "b1": b1.reshape(1, c1),
        "w2": w2, "b2": b2.reshape(1, c2),
        "wf1": wf1, "bf1": bf1.reshape(1, hid),
        "wf2": wf2, "bf2": bf2.reshape(1, -1),
    }


def model_forward(x_nchw, prep):
    B = x_nchw.shape[0]
    c1 = prep["w1"].shape[2]
    c2 = prep["w2"].shape[2]
    num_classes = prep["wf2"].shape[1]

    # Only pre-kernel glue: NCHW -> NHWC + "same"-conv zero padding (16 KB).
    x_nhwc = jnp.transpose(x_nchw, (0, 2, 3, 1))
    xp = jnp.pad(x_nhwc, ((0, 0), (FILTER_PADDING, FILTER_PADDING),
                          (FILTER_PADDING, FILTER_PADDING), (0, 0)))

    operands = (xp, prep["w1"], prep["b1"], prep["w2"], prep["b2"],
                prep["wf1"], prep["bf1"], prep["wf2"], prep["bf2"])

    # Note: for large batches, tile B with a leading "parallel" grid axis
    # (v7x megacore); at B=2 a single fused step is fastest.
    out = pl.pallas_call(
        _fused_forward_kernel,
        out_shape=jax.ShapeDtypeStruct((B, num_classes), jnp.float32),
        grid=(1,),
        in_specs=[_full_spec(a.shape) for a in operands],
        out_specs=_full_spec((B, num_classes)),
        scratch_shapes=[
            pltpu.VMEM((B, _HP1, _H1, c1), jnp.float32),                    # hm1
            pltpu.VMEM((B, _HP1 + 2, _W_OFF + _HP1 + 8, c1), jnp.float32),  # pad2
            pltpu.VMEM((B, _HP2, _HP1, c2), jnp.float32),                   # hm2
            pltpu.VMEM((B, _HP2, _HP2, c2), jnp.float32),                   # p2
        ],
        compiler_params=pltpu.CompilerParams(
            dimension_semantics=("arbitrary",)),
    )(*operands)
    assert out.shape == (B, NEURONS_PER_LAYER[-1])
    return out


# ---------------- reference (pure JAX, PyTorch semantics) ----------------
def reference_forward(x_nchw, params):
    y = x_nchw
    for (w, b) in params["conv"]:
        y = lax.conv_general_dilated(
            y, w, (FILTER_STRIDE, FILTER_STRIDE),
            [(FILTER_PADDING, FILTER_PADDING)] * 2,
            dimension_numbers=("NCHW", "OIHW", "NCHW"), precision=_REF_PREC)
        y = y + b[None, :, None, None]
        y = jnp.maximum(y, 0.0)
        y = lax.reduce_window(y, -jnp.inf, lax.max,
                              (1, 1, POOL_SIZE, POOL_SIZE),
                              (1, 1, POOL_STRIDE, POOL_STRIDE), "VALID")
    feat = y.reshape(y.shape[0], -1)
    (w1, b1), (w2, b2) = params["fc"]
    h = jnp.maximum(jnp.dot(feat, w1.T, precision=_REF_PREC) + b1, 0.0)
    return jnp.dot(h, w2.T, precision=_REF_PREC) + b2


# ---------------- deterministic parameter init ----------------
def init_params(key):
    keys = jax.random.split(key, 2 * len(FILTERS_PER_LAYER)
                            + 2 * len(NEURONS_PER_LAYER))
    ki = 0
    conv = []
    cin = IMAGE_CHANNELS
    for cout in FILTERS_PER_LAYER:
        w = 0.1 * jax.random.normal(keys[ki], (cout, cin, FILTER_SIZE, FILTER_SIZE),
                                    jnp.float32)
        b = 0.05 * jax.random.normal(keys[ki + 1], (cout,), jnp.float32)
        conv.append((w, b))
        cin = cout
        ki += 2
    # num_output_features, same arithmetic as the PyTorch module
    size_out = IMAGE_SIZE
    for _ in FILTERS_PER_LAYER:
        size_out = (size_out - FILTER_SIZE + 2 * FILTER_PADDING) // FILTER_STRIDE + 1
        size_out = (size_out - POOL_SIZE) // POOL_STRIDE + 1
    num_output_features = FILTERS_PER_LAYER[-1] * size_out * size_out
    fc = []
    fin = num_output_features
    for n in NEURONS_PER_LAYER:
        w = 0.1 * jax.random.normal(keys[ki], (n, fin), jnp.float32)  # (out, in)
        b = 0.05 * jax.random.normal(keys[ki + 1], (n,), jnp.float32)
        fc.append((w, b))
        fin = n
        ki += 2
    return {"conv": conv, "fc": fc}


if __name__ == "__main__":
    key = jax.random.PRNGKey(0)
    pkey, xkey = jax.random.split(key)
    params = init_params(pkey)
    prep = prepare_params(params)        # one-time weight re-layout (hoisted)
    x = jax.random.normal(
        xkey, (2, IMAGE_CHANNELS, IMAGE_SIZE, IMAGE_SIZE), jnp.float32)

    fwd = jax.jit(model_forward)
    out = jax.block_until_ready(fwd(x, prep))
    assert out.shape == (2, NEURONS_PER_LAYER[-1]), out.shape

    ref = jax.block_until_ready(jax.jit(reference_forward)(x, params))
    # Kernel matmuls run at default MXU precision (bf16 inputs, f32 accumulate)
    # per the perf review; the reference runs at Precision.HIGHEST, hence the
    # slightly looser bound.
    assert jnp.allclose(out, ref, rtol=2e-2, atol=2e-2), \
        float(jnp.max(jnp.abs(out - ref)))
    print("KERNEL_OK")
</pallas_src>

<mosaic_0001>
module attributes {stable_mosaic.version = 11 : i64} {
  func.func @_fused_forward_kernel(%arg0: i32, %arg1: memref<2x18x18x4xf32, #tpu.memory_space<vmem>>, %arg2: memref<9x4x8xf32, #tpu.memory_space<vmem>>, %arg3: memref<1x8xf32, #tpu.memory_space<vmem>>, %arg4: memref<9x8x16xf32, #tpu.memory_space<vmem>>, %arg5: memref<1x16xf32, #tpu.memory_space<vmem>>, %arg6: memref<16x16x32xf32, #tpu.memory_space<vmem>>, %arg7: memref<1x32xf32, #tpu.memory_space<vmem>>, %arg8: memref<32x10xf32, #tpu.memory_space<vmem>>, %arg9: memref<1x10xf32, #tpu.memory_space<vmem>>, %arg10: memref<2x10xf32, #tpu.memory_space<vmem>>, %arg11: memref<2x8x16x8xf32, #tpu.memory_space<vmem>>, %arg12: memref<2x10x24x8xf32, #tpu.memory_space<vmem>>, %arg13: memref<2x4x8x16xf32, #tpu.memory_space<vmem>>, %arg14: memref<2x4x4x16xf32, #tpu.memory_space<vmem>>) attributes {dimension_semantics = [#tpu.dimension_semantics<arbitrary>], iteration_bounds = array<i64: 1>, scalar_prefetch = 0 : i64, scratch_operands = 4 : i64, tpu.core_type = #tpu.core_type<tc>, window_params = [{pipeline_mode = #tpu.pipeline_mode<synchronous>, transform_indices = @transform_0, window_bounds = array<i64: 2, 18, 18, 4>}, {pipeline_mode = #tpu.pipeline_mode<synchronous>, transform_indices = @transform_1, window_bounds = array<i64: 9, 4, 8>}, {pipeline_mode = #tpu.pipeline_mode<synchronous>, transform_indices = @transform_2, window_bounds = array<i64: 1, 8>}, {pipeline_mode = #tpu.pipeline_mode<synchronous>, transform_indices = @transform_3, window_bounds = array<i64: 9, 8, 16>}, {pipeline_mode = #tpu.pipeline_mode<synchronous>, transform_indices = @transform_4, window_bounds = array<i64: 1, 16>}, {pipeline_mode = #tpu.pipeline_mode<synchronous>, transform_indices = @transform_5, window_bounds = array<i64: 16, 16, 32>}, {pipeline_mode = #tpu.pipeline_mode<synchronous>, transform_indices = @transform_6, window_bounds = array<i64: 1, 32>}, {pipeline_mode = #tpu.pipeline_mode<synchronous>, transform_indices = @transform_7, window_bounds = array<i64: 32, 10>}, {pipeline_mode = #tpu.pipeline_mode<synchronous>, transform_indices = @transform_8, window_bounds = array<i64: 1, 10>}, {pipeline_mode = #tpu.pipeline_mode<synchronous>, transform_indices = @transform_9, window_bounds = array<i64: 2, 10>}]} {
    %c0 = arith.constant 0 : index
    %c0_0 = arith.constant 0 : index
    %c0_1 = arith.constant 0 : index
    %c0_2 = arith.constant 0 : index
    %0 = vector.load %arg1[%c0, %c0_0, %c0_1, %c0_2] : memref<2x18x18x4xf32, #tpu.memory_space<vmem>>, vector<2x16x16x4xf32>
    %1 = vector.shape_cast %0 : vector<2x16x16x4xf32> to vector<512x4xf32>
    %c0_3 = arith.constant 0 : index
    %c0_4 = arith.constant 0 : index
    %c0_5 = arith.constant 0 : index
    %2 = vector.load %arg2[%c0_3, %c0_4, %c0_5] : memref<9x4x8xf32, #tpu.memory_space<vmem>>, vector<1x4x8xf32>
    %3 = vector.shape_cast %2 : vector<1x4x8xf32> to vector<4x8xf32>
    %cst = arith.constant dense<0.000000e+00> : vector<512x8xf32>
    %4 = tpu.matmul %1, %3, %cst {dimension_numbers = #tpu.dot_dimension_numbers<[1], [0], [0], [1], [0, 0, 1, 1], [], []>} : vector<512x4xf32>, vector<4x8xf32>, vector<512x8xf32> -> vector<512x8xf32>
    %c0_6 = arith.constant 0 : index
    %c0_7 = arith.constant 0 : index
    %c1 = arith.constant 1 : index
    %c0_8 = arith.constant 0 : index
    %5 = vector.load %arg1[%c0_6, %c0_7, %c1, %c0_8] : memref<2x18x18x4xf32, #tpu.memory_space<vmem>>, vector<2x16x16x4xf32>
    %6 = vector.shape_cast %5 : vector<2x16x16x4xf32> to vector<512x4xf32>
    %c1_9 = arith.constant 1 : index
    %c0_10 = arith.constant 0 : index
    %c0_11 = arith.constant 0 : index
    %7 = vector.load %arg2[%c1_9, %c0_10, %c0_11] : memref<9x4x8xf32, #tpu.memory_space<vmem>>, vector<1x4x8xf32>
    %8 = vector.shape_cast %7 : vector<1x4x8xf32> to vector<4x8xf32>
    %cst_12 = arith.constant dense<0.000000e+00> : vector<512x8xf32>
    %9 = tpu.matmul %6, %8, %cst_12 {dimension_numbers = #tpu.dot_dimension_numbers<[1], [0], [0], [1], [0, 0, 1, 1], [], []>} : vector<512x4xf32>, vector<4x8xf32>, vector<512x8xf32> -> vector<512x8xf32>
    %10 = arith.addf %4, %9 : vector<512x8xf32>
    %c0_13 = arith.constant 0 : index
    %c0_14 = arith.constant 0 : index
    %c2 = arith.constant 2 : index
    %c0_15 = arith.constant 0 : index
    %11 = vector.load %arg1[%c0_13, %c0_14, %c2, %c0_15] : memref<2x18x18x4xf32, #tpu.memory_space<vmem>>, vector<2x16x16x4xf32>
    %12 = vector.shape_cast %11 : vector<2x16x16x4xf32> to vector<512x4xf32>
    %c2_16 = arith.constant 2 : index
    %c0_17 = arith.constant 0 : index
    %c0_18 = arith.constant 0 : index
    %13 = vector.load %arg2[%c2_16, %c0_17, %c0_18] : memref<9x4x8xf32, #tpu.memory_space<vmem>>, vector<1x4x8xf32>
    %14 = vector.shape_cast %13 : vector<1x4x8xf32> to vector<4x8xf32>
    %cst_19 = arith.constant dense<0.000000e+00> : vector<512x8xf32>
    %15 = tpu.matmul %12, %14, %cst_19 {dimension_numbers = #tpu.dot_dimension_numbers<[1], [0], [0], [1], [0, 0, 1, 1], [], []>} : vector<512x4xf32>, vector<4x8xf32>, vector<512x8xf32> -> vector<512x8xf32>
    %16 = arith.addf %10, %15 : vector<512x8xf32>
    %c0_20 = arith.constant 0 : index
    %c1_21 = arith.constant 1 : index
    %c0_22 = arith.constant 0 : index
    %c0_23 = arith.constant 0 : index
    %17 = vector.load %arg1[%c0_20, %c1_21, %c0_22, %c0_23] : memref<2x18x18x4xf32, #tpu.memory_space<vmem>>, vector<2x16x16x4xf32>
    %18 = vector.shape_cast %17 : vector<2x16x16x4xf32> to vector<512x4xf32>
    %c3 = arith.constant 3 : index
    %c0_24 = arith.constant 0 : index
    %c0_25 = arith.constant 0 : index
    %19 = vector.load %arg2[%c3, %c0_24, %c0_25] : memref<9x4x8xf32, #tpu.memory_space<vmem>>, vector<1x4x8xf32>
    %20 = vector.shape_cast %19 : vector<1x4x8xf32> to vector<4x8xf32>
    %cst_26 = arith.constant dense<0.000000e+00> : vector<512x8xf32>
    %21 = tpu.matmul %18, %20, %cst_26 {dimension_numbers = #tpu.dot_dimension_numbers<[1], [0], [0], [1], [0, 0, 1, 1], [], []>} : vector<512x4xf32>, vector<4x8xf32>, vector<512x8xf32> -> vector<512x8xf32>
    %22 = arith.addf %16, %21 : vector<512x8xf32>
    %c0_27 = arith.constant 0 : index
    %c1_28 = arith.constant 1 : index
    %c1_29 = arith.constant 1 : index
    %c0_30 = arith.constant 0 : index
    %23 = vector.load %arg1[%c0_27, %c1_28, %c1_29, %c0_30] : memref<2x18x18x4xf32, #tpu.memory_space<vmem>>, vector<2x16x16x4xf32>
    %24 = vector.shape_cast %23 : vector<2x16x16x4xf32> to vector<512x4xf32>
    %c4 = arith.constant 4 : index
    %c0_31 = arith.constant 0 : index
    %c0_32 = arith.constant 0 : index
    %25 = vector.load %arg2[%c4, %c0_31, %c0_32] : memref<9x4x8xf32, #tpu.memory_space<vmem>>, vector<1x4x8xf32>
    %26 = vector.shape_cast %25 : vector<1x4x8xf32> to vector<4x8xf32>
    %cst_33 = arith.constant dense<0.000000e+00> : vector<512x8xf32>
    %27 = tpu.matmul %24, %26, %cst_33 {dimension_numbers = #tpu.dot_dimension_numbers<[1], [0], [0], [1], [0, 0, 1, 1], [], []>} : vector<512x4xf32>, vector<4x8xf32>, vector<512x8xf32> -> vector<512x8xf32>
    %28 = arith.addf %22, %27 : vector<512x8xf32>
    %c0_34 = arith.constant 0 : index
    %c1_35 = arith.constant 1 : index
    %c2_36 = arith.constant 2 : index
    %c0_37 = arith.constant 0 : index
    %29 = vector.load %arg1[%c0_34, %c1_35, %c2_36, %c0_37] : memref<2x18x18x4xf32, #tpu.memory_space<vmem>>, vector<2x16x16x4xf32>
    %30 = vector.shape_cast %29 : vector<2x16x16x4xf32> to vector<512x4xf32>
    %c5 = arith.constant 5 : index
    %c0_38 = arith.constant 0 : index
    %c0_39 = arith.constant 0 : index
    %31 = vector.load %arg2[%c5, %c0_38, %c0_39] : memref<9x4x8xf32, #tpu.memory_space<vmem>>, vector<1x4x8xf32>
    %32 = vector.shape_cast %31 : vector<1x4x8xf32> to vector<4x8xf32>
    %cst_40 = arith.constant dense<0.000000e+00> : vector<512x8xf32>
    %33 = tpu.matmul %30, %32, %cst_40 {dimension_numbers = #tpu.dot_dimension_numbers<[1], [0], [0], [1], [0, 0, 1, 1], [], []>} : vector<512x4xf32>, vector<4x8xf32>, vector<512x8xf32> -> vector<512x8xf32>
    %34 = arith.addf %28, %33 : vector<512x8xf32>
    %c0_41 = arith.constant 0 : index
    %c2_42 = arith.constant 2 : index
    %c0_43 = arith.constant 0 : index
    %c0_44 = arith.constant 0 : index
    %35 = vector.load %arg1[%c0_41, %c2_42, %c0_43, %c0_44] : memref<2x18x18x4xf32, #tpu.memory_space<vmem>>, vector<2x16x16x4xf32>
    %36 = vector.shape_cast %35 : vector<2x16x16x4xf32> to vector<512x4xf32>
    %c6 = arith.constant 6 : index
    %c0_45 = arith.constant 0 : index
    %c0_46 = arith.constant 0 : index
    %37 = vector.load %arg2[%c6, %c0_45, %c0_46] : memref<9x4x8xf32, #tpu.memory_space<vmem>>, vector<1x4x8xf32>
    %38 = vector.shape_cast %37 : vector<1x4x8xf32> to vector<4x8xf32>
    %cst_47 = arith.constant dense<0.000000e+00> : vector<512x8xf32>
    %39 = tpu.matmul %36, %38, %cst_47 {dimension_numbers = #tpu.dot_dimension_numbers<[1], [0], [0], [1], [0, 0, 1, 1], [], []>} : vector<512x4xf32>, vector<4x8xf32>, vector<512x8xf32> -> vector<512x8xf32>
    %40 = arith.addf %34, %39 : vector<512x8xf32>
    %c0_48 = arith.constant 0 : index
    %c2_49 = arith.constant 2 : index
    %c1_50 = arith.constant 1 : index
    %c0_51 = arith.constant 0 : index
    %41 = vector.load %arg1[%c0_48, %c2_49, %c1_50, %c0_51] : memref<2x18x18x4xf32, #tpu.memory_space<vmem>>, vector<2x16x16x4xf32>
    %42 = vector.shape_cast %41 : vector<2x16x16x4xf32> to vector<512x4xf32>
    %c7 = arith.constant 7 : index
    %c0_52 = arith.constant 0 : index
    %c0_53 = arith.constant 0 : index
    %43 = vector.load %arg2[%c7, %c0_52, %c0_53] : memref<9x4x8xf32, #tpu.memory_space<vmem>>, vector<1x4x8xf32>
    %44 = vector.shape_cast %43 : vector<1x4x8xf32> to vector<4x8xf32>
    %cst_54 = arith.constant dense<0.000000e+00> : vector<512x8xf32>
    %45 = tpu.matmul %42, %44, %cst_54 {dimension_numbers = #tpu.dot_dimension_numbers<[1], [0], [0], [1], [0, 0, 1, 1], [], []>} : vector<512x4xf32>, vector<4x8xf32>, vector<512x8xf32> -> vector<512x8xf32>
    %46 = arith.addf %40, %45 : vector<512x8xf32>
    %c0_55 = arith.constant 0 : index
    %c2_56 = arith.constant 2 : index
    %c2_57 = arith.constant 2 : index
    %c0_58 = arith.constant 0 : index
    %47 = vector.load %arg1[%c0_55, %c2_56, %c2_57, %c0_58] : memref<2x18x18x4xf32, #tpu.memory_space<vmem>>, vector<2x16x16x4xf32>
    %48 = vector.shape_cast %47 : vector<2x16x16x4xf32> to vector<512x4xf32>
    %c8 = arith.constant 8 : index
    %c0_59 = arith.constant 0 : index
    %c0_60 = arith.constant 0 : index
    %49 = vector.load %arg2[%c8, %c0_59, %c0_60] : memref<9x4x8xf32, #tpu.memory_space<vmem>>, vector<1x4x8xf32>
    %50 = vector.shape_cast %49 : vector<1x4x8xf32> to vector<4x8xf32>
    %cst_61 = arith.constant dense<0.000000e+00> : vector<512x8xf32>
    %51 = tpu.matmul %48, %50, %cst_61 {dimension_numbers = #tpu.dot_dimension_numbers<[1], [0], [0], [1], [0, 0, 1, 1], [], []>} : vector<512x4xf32>, vector<4x8xf32>, vector<512x8xf32> -> vector<512x8xf32>
    %52 = arith.addf %46, %51 : vector<512x8xf32>
    %c0_62 = arith.constant 0 : index
    %c0_63 = arith.constant 0 : index
    %53 = vector.load %arg3[%c0_62, %c0_63] : memref<1x8xf32, #tpu.memory_space<vmem>>, vector<1x8xf32>
    %54 = vector.broadcast %53 : vector<1x8xf32> to vector<512x8xf32>
    %55 = arith.addf %52, %54 : vector<512x8xf32>
    %cst_64 = arith.constant 0.000000e+00 : f32
    %56 = vector.broadcast %cst_64 : f32 to vector<512x8xf32>
    %57 = arith.maximumf %55, %56 : vector<512x8xf32>
    %58 = vector.shape_cast %57 : vector<512x8xf32> to vector<2x8x2x16x8xf32>
    %59 = vector.extract_strided_slice %58 {offsets = [0, 0, 0, 0, 0], sizes = [2, 8, 1, 16, 8], strides = [1, 1, 1, 1, 1]} : vector<2x8x2x16x8xf32> to vector<2x8x1x16x8xf32>
    %60 = vector.shape_cast %59 : vector<2x8x1x16x8xf32> to vector<2x8x16x8xf32>
    %61 = vector.extract_strided_slice %58 {offsets = [0, 0, 1, 0, 0], sizes = [2, 8, 1, 16, 8], strides = [1, 1, 1, 1, 1]} : vector<2x8x2x16x8xf32> to vector<2x8x1x16x8xf32>
    %62 = vector.shape_cast %61 : vector<2x8x1x16x8xf32> to vector<2x8x16x8xf32>
    %63 = arith.maximumf %60, %62 : vector<2x8x16x8xf32>
    %c0_65 = arith.constant 0 : index
    %c0_66 = arith.constant 0 : index
    %c0_67 = arith.constant 0 : index
    %c0_68 = arith.constant 0 : index
    %64 = vector.load %arg11[%c0_65, %c0_66, %c0_67, %c0_68] : memref<2x8x16x8xf32, #tpu.memory_space<vmem>>, vector<2x8x16x8xf32>
    tpu.vector_store %arg11[%c0_65, %c0_66, %c0_67, %c0_68], %63 {strides = array<i32>} : memref<2x8x16x8xf32, #tpu.memory_space<vmem>>, vector<2x8x16x8xf32>,
    %c0_69 = arith.constant 0 : index
    %c0_70 = arith.constant 0 : index
    %c0_71 = arith.constant 0 : index
    %c0_72 = arith.constant 0 : index
    %65 = tpu.strided_load %arg11[%c0_69, %c0_70, %c0_71, %c0_72] {strides = array<i32: 1, 1, 2, 1>} : memref<2x8x16x8xf32, #tpu.memory_space<vmem>>, vector<2x8x8x8xf32>
    %c0_73 = arith.constant 0 : index
    %c0_74 = arith.constant 0 : index
    %c1_75 = arith.constant 1 : index
    %c0_76 = arith.constant 0 : index
    %66 = tpu.strided_load %arg11[%c0_73, %c0_74, %c1_75, %c0_76] {strides = array<i32: 1, 1, 2, 1>} : memref<2x8x16x8xf32, #tpu.memory_space<vmem>>, vector<2x8x8x8xf32>
    %67 = arith.maximumf %65, %66 : vector<2x8x8x8xf32>
    %cst_77 = arith.constant 0.000000e+00 : f32
    %68 = vector.broadcast %cst_77 : f32 to vector<2x10x24x8xf32>
    %c0_78 = arith.constant 0 : index
    %c0_79 = arith.constant 0 : index
    %c0_80 = arith.constant 0 : index
    %c0_81 = arith.constant 0 : index
    %69 = vector.load %arg12[%c0_78, %c0_79, %c0_80, %c0_81] : memref<2x10x24x8xf32, #tpu.memory_space<vmem>>, vector<2x10x24x8xf32>
    tpu.vector_store %arg12[%c0_78, %c0_79, %c0_80, %c0_81], %68 {strides = array<i32>} : memref<2x10x24x8xf32, #tpu.memory_space<vmem>>, vector<2x10x24x8xf32>,
    %c0_82 = arith.constant 0 : index
    %c1_83 = arith.constant 1 : index
    %c8_84 = arith.constant 8 : index
    %c0_85 = arith.constant 0 : index
    %70 = vector.load %arg12[%c0_82, %c1_83, %c8_84, %c0_85] : memref<2x10x24x8xf32, #tpu.memory_space<vmem>>, vector<2x8x8x8xf32>
    tpu.vector_store %arg12[%c0_82, %c1_83, %c8_84, %c0_85], %67 {strides = array<i32>} : memref<2x10x24x8xf32, #tpu.memory_space<vmem>>, vector<2x8x8x8xf32>,
    %c0_86 = arith.constant 0 : index
    %c0_87 = arith.constant 0 : index
    %c7_88 = arith.constant 7 : index
    %c0_89 = arith.constant 0 : index
    %71 = vector.load %arg12[%c0_86, %c0_87, %c7_88, %c0_89] : memref<2x10x24x8xf32, #tpu.memory_space<vmem>>, vector<2x8x8x8xf32>
    %72 = vector.shape_cast %71 : vector<2x8x8x8xf32> to vector<128x8xf32>
    %c0_90 = arith.constant 0 : index
    %c0_91 = arith.constant 0 : index
    %c0_92 = arith.constant 0 : index
    %73 = vector.load %arg4[%c0_90, %c0_91, %c0_92] : memref<9x8x16xf32, #tpu.memory_space<vmem>>, vector<1x8x16xf32>
    %74 = vector.shape_cast %73 : vector<1x8x16xf32> to vector<8x16xf32>
    %cst_93 = arith.constant dense<0.000000e+00> : vector<128x16xf32>
    %75 = tpu.matmul %72, %74, %cst_93 {dimension_numbers = #tpu.dot_dimension_numbers<[1], [0], [0], [1], [0, 0, 1, 1], [], []>} : vector<128x8xf32>, vector<8x16xf32>, vector<128x16xf32> -> vector<128x16xf32>
    %c0_94 = arith.constant 0 : index
    %c0_95 = arith.constant 0 : index
    %c8_96 = arith.constant 8 : index
    %c0_97 = arith.constant 0 : index
    %76 = vector.load %arg12[%c0_94, %c0_95, %c8_96, %c0_97] : memref<2x10x24x8xf32, #tpu.memory_space<vmem>>, vector<2x8x8x8xf32>
    %77 = vector.shape_cast %76 : vector<2x8x8x8xf32> to vector<128x8xf32>
    %c1_98 = arith.constant 1 : index
    %c0_99 = arith.constant 0 : index
    %c0_100 = arith.constant 0 : index
    %78 = vector.load %arg4[%c1_98, %c0_99, %c0_100] : memref<9x8x16xf32, #tpu.memory_space<vmem>>, vector<1x8x16xf32>
    %79 = vector.shape_cast %78 : vector<1x8x16xf32> to vector<8x16xf32>
    %cst_101 = arith.constant dense<0.000000e+00> : vector<128x16xf32>
    %80 = tpu.matmul %77, %79, %cst_101 {dimension_numbers = #tpu.dot_dimension_numbers<[1], [0], [0], [1], [0, 0, 1, 1], [], []>} : vector<128x8xf32>, vector<8x16xf32>, vector<128x16xf32> -> vector<128x16xf32>
    %81 = arith.addf %75, %80 : vector<128x16xf32>
    %c0_102 = arith.constant 0 : index
    %c0_103 = arith.constant 0 : index
    %c9 = arith.constant 9 : index
    %c0_104 = arith.constant 0 : index
    %82 = vector.load %arg12[%c0_102, %c0_103, %c9, %c0_104] : memref<2x10x24x8xf32, #tpu.memory_space<vmem>>, vector<2x8x8x8xf32>
    %83 = vector.shape_cast %82 : vector<2x8x8x8xf32> to vector<128x8xf32>
    %c2_105 = arith.constant 2 : index
    %c0_106 = arith.constant 0 : index
    %c0_107 = arith.constant 0 : index
    %84 = vector.load %arg4[%c2_105, %c0_106, %c0_107] : memref<9x8x16xf32, #tpu.memory_space<vmem>>, vector<1x8x16xf32>
    %85 = vector.shape_cast %84 : vector<1x8x16xf32> to vector<8x16xf32>
    %cst_108 = arith.constant dense<0.000000e+00> : vector<128x16xf32>
    %86 = tpu.matmul %83, %85, %cst_108 {dimension_numbers = #tpu.dot_dimension_numbers<[1], [0], [0], [1], [0, 0, 1, 1], [], []>} : vector<128x8xf32>, vector<8x16xf32>, vector<128x16xf32> -> vector<128x16xf32>
    %87 = arith.addf %81, %86 : vector<128x16xf32>
    %c0_109 = arith.constant 0 : index
    %c1_110 = arith.constant 1 : index
    %c7_111 = arith.constant 7 : index
    %c0_112 = arith.constant 0 : index
    %88 = vector.load %arg12[%c0_109, %c1_110, %c7_111, %c0_112] : memref<2x10x24x8xf32, #tpu.memory_space<vmem>>, vector<2x8x8x8xf32>
    %89 = vector.shape_cast %88 : vector<2x8x8x8xf32> to vector<128x8xf32>
    %c3_113 = arith.constant 3 : index
    %c0_114 = arith.constant 0 : index
    %c0_115 = arith.constant 0 : index
    %90 = vector.load %arg4[%c3_113, %c0_114, %c0_115] : memref<9x8x16xf32, #tpu.memory_space<vmem>>, vector<1x8x16xf32>
    %91 = vector.shape_cast %90 : vector<1x8x16xf32> to vector<8x16xf32>
    %cst_116 = arith.constant dense<0.000000e+00> : vector<128x16xf32>
    %92 = tpu.matmul %89, %91, %cst_116 {dimension_numbers = #tpu.dot_dimension_numbers<[1], [0], [0], [1], [0, 0, 1, 1], [], []>} : vector<128x8xf32>, vector<8x16xf32>, vector<128x16xf32> -> vector<128x16xf32>
    %93 = arith.addf %87, %92 : vector<128x16xf32>
    %c0_117 = arith.constant 0 : index
    %c1_118 = arith.constant 1 : index
    %c8_119 = arith.constant 8 : index
    %c0_120 = arith.constant 0 : index
    %94 = vector.load %arg12[%c0_117, %c1_118, %c8_119, %c0_120] : memref<2x10x24x8xf32, #tpu.memory_space<vmem>>, vector<2x8x8x8xf32>
    %95 = vector.shape_cast %94 : vector<2x8x8x8xf32> to vector<128x8xf32>
    %c4_121 = arith.constant 4 : index
    %c0_122 = arith.constant 0 : index
    %c0_123 = arith.constant 0 : index
    %96 = vector.load %arg4[%c4_121, %c0_122, %c0_123] : memref<9x8x16xf32, #tpu.memory_space<vmem>>, vector<1x8x16xf32>
    %97 = vector.shape_cast %96 : vector<1x8x16xf32> to vector<8x16xf32>
    %cst_124 = arith.constant dense<0.000000e+00> : vector<128x16xf32>
    %98 = tpu.matmul %95, %97, %cst_124 {dimension_numbers = #tpu.dot_dimension_numbers<[1], [0], [0], [1], [0, 0, 1, 1], [], []>} : vector<128x8xf32>, vector<8x16xf32>, vector<128x16xf32> -> vector<128x16xf32>
    %99 = arith.addf %93, %98 : vector<128x16xf32>
    %c0_125 = arith.constant 0 : index
    %c1_126 = arith.constant 1 : index
    %c9_127 = arith.constant 9 : index
    %c0_128 = arith.constant 0 : index
    %100 = vector.load %arg12[%c0_125, %c1_126, %c9_127, %c0_128] : memref<2x10x24x8xf32, #tpu.memory_space<vmem>>, vector<2x8x8x8xf32>
    %101 = vector.shape_cast %100 : vector<2x8x8x8xf32> to vector<128x8xf32>
    %c5_129 = arith.constant 5 : index
    %c0_130 = arith.constant 0 : index
    %c0_131 = arith.constant 0 : index
    %102 = vector.load %arg4[%c5_129, %c0_130, %c0_131] : memref<9x8x16xf32, #tpu.memory_space<vmem>>, vector<1x8x16xf32>
    %103 = vector.shape_cast %102 : vector<1x8x16xf32> to vector<8x16xf32>
    %cst_132 = arith.constant dense<0.000000e+00> : vector<128x16xf32>
    %104 = tpu.matmul %101, %103, %cst_132 {dimension_numbers = #tpu.dot_dimension_numbers<[1], [0], [0], [1], [0, 0, 1, 1], [], []>} : vector<128x8xf32>, vector<8x16xf32>, vector<128x16xf32> -> vector<128x16xf32>
    %105 = arith.addf %99, %104 : vector<128x16xf32>
    %c0_133 = arith.constant 0 : index
    %c2_134 = arith.constant 2 : index
    %c7_135 = arith.constant 7 : index
    %c0_136 = arith.constant 0 : index
    %106 = vector.load %arg12[%c0_133, %c2_134, %c7_135, %c0_136] : memref<2x10x24x8xf32, #tpu.memory_space<vmem>>, vector<2x8x8x8xf32>
    %107 = vector.shape_cast %106 : vector<2x8x8x8xf32> to vector<128x8xf32>
    %c6_137 = arith.constant 6 : index
    %c0_138 = arith.constant 0 : index
    %c0_139 = arith.constant 0 : index
    %108 = vector.load %arg4[%c6_137, %c0_138, %c0_139] : memref<9x8x16xf32, #tpu.memory_space<vmem>>, vector<1x8x16xf32>
    %109 = vector.shape_cast %108 : vector<1x8x16xf32> to vector<8x16xf32>
    %cst_140 = arith.constant dense<0.000000e+00> : vector<128x16xf32>
    %110 = tpu.matmul %107, %109, %cst_140 {dimension_numbers = #tpu.dot_dimension_numbers<[1], [0], [0], [1], [0, 0, 1, 1], [], []>} : vector<128x8xf32>, vector<8x16xf32>, vector<128x16xf32> -> vector<128x16xf32>
    %111 = arith.addf %105, %110 : vector<128x16xf32>
    %c0_141 = arith.constant 0 : index
    %c2_142 = arith.constant 2 : index
    %c8_143 = arith.constant 8 : index
    %c0_144 = arith.constant 0 : index
    %112 = vector.load %arg12[%c0_141, %c2_142, %c8_143, %c0_144] : memref<2x10x24x8xf32, #tpu.memory_space<vmem>>, vector<2x8x8x8xf32>
    %113 = vector.shape_cast %112 : vector<2x8x8x8xf32> to vector<128x8xf32>
    %c7_145 = arith.constant 7 : index
    %c0_146 = arith.constant 0 : index
    %c0_147 = arith.constant 0 : index
    %114 = vector.load %arg4[%c7_145, %c0_146, %c0_147] : memref<9x8x16xf32, #tpu.memory_space<vmem>>, vector<1x8x16xf32>
    %115 = vector.shape_cast %114 : vector<1x8x16xf32> to vector<8x16xf32>
    %cst_148 = arith.constant dense<0.000000e+00> : vector<128x16xf32>
    %116 = tpu.matmul %113, %115, %cst_148 {dimension_numbers = #tpu.dot_dimension_numbers<[1], [0], [0], [1], [0, 0, 1, 1], [], []>} : vector<128x8xf32>, vector<8x16xf32>, vector<128x16xf32> -> vector<128x16xf32>
    %117 = arith.addf %111, %116 : vector<128x16xf32>
    %c0_149 = arith.constant 0 : index
    %c2_150 = arith.constant 2 : index
    %c9_151 = arith.constant 9 : index
    %c0_152 = arith.constant 0 : index
    %118 = vector.load %arg12[%c0_149, %c2_150, %c9_151, %c0_152] : memref<2x10x24x8xf32, #tpu.memory_space<vmem>>, vector<2x8x8x8xf32>
    %119 = vector.shape_cast %118 : vector<2x8x8x8xf32> to vector<128x8xf32>
    %c8_153 = arith.constant 8 : index
    %c0_154 = arith.constant 0 : index
    %c0_155 = arith.constant 0 : index
    %120 = vector.load %arg4[%c8_153, %c0_154, %c0_155] : memref<9x8x16xf32, #tpu.memory_space<vmem>>, vector<1x8x16xf32>
    %121 = vector.shape_cast %120 : vector<1x8x16xf32> to vector<8x16xf32>
    %cst_156 = arith.constant dense<0.000000e+00> : vector<128x16xf32>
    %122 = tpu.matmul %119, %121, %cst_156 {dimension_numbers = #tpu.dot_dimension_numbers<[1], [0], [0], [1], [0, 0, 1, 1], [], []>} : vector<128x8xf32>, vector<8x16xf32>, vector<128x16xf32> -> vector<128x16xf32>
    %123 = arith.addf %117, %122 : vector<128x16xf32>
    %c0_157 = arith.constant 0 : index
    %c0_158 = arith.constant 0 : index
    %124 = vector.load %arg5[%c0_157, %c0_158] : memref<1x16xf32, #tpu.memory_space<vmem>>, vector<1x16xf32>
    %125 = vector.broadcast %124 : vector<1x16xf32> to vector<128x16xf32>
    %126 = arith.addf %123, %125 : vector<128x16xf32>
    %cst_159 = arith.constant 0.000000e+00 : f32
    %127 = vector.broadcast %cst_159 : f32 to vector<128x16xf32>
    %128 = arith.maximumf %126, %127 : vector<128x16xf32>
    %129 = vector.shape_cast %128 : vector<128x16xf32> to vector<2x4x2x8x16xf32>
    %130 = vector.extract_strided_slice %129 {offsets = [0, 0, 0, 0, 0], sizes = [2, 4, 1, 8, 16], strides = [1, 1, 1, 1, 1]} : vector<2x4x2x8x16xf32> to vector<2x4x1x8x16xf32>
    %131 = vector.shape_cast %130 : vector<2x4x1x8x16xf32> to vector<2x4x8x16xf32>
    %132 = vector.extract_strided_slice %129 {offsets = [0, 0, 1, 0, 0], sizes = [2, 4, 1, 8, 16], strides = [1, 1, 1, 1, 1]} : vector<2x4x2x8x16xf32> to vector<2x4x1x8x16xf32>
    %133 = vector.shape_cast %132 : vector<2x4x1x8x16xf32> to vector<2x4x8x16xf32>
    %134 = arith.maximumf %131, %133 : vector<2x4x8x16xf32>
    %c0_160 = arith.constant 0 : index
    %c0_161 = arith.constant 0 : index
    %c0_162 = arith.constant 0 : index
    %c0_163 = arith.constant 0 : index
    %135 = vector.load %arg13[%c0_160, %c0_161, %c0_162, %c0_163] : memref<2x4x8x16xf32, #tpu.memory_space<vmem>>, vector<2x4x8x16xf32>
    tpu.vector_store %arg13[%c0_160, %c0_161, %c0_162, %c0_163], %134 {strides = array<i32>} : memref<2x4x8x16xf32, #tpu.memory_space<vmem>>, vector<2x4x8x16xf32>,
    %c0_164 = arith.constant 0 : index
    %c0_165 = arith.constant 0 : index
    %c0_166 = arith.constant 0 : index
    %c0_167 = arith.constant 0 : index
    %136 = tpu.strided_load %arg13[%c0_164, %c0_165, %c0_166, %c0_167] {strides = array<i32: 1, 1, 2, 1>} : memref<2x4x8x16xf32, #tpu.memory_space<vmem>>, vector<2x4x4x16xf32>
    %c0_168 = arith.constant 0 : index
    %c0_169 = arith.constant 0 : index
    %c1_170 = arith.constant 1 : index
    %c0_171 = arith.constant 0 : index
    %137 = tpu.strided_load %arg13[%c0_168, %c0_169, %c1_170, %c0_171] {strides = array<i32: 1, 1, 2, 1>} : memref<2x4x8x16xf32, #tpu.memory_space<vmem>>, vector<2x4x4x16xf32>
    %138 = arith.maximumf %136, %137 : vector<2x4x4x16xf32>
    %c0_172 = arith.constant 0 : index
    %c0_173 = arith.constant 0 : index
    %c0_174 = arith.constant 0 : index
    %c0_175 = arith.constant 0 : index
    %139 = vector.load %arg14[%c0_172, %c0_173, %c0_174, %c0_175] : memref<2x4x4x16xf32, #tpu.memory_space<vmem>>, vector<2x4x4x16xf32>
    tpu.vector_store %arg14[%c0_172, %c0_173, %c0_174, %c0_175], %138 {strides = array<i32>} : memref<2x4x4x16xf32, #tpu.memory_space<vmem>>, vector<2x4x4x16xf32>,
    %c0_176 = arith.constant 0 : index
    %c0_177 = arith.constant 0 : index
    %c0_178 = arith.constant 0 : index
    %c0_179 = arith.constant 0 : index
    %140 = vector.load %arg14[%c0_176, %c0_177, %c0_178, %c0_179] : memref<2x4x4x16xf32, #tpu.memory_space<vmem>>, vector<2x1x1x16xf32>
    %141 = vector.shape_cast %140 : vector<2x1x1x16xf32> to vector<2x16xf32>
    %c0_180 = arith.constant 0 : index
    %c0_181 = arith.constant 0 : index
    %c0_182 = arith.constant 0 : index
    %142 = vector.load %arg6[%c0_180, %c0_181, %c0_182] : memref<16x16x32xf32, #tpu.memory_space<vmem>>, vector<1x16x32xf32>
    %143 = vector.shape_cast %142 : vector<1x16x32xf32> to vector<16x32xf32>
    %cst_183 = arith.constant dense<0.000000e+00> : vector<2x32xf32>
    %144 = tpu.matmul %141, %143, %cst_183 {dimension_numbers = #tpu.dot_dimension_numbers<[1], [0], [0], [1], [0, 0, 1, 1], [], []>} : vector<2x16xf32>, vector<16x32xf32>, vector<2x32xf32> -> vector<2x32xf32>
    %c0_184 = arith.constant 0 : index
    %c0_185 = arith.constant 0 : index
    %c1_186 = arith.constant 1 : index
    %c0_187 = arith.constant 0 : index
    %145 = vector.load %arg14[%c0_184, %c0_185, %c1_186, %c0_187] : memref<2x4x4x16xf32, #tpu.memory_space<vmem>>, vector<2x1x1x16xf32>
    %146 = vector.shape_cast %145 : vector<2x1x1x16xf32> to vector<2x16xf32>
    %c1_188 = arith.constant 1 : index
    %c0_189 = arith.constant 0 : index
    %c0_190 = arith.constant 0 : index
    %147 = vector.load %arg6[%c1_188, %c0_189, %c0_190] : memref<16x16x32xf32, #tpu.memory_space<vmem>>, vector<1x16x32xf32>
    %148 = vector.shape_cast %147 : vector<1x16x32xf32> to vector<16x32xf32>
    %cst_191 = arith.constant dense<0.000000e+00> : vector<2x32xf32>
    %149 = tpu.matmul %146, %148, %cst_191 {dimension_numbers = #tpu.dot_dimension_numbers<[1], [0], [0], [1], [0, 0, 1, 1], [], []>} : vector<2x16xf32>, vector<16x32xf32>, vector<2x32xf32> -> vector<2x32xf32>
    %150 = arith.addf %144, %149 : vector<2x32xf32>
    %c0_192 = arith.constant 0 : index
    %c0_193 = arith.constant 0 : index
    %c2_194 = arith.constant 2 : index
    %c0_195 = arith.constant 0 : index
    %151 = vector.load %arg14[%c0_192, %c0_193, %c2_194, %c0_195] : memref<2x4x4x16xf32, #tpu.memory_space<vmem>>, vector<2x1x1x16xf32>
    %152 = vector.shape_cast %151 : vector<2x1x1x16xf32> to vector<2x16xf32>
    %c2_196 = arith.constant 2 : index
    %c0_197 = arith.constant 0 : index
    %c0_198 = arith.constant 0 : index
    %153 = vector.load %arg6[%c2_196, %c0_197, %c0_198] : memref<16x16x32xf32, #tpu.memory_space<vmem>>, vector<1x16x32xf32>
    %154 = vector.shape_cast %153 : vector<1x16x32xf32> to vector<16x32xf32>
    %cst_199 = arith.constant dense<0.000000e+00> : vector<2x32xf32>
    %155 = tpu.matmul %152, %154, %cst_199 {dimension_numbers = #tpu.dot_dimension_numbers<[1], [0], [0], [1], [0, 0, 1, 1], [], []>} : vector<2x16xf32>, vector<16x32xf32>, vector<2x32xf32> -> vector<2x32xf32>
    %156 = arith.addf %150, %155 : vector<2x32xf32>
    %c0_200 = arith.constant 0 : index
    %c0_201 = arith.constant 0 : index
    %c3_202 = arith.constant 3 : index
    %c0_203 = arith.constant 0 : index
    %157 = vector.load %arg14[%c0_200, %c0_201, %c3_202, %c0_203] : memref<2x4x4x16xf32, #tpu.memory_space<vmem>>, vector<2x1x1x16xf32>
    %158 = vector.shape_cast %157 : vector<2x1x1x16xf32> to vector<2x16xf32>
    %c3_204 = arith.constant 3 : index
    %c0_205 = arith.constant 0 : index
    %c0_206 = arith.constant 0 : index
    %159 = vector.load %arg6[%c3_204, %c0_205, %c0_206] : memref<16x16x32xf32, #tpu.memory_space<vmem>>, vector<1x16x32xf32>
    %160 = vector.shape_cast %159 : vector<1x16x32xf32> to vector<16x32xf32>
    %cst_207 = arith.constant dense<0.000000e+00> : vector<2x32xf32>
    %161 = tpu.matmul %158, %160, %cst_207 {dimension_numbers = #tpu.dot_dimension_numbers<[1], [0], [0], [1], [0, 0, 1, 1], [], []>} : vector<2x16xf32>, vector<16x32xf32>, vector<2x32xf32> -> vector<2x32xf32>
    %162 = arith.addf %156, %161 : vector<2x32xf32>
    %c0_208 = arith.constant 0 : index
    %c1_209 = arith.constant 1 : index
    %c0_210 = arith.constant 0 : index
    %c0_211 = arith.constant 0 : index
    %163 = vector.load %arg14[%c0_208, %c1_209, %c0_210, %c0_211] : memref<2x4x4x16xf32, #tpu.memory_space<vmem>>, vector<2x1x1x16xf32>
    %164 = vector.shape_cast %163 : vector<2x1x1x16xf32> to vector<2x16xf32>
    %c4_212 = arith.constant 4 : index
    %c0_213 = arith.constant 0 : index
    %c0_214 = arith.constant 0 : index
    %165 = vector.load %arg6[%c4_212, %c0_213, %c0_214] : memref<16x16x32xf32, #tpu.memory_space<vmem>>, vector<1x16x32xf32>
    %166 = vector.shape_cast %165 : vector<1x16x32xf32> to vector<16x32xf32>
    %cst_215 = arith.constant dense<0.000000e+00> : vector<2x32xf32>
    %167 = tpu.matmul %164, %166, %cst_215 {dimension_numbers = #tpu.dot_dimension_numbers<[1], [0], [0], [1], [0, 0, 1, 1], [], []>} : vector<2x16xf32>, vector<16x32xf32>, vector<2x32xf32> -> vector<2x32xf32>
    %168 = arith.addf %162, %167 : vector<2x32xf32>
    %c0_216 = arith.constant 0 : index
    %c1_217 = arith.constant 1 : index
    %c1_218 = arith.constant 1 : index
    %c0_219 = arith.constant 0 : index
    %169 = vector.load %arg14[%c0_216, %c1_217, %c1_218, %c0_219] : memref<2x4x4x16xf32, #tpu.memory_space<vmem>>, vector<2x1x1x16xf32>
    %170 = vector.shape_cast %169 : vector<2x1x1x16xf32> to vector<2x16xf32>
    %c5_220 = arith.constant 5 : index
    %c0_221 = arith.constant 0 : index
    %c0_222 = arith.constant 0 : index
    %171 = vector.load %arg6[%c5_220, %c0_221, %c0_222] : memref<16x16x32xf32, #tpu.memory_space<vmem>>, vector<1x16x32xf32>
    %172 = vector.shape_cast %171 : vector<1x16x32xf32> to vector<16x32xf32>
    %cst_223 = arith.constant dense<0.000000e+00> : vector<2x32xf32>
    %173 = tpu.matmul %170, %172, %cst_223 {dimension_numbers = #tpu.dot_dimension_numbers<[1], [0], [0], [1], [0, 0, 1, 1], [], []>} : vector<2x16xf32>, vector<16x32xf32>, vector<2x32xf32> -> vector<2x32xf32>
    %174 = arith.addf %168, %173 : vector<2x32xf32>
    %c0_224 = arith.constant 0 : index
    %c1_225 = arith.constant 1 : index
    %c2_226 = arith.constant 2 : index
    %c0_227 = arith.constant 0 : index
    %175 = vector.load %arg14[%c0_224, %c1_225, %c2_226, %c0_227] : memref<2x4x4x16xf32, #tpu.memory_space<vmem>>, vector<2x1x1x16xf32>
    %176 = vector.shape_cast %175 : vector<2x1x1x16xf32> to vector<2x16xf32>
    %c6_228 = arith.constant 6 : index
    %c0_229 = arith.constant 0 : index
    %c0_230 = arith.constant 0 : index
    %177 = vector.load %arg6[%c6_228, %c0_229, %c0_230] : memref<16x16x32xf32, #tpu.memory_space<vmem>>, vector<1x16x32xf32>
    %178 = vector.shape_cast %177 : vector<1x16x32xf32> to vector<16x32xf32>
    %cst_231 = arith.constant dense<0.000000e+00> : vector<2x32xf32>
    %179 = tpu.matmul %176, %178, %cst_231 {dimension_numbers = #tpu.dot_dimension_numbers<[1], [0], [0], [1], [0, 0, 1, 1], [], []>} : vector<2x16xf32>, vector<16x32xf32>, vector<2x32xf32> -> vector<2x32xf32>
    %180 = arith.addf %174, %179 : vector<2x32xf32>
    %c0_232 = arith.constant 0 : index
    %c1_233 = arith.constant 1 : index
    %c3_234 = arith.constant 3 : index
    %c0_235 = arith.constant 0 : index
    %181 = vector.load %arg14[%c0_232, %c1_233, %c3_234, %c0_235] : memref<2x4x4x16xf32, #tpu.memory_space<vmem>>, vector<2x1x1x16xf32>
    %182 = vector.shape_cast %181 : vector<2x1x1x16xf32> to vector<2x16xf32>
    %c7_236 = arith.constant 7 : index
    %c0_237 = arith.constant 0 : index
    %c0_238 = arith.constant 0 : index
    %183 = vector.load %arg6[%c7_236, %c0_237, %c0_238] : memref<16x16x32xf32, #tpu.memory_space<vmem>>, vector<1x16x32xf32>
    %184 = vector.shape_cast %183 : vector<1x16x32xf32> to vector<16x32xf32>
    %cst_239 = arith.constant dense<0.000000e+00> : vector<2x32xf32>
    %185 = tpu.matmul %182, %184, %cst_239 {dimension_numbers = #tpu.dot_dimension_numbers<[1], [0], [0], [1], [0, 0, 1, 1], [], []>} : vector<2x16xf32>, vector<16x32xf32>, vector<2x32xf32> -> vector<2x32xf32>
    %186 = arith.addf %180, %185 : vector<2x32xf32>
    %c0_240 = arith.constant 0 : index
    %c2_241 = arith.constant 2 : index
    %c0_242 = arith.constant 0 : index
    %c0_243 = arith.constant 0 : index
    %187 = vector.load %arg14[%c0_240, %c2_241, %c0_242, %c0_243] : memref<2x4x4x16xf32, #tpu.memory_space<vmem>>, vector<2x1x1x16xf32>
    %188 = vector.shape_cast %187 : vector<2x1x1x16xf32> to vector<2x16xf32>
    %c8_244 = arith.constant 8 : index
    %c0_245 = arith.constant 0 : index
    %c0_246 = arith.constant 0 : index
    %189 = vector.load %arg6[%c8_244, %c0_245, %c0_246] : memref<16x16x32xf32, #tpu.memory_space<vmem>>, vector<1x16x32xf32>
    %190 = vector.shape_cast %189 : vector<1x16x32xf32> to vector<16x32xf32>
    %cst_247 = arith.constant dense<0.000000e+00> : vector<2x32xf32>
    %191 = tpu.matmul %188, %190, %cst_247 {dimension_numbers = #tpu.dot_dimension_numbers<[1], [0], [0], [1], [0, 0, 1, 1], [], []>} : vector<2x16xf32>, vector<16x32xf32>, vector<2x32xf32> -> vector<2x32xf32>
    %192 = arith.addf %186, %191 : vector<2x32xf32>
    %c0_248 = arith.constant 0 : index
    %c2_249 = arith.constant 2 : index
    %c1_250 = arith.constant 1 : index
    %c0_251 = arith.constant 0 : index
    %193 = vector.load %arg14[%c0_248, %c2_249, %c1_250, %c0_251] : memref<2x4x4x16xf32, #tpu.memory_space<vmem>>, vector<2x1x1x16xf32>
    %194 = vector.shape_cast %193 : vector<2x1x1x16xf32> to vector<2x16xf32>
    %c9_252 = arith.constant 9 : index
    %c0_253 = arith.constant 0 : index
    %c0_254 = arith.constant 0 : index
    %195 = vector.load %arg6[%c9_252, %c0_253, %c0_254] : memref<16x16x32xf32, #tpu.memory_space<vmem>>, vector<1x16x32xf32>
    %196 = vector.shape_cast %195 : vector<1x16x32xf32> to vector<16x32xf32>
    %cst_255 = arith.constant dense<0.000000e+00> : vector<2x32xf32>
    %197 = tpu.matmul %194, %196, %cst_255 {dimension_numbers = #tpu.dot_dimension_numbers<[1], [0], [0], [1], [0, 0, 1, 1], [], []>} : vector<2x16xf32>, vector<16x32xf32>, vector<2x32xf32> -> vector<2x32xf32>
    %198 = arith.addf %192, %197 : vector<2x32xf32>
    %c0_256 = arith.constant 0 : index
    %c2_257 = arith.constant 2 : index
    %c2_258 = arith.constant 2 : index
    %c0_259 = arith.constant 0 : index
    %199 = vector.load %arg14[%c0_256, %c2_257, %c2_258, %c0_259] : memref<2x4x4x16xf32, #tpu.memory_space<vmem>>, vector<2x1x1x16xf32>
    %200 = vector.shape_cast %199 : vector<2x1x1x16xf32> to vector<2x16xf32>
    %c10 = arith.constant 10 : index
    %c0_260 = arith.constant 0 : index
    %c0_261 = arith.constant 0 : index
    %201 = vector.load %arg6[%c10, %c0_260, %c0_261] : memref<16x16x32xf32, #tpu.memory_space<vmem>>, vector<1x16x32xf32>
    %202 = vector.shape_cast %201 : vector<1x16x32xf32> to vector<16x32xf32>
    %cst_262 = arith.constant dense<0.000000e+00> : vector<2x32xf32>
    %203 = tpu.matmul %200, %202, %cst_262 {dimension_numbers = #tpu.dot_dimension_numbers<[1], [0], [0], [1], [0, 0, 1, 1], [], []>} : vector<2x16xf32>, vector<16x32xf32>, vector<2x32xf32> -> vector<2x32xf32>
    %204 = arith.addf %198, %203 : vector<2x32xf32>
    %c0_263 = arith.constant 0 : index
    %c2_264 = arith.constant 2 : index
    %c3_265 = arith.constant 3 : index
    %c0_266 = arith.constant 0 : index
    %205 = vector.load %arg14[%c0_263, %c2_264, %c3_265, %c0_266] : memref<2x4x4x16xf32, #tpu.memory_space<vmem>>, vector<2x1x1x16xf32>
    %206 = vector.shape_cast %205 : vector<2x1x1x16xf32> to vector<2x16xf32>
    %c11 = arith.constant 11 : index
    %c0_267 = arith.constant 0 : index
    %c0_268 = arith.constant 0 : index
    %207 = vector.load %arg6[%c11, %c0_267, %c0_268] : memref<16x16x32xf32, #tpu.memory_space<vmem>>, vector<1x16x32xf32>
    %208 = vector.shape_cast %207 : vector<1x16x32xf32> to vector<16x32xf32>
    %cst_269 = arith.constant dense<0.000000e+00> : vector<2x32xf32>
    %209 = tpu.matmul %206, %208, %cst_269 {dimension_numbers = #tpu.dot_dimension_numbers<[1], [0], [0], [1], [0, 0, 1, 1], [], []>} : vector<2x16xf32>, vector<16x32xf32>, vector<2x32xf32> -> vector<2x32xf32>
    %210 = arith.addf %204, %209 : vector<2x32xf32>
    %c0_270 = arith.constant 0 : index
    %c3_271 = arith.constant 3 : index
    %c0_272 = arith.constant 0 : index
    %c0_273 = arith.constant 0 : index
    %211 = vector.load %arg14[%c0_270, %c3_271, %c0_272, %c0_273] : memref<2x4x4x16xf32, #tpu.memory_space<vmem>>, vector<2x1x1x16xf32>
    %212 = vector.shape_cast %211 : vector<2x1x1x16xf32> to vector<2x16xf32>
    %c12 = arith.constant 12 : index
    %c0_274 = arith.constant 0 : index
    %c0_275 = arith.constant 0 : index
    %213 = vector.load %arg6[%c12, %c0_274, %c0_275] : memref<16x16x32xf32, #tpu.memory_space<vmem>>, vector<1x16x32xf32>
    %214 = vector.shape_cast %213 : vector<1x16x32xf32> to vector<16x32xf32>
    %cst_276 = arith.constant dense<0.000000e+00> : vector<2x32xf32>
    %215 = tpu.matmul %212, %214, %cst_276 {dimension_numbers = #tpu.dot_dimension_numbers<[1], [0], [0], [1], [0, 0, 1, 1], [], []>} : vector<2x16xf32>, vector<16x32xf32>, vector<2x32xf32> -> vector<2x32xf32>
    %216 = arith.addf %210, %215 : vector<2x32xf32>
    %c0_277 = arith.constant 0 : index
    %c3_278 = arith.constant 3 : index
    %c1_279 = arith.constant 1 : index
    %c0_280 = arith.constant 0 : index
    %217 = vector.load %arg14[%c0_277, %c3_278, %c1_279, %c0_280] : memref<2x4x4x16xf32, #tpu.memory_space<vmem>>, vector<2x1x1x16xf32>
    %218 = vector.shape_cast %217 : vector<2x1x1x16xf32> to vector<2x16xf32>
    %c13 = arith.constant 13 : index
    %c0_281 = arith.constant 0 : index
    %c0_282 = arith.constant 0 : index
    %219 = vector.load %arg6[%c13, %c0_281, %c0_282] : memref<16x16x32xf32, #tpu.memory_space<vmem>>, vector<1x16x32xf32>
    %220 = vector.shape_cast %219 : vector<1x16x32xf32> to vector<16x32xf32>
    %cst_283 = arith.constant dense<0.000000e+00> : vector<2x32xf32>
    %221 = tpu.matmul %218, %220, %cst_283 {dimension_numbers = #tpu.dot_dimension_numbers<[1], [0], [0], [1], [0, 0, 1, 1], [], []>} : vector<2x16xf32>, vector<16x32xf32>, vector<2x32xf32> -> vector<2x32xf32>
    %222 = arith.addf %216, %221 : vector<2x32xf32>
    %c0_284 = arith.constant 0 : index
    %c3_285 = arith.constant 3 : index
    %c2_286 = arith.constant 2 : index
    %c0_287 = arith.constant 0 : index
    %223 = vector.load %arg14[%c0_284, %c3_285, %c2_286, %c0_287] : memref<2x4x4x16xf32, #tpu.memory_space<vmem>>, vector<2x1x1x16xf32>
    %224 = vector.shape_cast %223 : vector<2x1x1x16xf32> to vector<2x16xf32>
    %c14 = arith.constant 14 : index
    %c0_288 = arith.constant 0 : index
    %c0_289 = arith.constant 0 : index
    %225 = vector.load %arg6[%c14, %c0_288, %c0_289] : memref<16x16x32xf32, #tpu.memory_space<vmem>>, vector<1x16x32xf32>
    %226 = vector.shape_cast %225 : vector<1x16x32xf32> to vector<16x32xf32>
    %cst_290 = arith.constant dense<0.000000e+00> : vector<2x32xf32>
    %227 = tpu.matmul %224, %226, %cst_290 {dimension_numbers = #tpu.dot_dimension_numbers<[1], [0], [0], [1], [0, 0, 1, 1], [], []>} : vector<2x16xf32>, vector<16x32xf32>, vector<2x32xf32> -> vector<2x32xf32>
    %228 = arith.addf %222, %227 : vector<2x32xf32>
    %c0_291 = arith.constant 0 : index
    %c3_292 = arith.constant 3 : index
    %c3_293 = arith.constant 3 : index
    %c0_294 = arith.constant 0 : index
    %229 = vector.load %arg14[%c0_291, %c3_292, %c3_293, %c0_294] : memref<2x4x4x16xf32, #tpu.memory_space<vmem>>, vector<2x1x1x16xf32>
    %230 = vector.shape_cast %229 : vector<2x1x1x16xf32> to vector<2x16xf32>
    %c15 = arith.constant 15 : index
    %c0_295 = arith.constant 0 : index
    %c0_296 = arith.constant 0 : index
    %231 = vector.load %arg6[%c15, %c0_295, %c0_296] : memref<16x16x32xf32, #tpu.memory_space<vmem>>, vector<1x16x32xf32>
    %232 = vector.shape_cast %231 : vector<1x16x32xf32> to vector<16x32xf32>
    %cst_297 = arith.constant dense<0.000000e+00> : vector<2x32xf32>
    %233 = tpu.matmul %230, %232, %cst_297 {dimension_numbers = #tpu.dot_dimension_numbers<[1], [0], [0], [1], [0, 0, 1, 1], [], []>} : vector<2x16xf32>, vector<16x32xf32>, vector<2x32xf32> -> vector<2x32xf32>
    %234 = arith.addf %228, %233 : vector<2x32xf32>
    %c0_298 = arith.constant 0 : index
    %c0_299 = arith.constant 0 : index
    %235 = vector.load %arg7[%c0_298, %c0_299] : memref<1x32xf32, #tpu.memory_space<vmem>>, vector<1x32xf32>
    %236 = vector.broadcast %235 : vector<1x32xf32> to vector<2x32xf32>
    %237 = arith.addf %234, %236 : vector<2x32xf32>
    %cst_300 = arith.constant 0.000000e+00 : f32
    %238 = vector.broadcast %cst_300 : f32 to vector<2x32xf32>
    %239 = arith.maximumf %237, %238 : vector<2x32xf32>
    %c0_301 = arith.constant 0 : index
    %c0_302 = arith.constant 0 : index
    %240 = vector.load %arg8[%c0_301, %c0_302] : memref<32x10xf32, #tpu.memory_space<vmem>>, vector<32x10xf32>
    %cst_303 = arith.constant dense<0.000000e+00> : vector<2x10xf32>
    %241 = tpu.matmul %239, %240, %cst_303 {dimension_numbers = #tpu.dot_dimension_numbers<[1], [0], [0], [1], [0, 0, 1, 1], [], []>} : vector<2x32xf32>, vector<32x10xf32>, vector<2x10xf32> -> vector<2x10xf32>
    %c0_304 = arith.constant 0 : index
    %c0_305 = arith.constant 0 : index
    %242 = vector.load %arg9[%c0_304, %c0_305] : memref<1x10xf32, #tpu.memory_space<vmem>>, vector<1x10xf32>
    %243 = vector.broadcast %242 : vector<1x10xf32> to vector<2x10xf32>
    %244 = arith.addf %241, %243 : vector<2x10xf32>
    %c0_306 = arith.constant 0 : index
    %c0_307 = arith.constant 0 : index
    %245 = vector.load %arg10[%c0_306, %c0_307] : memref<2x10xf32, #tpu.memory_space<vmem>>, vector<2x10xf32>
    tpu.vector_store %arg10[%c0_306, %c0_307], %244 {strides = array<i32>} : memref<2x10xf32, #tpu.memory_space<vmem>>, vector<2x10xf32>,
    return
  }
  func.func @transform_0(%arg0: i32) -> (i32, i32, i32, i32) {
    %c0_i32 = arith.constant 0 : i32
    %c0_i32_0 = arith.constant 0 : i32
    %c0_i32_1 = arith.constant 0 : i32
    %c0_i32_2 = arith.constant 0 : i32
    %c0_i32_3 = arith.constant 0 : i32
    return %c0_i32, %c0_i32_0, %c0_i32_1, %c0_i32_2 : i32, i32, i32, i32
  }
  func.func @transform_1(%arg0: i32) -> (i32, i32, i32) {
    %c0_i32 = arith.constant 0 : i32
    %c0_i32_0 = arith.constant 0 : i32
    %c0_i32_1 = arith.constant 0 : i32
    %c0_i32_2 = arith.constant 0 : i32
    return %c0_i32, %c0_i32_0, %c0_i32_1 : i32, i32, i32
  }
  func.func @transform_2(%arg0: i32) -> (i32, i32) {
    %c0_i32 = arith.constant 0 : i32
    %c0_i32_0 = arith.constant 0 : i32
    %c0_i32_1 = arith.constant 0 : i32
    return %c0_i32, %c0_i32_0 : i32, i32
  }
  func.func @transform_3(%arg0: i32) -> (i32, i32, i32) {
    %c0_i32 = arith.constant 0 : i32
    %c0_i32_0 = arith.constant 0 : i32
    %c0_i32_1 = arith.constant 0 : i32
    %c0_i32_2 = arith.constant 0 : i32
    return %c0_i32, %c0_i32_0, %c0_i32_1 : i32, i32, i32
  }
  func.func @transform_4(%arg0: i32) -> (i32, i32) {
    %c0_i32 = arith.constant 0 : i32
    %c0_i32_0 = arith.constant 0 : i32
    %c0_i32_1 = arith.constant 0 : i32
    return %c0_i32, %c0_i32_0 : i32, i32
  }
  func.func @transform_5(%arg0: i32) -> (i32, i32, i32) {
    %c0_i32 = arith.constant 0 : i32
    %c0_i32_0 = arith.constant 0 : i32
    %c0_i32_1 = arith.constant 0 : i32
    %c0_i32_2 = arith.constant 0 : i32
    return %c0_i32, %c0_i32_0, %c0_i32_1 : i32, i32, i32
  }
  func.func @transform_6(%arg0: i32) -> (i32, i32) {
    %c0_i32 = arith.constant 0 : i32
    %c0_i32_0 = arith.constant 0 : i32
    %c0_i32_1 = arith.constant 0 : i32
    return %c0_i32, %c0_i32_0 : i32, i32
  }
  func.func @transform_7(%arg0: i32) -> (i32, i32) {
    %c0_i32 = arith.constant 0 : i32
    %c0_i32_0 = arith.constant 0 : i32
    %c0_i32_1 = arith.constant 0 : i32
    return %c0_i32, %c0_i32_0 : i32, i32
  }
  func.func @transform_8(%arg0: i32) -> (i32, i32) {
    %c0_i32 = arith.constant 0 : i32
    %c0_i32_0 = arith.constant 0 : i32
    %c0_i32_1 = arith.constant 0 : i32
    return %c0_i32, %c0_i32_0 : i32, i32
  }
  func.func @transform_9(%arg0: i32) -> (i32, i32) {
    %c0_i32 = arith.constant 0 : i32
    %c0_i32_0 = arith.constant 0 : i32
    %c0_i32_1 = arith.constant 0 : i32
    return %c0_i32, %c0_i32_0 : i32, i32
  }
}

</mosaic_0001>

<llo_original>
// kernel: model_forward.1
$region0: #{model_forward.1}
  #allocation0 [shape = 'u32[]', space=smem, size = 0x4, offset = 0x4, fixed_abs, tag = 'smem constant byte address 0x4 - core index']
  #allocation1 [shape = 'u32[144,128]{1,0:T(1,128)}', space=vmem, size = 0x12000, scoped, tag = 'internal scratch']
  #allocation2 [shape = 'f32[2,8,16,8]{3,2,1,0:T(8,128)}', space=vmem, size = 0x20000, scoped, tag = 'scratch operand']
  #allocation3 [shape = 'f32[2,10,24,8]{3,2,1,0:T(8,128)}', space=vmem, size = 0x3c000, scoped, tag = 'scratch operand']
  #allocation4 [shape = 'f32[2,4,8,16]{3,2,1,0:T(8,128)}', space=vmem, size = 0x8000, scoped, tag = 'scratch operand']
  #allocation5 [shape = 'f32[2,4,4,16]{3,2,1,0:T(4,128)}', space=vmem, size = 0x4000, scoped, tag = 'scratch operand']
  %s0 = inlined_call_operand.vmem [shape: f32[2,18,18,4], index: 0, kind: input, shape index: {}]
  %s1 = inlined_call_operand.vmem [shape: f32[9,4,8], index: 1, kind: input, shape index: {}]
  %s2 = inlined_call_operand.vmem [shape: f32[1,8], index: 2, kind: input, shape index: {}]
  %s3 = inlined_call_operand.vmem [shape: f32[9,8,16], index: 3, kind: input, shape index: {}]
  %s4 = inlined_call_operand.vmem [shape: f32[1,16], index: 4, kind: input, shape index: {}]
  %s5 = inlined_call_operand.vmem [shape: f32[16,16,32], index: 5, kind: input, shape index: {}]
  %s6 = inlined_call_operand.vmem [shape: f32[1,32], index: 6, kind: input, shape index: {}]
  %s7 = inlined_call_operand.vmem [shape: f32[32,10], index: 7, kind: input, shape index: {}]
  %s8 = inlined_call_operand.vmem [shape: f32[1,10], index: 8, kind: input, shape index: {}]
  %s9 = inlined_call_operand.hbm [shape: f32[2,10], index: 9, kind: output, shape index: {}]
  %s10 = sld [smem:[#allocation0]]
  $region46: #{model_forward.1} parent=0
    _
  %s12 = ssub.s32 1, %s10
  %s13 = scalar_select 0, %s12, %s10
  $region1: #{model_forward.1} parent=0
    #allocation6 [shape = 'u8[1024]{0}', space=vmem, size = 0x400, scoped, tag = 'output window, operand 0, single buffered']
    #allocation7 [shape = 's32[1]{0}', space=sflag, size = 0x4, scoped, tag = 'scoped memory for model_forward.1']
    %14 = vsyncpa [#allocation7], 0
    // Predicated region
    $region2: #{model_forward.1} parent=1 // pred_check
      _
    $region3: #{model_forward.1} parent=1 // pred_check_branch
      %16 = sbr.rel (0) target = $region5
    $region4: #{model_forward.1} parent=1 // pred_region
      _
    $region5: #{model_forward.1} parent=1 // pred_fallthru
      _
    // Predicated region
    $region6: #{model_forward.1} parent=1 // pred_check
      _
    $region7: #{model_forward.1} parent=1 // pred_check_branch
      %18 = sbr.rel (0) target = $region9
    $region8: #{model_forward.1} parent=1 // pred_region
      _
    $region9: #{model_forward.1} parent=1 // pred_fallthru
      _
    // Predicated region
    $region10: #{model_forward.1} parent=1 // pred_check
      _
    $region11: #{model_forward.1} parent=1 // pred_check_branch
      %20 = sbr.rel (0) target = $region13
    $region12: #{model_forward.1} parent=1 // pred_region
      _
    $region13: #{model_forward.1} parent=1 // pred_fallthru
      _
    // Predicated region
    $region14: #{model_forward.1} parent=1 // pred_check
      _
    $region15: #{model_forward.1} parent=1 // pred_check_branch
      %22 = sbr.rel (0) target = $region17
    $region16: #{model_forward.1} parent=1 // pred_region
      _
    $region17: #{model_forward.1} parent=1 // pred_fallthru
      _
    // Predicated region
    $region18: #{model_forward.1} parent=1 // pred_check
      _
    $region19: #{model_forward.1} parent=1 // pred_check_branch
      %24 = sbr.rel (0) target = $region21
    $region20: #{model_forward.1} parent=1 // pred_region
      _
    $region21: #{model_forward.1} parent=1 // pred_fallthru
      _
    // Predicated region
    $region22: #{model_forward.1} parent=1 // pred_check
      _
    $region23: #{model_forward.1} parent=1 // pred_check_branch
      %26 = sbr.rel (0) target = $region25
    $region24: #{model_forward.1} parent=1 // pred_region
      _
    $region25: #{model_forward.1} parent=1 // pred_fallthru
      _
    // Predicated region
    $region26: #{model_forward.1} parent=1 // pred_check
      _
    $region27: #{model_forward.1} parent=1 // pred_check_branch
      %28 = sbr.rel (0) target = $region29
    $region28: #{model_forward.1} parent=1 // pred_region
      _
    $region29: #{model_forward.1} parent=1 // pred_fallthru
      _
    // Predicated region
    $region30: #{model_forward.1} parent=1 // pred_check
      _
    $region31: #{model_forward.1} parent=1 // pred_check_branch
      %30 = sbr.rel (0) target = $region33
    $region32: #{model_forward.1} parent=1 // pred_region
      _
    $region33: #{model_forward.1} parent=1 // pred_fallthru
      _
    // Predicated region
    $region34: #{model_forward.1} parent=1 // pred_check
      _
    $region35: #{model_forward.1} parent=1 // pred_check_branch
      %32 = sbr.rel (0) target = $region37
    $region36: #{model_forward.1} parent=1 // pred_region
      _
    $region37: #{model_forward.1} parent=1 // pred_fallthru
      _
    %v33 = vld [vmem:[%s0] sm:$0xff]
    %v34 = vld [vmem:[%s0 + $0x8] sm:$0xff]
    %v35 = vld [vmem:[%s0 + $0x18] sm:$0xff]
    %v36 = vld [vmem:[%s0 + $0x20] sm:$0xff]
    %v37 = vld [vmem:[%s0 + $0x30] sm:$0xff]
    %v38 = vld [vmem:[%s0 + $0x38] sm:$0xff]
    %v39 = vld [vmem:[%s0 + $0x48] sm:$0xff]
    %v40 = vld [vmem:[%s0 + $0x50] sm:$0xff]
    %v41 = vld [vmem:[%s0 + $0x60] sm:$0xff]
    %v42 = vld [vmem:[%s0 + $0x68] sm:$0xff]
    %v43 = vld [vmem:[%s0 + $0x78] sm:$0xff]
    %v44 = vld [vmem:[%s0 + $0x80] sm:$0xff]
    %v45 = vld [vmem:[%s0 + $0x90] sm:$0xff]
    %v46 = vld [vmem:[%s0 + $0x98] sm:$0xff]
    %v47 = vld [vmem:[%s0 + $0xa8] sm:$0xff]
    %v48 = vld [vmem:[%s0 + $0xb0] sm:$0xff]
    %v49 = vld [vmem:[%s0 + $0xc0] sm:$0xff]
    %v50 = vld [vmem:[%s0 + $0xc8] sm:$0xff]
    %v51 = vld [vmem:[%s0 + $0xd8] sm:$0xff]
    %v52 = vld [vmem:[%s0 + $0xe0] sm:$0xff]
    %v53 = vld [vmem:[%s0 + $0xf0] sm:$0xff]
    %v54 = vld [vmem:[%s0 + $0xf8] sm:$0xff]
    %v55 = vld [vmem:[%s0 + $0x108] sm:$0xff]
    %v56 = vld [vmem:[%s0 + $0x110] sm:$0xff]
    %v57 = vld [vmem:[%s0 + $0x120] sm:$0xff]
    %v58 = vld [vmem:[%s0 + $0x128] sm:$0xff]
    %v59 = vld [vmem:[%s0 + $0x138] sm:$0xff]
    %v60 = vld [vmem:[%s0 + $0x140] sm:$0xff]
    %v61 = vld [vmem:[%s0 + $0x150] sm:$0xff]
    %v62 = vld [vmem:[%s0 + $0x158] sm:$0xff]
    %v63 = vld [vmem:[%s0 + $0x168] sm:$0xff]
    %v64 = vld [vmem:[%s0 + $0x170] sm:$0xff]
    %v65 = vld [vmem:[%s0 + $0x1b0] sm:$0xff]
    %v66 = vld [vmem:[%s0 + $0x1b8] sm:$0xff]
    %v67 = vld [vmem:[%s0 + $0x1c8] sm:$0xff]
    %v68 = vld [vmem:[%s0 + $0x1d0] sm:$0xff]
    %v69 = vld [vmem:[%s0 + $0x1e0] sm:$0xff]
    %v70 = vld [vmem:[%s0 + $0x1e8] sm:$0xff]
    %v71 = vld [vmem:[%s0 + $0x1f8] sm:$0xff]
    %v72 = vld [vmem:[%s0 + $0x200] sm:$0xff]
    %v73 = vld [vmem:[%s0 + $0x210] sm:$0xff]
    %v74 = vld [vmem:[%s0 + $0x218] sm:$0xff]
    %v75 = vld [vmem:[%s0 + $0x228] sm:$0xff]
    %v76 = vld [vmem:[%s0 + $0x230] sm:$0xff]
    %v77 = vld [vmem:[%s0 + $0x240] sm:$0xff]
    %v78 = vld [vmem:[%s0 + $0x248] sm:$0xff]
    %v79 = vld [vmem:[%s0 + $0x258] sm:$0xff]
    %v80 = vld [vmem:[%s0 + $0x260] sm:$0xff]
    %v81 = vld [vmem:[%s0 + $0x270] sm:$0xff]
    %v82 = vld [vmem:[%s0 + $0x278] sm:$0xff]
    %v83 = vld [vmem:[%s0 + $0x288] sm:$0xff]
    %v84 = vld [vmem:[%s0 + $0x290] sm:$0xff]
    %v85 = vld [vmem:[%s0 + $0x2a0] sm:$0xff]
    %v86 = vld [vmem:[%s0 + $0x2a8] sm:$0xff]
    %v87 = vld [vmem:[%s0 + $0x2b8] sm:$0xff]
    %v88 = vld [vmem:[%s0 + $0x2c0] sm:$0xff]
    %v89 = vld [vmem:[%s0 + $0x2d0] sm:$0xff]
    %v90 = vld [vmem:[%s0 + $0x2d8] sm:$0xff]
    %v91 = vld [vmem:[%s0 + $0x2e8] sm:$0xff]
    %v92 = vld [vmem:[%s0 + $0x2f0] sm:$0xff]
    %v93 = vld [vmem:[%s0 + $0x300] sm:$0xff]
    %v94 = vld [vmem:[%s0 + $0x308] sm:$0xff]
    %v95 = vld [vmem:[%s0 + $0x318] sm:$0xff]
    %v96 = vld [vmem:[%s0 + $0x320] sm:$0xff]
    %v97 = vld [vmem:[%s1] sm:$0xf]
    %v98 = vld [vmem:[%s0 + $0x1] sm:$0xff]
    %v99 = vld [vmem:[%s0 + $0x9] sm:$0xff]
    %v100 = vld [vmem:[%s0 + $0x19] sm:$0xff]
    %v101 = vld [vmem:[%s0 + $0x21] sm:$0xff]
    %v102 = vld [vmem:[%s0 + $0x31] sm:$0xff]
    %v103 = vld [vmem:[%s0 + $0x39] sm:$0xff]
    %v104 = vld [vmem:[%s0 + $0x49] sm:$0xff]
    %v105 = vld [vmem:[%s0 + $0x51] sm:$0xff]
    %v106 = vld [vmem:[%s0 + $0x61] sm:$0xff]
    %v107 = vld [vmem:[%s0 + $0x69] sm:$0xff]
    %v108 = vld [vmem:[%s0 + $0x79] sm:$0xff]
    %v109 = vld [vmem:[%s0 + $0x81] sm:$0xff]
    %v110 = vld [vmem:[%s0 + $0x91] sm:$0xff]
    %v111 = vld [vmem:[%s0 + $0x99] sm:$0xff]
    %v112 = vld [vmem:[%s0 + $0xa9] sm:$0xff]
    %v113 = vld [vmem:[%s0 + $0xb1] sm:$0xff]
    %v114 = vld [vmem:[%s0 + $0xc1] sm:$0xff]
    %v115 = vld [vmem:[%s0 + $0xc9] sm:$0xff]
    %v116 = vld [vmem:[%s0 + $0xd9] sm:$0xff]
    %v117 = vld [vmem:[%s0 + $0xe1] sm:$0xff]
    %v118 = vld [vmem:[%s0 + $0xf1] sm:$0xff]
    %v119 = vld [vmem:[%s0 + $0xf9] sm:$0xff]
    %v120 = vld [vmem:[%s0 + $0x109] sm:$0xff]
    %v121 = vld [vmem:[%s0 + $0x111] sm:$0xff]
    %v122 = vld [vmem:[%s0 + $0x121] sm:$0xff]
    %v123 = vld [vmem:[%s0 + $0x129] sm:$0xff]
    %v124 = vld [vmem:[%s0 + $0x139] sm:$0xff]
    %v125 = vld [vmem:[%s0 + $0x141] sm:$0xff]
    %v126 = vld [vmem:[%s0 + $0x151] sm:$0xff]
    %v127 = vld [vmem:[%s0 + $0x159] sm:$0xff]
    %v128 = vld [vmem:[%s0 + $0x169] sm:$0xff]
    %v129 = vld [vmem:[%s0 + $0x171] sm:$0xff]
    %v130 = vld [vmem:[%s0 + $0x1b1] sm:$0xff]
    %v131 = vld [vmem:[%s0 + $0x1b9] sm:$0xff]
    %v132 = vld [vmem:[%s0 + $0x1c9] sm:$0xff]
    %v133 = vld [vmem:[%s0 + $0x1d1] sm:$0xff]
    %v134 = vld [vmem:[%s0 + $0x1e1] sm:$0xff]
    %v135 = vld [vmem:[%s0 + $0x1e9] sm:$0xff]
    %v136 = vld [vmem:[%s0 + $0x1f9] sm:$0xff]
    %v137 = vld [vmem:[%s0 + $0x201] sm:$0xff]
    %v138 = vld [vmem:[%s0 + $0x211] sm:$0xff]
    %v139 = vld [vmem:[%s0 + $0x219] sm:$0xff]
    %v140 = vld [vmem:[%s0 + $0x229] sm:$0xff]
    %v141 = vld [vmem:[%s0 + $0x231] sm:$0xff]
    %v142 = vld [vmem:[%s0 + $0x241] sm:$0xff]
    %v143 = vld [vmem:[%s0 + $0x249] sm:$0xff]
    %v144 = vld [vmem:[%s0 + $0x259] sm:$0xff]
    %v145 = vld [vmem:[%s0 + $0x261] sm:$0xff]
    %v146 = vld [vmem:[%s0 + $0x271] sm:$0xff]
    %v147 = vld [vmem:[%s0 + $0x279] sm:$0xff]
    %v148 = vld [vmem:[%s0 + $0x289] sm:$0xff]
    %v149 = vld [vmem:[%s0 + $0x291] sm:$0xff]
    %v150 = vld [vmem:[%s0 + $0x2a1] sm:$0xff]
    %v151 = vld [vmem:[%s0 + $0x2a9] sm:$0xff]
    %v152 = vld [vmem:[%s0 + $0x2b9] sm:$0xff]
    %v153 = vld [vmem:[%s0 + $0x2c1] sm:$0xff]
    %v154 = vld [vmem:[%s0 + $0x2d1] sm:$0xff]
    %v155 = vld [vmem:[%s0 + $0x2d9] sm:$0xff]
    %v156 = vld [vmem:[%s0 + $0x2e9] sm:$0xff]
    %v157 = vld [vmem:[%s0 + $0x2f1] sm:$0xff]
    %v158 = vld [vmem:[%s0 + $0x301] sm:$0xff]
    %v159 = vld [vmem:[%s0 + $0x309] sm:$0xff]
    %v160 = vld [vmem:[%s0 + $0x319] sm:$0xff]
    %v161 = vld [vmem:[%s0 + $0x321] sm:$0xff]
    %s162 = scalar_lea.vmem %s1, 4
    %v163 = vld [vmem:[%s162] sm:$0xf]
    %vm164 = vcmask 31744
    %v166 = vsel %vm164, %v98, 0
    %v169 = vsel %vm164, %v99, 0
    %v172 = vsel %vm164, %v100, 0
    %v175 = vsel %vm164, %v101, 0
    %v178 = vsel %vm164, %v102, 0
    %v181 = vsel %vm164, %v103, 0
    %v184 = vsel %vm164, %v104, 0
    %v187 = vsel %vm164, %v105, 0
    %v190 = vsel %vm164, %v106, 0
    %v193 = vsel %vm164, %v107, 0
    %v196 = vsel %vm164, %v108, 0
    %v199 = vsel %vm164, %v109, 0
    %v202 = vsel %vm164, %v110, 0
    %v205 = vsel %vm164, %v111, 0
    %v208 = vsel %vm164, %v112, 0
    %v211 = vsel %vm164, %v113, 0
    %v214 = vsel %vm164, %v114, 0
    %v217 = vsel %vm164, %v115, 0
    %v220 = vsel %vm164, %v116, 0
    %v223 = vsel %vm164, %v117, 0
    %v226 = vsel %vm164, %v118, 0
    %v229 = vsel %vm164, %v119, 0
    %v232 = vsel %vm164, %v120, 0
    %v235 = vsel %vm164, %v121, 0
    %v238 = vsel %vm164, %v122, 0
    %v241 = vsel %vm164, %v123, 0
    %v244 = vsel %vm164, %v124, 0
    %v247 = vsel %vm164, %v125, 0
    %v250 = vsel %vm164, %v126, 0
    %v253 = vsel %vm164, %v127, 0
    %v256 = vsel %vm164, %v128, 0
    %v259 = vsel %vm164, %v129, 0
    %v262 = vsel %vm164, %v130, 0
    %v265 = vsel %vm164, %v131, 0
    %v268 = vsel %vm164, %v132, 0
    %v271 = vsel %vm164, %v133, 0
    %v274 = vsel %vm164, %v134, 0
    %v277 = vsel %vm164, %v135, 0
    %v280 = vsel %vm164, %v136, 0
    %v283 = vsel %vm164, %v137, 0
    %v286 = vsel %vm164, %v138, 0
    %v289 = vsel %vm164, %v139, 0
    %v292 = vsel %vm164, %v140, 0
    %v295 = vsel %vm164, %v141, 0
    %v298 = vsel %vm164, %v142, 0
    %v301 = vsel %vm164, %v143, 0
    %v304 = vsel %vm164, %v144, 0
    %v307 = vsel %vm164, %v145, 0
    %v310 = vsel %vm164, %v146, 0
    %v313 = vsel %vm164, %v147, 0
    %v316 = vsel %vm164, %v148, 0
    %v319 = vsel %vm164, %v149, 0
    %v322 = vsel %vm164, %v150, 0
    %v325 = vsel %vm164, %v151, 0
    %v328 = vsel %vm164, %v152, 0
    %v331 = vsel %vm164, %v153, 0
    %v334 = vsel %vm164, %v154, 0
    %v337 = vsel %vm164, %v155, 0
    %v340 = vsel %vm164, %v156, 0
    %v343 = vsel %vm164, %v157, 0
    %v346 = vsel %vm164, %v158, 0
    %v349 = vsel %vm164, %v159, 0
    %v352 = vsel %vm164, %v160, 0
    %v355 = vsel %vm164, %v161, 0
    %vm357 = vcmask 1043456
    %v359 = vsel %vm357, %v163, 0
    %361 = vmatprep.subr.mxu0 0.0
    %362 = vmatpush1.msra.mxu0 0.0
    %363 = vmatprep.subr.mxu0 0.0
    %364 = vmatpush1.msra.mxu0 0.0
    %365 = vmatprep.subr.mxu0 0.0
    %366 = vmatpush1.msra.mxu0 0.0
    %367 = vmatprep.subr.mxu0 0.0
    %368 = vmatpush1.msra.mxu0 0.0
    %369 = vmatprep.subr.mxu0 0.0
    %370 = vmatpush1.msra.mxu0 0.0
    %371 = vmatprep.subr.mxu0 0.0
    %372 = vmatpush1.msra.mxu0 0.0
    %373 = vmatprep.subr.mxu0 0.0
    %374 = vmatpush1.msra.mxu0 0.0
    %375 = vmatprep.subr.mxu0 0.0
    %376 = vmatpush1.msra.mxu0 0.0
    %377 = vmatprep.subr.mxu0 0.0
    %378 = vmatpush1.msra.mxu0 0.0
    %379 = vmatprep.subr.mxu0 0.0
    %380 = vmatpush1.msra.mxu0 0.0
    %381 = vmatprep.subr.mxu0 0.0
    %382 = vmatpush1.msra.mxu0 0.0
    %383 = vmatprep.subr.mxu0 0.0
    %384 = vmatpush1.msra.mxu0 0.0
    %385 = vmatprep.subr.mxu0 0.0
    %386 = vmatpush1.msra.mxu0 0.0
    %387 = vmatprep.subr.mxu0 0.0
    %388 = vmatpush1.msra.mxu0 0.0
    %389 = vmatprep.subr.mxu0 0.0
    %390 = vmatpush1.msra.mxu0 0.0
    %391 = vmatprep.subr.mxu0 0.0
    %392 = vmatpush1.msra.mxu0 %v359
    %393 = vmatprep.subr.mxu0 0.0
    %394 = vmatpush2.msra.mxu0 0.0
    %395 = vmatprep.subr.mxu0 0.0
    %396 = vmatpush2.msra.mxu0 0.0
    %397 = vmatprep.subr.mxu0 0.0
    %398 = vmatpush2.msra.mxu0 0.0
    %399 = vmatprep.subr.mxu0 0.0
    %400 = vmatpush2.msra.mxu0 0.0
    %401 = vmatprep.subr.mxu0 0.0
    %402 = vmatpush2.msra.mxu0 0.0
    %403 = vmatprep.subr.mxu0 0.0
    %404 = vmatpush2.msra.mxu0 0.0
    %405 = vmatprep.subr.mxu0 0.0
    %406 = vmatpush2.msra.mxu0 0.0
    %407 = vmatprep.subr.mxu0 0.0
    %408 = vmatpush2.msra.mxu0 0.0
    %409 = vmatprep.subr.mxu0 0.0
    %410 = vmatpush2.msra.mxu0 0.0
    %411 = vmatprep.subr.mxu0 0.0
    %412 = vmatpush2.msra.mxu0 0.0
    %413 = vmatprep.subr.mxu0 0.0
    %414 = vmatpush2.msra.mxu0 0.0
    %415 = vmatprep.subr.mxu0 0.0
    %416 = vmatpush2.msra.mxu0 0.0
    %417 = vmatprep.subr.mxu0 0.0
    %418 = vmatpush2.msra.mxu0 0.0
    %419 = vmatprep.subr.mxu0 0.0
    %420 = vmatpush2.msra.mxu0 0.0
    %421 = vmatprep.subr.mxu0 0.0
    %422 = vmatpush2.msra.mxu0 0.0
    %423 = vmatprep.subr.mxu0 0.0
    %424 = vmatpush2.msra.mxu0 0.0
    %425 = vmatprep.mubr.f32.mxu0 0.0
    %426 = vmatmul.mubr.f32.gmra.mxu0 %v166
    %v427 = vpop.f32.mrf.mxu0
    %v428 = vadd.f32 0.0, %v427
    %v429 = vpop.f32.mrf.mxu0
    %430 = vmatprep.mubr.f32.mxu0 0.0
    %431 = vmatmul.mubr.f32.gmra.mxu0 %v169
    %v432 = vpop.f32.mrf.mxu0
    %v433 = vadd.f32 0.0, %v432
    %v434 = vpop.f32.mrf.mxu0
    %435 = vmatprep.mubr.f32.mxu0 0.0
    %436 = vmatmul.mubr.f32.gmra.mxu0 %v172
    %v437 = vpop.f32.mrf.mxu0
    %v438 = vadd.f32 0.0, %v437
    %v439 = vpop.f32.mrf.mxu0
    %440 = vmatprep.mubr.f32.mxu0 0.0
    %441 = vmatmul.mubr.f32.gmra.mxu0 %v175
    %v442 = vpop.f32.mrf.mxu0
    %v443 = vadd.f32 0.0, %v442
    %v444 = vpop.f32.mrf.mxu0
    %445 = vmatprep.mubr.f32.mxu0 0.0
    %446 = vmatmul.mubr.f32.gmra.mxu0 %v178
    %v447 = vpop.f32.mrf.mxu0
    %v448 = vadd.f32 0.0, %v447
    %v449 = vpop.f32.mrf.mxu0
    %450 = vmatprep.mubr.f32.mxu0 0.0
    %451 = vmatmul.mubr.f32.gmra.mxu0 %v181
    %v452 = vpop.f32.mrf.mxu0
    %v453 = vadd.f32 0.0, %v452
    %v454 = vpop.f32.mrf.mxu0
    %455 = vmatprep.mubr.f32.mxu0 0.0
    %456 = vmatmul.mubr.f32.gmra.mxu0 %v184
    %v457 = vpop.f32.mrf.mxu0
    %v458 = vadd.f32 0.0, %v457
    %v459 = vpop.f32.mrf.mxu0
    %460 = vmatprep.mubr.f32.mxu0 0.0
    %461 = vmatmul.mubr.f32.gmra.mxu0 %v187
    %v462 = vpop.f32.mrf.mxu0
    %v463 = vadd.f32 0.0, %v462
    %v464 = vpop.f32.mrf.mxu0
    %465 = vmatprep.mubr.f32.mxu0 0.0
    %466 = vmatmul.mubr.f32.gmra.mxu0 %v190
    %v467 = vpop.f32.mrf.mxu0
    %v468 = vadd.f32 0.0, %v467
    %v469 = vpop.f32.mrf.mxu0
    %470 = vmatprep.mubr.f32.mxu0 0.0
    %471 = vmatmul.mubr.f32.gmra.mxu0 %v193
    %v472 = vpop.f32.mrf.mxu0
    %v473 = vadd.f32 0.0, %v472
    %v474 = vpop.f32.mrf.mxu0
    %475 = vmatprep.mubr.f32.mxu0 0.0
    %476 = vmatmul.mubr.f32.gmra.mxu0 %v196
    %v477 = vpop.f32.mrf.mxu0
    %v478 = vadd.f32 0.0, %v477
    %v479 = vpop.f32.mrf.mxu0
    %480 = vmatprep.mubr.f32.mxu0 0.0
    %481 = vmatmul.mubr.f32.gmra.mxu0 %v199
    %v482 = vpop.f32.mrf.mxu0
    %v483 = vadd.f32 0.0, %v482
    %v484 = vpop.f32.mrf.mxu0
    %485 = vmatprep.mubr.f32.mxu0 0.0
    %486 = vmatmul.mubr.f32.gmra.mxu0 %v202
    %v487 = vpop.f32.mrf.mxu0
    %v488 = vadd.f32 0.0, %v487
    %v489 = vpop.f32.mrf.mxu0
    %490 = vmatprep.mubr.f32.mxu0 0.0
    %491 = vmatmul.mubr.f32.gmra.mxu0 %v205
    %v492 = vpop.f32.mrf.mxu0
    %v493 = vadd.f32 0.0, %v492
    %v494 = vpop.f32.mrf.mxu0
    %495 = vmatprep.mubr.f32.mxu0 0.0
    %496 = vmatmul.mubr.f32.gmra.mxu0 %v208
    %v497 = vpop.f32.mrf.mxu0
    %v498 = vadd.f32 0.0, %v497
    %v499 = vpop.f32.mrf.mxu0
    %500 = vmatprep.mubr.f32.mxu0 0.0
    %501 = vmatmul.mubr.f32.gmra.mxu0 %v211
    %v502 = vpop.f32.mrf.mxu0
    %v503 = vadd.f32 0.0, %v502
    %v504 = vpop.f32.mrf.mxu0
    %505 = vmatprep.mubr.f32.mxu0 0.0
    %506 = vmatmul.mubr.f32.gmra.mxu0 %v214
    %v507 = vpop.f32.mrf.mxu0
    %v508 = vadd.f32 0.0, %v507
    %v509 = vpop.f32.mrf.mxu0
    %510 = vmatprep.mubr.f32.mxu0 0.0
    %511 = vmatmul.mubr.f32.gmra.mxu0 %v217
    %v512 = vpop.f32.mrf.mxu0
    %v513 = vadd.f32 0.0, %v512
    %v514 = vpop.f32.mrf.mxu0
    %515 = vmatprep.mubr.f32.mxu0 0.0
    %516 = vmatmul.mubr.f32.gmra.mxu0 %v220
    %v517 = vpop.f32.mrf.mxu0
    %v518 = vadd.f32 0.0, %v517
    %v519 = vpop.f32.mrf.mxu0
    %520 = vmatprep.mubr.f32.mxu0 0.0
    %521 = vmatmul.mubr.f32.gmra.mxu0 %v223
    %v522 = vpop.f32.mrf.mxu0
    %v523 = vadd.f32 0.0, %v522
    %v524 = vpop.f32.mrf.mxu0
    %525 = vmatprep.mubr.f32.mxu0 0.0
    %526 = vmatmul.mubr.f32.gmra.mxu0 %v226
    %v527 = vpop.f32.mrf.mxu0
    %v528 = vadd.f32 0.0, %v527
    %v529 = vpop.f32.mrf.mxu0
    %530 = vmatprep.mubr.f32.mxu0 0.0
    %531 = vmatmul.mubr.f32.gmra.mxu0 %v229
    %v532 = vpop.f32.mrf.mxu0
    %v533 = vadd.f32 0.0, %v532
    %v534 = vpop.f32.mrf.mxu0
    %535 = vmatprep.mubr.f32.mxu0 0.0
    %536 = vmatmul.mubr.f32.gmra.mxu0 %v232
    %v537 = vpop.f32.mrf.mxu0
    %v538 = vadd.f32 0.0, %v537
    %v539 = vpop.f32.mrf.mxu0
    %540 = vmatprep.mubr.f32.mxu0 0.0
    %541 = vmatmul.mubr.f32.gmra.mxu0 %v235
    %v542 = vpop.f32.mrf.mxu0
    %v543 = vadd.f32 0.0, %v542
    %v544 = vpop.f32.mrf.mxu0
    %545 = vmatprep.mubr.f32.mxu0 0.0
    %546 = vmatmul.mubr.f32.gmra.mxu0 %v238
    %v547 = vpop.f32.mrf.mxu0
    %v548 = vadd.f32 0.0, %v547
    %v549 = vpop.f32.mrf.mxu0
    %550 = vmatprep.mubr.f32.mxu0 0.0
    %551 = vmatmul.mubr.f32.gmra.mxu0 %v241
    %v552 = vpop.f32.mrf.mxu0
    %v553 = vadd.f32 0.0, %v552
    %v554 = vpop.f32.mrf.mxu0
    %555 = vmatprep.mubr.f32.mxu0 0.0
    %556 = vmatmul.mubr.f32.gmra.mxu0 %v244
    %v557 = vpop.f32.mrf.mxu0
    %v558 = vadd.f32 0.0, %v557
    %v559 = vpop.f32.mrf.mxu0
    %560 = vmatprep.mubr.f32.mxu0 0.0
    %561 = vmatmul.mubr.f32.gmra.mxu0 %v247
    %v562 = vpop.f32.mrf.mxu0
    %v563 = vadd.f32 0.0, %v562
    %v564 = vpop.f32.mrf.mxu0
    %565 = vmatprep.mubr.f32.mxu0 0.0
    %566 = vmatmul.mubr.f32.gmra.mxu0 %v250
    %v567 = vpop.f32.mrf.mxu0
    %v568 = vadd.f32 0.0, %v567
    %v569 = vpop.f32.mrf.mxu0
    %570 = vmatprep.mubr.f32.mxu0 0.0
    %571 = vmatmul.mubr.f32.gmra.mxu0 %v253
    %v572 = vpop.f32.mrf.mxu0
    %v573 = vadd.f32 0.0, %v572
    %v574 = vpop.f32.mrf.mxu0
    %575 = vmatprep.mubr.f32.mxu0 0.0
    %576 = vmatmul.mubr.f32.gmra.mxu0 %v256
    %v577 = vpop.f32.mrf.mxu0
    %v578 = vadd.f32 0.0, %v577
    %v579 = vpop.f32.mrf.mxu0
    %580 = vmatprep.mubr.f32.mxu0 0.0
    %581 = vmatmul.mubr.f32.gmra.mxu0 %v259
    %v582 = vpop.f32.mrf.mxu0
    %v583 = vadd.f32 0.0, %v582
    %v584 = vpop.f32.mrf.mxu0
    %585 = vmatprep.mubr.f32.mxu0 0.0
    %586 = vmatmul.mubr.f32.gmra.mxu0 %v262
    %v587 = vpop.f32.mrf.mxu0
    %v588 = vadd.f32 0.0, %v587
    %v589 = vpop.f32.mrf.mxu0
    %590 = vmatprep.mubr.f32.mxu0 0.0
    %591 = vmatmul.mubr.f32.gmra.mxu0 %v265
    %v592 = vpop.f32.mrf.mxu0
    %v593 = vadd.f32 0.0, %v592
    %v594 = vpop.f32.mrf.mxu0
    %595 = vmatprep.mubr.f32.mxu0 0.0
    %596 = vmatmul.mubr.f32.gmra.mxu0 %v268
    %v597 = vpop.f32.mrf.mxu0
    %v598 = vadd.f32 0.0, %v597
    %v599 = vpop.f32.mrf.mxu0
    %600 = vmatprep.mubr.f32.mxu0 0.0
    %601 = vmatmul.mubr.f32.gmra.mxu0 %v271
    %v602 = vpop.f32.mrf.mxu0
    %v603 = vadd.f32 0.0, %v602
    %v604 = vpop.f32.mrf.mxu0
    %605 = vmatprep.mubr.f32.mxu0 0.0
    %606 = vmatmul.mubr.f32.gmra.mxu0 %v274
    %v607 = vpop.f32.mrf.mxu0
    %v608 = vadd.f32 0.0, %v607
    %v609 = vpop.f32.mrf.mxu0
    %610 = vmatprep.mubr.f32.mxu0 0.0
    %611 = vmatmul.mubr.f32.gmra.mxu0 %v277
    %v612 = vpop.f32.mrf.mxu0
    %v613 = vadd.f32 0.0, %v612
    %v614 = vpop.f32.mrf.mxu0
    %615 = vmatprep.mubr.f32.mxu0 0.0
    %616 = vmatmul.mubr.f32.gmra.mxu0 %v280
    %v617 = vpop.f32.mrf.mxu0
    %v618 = vadd.f32 0.0, %v617
    %v619 = vpop.f32.mrf.mxu0
    %620 = vmatprep.mubr.f32.mxu0 0.0
    %621 = vmatmul.mubr.f32.gmra.mxu0 %v283
    %v622 = vpop.f32.mrf.mxu0
    %v623 = vadd.f32 0.0, %v622
    %v624 = vpop.f32.mrf.mxu0
    %625 = vmatprep.mubr.f32.mxu0 0.0
    %626 = vmatmul.mubr.f32.gmra.mxu0 %v286
    %v627 = vpop.f32.mrf.mxu0
    %v628 = vadd.f32 0.0, %v627
    %v629 = vpop.f32.mrf.mxu0
    %630 = vmatprep.mubr.f32.mxu0 0.0
    %631 = vmatmul.mubr.f32.gmra.mxu0 %v289
    %v632 = vpop.f32.mrf.mxu0
    %v633 = vadd.f32 0.0, %v632
    %v634 = vpop.f32.mrf.mxu0
    %635 = vmatprep.mubr.f32.mxu0 0.0
    %636 = vmatmul.mubr.f32.gmra.mxu0 %v292
    %v637 = vpop.f32.mrf.mxu0
    %v638 = vadd.f32 0.0, %v637
    %v639 = vpop.f32.mrf.mxu0
    %640 = vmatprep.mubr.f32.mxu0 0.0
    %641 = vmatmul.mubr.f32.gmra.mxu0 %v295
    %v642 = vpop.f32.mrf.mxu0
    %v643 = vadd.f32 0.0, %v642
    %v644 = vpop.f32.mrf.mxu0
    %645 = vmatprep.mubr.f32.mxu0 0.0
    %646 = vmatmul.mubr.f32.gmra.mxu0 %v298
    %v647 = vpop.f32.mrf.mxu0
    %v648 = vadd.f32 0.0, %v647
    %v649 = vpop.f32.mrf.mxu0
    %650 = vmatprep.mubr.f32.mxu0 0.0
    %651 = vmatmul.mubr.f32.gmra.mxu0 %v301
    %v652 = vpop.f32.mrf.mxu0
    %v653 = vadd.f32 0.0, %v652
    %v654 = vpop.f32.mrf.mxu0
    %655 = vmatprep.mubr.f32.mxu0 0.0
    %656 = vmatmul.mubr.f32.gmra.mxu0 %v304
    %v657 = vpop.f32.mrf.mxu0
    %v658 = vadd.f32 0.0, %v657
    %v659 = vpop.f32.mrf.mxu0
    %660 = vmatprep.mubr.f32.mxu0 0.0
    %661 = vmatmul.mubr.f32.gmra.mxu0 %v307
    %v662 = vpop.f32.mrf.mxu0
    %v663 = vadd.f32 0.0, %v662
    %v664 = vpop.f32.mrf.mxu0
    %665 = vmatprep.mubr.f32.mxu0 0.0
    %666 = vmatmul.mubr.f32.gmra.mxu0 %v310
    %v667 = vpop.f32.mrf.mxu0
    %v668 = vadd.f32 0.0, %v667
    %v669 = vpop.f32.mrf.mxu0
    %670 = vmatprep.mubr.f32.mxu0 0.0
    %671 = vmatmul.mubr.f32.gmra.mxu0 %v313
    %v672 = vpop.f32.mrf.mxu0
    %v673 = vadd.f32 0.0, %v672
    %v674 = vpop.f32.mrf.mxu0
    %675 = vmatprep.mubr.f32.mxu0 0.0
    %676 = vmatmul.mubr.f32.gmra.mxu0 %v316
    %v677 = vpop.f32.mrf.mxu0
    %v678 = vadd.f32 0.0, %v677
    %v679 = vpop.f32.mrf.mxu0
    %680 = vmatprep.mubr.f32.mxu0 0.0
    %681 = vmatmul.mubr.f32.gmra.mxu0 %v319
    %v682 = vpop.f32.mrf.mxu0
    %v683 = vadd.f32 0.0, %v682
    %v684 = vpop.f32.mrf.mxu0
    %685 = vmatprep.mubr.f32.mxu0 0.0
    %686 = vmatmul.mubr.f32.gmra.mxu0 %v322
    %v687 = vpop.f32.mrf.mxu0
    %v688 = vadd.f32 0.0, %v687
    %v689 = vpop.f32.mrf.mxu0
    %690 = vmatprep.mubr.f32.mxu0 0.0
    %691 = vmatmul.mubr.f32.gmra.mxu0 %v325
    %v692 = vpop.f32.mrf.mxu0
    %v693 = vadd.f32 0.0, %v692
    %v694 = vpop.f32.mrf.mxu0
    %695 = vmatprep.mubr.f32.mxu0 0.0
    %696 = vmatmul.mubr.f32.gmra.mxu0 %v328
    %v697 = vpop.f32.mrf.mxu0
    %v698 = vadd.f32 0.0, %v697
    %v699 = vpop.f32.mrf.mxu0
    %700 = vmatprep.mubr.f32.mxu0 0.0
    %701 = vmatmul.mubr.f32.gmra.mxu0 %v331
    %v702 = vpop.f32.mrf.mxu0
    %v703 = vadd.f32 0.0, %v702
    %v704 = vpop.f32.mrf.mxu0
    %705 = vmatprep.mubr.f32.mxu0 0.0
    %706 = vmatmul.mubr.f32.gmra.mxu0 %v334
    %v707 = vpop.f32.mrf.mxu0
    %v708 = vadd.f32 0.0, %v707
    %v709 = vpop.f32.mrf.mxu0
    %710 = vmatprep.mubr.f32.mxu0 0.0
    %711 = vmatmul.mubr.f32.gmra.mxu0 %v337
    %v712 = vpop.f32.mrf.mxu0
    %v713 = vadd.f32 0.0, %v712
    %v714 = vpop.f32.mrf.mxu0
    %715 = vmatprep.mubr.f32.mxu0 0.0
    %716 = vmatmul.mubr.f32.gmra.mxu0 %v340
    %v717 = vpop.f32.mrf.mxu0
    %v718 = vadd.f32 0.0, %v717
    %v719 = vpop.f32.mrf.mxu0
    %720 = vmatprep.mubr.f32.mxu0 0.0
    %721 = vmatmul.mubr.f32.gmra.mxu0 %v343
    %v722 = vpop.f32.mrf.mxu0
    %v723 = vadd.f32 0.0, %v722
    %v724 = vpop.f32.mrf.mxu0
    %725 = vmatprep.mubr.f32.mxu0 0.0
    %726 = vmatmul.mubr.f32.gmra.mxu0 %v346
    %v727 = vpop.f32.mrf.mxu0
    %v728 = vadd.f32 0.0, %v727
    %v729 = vpop.f32.mrf.mxu0
    %730 = vmatprep.mubr.f32.mxu0 0.0
    %731 = vmatmul.mubr.f32.gmra.mxu0 %v349
    %v732 = vpop.f32.mrf.mxu0
    %v733 = vadd.f32 0.0, %v732
    %v734 = vpop.f32.mrf.mxu0
    %735 = vmatprep.mubr.f32.mxu0 0.0
    %736 = vmatmul.mubr.f32.gmra.mxu0 %v352
    %v737 = vpop.f32.mrf.mxu0
    %v738 = vadd.f32 0.0, %v737
    %v739 = vpop.f32.mrf.mxu0
    %740 = vmatprep.mubr.f32.mxu0 0.0
    %741 = vmatmul.mubr.f32.gmra.mxu0 %v355
    %v742 = vpop.f32.mrf.mxu0
    %v743 = vadd.f32 0.0, %v742
    %v744 = vpop.f32.mrf.mxu0
    %745 = vdwg.mxu0
    %v747 = vsel %vm164, %v33, 0
    %v750 = vsel %vm164, %v34, 0
    %v753 = vsel %vm164, %v35, 0
    %v756 = vsel %vm164, %v36, 0
    %v759 = vsel %vm164, %v37, 0
    %v762 = vsel %vm164, %v38, 0
    %v765 = vsel %vm164, %v39, 0
    %v768 = vsel %vm164, %v40, 0
    %v771 = vsel %vm164, %v41, 0
    %v774 = vsel %vm164, %v42, 0
    %v777 = vsel %vm164, %v43, 0
    %v780 = vsel %vm164, %v44, 0
    %v783 = vsel %vm164, %v45, 0
    %v786 = vsel %vm164, %v46, 0
    %v789 = vsel %vm164, %v47, 0
    %v792 = vsel %vm164, %v48, 0
    %v795 = vsel %vm164, %v49, 0
    %v798 = vsel %vm164, %v50, 0
    %v801 = vsel %vm164, %v51, 0
    %v804 = vsel %vm164, %v52, 0
    %v807 = vsel %vm164, %v53, 0
    %v810 = vsel %vm164, %v54, 0
    %v813 = vsel %vm164, %v55, 0
    %v816 = vsel %vm164, %v56, 0
    %v819 = vsel %vm164, %v57, 0
    %v822 = vsel %vm164, %v58, 0
    %v825 = vsel %vm164, %v59, 0
    %v828 = vsel %vm164, %v60, 0
    %v831 = vsel %vm164, %v61, 0
    %v834 = vsel %vm164, %v62, 0
    %v837 = vsel %vm164, %v63, 0
    %v840 = vsel %vm164, %v64, 0
    %v843 = vsel %vm164, %v65, 0
    %v846 = vsel %vm164, %v66, 0
    %v849 = vsel %vm164, %v67, 0
    %v852 = vsel %vm164, %v68, 0
    %v855 = vsel %vm164, %v69, 0
    %v858 = vsel %vm164, %v70, 0
    %v861 = vsel %vm164, %v71, 0
    %v864 = vsel %vm164, %v72, 0
    %v867 = vsel %vm164, %v73, 0
    %v870 = vsel %vm164, %v74, 0
    %v873 = vsel %vm164, %v75, 0
    %v876 = vsel %vm164, %v76, 0
    %v879 = vsel %vm164, %v77, 0
    %v882 = vsel %vm164, %v78, 0
    %v885 = vsel %vm164, %v79, 0
    %v888 = vsel %vm164, %v80, 0
    %v891 = vsel %vm164, %v81, 0
    %v894 = vsel %vm164, %v82, 0
    %v897 = vsel %vm164, %v83, 0
    %v900 = vsel %vm164, %v84, 0
    %v903 = vsel %vm164, %v85, 0
    %v906 = vsel %vm164, %v86, 0
    %v909 = vsel %vm164, %v87, 0
    %v912 = vsel %vm164, %v88, 0
    %v915 = vsel %vm164, %v89, 0
    %v918 = vsel %vm164, %v90, 0
    %v921 = vsel %vm164, %v91, 0
    %v924 = vsel %vm164, %v92, 0
    %v927 = vsel %vm164, %v93, 0
    %v930 = vsel %vm164, %v94, 0
    %v933 = vsel %vm164, %v95, 0
    %v936 = vsel %vm164, %v96, 0
    %v939 = vsel %vm357, %v97, 0
    %941 = vmatprep.subr.mxu0 0.0
    %942 = vmatpush1.msra.mxu0 0.0
    %943 = vmatprep.subr.mxu0 0.0
    %944 = vmatpush1.msra.mxu0 0.0
    %945 = vmatprep.subr.mxu0 0.0
    %946 = vmatpush1.msra.mxu0 0.0
    %947 = vmatprep.subr.mxu0 0.0
    %948 = vmatpush1.msra.mxu0 0.0
    %949 = vmatprep.subr.mxu0 0.0
    %950 = vmatpush1.msra.mxu0 0.0
    %951 = vmatprep.subr.mxu0 0.0
    %952 = vmatpush1.msra.mxu0 0.0
    %953 = vmatprep.subr.mxu0 0.0
    %954 = vmatpush1.msra.mxu0 0.0
    %955 = vmatprep.subr.mxu0 0.0
    %956 = vmatpush1.msra.mxu0 0.0
    %957 = vmatprep.subr.mxu0 0.0
    %958 = vmatpush1.msra.mxu0 0.0
    %959 = vmatprep.subr.mxu0 0.0
    %960 = vmatpush1.msra.mxu0 0.0
    %961 = vmatprep.subr.mxu0 0.0
    %962 = vmatpush1.msra.mxu0 0.0
    %963 = vmatprep.subr.mxu0 0.0
    %964 = vmatpush1.msra.mxu0 0.0
    %965 = vmatprep.subr.mxu0 0.0
    %966 = vmatpush1.msra.mxu0 0.0
    %967 = vmatprep.subr.mxu0 0.0
    %968 = vmatpush1.msra.mxu0 0.0
    %969 = vmatprep.subr.mxu0 0.0
    %970 = vmatpush1.msra.mxu0 0.0
    %971 = vmatprep.subr.mxu0 0.0
    %972 = vmatpush1.msra.mxu0 %v939
    %973 = vmatprep.subr.mxu0 0.0
    %974 = vmatpush2.msra.mxu0 0.0
    %975 = vmatprep.subr.mxu0 0.0
    %976 = vmatpush2.msra.mxu0 0.0
    %977 = vmatprep.subr.mxu0 0.0
    %978 = vmatpush2.msra.mxu0 0.0
    %979 = vmatprep.subr.mxu0 0.0
    %980 = vmatpush2.msra.mxu0 0.0
    %981 = vmatprep.subr.mxu0 0.0
    %982 = vmatpush2.msra.mxu0 0.0
    %983 = vmatprep.subr.mxu0 0.0
    %984 = vmatpush2.msra.mxu0 0.0
    %985 = vmatprep.subr.mxu0 0.0
    %986 = vmatpush2.msra.mxu0 0.0
    %987 = vmatprep.subr.mxu0 0.0
    %988 = vmatpush2.msra.mxu0 0.0
    %989 = vmatprep.subr.mxu0 0.0
    %990 = vmatpush2.msra.mxu0 0.0
    %991 = vmatprep.subr.mxu0 0.0
    %992 = vmatpush2.msra.mxu0 0.0
    %993 = vmatprep.subr.mxu0 0.0
    %994 = vmatpush2.msra.mxu0 0.0
    %995 = vmatprep.subr.mxu0 0.0
    %996 = vmatpush2.msra.mxu0 0.0
    %997 = vmatprep.subr.mxu0 0.0
    %998 = vmatpush2.msra.mxu0 0.0
    %999 = vmatprep.subr.mxu0 0.0
    %1000 = vmatpush2.msra.mxu0 0.0
    %1001 = vmatprep.subr.mxu0 0.0
    %1002 = vmatpush2.msra.mxu0 0.0
    %1003 = vmatprep.subr.mxu0 0.0
    %1004 = vmatpush2.msra.mxu0 0.0
    %1005 = vmatprep.mubr.f32.mxu0 0.0
    %1006 = vmatmul.mubr.f32.gmra.mxu0 %v747
    %v1007 = vpop.f32.mrf.mxu0
    %v1008 = vadd.f32 %v428, %v1007
    %v1009 = vpop.f32.mrf.mxu0
    %1010 = vmatprep.mubr.f32.mxu0 0.0
    %1011 = vmatmul.mubr.f32.gmra.mxu0 %v750
    %v1012 = vpop.f32.mrf.mxu0
    %v1013 = vadd.f32 %v433, %v1012
    %v1014 = vpop.f32.mrf.mxu0
    %1015 = vmatprep.mubr.f32.mxu0 0.0
    %1016 = vmatmul.mubr.f32.gmra.mxu0 %v753
    %v1017 = vpop.f32.mrf.mxu0
    %v1018 = vadd.f32 %v438, %v1017
    %v1019 = vpop.f32.mrf.mxu0
    %1020 = vmatprep.mubr.f32.mxu0 0.0
    %1021 = vmatmul.mubr.f32.gmra.mxu0 %v756
    %v1022 = vpop.f32.mrf.mxu0
    %v1023 = vadd.f32 %v443, %v1022
    %v1024 = vpop.f32.mrf.mxu0
    %1025 = vmatprep.mubr.f32.mxu0 0.0
    %1026 = vmatmul.mubr.f32.gmra.mxu0 %v759
    %v1027 = vpop.f32.mrf.mxu0
    %v1028 = vadd.f32 %v448, %v1027
    %v1029 = vpop.f32.mrf.mxu0
    %1030 = vmatprep.mubr.f32.mxu0 0.0
    %1031 = vmatmul.mubr.f32.gmra.mxu0 %v762
    %v1032 = vpop.f32.mrf.mxu0
    %v1033 = vadd.f32 %v453, %v1032
    %v1034 = vpop.f32.mrf.mxu0
    %1035 = vmatprep.mubr.f32.mxu0 0.0
    %1036 = vmatmul.mubr.f32.gmra.mxu0 %v765
    %v1037 = vpop.f32.mrf.mxu0
    %v1038 = vadd.f32 %v458, %v1037
    %v1039 = vpop.f32.mrf.mxu0
    %1040 = vmatprep.mubr.f32.mxu0 0.0
    %1041 = vmatmul.mubr.f32.gmra.mxu0 %v768
    %v1042 = vpop.f32.mrf.mxu0
    %v1043 = vadd.f32 %v463, %v1042
    %v1044 = vpop.f32.mrf.mxu0
    %1045 = vmatprep.mubr.f32.mxu0 0.0
    %1046 = vmatmul.mubr.f32.gmra.mxu0 %v771
    %v1047 = vpop.f32.mrf.mxu0
    %v1048 = vadd.f32 %v468, %v1047
    %v1049 = vpop.f32.mrf.mxu0
    %1050 = vmatprep.mubr.f32.mxu0 0.0
    %1051 = vmatmul.mubr.f32.gmra.mxu0 %v774
    %v1052 = vpop.f32.mrf.mxu0
    %v1053 = vadd.f32 %v473, %v1052
    %v1054 = vpop.f32.mrf.mxu0
    %1055 = vmatprep.mubr.f32.mxu0 0.0
    %1056 = vmatmul.mubr.f32.gmra.mxu0 %v777
    %v1057 = vpop.f32.mrf.mxu0
    %v1058 = vadd.f32 %v478, %v1057
    %v1059 = vpop.f32.mrf.mxu0
    %1060 = vmatprep.mubr.f32.mxu0 0.0
    %1061 = vmatmul.mubr.f32.gmra.mxu0 %v780
    %v1062 = vpop.f32.mrf.mxu0
    %v1063 = vadd.f32 %v483, %v1062
    %v1064 = vpop.f32.mrf.mxu0
    %1065 = vmatprep.mubr.f32.mxu0 0.0
    %1066 = vmatmul.mubr.f32.gmra.mxu0 %v783
    %v1067 = vpop.f32.mrf.mxu0
    %v1068 = vadd.f32 %v488, %v1067
    %v1069 = vpop.f32.mrf.mxu0
    %1070 = vmatprep.mubr.f32.mxu0 0.0
    %1071 = vmatmul.mubr.f32.gmra.mxu0 %v786
    %v1072 = vpop.f32.mrf.mxu0
    %v1073 = vadd.f32 %v493, %v1072
    %v1074 = vpop.f32.mrf.mxu0
    %1075 = vmatprep.mubr.f32.mxu0 0.0
    %1076 = vmatmul.mubr.f32.gmra.mxu0 %v789
    %v1077 = vpop.f32.mrf.mxu0
    %v1078 = vadd.f32 %v498, %v1077
    %v1079 = vpop.f32.mrf.mxu0
    %1080 = vmatprep.mubr.f32.mxu0 0.0
    %1081 = vmatmul.mubr.f32.gmra.mxu0 %v792
    %v1082 = vpop.f32.mrf.mxu0
    %v1083 = vadd.f32 %v503, %v1082
    %v1084 = vpop.f32.mrf.mxu0
    %1085 = vmatprep.mubr.f32.mxu0 0.0
    %1086 = vmatmul.mubr.f32.gmra.mxu0 %v795
    %v1087 = vpop.f32.mrf.mxu0
    %v1088 = vadd.f32 %v508, %v1087
    %v1089 = vpop.f32.mrf.mxu0
    %1090 = vmatprep.mubr.f32.mxu0 0.0
    %1091 = vmatmul.mubr.f32.gmra.mxu0 %v798
    %v1092 = vpop.f32.mrf.mxu0
    %v1093 = vadd.f32 %v513, %v1092
    %v1094 = vpop.f32.mrf.mxu0
    %1095 = vmatprep.mubr.f32.mxu0 0.0
    %1096 = vmatmul.mubr.f32.gmra.mxu0 %v801
    %v1097 = vpop.f32.mrf.mxu0
    %v1098 = vadd.f32 %v518, %v1097
    %v1099 = vpop.f32.mrf.mxu0
    %1100 = vmatprep.mubr.f32.mxu0 0.0
    %1101 = vmatmul.mubr.f32.gmra.mxu0 %v804
    %v1102 = vpop.f32.mrf.mxu0
    %v1103 = vadd.f32 %v523, %v1102
    %v1104 = vpop.f32.mrf.mxu0
    %1105 = vmatprep.mubr.f32.mxu0 0.0
    %1106 = vmatmul.mubr.f32.gmra.mxu0 %v807
    %v1107 = vpop.f32.mrf.mxu0
    %v1108 = vadd.f32 %v528, %v1107
    %v1109 = vpop.f32.mrf.mxu0
    %1110 = vmatprep.mubr.f32.mxu0 0.0
    %1111 = vmatmul.mubr.f32.gmra.mxu0 %v810
    %v1112 = vpop.f32.mrf.mxu0
    %v1113 = vadd.f32 %v533, %v1112
    %v1114 = vpop.f32.mrf.mxu0
    %1115 = vmatprep.mubr.f32.mxu0 0.0
    %1116 = vmatmul.mubr.f32.gmra.mxu0 %v813
    %v1117 = vpop.f32.mrf.mxu0
    %v1118 = vadd.f32 %v538, %v1117
    %v1119 = vpop.f32.mrf.mxu0
    %1120 = vmatprep.mubr.f32.mxu0 0.0
    %1121 = vmatmul.mubr.f32.gmra.mxu0 %v816
    %v1122 = vpop.f32.mrf.mxu0
    %v1123 = vadd.f32 %v543, %v1122
    %v1124 = vpop.f32.mrf.mxu0
    %1125 = vmatprep.mubr.f32.mxu0 0.0
    %1126 = vmatmul.mubr.f32.gmra.mxu0 %v819
    %v1127 = vpop.f32.mrf.mxu0
    %v1128 = vadd.f32 %v548, %v1127
    %v1129 = vpop.f32.mrf.mxu0
    %1130 = vmatprep.mubr.f32.mxu0 0.0
    %1131 = vmatmul.mubr.f32.gmra.mxu0 %v822
    %v1132 = vpop.f32.mrf.mxu0
    %v1133 = vadd.f32 %v553, %v1132
    %v1134 = vpop.f32.mrf.mxu0
    %1135 = vmatprep.mubr.f32.mxu0 0.0
    %1136 = vmatmul.mubr.f32.gmra.mxu0 %v825
    %v1137 = vpop.f32.mrf.mxu0
    %v1138 = vadd.f32 %v558, %v1137
    %v1139 = vpop.f32.mrf.mxu0
    %1140 = vmatprep.mubr.f32.mxu0 0.0
    %1141 = vmatmul.mubr.f32.gmra.mxu0 %v828
    %v1142 = vpop.f32.mrf.mxu0
    %v1143 = vadd.f32 %v563, %v1142
    %v1144 = vpop.f32.mrf.mxu0
    %1145 = vmatprep.mubr.f32.mxu0 0.0
    %1146 = vmatmul.mubr.f32.gmra.mxu0 %v831
    %v1147 = vpop.f32.mrf.mxu0
    %v1148 = vadd.f32 %v568, %v1147
    %v1149 = vpop.f32.mrf.mxu0
    %1150 = vmatprep.mubr.f32.mxu0 0.0
    %1151 = vmatmul.mubr.f32.gmra.mxu0 %v834
    %v1152 = vpop.f32.mrf.mxu0
    %v1153 = vadd.f32 %v573, %v1152
    %v1154 = vpop.f32.mrf.mxu0
    %1155 = vmatprep.mubr.f32.mxu0 0.0
    %1156 = vmatmul.mubr.f32.gmra.mxu0 %v837
    %v1157 = vpop.f32.mrf.mxu0
    %v1158 = vadd.f32 %v578, %v1157
    %v1159 = vpop.f32.mrf.mxu0
    %1160 = vmatprep.mubr.f32.mxu0 0.0
    %1161 = vmatmul.mubr.f32.gmra.mxu0 %v840
    %v1162 = vpop.f32.mrf.mxu0
    %v1163 = vadd.f32 %v583, %v1162
    %v1164 = vpop.f32.mrf.mxu0
    %1165 = vmatprep.mubr.f32.mxu0 0.0
    %1166 = vmatmul.mubr.f32.gmra.mxu0 %v843
    %v1167 = vpop.f32.mrf.mxu0
    %v1168 = vadd.f32 %v588, %v1167
    %v1169 = vpop.f32.mrf.mxu0
    %1170 = vmatprep.mubr.f32.mxu0 0.0
    %1171 = vmatmul.mubr.f32.gmra.mxu0 %v846
    %v1172 = vpop.f32.mrf.mxu0
    %v1173 = vadd.f32 %v593, %v1172
    %v1174 = vpop.f32.mrf.mxu0
    %1175 = vmatprep.mubr.f32.mxu0 0.0
    %1176 = vmatmul.mubr.f32.gmra.mxu0 %v849
    %v1177 = vpop.f32.mrf.mxu0
    %v1178 = vadd.f32 %v598, %v1177
    %v1179 = vpop.f32.mrf.mxu0
    %1180 = vmatprep.mubr.f32.mxu0 0.0
    %1181 = vmatmul.mubr.f32.gmra.mxu0 %v852
    %v1182 = vpop.f32.mrf.mxu0
    %v1183 = vadd.f32 %v603, %v1182
    %v1184 = vpop.f32.mrf.mxu0
    %1185 = vmatprep.mubr.f32.mxu0 0.0
    %1186 = vmatmul.mubr.f32.gmra.mxu0 %v855
    %v1187 = vpop.f32.mrf.mxu0
    %v1188 = vadd.f32 %v608, %v1187
    %v1189 = vpop.f32.mrf.mxu0
    %1190 = vmatprep.mubr.f32.mxu0 0.0
    %1191 = vmatmul.mubr.f32.gmra.mxu0 %v858
    %v1192 = vpop.f32.mrf.mxu0
    %v1193 = vadd.f32 %v613, %v1192
    %v1194 = vpop.f32.mrf.mxu0
    %1195 = vmatprep.mubr.f32.mxu0 0.0
    %1196 = vmatmul.mubr.f32.gmra.mxu0 %v861
    %v1197 = vpop.f32.mrf.mxu0
    %v1198 = vadd.f32 %v618, %v1197
    %v1199 = vpop.f32.mrf.mxu0
    %1200 = vmatprep.mubr.f32.mxu0 0.0
    %1201 = vmatmul.mubr.f32.gmra.mxu0 %v864
    %v1202 = vpop.f32.mrf.mxu0
    %v1203 = vadd.f32 %v623, %v1202
    %v1204 = vpop.f32.mrf.mxu0
    %1205 = vmatprep.mubr.f32.mxu0 0.0
    %1206 = vmatmul.mubr.f32.gmra.mxu0 %v867
    %v1207 = vpop.f32.mrf.mxu0
    %v1208 = vadd.f32 %v628, %v1207
    %v1209 = vpop.f32.mrf.mxu0
    %1210 = vmatprep.mubr.f32.mxu0 0.0
    %1211 = vmatmul.mubr.f32.gmra.mxu0 %v870
    %v1212 = vpop.f32.mrf.mxu0
    %v1213 = vadd.f32 %v633, %v1212
    %v1214 = vpop.f32.mrf.mxu0
    %1215 = vmatprep.mubr.f32.mxu0 0.0
    %1216 = vmatmul.mubr.f32.gmra.mxu0 %v873
    %v1217 = vpop.f32.mrf.mxu0
    %v1218 = vadd.f32 %v638, %v1217
    %v1219 = vpop.f32.mrf.mxu0
    %1220 = vmatprep.mubr.f32.mxu0 0.0
    %1221 = vmatmul.mubr.f32.gmra.mxu0 %v876
    %v1222 = vpop.f32.mrf.mxu0
    %v1223 = vadd.f32 %v643, %v1222
    %v1224 = vpop.f32.mrf.mxu0
    %1225 = vmatprep.mubr.f32.mxu0 0.0
    %1226 = vmatmul.mubr.f32.gmra.mxu0 %v879
    %v1227 = vpop.f32.mrf.mxu0
    %v1228 = vadd.f32 %v648, %v1227
    %v1229 = vpop.f32.mrf.mxu0
    %1230 = vmatprep.mubr.f32.mxu0 0.0
    %1231 = vmatmul.mubr.f32.gmra.mxu0 %v882
    %v1232 = vpop.f32.mrf.mxu0
    %v1233 = vadd.f32 %v653, %v1232
    %v1234 = vpop.f32.mrf.mxu0
    %1235 = vmatprep.mubr.f32.mxu0 0.0
    %1236 = vmatmul.mubr.f32.gmra.mxu0 %v885
    %v1237 = vpop.f32.mrf.mxu0
    %v1238 = vadd.f32 %v658, %v1237
    %v1239 = vpop.f32.mrf.mxu0
    %1240 = vmatprep.mubr.f32.mxu0 0.0
    %1241 = vmatmul.mubr.f32.gmra.mxu0 %v888
    %v1242 = vpop.f32.mrf.mxu0
    %v1243 = vadd.f32 %v663, %v1242
    %v1244 = vpop.f32.mrf.mxu0
    %1245 = vmatprep.mubr.f32.mxu0 0.0
    %1246 = vmatmul.mubr.f32.gmra.mxu0 %v891
    %v1247 = vpop.f32.mrf.mxu0
    %v1248 = vadd.f32 %v668, %v1247
    %v1249 = vpop.f32.mrf.mxu0
    %1250 = vmatprep.mubr.f32.mxu0 0.0
    %1251 = vmatmul.mubr.f32.gmra.mxu0 %v894
    %v1252 = vpop.f32.mrf.mxu0
    %v1253 = vadd.f32 %v673, %v1252
    %v1254 = vpop.f32.mrf.mxu0
    %1255 = vmatprep.mubr.f32.mxu0 0.0
    %1256 = vmatmul.mubr.f32.gmra.mxu0 %v897
    %v1257 = vpop.f32.mrf.mxu0
    %v1258 = vadd.f32 %v678, %v1257
    %v1259 = vpop.f32.mrf.mxu0
    %1260 = vmatprep.mubr.f32.mxu0 0.0
    %1261 = vmatmul.mubr.f32.gmra.mxu0 %v900
    %v1262 = vpop.f32.mrf.mxu0
    %v1263 = vadd.f32 %v683, %v1262
    %v1264 = vpop.f32.mrf.mxu0
    %1265 = vmatprep.mubr.f32.mxu0 0.0
    %1266 = vmatmul.mubr.f32.gmra.mxu0 %v903
    %v1267 = vpop.f32.mrf.mxu0
    %v1268 = vadd.f32 %v688, %v1267
    %v1269 = vpop.f32.mrf.mxu0
    %1270 = vmatprep.mubr.f32.mxu0 0.0
    %1271 = vmatmul.mubr.f32.gmra.mxu0 %v906
    %v1272 = vpop.f32.mrf.mxu0
    %v1273 = vadd.f32 %v693, %v1272
    %v1274 = vpop.f32.mrf.mxu0
    %1275 = vmatprep.mubr.f32.mxu0 0.0
    %1276 = vmatmul.mubr.f32.gmra.mxu0 %v909
    %v1277 = vpop.f32.mrf.mxu0
    %v1278 = vadd.f32 %v698, %v1277
    %v1279 = vpop.f32.mrf.mxu0
    %1280 = vmatprep.mubr.f32.mxu0 0.0
    %1281 = vmatmul.mubr.f32.gmra.mxu0 %v912
    %v1282 = vpop.f32.mrf.mxu0
    %v1283 = vadd.f32 %v703, %v1282
    %v1284 = vpop.f32.mrf.mxu0
    %1285 = vmatprep.mubr.f32.mxu0 0.0
    %1286 = vmatmul.mubr.f32.gmra.mxu0 %v915
    %v1287 = vpop.f32.mrf.mxu0
    %v1288 = vadd.f32 %v708, %v1287
    %v1289 = vpop.f32.mrf.mxu0
    %1290 = vmatprep.mubr.f32.mxu0 0.0
    %1291 = vmatmul.mubr.f32.gmra.mxu0 %v918
    %v1292 = vpop.f32.mrf.mxu0
    %v1293 = vadd.f32 %v713, %v1292
    %v1294 = vpop.f32.mrf.mxu0
    %1295 = vmatprep.mubr.f32.mxu0 0.0
    %1296 = vmatmul.mubr.f32.gmra.mxu0 %v921
    %v1297 = vpop.f32.mrf.mxu0
    %v1298 = vadd.f32 %v718, %v1297
    %v1299 = vpop.f32.mrf.mxu0
    %1300 = vmatprep.mubr.f32.mxu0 0.0
    %1301 = vmatmul.mubr.f32.gmra.mxu0 %v924
    %v1302 = vpop.f32.mrf.mxu0
    %v1303 = vadd.f32 %v723, %v1302
    %v1304 = vpop.f32.mrf.mxu0
    %1305 = vmatprep.mubr.f32.mxu0 0.0
    %1306 = vmatmul.mubr.f32.gmra.mxu0 %v927
    %v1307 = vpop.f32.mrf.mxu0
    %v1308 = vadd.f32 %v728, %v1307
    %v1309 = vpop.f32.mrf.mxu0
    %1310 = vmatprep.mubr.f32.mxu0 0.0
    %1311 = vmatmul.mubr.f32.gmra.mxu0 %v930
    %v1312 = vpop.f32.mrf.mxu0
    %v1313 = vadd.f32 %v733, %v1312
    %v1314 = vpop.f32.mrf.mxu0
    %1315 = vmatprep.mubr.f32.mxu0 0.0
    %1316 = vmatmul.mubr.f32.gmra.mxu0 %v933
    %v1317 = vpop.f32.mrf.mxu0
    %v1318 = vadd.f32 %v738, %v1317
    %v1319 = vpop.f32.mrf.mxu0
    %1320 = vmatprep.mubr.f32.mxu0 0.0
    %1321 = vmatmul.mubr.f32.gmra.mxu0 %v936
    %v1322 = vpop.f32.mrf.mxu0
    %v1323 = vadd.f32 %v743, %v1322
    %v1324 = vpop.f32.mrf.mxu0
    %1325 = vdwg.mxu0
    %v1326 = vld [vmem:[%s0 + $0x2] sm:$0xff]
    %v1327 = vld [vmem:[%s0 + $0xa] sm:$0xff]
    %v1328 = vld [vmem:[%s0 + $0x1a] sm:$0xff]
    %v1329 = vld [vmem:[%s0 + $0x22] sm:$0xff]
    %v1330 = vld [vmem:[%s0 + $0x32] sm:$0xff]
    %v1331 = vld [vmem:[%s0 + $0x3a] sm:$0xff]
    %v1332 = vld [vmem:[%s0 + $0x4a] sm:$0xff]
    %v1333 = vld [vmem:[%s0 + $0x52] sm:$0xff]
    %v1334 = vld [vmem:[%s0 + $0x62] sm:$0xff]
    %v1335 = vld [vmem:[%s0 + $0x6a] sm:$0xff]
    %v1336 = vld [vmem:[%s0 + $0x7a] sm:$0xff]
    %v1337 = vld [vmem:[%s0 + $0x82] sm:$0xff]
    %v1338 = vld [vmem:[%s0 + $0x92] sm:$0xff]
    %v1339 = vld [vmem:[%s0 + $0x9a] sm:$0xff]
    %v1340 = vld [vmem:[%s0 + $0xaa] sm:$0xff]
    %v1341 = vld [vmem:[%s0 + $0xb2] sm:$0xff]
    %v1342 = vld [vmem:[%s0 + $0xc2] sm:$0xff]
    %v1343 = vld [vmem:[%s0 + $0xca] sm:$0xff]
    %v1344 = vld [vmem:[%s0 + $0xda] sm:$0xff]
    %v1345 = vld [vmem:[%s0 + $0xe2] sm:$0xff]
    %v1346 = vld [vmem:[%s0 + $0xf2] sm:$0xff]
    %v1347 = vld [vmem:[%s0 + $0xfa] sm:$0xff]
    %v1348 = vld [vmem:[%s0 + $0x10a] sm:$0xff]
    %v1349 = vld [vmem:[%s0 + $0x112] sm:$0xff]
    %v1350 = vld [vmem:[%s0 + $0x122] sm:$0xff]
    %v1351 = vld [vmem:[%s0 + $0x12a] sm:$0xff]
    %v1352 = vld [vmem:[%s0 + $0x13a] sm:$0xff]
    %v1353 = vld [vmem:[%s0 + $0x142] sm:$0xff]
    %v1354 = vld [vmem:[%s0 + $0x152] sm:$0xff]
    %v1355 = vld [vmem:[%s0 + $0x15a] sm:$0xff]
    %v1356 = vld [vmem:[%s0 + $0x16a] sm:$0xff]
    %v1357 = vld [vmem:[%s0 + $0x172] sm:$0xff]
    %v1358 = vld [vmem:[%s0 + $0x1b2] sm:$0xff]
    %v1359 = vld [vmem:[%s0 + $0x1ba] sm:$0xff]
    %v1360 = vld [vmem:[%s0 + $0x1ca] sm:$0xff]
    %v1361 = vld [vmem:[%s0 + $0x1d2] sm:$0xff]
    %v1362 = vld [vmem:[%s0 + $0x1e2] sm:$0xff]
    %v1363 = vld [vmem:[%s0 + $0x1ea] sm:$0xff]
    %v1364 = vld [vmem:[%s0 + $0x1fa] sm:$0xff]
    %v1365 = vld [vmem:[%s0 + $0x202] sm:$0xff]
    %v1366 = vld [vmem:[%s0 + $0x212] sm:$0xff]
    %v1367 = vld [vmem:[%s0 + $0x21a] sm:$0xff]
    %v1368 = vld [vmem:[%s0 + $0x22a] sm:$0xff]
    %v1369 = vld [vmem:[%s0 + $0x232] sm:$0xff]
    %v1370 = vld [vmem:[%s0 + $0x242] sm:$0xff]
    %v1371 = vld [vmem:[%s0 + $0x24a] sm:$0xff]
    %v1372 = vld [vmem:[%s0 + $0x25a] sm:$0xff]
    %v1373 = vld [vmem:[%s0 + $0x262] sm:$0xff]
    %v1374 = vld [vmem:[%s0 + $0x272] sm:$0xff]
    %v1375 = vld [vmem:[%s0 + $0x27a] sm:$0xff]
    %v1376 = vld [vmem:[%s0 + $0x28a] sm:$0xff]
    %v1377 = vld [vmem:[%s0 + $0x292] sm:$0xff]
    %v1378 = vld [vmem:[%s0 + $0x2a2] sm:$0xff]
    %v1379 = vld [vmem:[%s0 + $0x2aa] sm:$0xff]
    %v1380 = vld [vmem:[%s0 + $0x2ba] sm:$0xff]
    %v1381 = vld [vmem:[%s0 + $0x2c2] sm:$0xff]
    %v1382 = vld [vmem:[%s0 + $0x2d2] sm:$0xff]
    %v1383 = vld [vmem:[%s0 + $0x2da] sm:$0xff]
    %v1384 = vld [vmem:[%s0 + $0x2ea] sm:$0xff]
    %v1385 = vld [vmem:[%s0 + $0x2f2] sm:$0xff]
    %v1386 = vld [vmem:[%s0 + $0x302] sm:$0xff]
    %v1387 = vld [vmem:[%s0 + $0x30a] sm:$0xff]
    %v1388 = vld [vmem:[%s0 + $0x31a] sm:$0xff]
    %v1389 = vld [vmem:[%s0 + $0x322] sm:$0xff]
    %s1390 = scalar_lea.vmem %s1, 8
    %v1391 = vld [vmem:[%s1390] sm:$0xf]
    %v1393 = vsel %vm164, %v1326, 0
    %v1396 = vsel %vm164, %v1327, 0
    %v1399 = vsel %vm164, %v1328, 0
    %v1402 = vsel %vm164, %v1329, 0
    %v1405 = vsel %vm164, %v1330, 0
    %v1408 = vsel %vm164, %v1331, 0
    %v1411 = vsel %vm164, %v1332, 0
    %v1414 = vsel %vm164, %v1333, 0
    %v1417 = vsel %vm164, %v1334, 0
    %v1420 = vsel %vm164, %v1335, 0
    %v1423 = vsel %vm164, %v1336, 0
    %v1426 = vsel %vm164, %v1337, 0
    %v1429 = vsel %vm164, %v1338, 0
    %v1432 = vsel %vm164, %v1339, 0
    %v1435 = vsel %vm164, %v1340, 0
    %v1438 = vsel %vm164, %v1341, 0
    %v1441 = vsel %vm164, %v1342, 0
    %v1444 = vsel %vm164, %v1343, 0
    %v1447 = vsel %vm164, %v1344, 0
    %v1450 = vsel %vm164, %v1345, 0
    %v1453 = vsel %vm164, %v1346, 0
    %v1456 = vsel %vm164, %v1347, 0
    %v1459 = vsel %vm164, %v1348, 0
    %v1462 = vsel %vm164, %v1349, 0
    %v1465 = vsel %vm164, %v1350, 0
    %v1468 = vsel %vm164, %v1351, 0
    %v1471 = vsel %vm164, %v1352, 0
    %v1474 = vsel %vm164, %v1353, 0
    %v1477 = vsel %vm164, %v1354, 0
    %v1480 = vsel %vm164, %v1355, 0
    %v1483 = vsel %vm164, %v1356, 0
    %v1486 = vsel %vm164, %v1357, 0
    %v1489 = vsel %vm164, %v1358, 0
    %v1492 = vsel %vm164, %v1359, 0
    %v1495 = vsel %vm164, %v1360, 0
    %v1498 = vsel %vm164, %v1361, 0
    %v1501 = vsel %vm164, %v1362, 0
    %v1504 = vsel %vm164, %v1363, 0
    %v1507 = vsel %vm164, %v1364, 0
    %v1510 = vsel %vm164, %v1365, 0
    %v1513 = vsel %vm164, %v1366, 0
    %v1516 = vsel %vm164, %v1367, 0
    %v1519 = vsel %vm164, %v1368, 0
    %v1522 = vsel %vm164, %v1369, 0
    %v1525 = vsel %vm164, %v1370, 0
    %v1528 = vsel %vm164, %v1371, 0
    %v1531 = vsel %vm164, %v1372, 0
    %v1534 = vsel %vm164, %v1373, 0
    %v1537 = vsel %vm164, %v1374, 0
    %v1540 = vsel %vm164, %v1375, 0
    %v1543 = vsel %vm164, %v1376, 0
    %v1546 = vsel %vm164, %v1377, 0
    %v1549 = vsel %vm164, %v1378, 0
    %v1552 = vsel %vm164, %v1379, 0
    %v1555 = vsel %vm164, %v1380, 0
    %v1558 = vsel %vm164, %v1381, 0
    %v1561 = vsel %vm164, %v1382, 0
    %v1564 = vsel %vm164, %v1383, 0
    %v1567 = vsel %vm164, %v1384, 0
    %v1570 = vsel %vm164, %v1385, 0
    %v1573 = vsel %vm164, %v1386, 0
    %v1576 = vsel %vm164, %v1387, 0
    %v1579 = vsel %vm164, %v1388, 0
    %v1582 = vsel %vm164, %v1389, 0
    %v1585 = vsel %vm357, %v1391, 0
    %1587 = vmatprep.subr.mxu0 0.0
    %1588 = vmatpush1.msra.mxu0 0.0
    %1589 = vmatprep.subr.mxu0 0.0
    %1590 = vmatpush1.msra.mxu0 0.0
    %1591 = vmatprep.subr.mxu0 0.0
    %1592 = vmatpush1.msra.mxu0 0.0
    %1593 = vmatprep.subr.mxu0 0.0
    %1594 = vmatpush1.msra.mxu0 0.0
    %1595 = vmatprep.subr.mxu0 0.0
    %1596 = vmatpush1.msra.mxu0 0.0
    %1597 = vmatprep.subr.mxu0 0.0
    %1598 = vmatpush1.msra.mxu0 0.0
    %1599 = vmatprep.subr.mxu0 0.0
    %1600 = vmatpush1.msra.mxu0 0.0
    %1601 = vmatprep.subr.mxu0 0.0
    %1602 = vmatpush1.msra.mxu0 0.0
    %1603 = vmatprep.subr.mxu0 0.0
    %1604 = vmatpush1.msra.mxu0 0.0
    %1605 = vmatprep.subr.mxu0 0.0
    %1606 = vmatpush1.msra.mxu0 0.0
    %1607 = vmatprep.subr.mxu0 0.0
    %1608 = vmatpush1.msra.mxu0 0.0
    %1609 = vmatprep.subr.mxu0 0.0
    %1610 = vmatpush1.msra.mxu0 0.0
    %1611 = vmatprep.subr.mxu0 0.0
    %1612 = vmatpush1.msra.mxu0 0.0
    %1613 = vmatprep.subr.mxu0 0.0
    %1614 = vmatpush1.msra.mxu0 0.0
    %1615 = vmatprep.subr.mxu0 0.0
    %1616 = vmatpush1.msra.mxu0 0.0
    %1617 = vmatprep.subr.mxu0 0.0
    %1618 = vmatpush1.msra.mxu0 %v1585
    %1619 = vmatprep.subr.mxu0 0.0
    %1620 = vmatpush2.msra.mxu0 0.0
    %1621 = vmatprep.subr.mxu0 0.0
    %1622 = vmatpush2.msra.mxu0 0.0
    %1623 = vmatprep.subr.mxu0 0.0
    %1624 = vmatpush2.msra.mxu0 0.0
    %1625 = vmatprep.subr.mxu0 0.0
    %1626 = vmatpush2.msra.mxu0 0.0
    %1627 = vmatprep.subr.mxu0 0.0
    %1628 = vmatpush2.msra.mxu0 0.0
    %1629 = vmatprep.subr.mxu0 0.0
    %1630 = vmatpush2.msra.mxu0 0.0
    %1631 = vmatprep.subr.mxu0 0.0
    %1632 = vmatpush2.msra.mxu0 0.0
    %1633 = vmatprep.subr.mxu0 0.0
    %1634 = vmatpush2.msra.mxu0 0.0
    %1635 = vmatprep.subr.mxu0 0.0
    %1636 = vmatpush2.msra.mxu0 0.0
    %1637 = vmatprep.subr.mxu0 0.0
    %1638 = vmatpush2.msra.mxu0 0.0
    %1639 = vmatprep.subr.mxu0 0.0
    %1640 = vmatpush2.msra.mxu0 0.0
    %1641 = vmatprep.subr.mxu0 0.0
    %1642 = vmatpush2.msra.mxu0 0.0
    %1643 = vmatprep.subr.mxu0 0.0
    %1644 = vmatpush2.msra.mxu0 0.0
    %1645 = vmatprep.subr.mxu0 0.0
    %1646 = vmatpush2.msra.mxu0 0.0
    %1647 = vmatprep.subr.mxu0 0.0
    %1648 = vmatpush2.msra.mxu0 0.0
    %1649 = vmatprep.subr.mxu0 0.0
    %1650 = vmatpush2.msra.mxu0 0.0
    %1651 = vmatprep.mubr.f32.mxu0 0.0
    %1652 = vmatmul.mubr.f32.gmra.mxu0 %v1393
    %v1653 = vpop.f32.mrf.mxu0
    %v1654 = vadd.f32 0.0, %v1653
    %v1655 = vpop.f32.mrf.mxu0
    %1656 = vmatprep.mubr.f32.mxu0 0.0
    %1657 = vmatmul.mubr.f32.gmra.mxu0 %v1396
    %v1658 = vpop.f32.mrf.mxu0
    %v1659 = vadd.f32 0.0, %v1658
    %v1660 = vpop.f32.mrf.mxu0
    %1661 = vmatprep.mubr.f32.mxu0 0.0
    %1662 = vmatmul.mubr.f32.gmra.mxu0 %v1399
    %v1663 = vpop.f32.mrf.mxu0
    %v1664 = vadd.f32 0.0, %v1663
    %v1665 = vpop.f32.mrf.mxu0
    %1666 = vmatprep.mubr.f32.mxu0 0.0
    %1667 = vmatmul.mubr.f32.gmra.mxu0 %v1402
    %v1668 = vpop.f32.mrf.mxu0
    %v1669 = vadd.f32 0.0, %v1668
    %v1670 = vpop.f32.mrf.mxu0
    %1671 = vmatprep.mubr.f32.mxu0 0.0
    %1672 = vmatmul.mubr.f32.gmra.mxu0 %v1405
    %v1673 = vpop.f32.mrf.mxu0
    %v1674 = vadd.f32 0.0, %v1673
    %v1675 = vpop.f32.mrf.mxu0
    %1676 = vmatprep.mubr.f32.mxu0 0.0
    %1677 = vmatmul.mubr.f32.gmra.mxu0 %v1408
    %v1678 = vpop.f32.mrf.mxu0
    %v1679 = vadd.f32 0.0, %v1678
    %v1680 = vpop.f32.mrf.mxu0
    %1681 = vmatprep.mubr.f32.mxu0 0.0
    %1682 = vmatmul.mubr.f32.gmra.mxu0 %v1411
    %v1683 = vpop.f32.mrf.mxu0
    %v1684 = vadd.f32 0.0, %v1683
    %v1685 = vpop.f32.mrf.mxu0
    %1686 = vmatprep.mubr.f32.mxu0 0.0
    %1687 = vmatmul.mubr.f32.gmra.mxu0 %v1414
    %v1688 = vpop.f32.mrf.mxu0
    %v1689 = vadd.f32 0.0, %v1688
    %v1690 = vpop.f32.mrf.mxu0
    %1691 = vmatprep.mubr.f32.mxu0 0.0
    %1692 = vmatmul.mubr.f32.gmra.mxu0 %v1417
    %v1693 = vpop.f32.mrf.mxu0
    %v1694 = vadd.f32 0.0, %v1693
    %v1695 = vpop.f32.mrf.mxu0
    %1696 = vmatprep.mubr.f32.mxu0 0.0
    %1697 = vmatmul.mubr.f32.gmra.mxu0 %v1420
    %v1698 = vpop.f32.mrf.mxu0
    %v1699 = vadd.f32 0.0, %v1698
    %v1700 = vpop.f32.mrf.mxu0
    %1701 = vmatprep.mubr.f32.mxu0 0.0
    %1702 = vmatmul.mubr.f32.gmra.mxu0 %v1423
    %v1703 = vpop.f32.mrf.mxu0
    %v1704 = vadd.f32 0.0, %v1703
    %v1705 = vpop.f32.mrf.mxu0
    %1706 = vmatprep.mubr.f32.mxu0 0.0
    %1707 = vmatmul.mubr.f32.gmra.mxu0 %v1426
    %v1708 = vpop.f32.mrf.mxu0
    %v1709 = vadd.f32 0.0, %v1708
    %v1710 = vpop.f32.mrf.mxu0
    %1711 = vmatprep.mubr.f32.mxu0 0.0
    %1712 = vmatmul.mubr.f32.gmra.mxu0 %v1429
    %v1713 = vpop.f32.mrf.mxu0
    %v1714 = vadd.f32 0.0, %v1713
    %v1715 = vpop.f32.mrf.mxu0
    %1716 = vmatprep.mubr.f32.mxu0 0.0
    %1717 = vmatmul.mubr.f32.gmra.mxu0 %v1432
    %v1718 = vpop.f32.mrf.mxu0
    %v1719 = vadd.f32 0.0, %v1718
    %v1720 = vpop.f32.mrf.mxu0
    %1721 = vmatprep.mubr.f32.mxu0 0.0
    %1722 = vmatmul.mubr.f32.gmra.mxu0 %v1435
    %v1723 = vpop.f32.mrf.mxu0
    %v1724 = vadd.f32 0.0, %v1723
    %v1725 = vpop.f32.mrf.mxu0
    %1726 = vmatprep.mubr.f32.mxu0 0.0
    %1727 = vmatmul.mubr.f32.gmra.mxu0 %v1438
    %v1728 = vpop.f32.mrf.mxu0
    %v1729 = vadd.f32 0.0, %v1728
    %v1730 = vpop.f32.mrf.mxu0
    %1731 = vmatprep.mubr.f32.mxu0 0.0
    %1732 = vmatmul.mubr.f32.gmra.mxu0 %v1441
    %v1733 = vpop.f32.mrf.mxu0
    %v1734 = vadd.f32 0.0, %v1733
    %v1735 = vpop.f32.mrf.mxu0
    %1736 = vmatprep.mubr.f32.mxu0 0.0
    %1737 = vmatmul.mubr.f32.gmra.mxu0 %v1444
    %v1738 = vpop.f32.mrf.mxu0
    %v1739 = vadd.f32 0.0, %v1738
    %v1740 = vpop.f32.mrf.mxu0
    %1741 = vmatprep.mubr.f32.mxu0 0.0
    %1742 = vmatmul.mubr.f32.gmra.mxu0 %v1447
    %v1743 = vpop.f32.mrf.mxu0
    %v1744 = vadd.f32 0.0, %v1743
    %v1745 = vpop.f32.mrf.mxu0
    %1746 = vmatprep.mubr.f32.mxu0 0.0
    %1747 = vmatmul.mubr.f32.gmra.mxu0 %v1450
    %v1748 = vpop.f32.mrf.mxu0
    %v1749 = vadd.f32 0.0, %v1748
    %v1750 = vpop.f32.mrf.mxu0
    %1751 = vmatprep.mubr.f32.mxu0 0.0
    %1752 = vmatmul.mubr.f32.gmra.mxu0 %v1453
    %v1753 = vpop.f32.mrf.mxu0
    %v1754 = vadd.f32 0.0, %v1753
    %v1755 = vpop.f32.mrf.mxu0
    %1756 = vmatprep.mubr.f32.mxu0 0.0
    %1757 = vmatmul.mubr.f32.gmra.mxu0 %v1456
    %v1758 = vpop.f32.mrf.mxu0
    %v1759 = vadd.f32 0.0, %v1758
    %v1760 = vpop.f32.mrf.mxu0
    %1761 = vmatprep.mubr.f32.mxu0 0.0
    %1762 = vmatmul.mubr.f32.gmra.mxu0 %v1459
    %v1763 = vpop.f32.mrf.mxu0
    %v1764 = vadd.f32 0.0, %v1763
    %v1765 = vpop.f32.mrf.mxu0
    %1766 = vmatprep.mubr.f32.mxu0 0.0
    %1767 = vmatmul.mubr.f32.gmra.mxu0 %v1462
    %v1768 = vpop.f32.mrf.mxu0
    %v1769 = vadd.f32 0.0, %v1768
    %v1770 = vpop.f32.mrf.mxu0
    %1771 = vmatprep.mubr.f32.mxu0 0.0
    %1772 = vmatmul.mubr.f32.gmra.mxu0 %v1465
    %v1773 = vpop.f32.mrf.mxu0
    %v1774 = vadd.f32 0.0, %v1773
    %v1775 = vpop.f32.mrf.mxu0
    %1776 = vmatprep.mubr.f32.mxu0 0.0
    %1777 = vmatmul.mubr.f32.gmra.mxu0 %v1468
    %v1778 = vpop.f32.mrf.mxu0
    %v1779 = vadd.f32 0.0, %v1778
    %v1780 = vpop.f32.mrf.mxu0
    %1781 = vmatprep.mubr.f32.mxu0 0.0
    %1782 = vmatmul.mubr.f32.gmra.mxu0 %v1471
    %v1783 = vpop.f32.mrf.mxu0
    %v1784 = vadd.f32 0.0, %v1783
    %v1785 = vpop.f32.mrf.mxu0
    %1786 = vmatprep.mubr.f32.mxu0 0.0
    %1787 = vmatmul.mubr.f32.gmra.mxu0 %v1474
    %v1788 = vpop.f32.mrf.mxu0
    %v1789 = vadd.f32 0.0, %v1788
    %v1790 = vpop.f32.mrf.mxu0
    %1791 = vmatprep.mubr.f32.mxu0 0.0
    %1792 = vmatmul.mubr.f32.gmra.mxu0 %v1477
    %v1793 = vpop.f32.mrf.mxu0
    %v1794 = vadd.f32 0.0, %v1793
    %v1795 = vpop.f32.mrf.mxu0
    %1796 = vmatprep.mubr.f32.mxu0 0.0
    %1797 = vmatmul.mubr.f32.gmra.mxu0 %v1480
    %v1798 = vpop.f32.mrf.mxu0
    %v1799 = vadd.f32 0.0, %v1798
    %v1800 = vpop.f32.mrf.mxu0
    %1801 = vmatprep.mubr.f32.mxu0 0.0
    %1802 = vmatmul.mubr.f32.gmra.mxu0 %v1483
    %v1803 = vpop.f32.mrf.mxu0
    %v1804 = vadd.f32 0.0, %v1803
    %v1805 = vpop.f32.mrf.mxu0
    %1806 = vmatprep.mubr.f32.mxu0 0.0
    %1807 = vmatmul.mubr.f32.gmra.mxu0 %v1486
    %v1808 = vpop.f32.mrf.mxu0
    %v1809 = vadd.f32 0.0, %v1808
    %v1810 = vpop.f32.mrf.mxu0
    %1811 = vmatprep.mubr.f32.mxu0 0.0
    %1812 = vmatmul.mubr.f32.gmra.mxu0 %v1489
    %v1813 = vpop.f32.mrf.mxu0
    %v1814 = vadd.f32 0.0, %v1813
    %v1815 = vpop.f32.mrf.mxu0
    %1816 = vmatprep.mubr.f32.mxu0 0.0
    %1817 = vmatmul.mubr.f32.gmra.mxu0 %v1492
    %v1818 = vpop.f32.mrf.mxu0
    %v1819 = vadd.f32 0.0, %v1818
    %v1820 = vpop.f32.mrf.mxu0
    %1821 = vmatprep.mubr.f32.mxu0 0.0
    %1822 = vmatmul.mubr.f32.gmra.mxu0 %v1495
    %v1823 = vpop.f32.mrf.mxu0
    %v1824 = vadd.f32 0.0, %v1823
    %v1825 = vpop.f32.mrf.mxu0
    %1826 = vmatprep.mubr.f32.mxu0 0.0
    %1827 = vmatmul.mubr.f32.gmra.mxu0 %v1498
    %v1828 = vpop.f32.mrf.mxu0
    %v1829 = vadd.f32 0.0, %v1828
    %v1830 = vpop.f32.mrf.mxu0
    %1831 = vmatprep.mubr.f32.mxu0 0.0
    %1832 = vmatmul.mubr.f32.gmra.mxu0 %v1501
    %v1833 = vpop.f32.mrf.mxu0
    %v1834 = vadd.f32 0.0, %v1833
    %v1835 = vpop.f32.mrf.mxu0
    %1836 = vmatprep.mubr.f32.mxu0 0.0
    %1837 = vmatmul.mubr.f32.gmra.mxu0 %v1504
    %v1838 = vpop.f32.mrf.mxu0
    %v1839 = vadd.f32 0.0, %v1838
    %v1840 = vpop.f32.mrf.mxu0
    %1841 = vmatprep.mubr.f32.mxu0 0.0
    %1842 = vmatmul.mubr.f32.gmra.mxu0 %v1507
    %v1843 = vpop.f32.mrf.mxu0
    %v1844 = vadd.f32 0.0, %v1843
    %v1845 = vpop.f32.mrf.mxu0
    %1846 = vmatprep.mubr.f32.mxu0 0.0
    %1847 = vmatmul.mubr.f32.gmra.mxu0 %v1510
    %v1848 = vpop.f32.mrf.mxu0
    %v1849 = vadd.f32 0.0, %v1848
    %v1850 = vpop.f32.mrf.mxu0
    %1851 = vmatprep.mubr.f32.mxu0 0.0
    %1852 = vmatmul.mubr.f32.gmra.mxu0 %v1513
    %v1853 = vpop.f32.mrf.mxu0
    %v1854 = vadd.f32 0.0, %v1853
    %v1855 = vpop.f32.mrf.mxu0
    %1856 = vmatprep.mubr.f32.mxu0 0.0
    %1857 = vmatmul.mubr.f32.gmra.mxu0 %v1516
    %v1858 = vpop.f32.mrf.mxu0
    %v1859 = vadd.f32 0.0, %v1858
    %v1860 = vpop.f32.mrf.mxu0
    %1861 = vmatprep.mubr.f32.mxu0 0.0
    %1862 = vmatmul.mubr.f32.gmra.mxu0 %v1519
    %v1863 = vpop.f32.mrf.mxu0
    %v1864 = vadd.f32 0.0, %v1863
    %v1865 = vpop.f32.mrf.mxu0
    %1866 = vmatprep.mubr.f32.mxu0 0.0
    %1867 = vmatmul.mubr.f32.gmra.mxu0 %v1522
    %v1868 = vpop.f32.mrf.mxu0
    %v1869 = vadd.f32 0.0, %v1868
    %v1870 = vpop.f32.mrf.mxu0
    %1871 = vmatprep.mubr.f32.mxu0 0.0
    %1872 = vmatmul.mubr.f32.gmra.mxu0 %v1525
    %v1873 = vpop.f32.mrf.mxu0
    %v1874 = vadd.f32 0.0, %v1873
    %v1875 = vpop.f32.mrf.mxu0
    %1876 = vmatprep.mubr.f32.mxu0 0.0
    %1877 = vmatmul.mubr.f32.gmra.mxu0 %v1528
    %v1878 = vpop.f32.mrf.mxu0
    %v1879 = vadd.f32 0.0, %v1878
    %v1880 = vpop.f32.mrf.mxu0
    %1881 = vmatprep.mubr.f32.mxu0 0.0
    %1882 = vmatmul.mubr.f32.gmra.mxu0 %v1531
    %v1883 = vpop.f32.mrf.mxu0
    %v1884 = vadd.f32 0.0, %v1883
    %v1885 = vpop.f32.mrf.mxu0
    %1886 = vmatprep.mubr.f32.mxu0 0.0
    %1887 = vmatmul.mubr.f32.gmra.mxu0 %v1534
    %v1888 = vpop.f32.mrf.mxu0
    %v1889 = vadd.f32 0.0, %v1888
    %v1890 = vpop.f32.mrf.mxu0
    %1891 = vmatprep.mubr.f32.mxu0 0.0
    %1892 = vmatmul.mubr.f32.gmra.mxu0 %v1537
    %v1893 = vpop.f32.mrf.mxu0
    %v1894 = vadd.f32 0.0, %v1893
    %v1895 = vpop.f32.mrf.mxu0
    %1896 = vmatprep.mubr.f32.mxu0 0.0
    %1897 = vmatmul.mubr.f32.gmra.mxu0 %v1540
    %v1898 = vpop.f32.mrf.mxu0
    %v1899 = vadd.f32 0.0, %v1898
    %v1900 = vpop.f32.mrf.mxu0
    %1901 = vmatprep.mubr.f32.mxu0 0.0
    %1902 = vmatmul.mubr.f32.gmra.mxu0 %v1543
    %v1903 = vpop.f32.mrf.mxu0
    %v1904 = vadd.f32 0.0, %v1903
    %v1905 = vpop.f32.mrf.mxu0
    %1906 = vmatprep.mubr.f32.mxu0 0.0
    %1907 = vmatmul.mubr.f32.gmra.mxu0 %v1546
    %v1908 = vpop.f32.mrf.mxu0
    %v1909 = vadd.f32 0.0, %v1908
    %v1910 = vpop.f32.mrf.mxu0
    %1911 = vmatprep.mubr.f32.mxu0 0.0
    %1912 = vmatmul.mubr.f32.gmra.mxu0 %v1549
    %v1913 = vpop.f32.mrf.mxu0
    %v1914 = vadd.f32 0.0, %v1913
    %v1915 = vpop.f32.mrf.mxu0
    %1916 = vmatprep.mubr.f32.mxu0 0.0
    %1917 = vmatmul.mubr.f32.gmra.mxu0 %v1552
    %v1918 = vpop.f32.mrf.mxu0
    %v1919 = vadd.f32 0.0, %v1918
    %v1920 = vpop.f32.mrf.mxu0
    %1921 = vmatprep.mubr.f32.mxu0 0.0
    %1922 = vmatmul.mubr.f32.gmra.mxu0 %v1555
    %v1923 = vpop.f32.mrf.mxu0
    %v1924 = vadd.f32 0.0, %v1923
    %v1925 = vpop.f32.mrf.mxu0
    %1926 = vmatprep.mubr.f32.mxu0 0.0
    %1927 = vmatmul.mubr.f32.gmra.mxu0 %v1558
    %v1928 = vpop.f32.mrf.mxu0
    %v1929 = vadd.f32 0.0, %v1928
    %v1930 = vpop.f32.mrf.mxu0
    %1931 = vmatprep.mubr.f32.mxu0 0.0
    %1932 = vmatmul.mubr.f32.gmra.mxu0 %v1561
    %v1933 = vpop.f32.mrf.mxu0
    %v1934 = vadd.f32 0.0, %v1933
    %v1935 = vpop.f32.mrf.mxu0
    %1936 = vmatprep.mubr.f32.mxu0 0.0
    %1937 = vmatmul.mubr.f32.gmra.mxu0 %v1564
    %v1938 = vpop.f32.mrf.mxu0
    %v1939 = vadd.f32 0.0, %v1938
    %v1940 = vpop.f32.mrf.mxu0
    %1941 = vmatprep.mubr.f32.mxu0 0.0
    %1942 = vmatmul.mubr.f32.gmra.mxu0 %v1567
    %v1943 = vpop.f32.mrf.mxu0
    %v1944 = vadd.f32 0.0, %v1943
    %v1945 = vpop.f32.mrf.mxu0
    %1946 = vmatprep.mubr.f32.mxu0 0.0
    %1947 = vmatmul.mubr.f32.gmra.mxu0 %v1570
    %v1948 = vpop.f32.mrf.mxu0
    %v1949 = vadd.f32 0.0, %v1948
    %v1950 = vpop.f32.mrf.mxu0
    %1951 = vmatprep.mubr.f32.mxu0 0.0
    %1952 = vmatmul.mubr.f32.gmra.mxu0 %v1573
    %v1953 = vpop.f32.mrf.mxu0
    %v1954 = vadd.f32 0.0, %v1953
    %v1955 = vpop.f32.mrf.mxu0
    %1956 = vmatprep.mubr.f32.mxu0 0.0
    %1957 = vmatmul.mubr.f32.gmra.mxu0 %v1576
    %v1958 = vpop.f32.mrf.mxu0
    %v1959 = vadd.f32 0.0, %v1958
    %v1960 = vpop.f32.mrf.mxu0
    %1961 = vmatprep.mubr.f32.mxu0 0.0
    %1962 = vmatmul.mubr.f32.gmra.mxu0 %v1579
    %v1963 = vpop.f32.mrf.mxu0
    %v1964 = vadd.f32 0.0, %v1963
    %v1965 = vpop.f32.mrf.mxu0
    %1966 = vmatprep.mubr.f32.mxu0 0.0
    %1967 = vmatmul.mubr.f32.gmra.mxu0 %v1582
    %v1968 = vpop.f32.mrf.mxu0
    %v1969 = vadd.f32 0.0, %v1968
    %v1970 = vpop.f32.mrf.mxu0
    %1971 = vdwg.mxu0
    %v1972 = vadd.f32 %v1008, %v1654
    %v1973 = vadd.f32 %v1013, %v1659
    %v1974 = vadd.f32 %v1018, %v1664
    %v1975 = vadd.f32 %v1023, %v1669
    %v1976 = vadd.f32 %v1028, %v1674
    %v1977 = vadd.f32 %v1033, %v1679
    %v1978 = vadd.f32 %v1038, %v1684
    %v1979 = vadd.f32 %v1043, %v1689
    %v1980 = vadd.f32 %v1048, %v1694
    %v1981 = vadd.f32 %v1053, %v1699
    %v1982 = vadd.f32 %v1058, %v1704
    %v1983 = vadd.f32 %v1063, %v1709
    %v1984 = vadd.f32 %v1068, %v1714
    %v1985 = vadd.f32 %v1073, %v1719
    %v1986 = vadd.f32 %v1078, %v1724
    %v1987 = vadd.f32 %v1083, %v1729
    %v1988 = vadd.f32 %v1088, %v1734
    %v1989 = vadd.f32 %v1093, %v1739
    %v1990 = vadd.f32 %v1098, %v1744
    %v1991 = vadd.f32 %v1103, %v1749
    %v1992 = vadd.f32 %v1108, %v1754
    %v1993 = vadd.f32 %v1113, %v1759
    %v1994 = vadd.f32 %v1118, %v1764
    %v1995 = vadd.f32 %v1123, %v1769
    %v1996 = vadd.f32 %v1128, %v1774
    %v1997 = vadd.f32 %v1133, %v1779
    %v1998 = vadd.f32 %v1138, %v1784
    %v1999 = vadd.f32 %v1143, %v1789
    %v2000 = vadd.f32 %v1148, %v1794
    %v2001 = vadd.f32 %v1153, %v1799
    %v2002 = vadd.f32 %v1158, %v1804
    %v2003 = vadd.f32 %v1163, %v1809
    %v2004 = vadd.f32 %v1168, %v1814
    %v2005 = vadd.f32 %v1173, %v1819
    %v2006 = vadd.f32 %v1178, %v1824
    %v2007 = vadd.f32 %v1183, %v1829
    %v2008 = vadd.f32 %v1188, %v1834
    %v2009 = vadd.f32 %v1193, %v1839
    %v2010 = vadd.f32 %v1198, %v1844
    %v2011 = vadd.f32 %v1203, %v1849
    %v2012 = vadd.f32 %v1208, %v1854
    %v2013 = vadd.f32 %v1213, %v1859
    %v2014 = vadd.f32 %v1218, %v1864
    %v2015 = vadd.f32 %v1223, %v1869
    %v2016 = vadd.f32 %v1228, %v1874
    %v2017 = vadd.f32 %v1233, %v1879
    %v2018 = vadd.f32 %v1238, %v1884
    %v2019 = vadd.f32 %v1243, %v1889
    %v2020 = vadd.f32 %v1248, %v1894
    %v2021 = vadd.f32 %v1253, %v1899
    %v2022 = vadd.f32 %v1258, %v1904
    %v2023 = vadd.f32 %v1263, %v1909
    %v2024 = vadd.f32 %v1268, %v1914
    %v2025 = vadd.f32 %v1273, %v1919
    %v2026 = vadd.f32 %v1278, %v1924
    %v2027 = vadd.f32 %v1283, %v1929
    %v2028 = vadd.f32 %v1288, %v1934
    %v2029 = vadd.f32 %v1293, %v1939
    %v2030 = vadd.f32 %v1298, %v1944
    %v2031 = vadd.f32 %v1303, %v1949
    %v2032 = vadd.f32 %v1308, %v1954
    %v2033 = vadd.f32 %v1313, %v1959
    %v2034 = vadd.f32 %v1318, %v1964
    %v2035 = vadd.f32 %v1323, %v1969
    %s2036 = scalar_lea.vmem %s0, 24
    %v2037 = vld [vmem:[%s2036] sm:$0xff]
    %v2038 = vld [vmem:[%s2036 + $0x8] sm:$0xff]
    %v2039 = vld [vmem:[%s2036 + $0x18] sm:$0xff]
    %v2040 = vld [vmem:[%s2036 + $0x20] sm:$0xff]
    %v2041 = vld [vmem:[%s2036 + $0x30] sm:$0xff]
    %v2042 = vld [vmem:[%s2036 + $0x38] sm:$0xff]
    %v2043 = vld [vmem:[%s2036 + $0x48] sm:$0xff]
    %v2044 = vld [vmem:[%s2036 + $0x50] sm:$0xff]
    %v2045 = vld [vmem:[%s2036 + $0x60] sm:$0xff]
    %v2046 = vld [vmem:[%s2036 + $0x68] sm:$0xff]
    %v2047 = vld [vmem:[%s2036 + $0x78] sm:$0xff]
    %v2048 = vld [vmem:[%s2036 + $0x80] sm:$0xff]
    %v2049 = vld [vmem:[%s2036 + $0x90] sm:$0xff]
    %v2050 = vld [vmem:[%s2036 + $0x98] sm:$0xff]
    %v2051 = vld [vmem:[%s2036 + $0xa8] sm:$0xff]
    %v2052 = vld [vmem:[%s2036 + $0xb0] sm:$0xff]
    %v2053 = vld [vmem:[%s2036 + $0xc0] sm:$0xff]
    %v2054 = vld [vmem:[%s2036 + $0xc8] sm:$0xff]
    %v2055 = vld [vmem:[%s2036 + $0xd8] sm:$0xff]
    %v2056 = vld [vmem:[%s2036 + $0xe0] sm:$0xff]
    %v2057 = vld [vmem:[%s2036 + $0xf0] sm:$0xff]
    %v2058 = vld [vmem:[%s2036 + $0xf8] sm:$0xff]
    %v2059 = vld [vmem:[%s2036 + $0x108] sm:$0xff]
    %v2060 = vld [vmem:[%s2036 + $0x110] sm:$0xff]
    %v2061 = vld [vmem:[%s2036 + $0x120] sm:$0xff]
    %v2062 = vld [vmem:[%s2036 + $0x128] sm:$0xff]
    %v2063 = vld [vmem:[%s2036 + $0x138] sm:$0xff]
    %v2064 = vld [vmem:[%s2036 + $0x140] sm:$0xff]
    %v2065 = vld [vmem:[%s2036 + $0x150] sm:$0xff]
    %v2066 = vld [vmem:[%s2036 + $0x158] sm:$0xff]
    %v2067 = vld [vmem:[%s2036 + $0x168] sm:$0xff]
    %v2068 = vld [vmem:[%s2036 + $0x170] sm:$0xff]
    %v2069 = vld [vmem:[%s2036 + $0x1b0] sm:$0xff]
    %v2070 = vld [vmem:[%s2036 + $0x1b8] sm:$0xff]
    %v2071 = vld [vmem:[%s2036 + $0x1c8] sm:$0xff]
    %v2072 = vld [vmem:[%s2036 + $0x1d0] sm:$0xff]
    %v2073 = vld [vmem:[%s2036 + $0x1e0] sm:$0xff]
    %v2074 = vld [vmem:[%s2036 + $0x1e8] sm:$0xff]
    %v2075 = vld [vmem:[%s2036 + $0x1f8] sm:$0xff]
    %v2076 = vld [vmem:[%s2036 + $0x200] sm:$0xff]
    %v2077 = vld [vmem:[%s2036 + $0x210] sm:$0xff]
    %v2078 = vld [vmem:[%s2036 + $0x218] sm:$0xff]
    %v2079 = vld [vmem:[%s2036 + $0x228] sm:$0xff]
    %v2080 = vld [vmem:[%s2036 + $0x230] sm:$0xff]
    %v2081 = vld [vmem:[%s2036 + $0x240] sm:$0xff]
    %v2082 = vld [vmem:[%s2036 + $0x248] sm:$0xff]
    %v2083 = vld [vmem:[%s2036 + $0x258] sm:$0xff]
    %v2084 = vld [vmem:[%s2036 + $0x260] sm:$0xff]
    %v2085 = vld [vmem:[%s2036 + $0x270] sm:$0xff]
    %v2086 = vld [vmem:[%s2036 + $0x278] sm:$0xff]
    %v2087 = vld [vmem:[%s2036 + $0x288] sm:$0xff]
    %v2088 = vld [vmem:[%s2036 + $0x290] sm:$0xff]
    %v2089 = vld [vmem:[%s2036 + $0x2a0] sm:$0xff]
    %v2090 = vld [vmem:[%s2036 + $0x2a8] sm:$0xff]
    %v2091 = vld [vmem:[%s2036 + $0x2b8] sm:$0xff]
    %v2092 = vld [vmem:[%s2036 + $0x2c0] sm:$0xff]
    %v2093 = vld [vmem:[%s2036 + $0x2d0] sm:$0xff]
    %v2094 = vld [vmem:[%s2036 + $0x2d8] sm:$0xff]
    %v2095 = vld [vmem:[%s2036 + $0x2e8] sm:$0xff]
    %v2096 = vld [vmem:[%s2036 + $0x2f0] sm:$0xff]
    %v2097 = vld [vmem:[%s2036 + $0x300] sm:$0xff]
    %v2098 = vld [vmem:[%s2036 + $0x308] sm:$0xff]
    %v2099 = vld [vmem:[%s2036 + $0x318] sm:$0xff]
    %v2100 = vld [vmem:[%s2036 + $0x320] sm:$0xff]
    %s2101 = scalar_lea.vmem %s1, 12
    %v2102 = vld [vmem:[%s2101] sm:$0xf]
    %v2104 = vsel %vm164, %v2037, 0
    %v2107 = vsel %vm164, %v2038, 0
    %v2110 = vsel %vm164, %v2039, 0
    %v2113 = vsel %vm164, %v2040, 0
    %v2116 = vsel %vm164, %v2041, 0
    %v2119 = vsel %vm164, %v2042, 0
    %v2122 = vsel %vm164, %v2043, 0
    %v2125 = vsel %vm164, %v2044, 0
    %v2128 = vsel %vm164, %v2045, 0
    %v2131 = vsel %vm164, %v2046, 0
    %v2134 = vsel %vm164, %v2047, 0
    %v2137 = vsel %vm164, %v2048, 0
    %v2140 = vsel %vm164, %v2049, 0
    %v2143 = vsel %vm164, %v2050, 0
    %v2146 = vsel %vm164, %v2051, 0
    %v2149 = vsel %vm164, %v2052, 0
    %v2152 = vsel %vm164, %v2053, 0
    %v2155 = vsel %vm164, %v2054, 0
    %v2158 = vsel %vm164, %v2055, 0
    %v2161 = vsel %vm164, %v2056, 0
    %v2164 = vsel %vm164, %v2057, 0
    %v2167 = vsel %vm164, %v2058, 0
    %v2170 = vsel %vm164, %v2059, 0
    %v2173 = vsel %vm164, %v2060, 0
    %v2176 = vsel %vm164, %v2061, 0
    %v2179 = vsel %vm164, %v2062, 0
    %v2182 = vsel %vm164, %v2063, 0
    %v2185 = vsel %vm164, %v2064, 0
    %v2188 = vsel %vm164, %v2065, 0
    %v2191 = vsel %vm164, %v2066, 0
    %v2194 = vsel %vm164, %v2067, 0
    %v2197 = vsel %vm164, %v2068, 0
    %v2200 = vsel %vm164, %v2069, 0
    %v2203 = vsel %vm164, %v2070, 0
    %v2206 = vsel %vm164, %v2071, 0
    %v2209 = vsel %vm164, %v2072, 0
    %v2212 = vsel %vm164, %v2073, 0
    %v2215 = vsel %vm164, %v2074, 0
    %v2218 = vsel %vm164, %v2075, 0
    %v2221 = vsel %vm164, %v2076, 0
    %v2224 = vsel %vm164, %v2077, 0
    %v2227 = vsel %vm164, %v2078, 0
    %v2230 = vsel %vm164, %v2079, 0
    %v2233 = vsel %vm164, %v2080, 0
    %v2236 = vsel %vm164, %v2081, 0
    %v2239 = vsel %vm164, %v2082, 0
    %v2242 = vsel %vm164, %v2083, 0
    %v2245 = vsel %vm164, %v2084, 0
    %v2248 = vsel %vm164, %v2085, 0
    %v2251 = vsel %vm164, %v2086, 0
    %v2254 = vsel %vm164, %v2087, 0
    %v2257 = vsel %vm164, %v2088, 0
    %v2260 = vsel %vm164, %v2089, 0
    %v2263 = vsel %vm164, %v2090, 0
    %v2266 = vsel %vm164, %v2091, 0
    %v2269 = vsel %vm164, %v2092, 0
    %v2272 = vsel %vm164, %v2093, 0
    %v2275 = vsel %vm164, %v2094, 0
    %v2278 = vsel %vm164, %v2095, 0
    %v2281 = vsel %vm164, %v2096, 0
    %v2284 = vsel %vm164, %v2097, 0
    %v2287 = vsel %vm164, %v2098, 0
    %v2290 = vsel %vm164, %v2099, 0
    %v2293 = vsel %vm164, %v2100, 0
    %v2296 = vsel %vm357, %v2102, 0
    %2298 = vmatprep.subr.mxu0 0.0
    %2299 = vmatpush1.msra.mxu0 0.0
    %2300 = vmatprep.subr.mxu0 0.0
    %2301 = vmatpush1.msra.mxu0 0.0
    %2302 = vmatprep.subr.mxu0 0.0
    %2303 = vmatpush1.msra.mxu0 0.0
    %2304 = vmatprep.subr.mxu0 0.0
    %2305 = vmatpush1.msra.mxu0 0.0
    %2306 = vmatprep.subr.mxu0 0.0
    %2307 = vmatpush1.msra.mxu0 0.0
    %2308 = vmatprep.subr.mxu0 0.0
    %2309 = vmatpush1.msra.mxu0 0.0
    %2310 = vmatprep.subr.mxu0 0.0
    %2311 = vmatpush1.msra.mxu0 0.0
    %2312 = vmatprep.subr.mxu0 0.0
    %2313 = vmatpush1.msra.mxu0 0.0
    %2314 = vmatprep.subr.mxu0 0.0
    %2315 = vmatpush1.msra.mxu0 0.0
    %2316 = vmatprep.subr.mxu0 0.0
    %2317 = vmatpush1.msra.mxu0 0.0
    %2318 = vmatprep.subr.mxu0 0.0
    %2319 = vmatpush1.msra.mxu0 0.0
    %2320 = vmatprep.subr.mxu0 0.0
    %2321 = vmatpush1.msra.mxu0 0.0
    %2322 = vmatprep.subr.mxu0 0.0
    %2323 = vmatpush1.msra.mxu0 0.0
    %2324 = vmatprep.subr.mxu0 0.0
    %2325 = vmatpush1.msra.mxu0 0.0
    %2326 = vmatprep.subr.mxu0 0.0
    %2327 = vmatpush1.msra.mxu0 0.0
    %2328 = vmatprep.subr.mxu0 0.0
    %2329 = vmatpush1.msra.mxu0 %v2296
    %2330 = vmatprep.subr.mxu0 0.0
    %2331 = vmatpush2.msra.mxu0 0.0
    %2332 = vmatprep.subr.mxu0 0.0
    %2333 = vmatpush2.msra.mxu0 0.0
    %2334 = vmatprep.subr.mxu0 0.0
    %2335 = vmatpush2.msra.mxu0 0.0
    %2336 = vmatprep.subr.mxu0 0.0
    %2337 = vmatpush2.msra.mxu0 0.0
    %2338 = vmatprep.subr.mxu0 0.0
    %2339 = vmatpush2.msra.mxu0 0.0
    %2340 = vmatprep.subr.mxu0 0.0
    %2341 = vmatpush2.msra.mxu0 0.0
    %2342 = vmatprep.subr.mxu0 0.0
    %2343 = vmatpush2.msra.mxu0 0.0
    %2344 = vmatprep.subr.mxu0 0.0
    %2345 = vmatpush2.msra.mxu0 0.0
    %2346 = vmatprep.subr.mxu0 0.0
    %2347 = vmatpush2.msra.mxu0 0.0
    %2348 = vmatprep.subr.mxu0 0.0
    %2349 = vmatpush2.msra.mxu0 0.0
    %2350 = vmatprep.subr.mxu0 0.0
    %2351 = vmatpush2.msra.mxu0 0.0
    %2352 = vmatprep.subr.mxu0 0.0
    %2353 = vmatpush2.msra.mxu0 0.0
    %2354 = vmatprep.subr.mxu0 0.0
    %2355 = vmatpush2.msra.mxu0 0.0
    %2356 = vmatprep.subr.mxu0 0.0
    %2357 = vmatpush2.msra.mxu0 0.0
    %2358 = vmatprep.subr.mxu0 0.0
    %2359 = vmatpush2.msra.mxu0 0.0
    %2360 = vmatprep.subr.mxu0 0.0
    %2361 = vmatpush2.msra.mxu0 0.0
    %2362 = vmatprep.mubr.f32.mxu0 0.0
    %2363 = vmatmul.mubr.f32.gmra.mxu0 %v2104
    %v2364 = vpop.f32.mrf.mxu0
    %v2365 = vadd.f32 0.0, %v2364
    %v2366 = vpop.f32.mrf.mxu0
    %2367 = vmatprep.mubr.f32.mxu0 0.0
    %2368 = vmatmul.mubr.f32.gmra.mxu0 %v2107
    %v2369 = vpop.f32.mrf.mxu0
    %v2370 = vadd.f32 0.0, %v2369
    %v2371 = vpop.f32.mrf.mxu0
    %2372 = vmatprep.mubr.f32.mxu0 0.0
    %2373 = vmatmul.mubr.f32.gmra.mxu0 %v2110
    %v2374 = vpop.f32.mrf.mxu0
    %v2375 = vadd.f32 0.0, %v2374
    %v2376 = vpop.f32.mrf.mxu0
    %2377 = vmatprep.mubr.f32.mxu0 0.0
    %2378 = vmatmul.mubr.f32.gmra.mxu0 %v2113
    %v2379 = vpop.f32.mrf.mxu0
    %v2380 = vadd.f32 0.0, %v2379
    %v2381 = vpop.f32.mrf.mxu0
    %2382 = vmatprep.mubr.f32.mxu0 0.0
    %2383 = vmatmul.mubr.f32.gmra.mxu0 %v2116
    %v2384 = vpop.f32.mrf.mxu0
    %v2385 = vadd.f32 0.0, %v2384
    %v2386 = vpop.f32.mrf.mxu0
    %2387 = vmatprep.mubr.f32.mxu0 0.0
    %2388 = vmatmul.mubr.f32.gmra.mxu0 %v2119
    %v2389 = vpop.f32.mrf.mxu0
    %v2390 = vadd.f32 0.0, %v2389
    %v2391 = vpop.f32.mrf.mxu0
    %2392 = vmatprep.mubr.f32.mxu0 0.0
    %2393 = vmatmul.mubr.f32.gmra.mxu0 %v2122
    %v2394 = vpop.f32.mrf.mxu0
    %v2395 = vadd.f32 0.0, %v2394
    %v2396 = vpop.f32.mrf.mxu0
    %2397 = vmatprep.mubr.f32.mxu0 0.0
    %2398 = vmatmul.mubr.f32.gmra.mxu0 %v2125
    %v2399 = vpop.f32.mrf.mxu0
    %v2400 = vadd.f32 0.0, %v2399
    %v2401 = vpop.f32.mrf.mxu0
    %2402 = vmatprep.mubr.f32.mxu0 0.0
    %2403 = vmatmul.mubr.f32.gmra.mxu0 %v2128
    %v2404 = vpop.f32.mrf.mxu0
    %v2405 = vadd.f32 0.0, %v2404
    %v2406 = vpop.f32.mrf.mxu0
    %2407 = vmatprep.mubr.f32.mxu0 0.0
    %2408 = vmatmul.mubr.f32.gmra.mxu0 %v2131
    %v2409 = vpop.f32.mrf.mxu0
    %v2410 = vadd.f32 0.0, %v2409
    %v2411 = vpop.f32.mrf.mxu0
    %2412 = vmatprep.mubr.f32.mxu0 0.0
    %2413 = vmatmul.mubr.f32.gmra.mxu0 %v2134
    %v2414 = vpop.f32.mrf.mxu0
    %v2415 = vadd.f32 0.0, %v2414
    %v2416 = vpop.f32.mrf.mxu0
    %2417 = vmatprep.mubr.f32.mxu0 0.0
    %2418 = vmatmul.mubr.f32.gmra.mxu0 %v2137
    %v2419 = vpop.f32.mrf.mxu0
    %v2420 = vadd.f32 0.0, %v2419
    %v2421 = vpop.f32.mrf.mxu0
    %2422 = vmatprep.mubr.f32.mxu0 0.0
    %2423 = vmatmul.mubr.f32.gmra.mxu0 %v2140
    %v2424 = vpop.f32.mrf.mxu0
    %v2425 = vadd.f32 0.0, %v2424
    %v2426 = vpop.f32.mrf.mxu0
    %2427 = vmatprep.mubr.f32.mxu0 0.0
    %2428 = vmatmul.mubr.f32.gmra.mxu0 %v2143
    %v2429 = vpop.f32.mrf.mxu0
    %v2430 = vadd.f32 0.0, %v2429
    %v2431 = vpop.f32.mrf.mxu0
    %2432 = vmatprep.mubr.f32.mxu0 0.0
    %2433 = vmatmul.mubr.f32.gmra.mxu0 %v2146
    %v2434 = vpop.f32.mrf.mxu0
    %v2435 = vadd.f32 0.0, %v2434
    %v2436 = vpop.f32.mrf.mxu0
    %2437 = vmatprep.mubr.f32.mxu0 0.0
    %2438 = vmatmul.mubr.f32.gmra.mxu0 %v2149
    %v2439 = vpop.f32.mrf.mxu0
    %v2440 = vadd.f32 0.0, %v2439
    %v2441 = vpop.f32.mrf.mxu0
    %2442 = vmatprep.mubr.f32.mxu0 0.0
    %2443 = vmatmul.mubr.f32.gmra.mxu0 %v2152
    %v2444 = vpop.f32.mrf.mxu0
    %v2445 = vadd.f32 0.0, %v2444
    %v2446 = vpop.f32.mrf.mxu0
    %2447 = vmatprep.mubr.f32.mxu0 0.0
    %2448 = vmatmul.mubr.f32.gmra.mxu0 %v2155
    %v2449 = vpop.f32.mrf.mxu0
    %v2450 = vadd.f32 0.0, %v2449
    %v2451 = vpop.f32.mrf.mxu0
    %2452 = vmatprep.mubr.f32.mxu0 0.0
    %2453 = vmatmul.mubr.f32.gmra.mxu0 %v2158
    %v2454 = vpop.f32.mrf.mxu0
    %v2455 = vadd.f32 0.0, %v2454
    %v2456 = vpop.f32.mrf.mxu0
    %2457 = vmatprep.mubr.f32.mxu0 0.0
    %2458 = vmatmul.mubr.f32.gmra.mxu0 %v2161
    %v2459 = vpop.f32.mrf.mxu0
    %v2460 = vadd.f32 0.0, %v2459
    %v2461 = vpop.f32.mrf.mxu0
    %2462 = vmatprep.mubr.f32.mxu0 0.0
    %2463 = vmatmul.mubr.f32.gmra.mxu0 %v2164
    %v2464 = vpop.f32.mrf.mxu0
    %v2465 = vadd.f32 0.0, %v2464
    %v2466 = vpop.f32.mrf.mxu0
    %2467 = vmatprep.mubr.f32.mxu0 0.0
    %2468 = vmatmul.mubr.f32.gmra.mxu0 %v2167
    %v2469 = vpop.f32.mrf.mxu0
    %v2470 = vadd.f32 0.0, %v2469
    %v2471 = vpop.f32.mrf.mxu0
    %2472 = vmatprep.mubr.f32.mxu0 0.0
    %2473 = vmatmul.mubr.f32.gmra.mxu0 %v2170
    %v2474 = vpop.f32.mrf.mxu0
    %v2475 = vadd.f32 0.0, %v2474
    %v2476 = vpop.f32.mrf.mxu0
    %2477 = vmatprep.mubr.f32.mxu0 0.0
    %2478 = vmatmul.mubr.f32.gmra.mxu0 %v2173
    %v2479 = vpop.f32.mrf.mxu0
    %v2480 = vadd.f32 0.0, %v2479
    %v2481 = vpop.f32.mrf.mxu0
    %2482 = vmatprep.mubr.f32.mxu0 0.0
    %2483 = vmatmul.mubr.f32.gmra.mxu0 %v2176
    %v2484 = vpop.f32.mrf.mxu0
    %v2485 = vadd.f32 0.0, %v2484
    %v2486 = vpop.f32.mrf.mxu0
    %2487 = vmatprep.mubr.f32.mxu0 0.0
    %2488 = vmatmul.mubr.f32.gmra.mxu0 %v2179
    %v2489 = vpop.f32.mrf.mxu0
    %v2490 = vadd.f32 0.0, %v2489
    %v2491 = vpop.f32.mrf.mxu0
    %2492 = vmatprep.mubr.f32.mxu0 0.0
    %2493 = vmatmul.mubr.f32.gmra.mxu0 %v2182
    %v2494 = vpop.f32.mrf.mxu0
    %v2495 = vadd.f32 0.0, %v2494
    %v2496 = vpop.f32.mrf.mxu0
    %2497 = vmatprep.mubr.f32.mxu0 0.0
    %2498 = vmatmul.mubr.f32.gmra.mxu0 %v2185
    %v2499 = vpop.f32.mrf.mxu0
    %v2500 = vadd.f32 0.0, %v2499
    %v2501 = vpop.f32.mrf.mxu0
    %2502 = vmatprep.mubr.f32.mxu0 0.0
    %2503 = vmatmul.mubr.f32.gmra.mxu0 %v2188
    %v2504 = vpop.f32.mrf.mxu0
    %v2505 = vadd.f32 0.0, %v2504
    %v2506 = vpop.f32.mrf.mxu0
    %2507 = vmatprep.mubr.f32.mxu0 0.0
    %2508 = vmatmul.mubr.f32.gmra.mxu0 %v2191
    %v2509 = vpop.f32.mrf.mxu0
    %v2510 = vadd.f32 0.0, %v2509
    %v2511 = vpop.f32.mrf.mxu0
    %2512 = vmatprep.mubr.f32.mxu0 0.0
    %2513 = vmatmul.mubr.f32.gmra.mxu0 %v2194
    %v2514 = vpop.f32.mrf.mxu0
    %v2515 = vadd.f32 0.0, %v2514
    %v2516 = vpop.f32.mrf.mxu0
    %2517 = vmatprep.mubr.f32.mxu0 0.0
    %2518 = vmatmul.mubr.f32.gmra.mxu0 %v2197
    %v2519 = vpop.f32.mrf.mxu0
    %v2520 = vadd.f32 0.0, %v2519
    %v2521 = vpop.f32.mrf.mxu0
    %2522 = vmatprep.mubr.f32.mxu0 0.0
    %2523 = vmatmul.mubr.f32.gmra.mxu0 %v2200
    %v2524 = vpop.f32.mrf.mxu0
    %v2525 = vadd.f32 0.0, %v2524
    %v2526 = vpop.f32.mrf.mxu0
    %2527 = vmatprep.mubr.f32.mxu0 0.0
    %2528 = vmatmul.mubr.f32.gmra.mxu0 %v2203
    %v2529 = vpop.f32.mrf.mxu0
    %v2530 = vadd.f32 0.0, %v2529
    %v2531 = vpop.f32.mrf.mxu0
    %2532 = vmatprep.mubr.f32.mxu0 0.0
    %2533 = vmatmul.mubr.f32.gmra.mxu0 %v2206
    %v2534 = vpop.f32.mrf.mxu0
    %v2535 = vadd.f32 0.0, %v2534
    %v2536 = vpop.f32.mrf.mxu0
    %2537 = vmatprep.mubr.f32.mxu0 0.0
    %2538 = vmatmul.mubr.f32.gmra.mxu0 %v2209
    %v2539 = vpop.f32.mrf.mxu0
    %v2540 = vadd.f32 0.0, %v2539
    %v2541 = vpop.f32.mrf.mxu0
    %2542 = vmatprep.mubr.f32.mxu0 0.0
    %2543 = vmatmul.mubr.f32.gmra.mxu0 %v2212
    %v2544 = vpop.f32.mrf.mxu0
    %v2545 = vadd.f32 0.0, %v2544
    %v2546 = vpop.f32.mrf.mxu0
    %2547 = vmatprep.mubr.f32.mxu0 0.0
    %2548 = vmatmul.mubr.f32.gmra.mxu0 %v2215
    %v2549 = vpop.f32.mrf.mxu0
    %v2550 = vadd.f32 0.0, %v2549
    %v2551 = vpop.f32.mrf.mxu0
    %2552 = vmatprep.mubr.f32.mxu0 0.0
    %2553 = vmatmul.mubr.f32.gmra.mxu0 %v2218
    %v2554 = vpop.f32.mrf.mxu0
    %v2555 = vadd.f32 0.0, %v2554
    %v2556 = vpop.f32.mrf.mxu0
    %2557 = vmatprep.mubr.f32.mxu0 0.0
    %2558 = vmatmul.mubr.f32.gmra.mxu0 %v2221
    %v2559 = vpop.f32.mrf.mxu0
    %v2560 = vadd.f32 0.0, %v2559
    %v2561 = vpop.f32.mrf.mxu0
    %2562 = vmatprep.mubr.f32.mxu0 0.0
    %2563 = vmatmul.mubr.f32.gmra.mxu0 %v2224
    %v2564 = vpop.f32.mrf.mxu0
    %v2565 = vadd.f32 0.0, %v2564
    %v2566 = vpop.f32.mrf.mxu0
    %2567 = vmatprep.mubr.f32.mxu0 0.0
    %2568 = vmatmul.mubr.f32.gmra.mxu0 %v2227
    %v2569 = vpop.f32.mrf.mxu0
    %v2570 = vadd.f32 0.0, %v2569
    %v2571 = vpop.f32.mrf.mxu0
    %2572 = vmatprep.mubr.f32.mxu0 0.0
    %2573 = vmatmul.mubr.f32.gmra.mxu0 %v2230
    %v2574 = vpop.f32.mrf.mxu0
    %v2575 = vadd.f32 0.0, %v2574
    %v2576 = vpop.f32.mrf.mxu0
    %2577 = vmatprep.mubr.f32.mxu0 0.0
    %2578 = vmatmul.mubr.f32.gmra.mxu0 %v2233
    %v2579 = vpop.f32.mrf.mxu0
    %v2580 = vadd.f32 0.0, %v2579
    %v2581 = vpop.f32.mrf.mxu0
    %2582 = vmatprep.mubr.f32.mxu0 0.0
    %2583 = vmatmul.mubr.f32.gmra.mxu0 %v2236
    %v2584 = vpop.f32.mrf.mxu0
    %v2585 = vadd.f32 0.0, %v2584
    %v2586 = vpop.f32.mrf.mxu0
    %2587 = vmatprep.mubr.f32.mxu0 0.0
    %2588 = vmatmul.mubr.f32.gmra.mxu0 %v2239
    %v2589 = vpop.f32.mrf.mxu0
    %v2590 = vadd.f32 0.0, %v2589
    %v2591 = vpop.f32.mrf.mxu0
    %2592 = vmatprep.mubr.f32.mxu0 0.0
    %2593 = vmatmul.mubr.f32.gmra.mxu0 %v2242
    %v2594 = vpop.f32.mrf.mxu0
    %v2595 = vadd.f32 0.0, %v2594
    %v2596 = vpop.f32.mrf.mxu0
    %2597 = vmatprep.mubr.f32.mxu0 0.0
    %2598 = vmatmul.mubr.f32.gmra.mxu0 %v2245
    %v2599 = vpop.f32.mrf.mxu0
    %v2600 = vadd.f32 0.0, %v2599
    %v2601 = vpop.f32.mrf.mxu0
    %2602 = vmatprep.mubr.f32.mxu0 0.0
    %2603 = vmatmul.mubr.f32.gmra.mxu0 %v2248
    %v2604 = vpop.f32.mrf.mxu0
    %v2605 = vadd.f32 0.0, %v2604
    %v2606 = vpop.f32.mrf.mxu0
    %2607 = vmatprep.mubr.f32.mxu0 0.0
    %2608 = vmatmul.mubr.f32.gmra.mxu0 %v2251
    %v2609 = vpop.f32.mrf.mxu0
    %v2610 = vadd.f32 0.0, %v2609
    %v2611 = vpop.f32.mrf.mxu0
    %2612 = vmatprep.mubr.f32.mxu0 0.0
    %2613 = vmatmul.mubr.f32.gmra.mxu0 %v2254
    %v2614 = vpop.f32.mrf.mxu0
    %v2615 = vadd.f32 0.0, %v2614
    %v2616 = vpop.f32.mrf.mxu0
    %2617 = vmatprep.mubr.f32.mxu0 0.0
    %2618 = vmatmul.mubr.f32.gmra.mxu0 %v2257
    %v2619 = vpop.f32.mrf.mxu0
    %v2620 = vadd.f32 0.0, %v2619
    %v2621 = vpop.f32.mrf.mxu0
    %2622 = vmatprep.mubr.f32.mxu0 0.0
    %2623 = vmatmul.mubr.f32.gmra.mxu0 %v2260
    %v2624 = vpop.f32.mrf.mxu0
    %v2625 = vadd.f32 0.0, %v2624
    %v2626 = vpop.f32.mrf.mxu0
    %2627 = vmatprep.mubr.f32.mxu0 0.0
    %2628 = vmatmul.mubr.f32.gmra.mxu0 %v2263
    %v2629 = vpop.f32.mrf.mxu0
    %v2630 = vadd.f32 0.0, %v2629
    %v2631 = vpop.f32.mrf.mxu0
    %2632 = vmatprep.mubr.f32.mxu0 0.0
    %2633 = vmatmul.mubr.f32.gmra.mxu0 %v2266
    %v2634 = vpop.f32.mrf.mxu0
    %v2635 = vadd.f32 0.0, %v2634
    %v2636 = vpop.f32.mrf.mxu0
    %2637 = vmatprep.mubr.f32.mxu0 0.0
    %2638 = vmatmul.mubr.f32.gmra.mxu0 %v2269
    %v2639 = vpop.f32.mrf.mxu0
    %v2640 = vadd.f32 0.0, %v2639
    %v2641 = vpop.f32.mrf.mxu0
    %2642 = vmatprep.mubr.f32.mxu0 0.0
    %2643 = vmatmul.mubr.f32.gmra.mxu0 %v2272
    %v2644 = vpop.f32.mrf.mxu0
    %v2645 = vadd.f32 0.0, %v2644
    %v2646 = vpop.f32.mrf.mxu0
    %2647 = vmatprep.mubr.f32.mxu0 0.0
    %2648 = vmatmul.mubr.f32.gmra.mxu0 %v2275
    %v2649 = vpop.f32.mrf.mxu0
    %v2650 = vadd.f32 0.0, %v2649
    %v2651 = vpop.f32.mrf.mxu0
    %2652 = vmatprep.mubr.f32.mxu0 0.0
    %2653 = vmatmul.mubr.f32.gmra.mxu0 %v2278
    %v2654 = vpop.f32.mrf.mxu0
    %v2655 = vadd.f32 0.0, %v2654
    %v2656 = vpop.f32.mrf.mxu0
    %2657 = vmatprep.mubr.f32.mxu0 0.0
    %2658 = vmatmul.mubr.f32.gmra.mxu0 %v2281
    %v2659 = vpop.f32.mrf.mxu0
    %v2660 = vadd.f32 0.0, %v2659
    %v2661 = vpop.f32.mrf.mxu0
    %2662 = vmatprep.mubr.f32.mxu0 0.0
    %2663 = vmatmul.mubr.f32.gmra.mxu0 %v2284
    %v2664 = vpop.f32.mrf.mxu0
    %v2665 = vadd.f32 0.0, %v2664
    %v2666 = vpop.f32.mrf.mxu0
    %2667 = vmatprep.mubr.f32.mxu0 0.0
    %2668 = vmatmul.mubr.f32.gmra.mxu0 %v2287
    %v2669 = vpop.f32.mrf.mxu0
    %v2670 = vadd.f32 0.0, %v2669
    %v2671 = vpop.f32.mrf.mxu0
    %2672 = vmatprep.mubr.f32.mxu0 0.0
    %2673 = vmatmul.mubr.f32.gmra.mxu0 %v2290
    %v2674 = vpop.f32.mrf.mxu0
    %v2675 = vadd.f32 0.0, %v2674
    %v2676 = vpop.f32.mrf.mxu0
    %2677 = vmatprep.mubr.f32.mxu0 0.0
    %2678 = vmatmul.mubr.f32.gmra.mxu0 %v2293
    %v2679 = vpop.f32.mrf.mxu0
    %v2680 = vadd.f32 0.0, %v2679
    %v2681 = vpop.f32.mrf.mxu0
    %2682 = vdwg.mxu0
    %v2683 = vadd.f32 %v1972, %v2365
    %v2684 = vadd.f32 %v1973, %v2370
    %v2685 = vadd.f32 %v1974, %v2375
    %v2686 = vadd.f32 %v1975, %v2380
    %v2687 = vadd.f32 %v1976, %v2385
    %v2688 = vadd.f32 %v1977, %v2390
    %v2689 = vadd.f32 %v1978, %v2395
    %v2690 = vadd.f32 %v1979, %v2400
    %v2691 = vadd.f32 %v1980, %v2405
    %v2692 = vadd.f32 %v1981, %v2410
    %v2693 = vadd.f32 %v1982, %v2415
    %v2694 = vadd.f32 %v1983, %v2420
    %v2695 = vadd.f32 %v1984, %v2425
    %v2696 = vadd.f32 %v1985, %v2430
    %v2697 = vadd.f32 %v1986, %v2435
    %v2698 = vadd.f32 %v1987, %v2440
    %v2699 = vadd.f32 %v1988, %v2445
    %v2700 = vadd.f32 %v1989, %v2450
    %v2701 = vadd.f32 %v1990, %v2455
    %v2702 = vadd.f32 %v1991, %v2460
    %v2703 = vadd.f32 %v1992, %v2465
    %v2704 = vadd.f32 %v1993, %v2470
    %v2705 = vadd.f32 %v1994, %v2475
    %v2706 = vadd.f32 %v1995, %v2480
    %v2707 = vadd.f32 %v1996, %v2485
    %v2708 = vadd.f32 %v1997, %v2490
    %v2709 = vadd.f32 %v1998, %v2495
    %v2710 = vadd.f32 %v1999, %v2500
    %v2711 = vadd.f32 %v2000, %v2505
    %v2712 = vadd.f32 %v2001, %v2510
    %v2713 = vadd.f32 %v2002, %v2515
    %v2714 = vadd.f32 %v2003, %v2520
    %v2715 = vadd.f32 %v2004, %v2525
    %v2716 = vadd.f32 %v2005, %v2530
    %v2717 = vadd.f32 %v2006, %v2535
    %v2718 = vadd.f32 %v2007, %v2540
    %v2719 = vadd.f32 %v2008, %v2545
    %v2720 = vadd.f32 %v2009, %v2550
    %v2721 = vadd.f32 %v2010, %v2555
    %v2722 = vadd.f32 %v2011, %v2560
    %v2723 = vadd.f32 %v2012, %v2565
    %v2724 = vadd.f32 %v2013, %v2570
    %v2725 = vadd.f32 %v2014, %v2575
    %v2726 = vadd.f32 %v2015, %v2580
    %v2727 = vadd.f32 %v2016, %v2585
    %v2728 = vadd.f32 %v2017, %v2590
    %v2729 = vadd.f32 %v2018, %v2595
    %v2730 = vadd.f32 %v2019, %v2600
    %v2731 = vadd.f32 %v2020, %v2605
    %v2732 = vadd.f32 %v2021, %v2610
    %v2733 = vadd.f32 %v2022, %v2615
    %v2734 = vadd.f32 %v2023, %v2620
    %v2735 = vadd.f32 %v2024, %v2625
    %v2736 = vadd.f32 %v2025, %v2630
    %v2737 = vadd.f32 %v2026, %v2635
    %v2738 = vadd.f32 %v2027, %v2640
    %v2739 = vadd.f32 %v2028, %v2645
    %v2740 = vadd.f32 %v2029, %v2650
    %v2741 = vadd.f32 %v2030, %v2655
    %v2742 = vadd.f32 %v2031, %v2660
    %v2743 = vadd.f32 %v2032, %v2665
    %v2744 = vadd.f32 %v2033, %v2670
    %v2745 = vadd.f32 %v2034, %v2675
    %v2746 = vadd.f32 %v2035, %v2680
    %v2747 = vld [vmem:[%s2036 + $0x1] sm:$0xff]
    %v2748 = vld [vmem:[%s2036 + $0x9] sm:$0xff]
    %v2749 = vld [vmem:[%s2036 + $0x19] sm:$0xff]
    %v2750 = vld [vmem:[%s2036 + $0x21] sm:$0xff]
    %v2751 = vld [vmem:[%s2036 + $0x31] sm:$0xff]
    %v2752 = vld [vmem:[%s2036 + $0x39] sm:$0xff]
    %v2753 = vld [vmem:[%s2036 + $0x49] sm:$0xff]
    %v2754 = vld [vmem:[%s2036 + $0x51] sm:$0xff]
    %v2755 = vld [vmem:[%s2036 + $0x61] sm:$0xff]
    %v2756 = vld [vmem:[%s2036 + $0x69] sm:$0xff]
    %v2757 = vld [vmem:[%s2036 + $0x79] sm:$0xff]
    %v2758 = vld [vmem:[%s2036 + $0x81] sm:$0xff]
    %v2759 = vld [vmem:[%s2036 + $0x91] sm:$0xff]
    %v2760 = vld [vmem:[%s2036 + $0x99] sm:$0xff]
    %v2761 = vld [vmem:[%s2036 + $0xa9] sm:$0xff]
    %v2762 = vld [vmem:[%s2036 + $0xb1] sm:$0xff]
    %v2763 = vld [vmem:[%s2036 + $0xc1] sm:$0xff]
    %v2764 = vld [vmem:[%s2036 + $0xc9] sm:$0xff]
    %v2765 = vld [vmem:[%s2036 + $0xd9] sm:$0xff]
    %v2766 = vld [vmem:[%s2036 + $0xe1] sm:$0xff]
    %v2767 = vld [vmem:[%s2036 + $0xf1] sm:$0xff]
    %v2768 = vld [vmem:[%s2036 + $0xf9] sm:$0xff]
    %v2769 = vld [vmem:[%s2036 + $0x109] sm:$0xff]
    %v2770 = vld [vmem:[%s2036 + $0x111] sm:$0xff]
    %v2771 = vld [vmem:[%s2036 + $0x121] sm:$0xff]
    %v2772 = vld [vmem:[%s2036 + $0x129] sm:$0xff]
    %v2773 = vld [vmem:[%s2036 + $0x139] sm:$0xff]
    %v2774 = vld [vmem:[%s2036 + $0x141] sm:$0xff]
    %v2775 = vld [vmem:[%s2036 + $0x151] sm:$0xff]
    %v2776 = vld [vmem:[%s2036 + $0x159] sm:$0xff]
    %v2777 = vld [vmem:[%s2036 + $0x169] sm:$0xff]
    %v2778 = vld [vmem:[%s2036 + $0x171] sm:$0xff]
    %v2779 = vld [vmem:[%s2036 + $0x1b1] sm:$0xff]
    %v2780 = vld [vmem:[%s2036 + $0x1b9] sm:$0xff]
    %v2781 = vld [vmem:[%s2036 + $0x1c9] sm:$0xff]
    %v2782 = vld [vmem:[%s2036 + $0x1d1] sm:$0xff]
    %v2783 = vld [vmem:[%s2036 + $0x1e1] sm:$0xff]
    %v2784 = vld [vmem:[%s2036 + $0x1e9] sm:$0xff]
    %v2785 = vld [vmem:[%s2036 + $0x1f9] sm:$0xff]
    %v2786 = vld [vmem:[%s2036 + $0x201] sm:$0xff]
    %v2787 = vld [vmem:[%s2036 + $0x211] sm:$0xff]
    %v2788 = vld [vmem:[%s2036 + $0x219] sm:$0xff]
    %v2789 = vld [vmem:[%s2036 + $0x229] sm:$0xff]
    %v2790 = vld [vmem:[%s2036 + $0x231] sm:$0xff]
    %v2791 = vld [vmem:[%s2036 + $0x241] sm:$0xff]
    %v2792 = vld [vmem:[%s2036 + $0x249] sm:$0xff]
    %v2793 = vld [vmem:[%s2036 + $0x259] sm:$0xff]
    %v2794 = vld [vmem:[%s2036 + $0x261] sm:$0xff]
    %v2795 = vld [vmem:[%s2036 + $0x271] sm:$0xff]
    %v2796 = vld [vmem:[%s2036 + $0x279] sm:$0xff]
    %v2797 = vld [vmem:[%s2036 + $0x289] sm:$0xff]
    %v2798 = vld [vmem:[%s2036 + $0x291] sm:$0xff]
    %v2799 = vld [vmem:[%s2036 + $0x2a1] sm:$0xff]
    %v2800 = vld [vmem:[%s2036 + $0x2a9] sm:$0xff]
    %v2801 = vld [vmem:[%s2036 + $0x2b9] sm:$0xff]
    %v2802 = vld [vmem:[%s2036 + $0x2c1] sm:$0xff]
    %v2803 = vld [vmem:[%s2036 + $0x2d1] sm:$0xff]
    %v2804 = vld [vmem:[%s2036 + $0x2d9] sm:$0xff]
    %v2805 = vld [vmem:[%s2036 + $0x2e9] sm:$0xff]
    %v2806 = vld [vmem:[%s2036 + $0x2f1] sm:$0xff]
    %v2807 = vld [vmem:[%s2036 + $0x301] sm:$0xff]
    %v2808 = vld [vmem:[%s2036 + $0x309] sm:$0xff]
    %v2809 = vld [vmem:[%s2036 + $0x319] sm:$0xff]
    %v2810 = vld [vmem:[%s2036 + $0x321] sm:$0xff]
    %s2811 = scalar_lea.vmem %s1, 16
    %v2812 = vld [vmem:[%s2811] sm:$0xf]
    %v2814 = vsel %vm164, %v2747, 0
    %v2817 = vsel %vm164, %v2748, 0
    %v2820 = vsel %vm164, %v2749, 0
    %v2823 = vsel %vm164, %v2750, 0
    %v2826 = vsel %vm164, %v2751, 0
    %v2829 = vsel %vm164, %v2752, 0
    %v2832 = vsel %vm164, %v2753, 0
    %v2835 = vsel %vm164, %v2754, 0
    %v2838 = vsel %vm164, %v2755, 0
    %v2841 = vsel %vm164, %v2756, 0
    %v2844 = vsel %vm164, %v2757, 0
    %v2847 = vsel %vm164, %v2758, 0
    %v2850 = vsel %vm164, %v2759, 0
    %v2853 = vsel %vm164, %v2760, 0
    %v2856 = vsel %vm164, %v2761, 0
    %v2859 = vsel %vm164, %v2762, 0
    %v2862 = vsel %vm164, %v2763, 0
    %v2865 = vsel %vm164, %v2764, 0
    %v2868 = vsel %vm164, %v2765, 0
    %v2871 = vsel %vm164, %v2766, 0
    %v2874 = vsel %vm164, %v2767, 0
    %v2877 = vsel %vm164, %v2768, 0
    %v2880 = vsel %vm164, %v2769, 0
    %v2883 = vsel %vm164, %v2770, 0
    %v2886 = vsel %vm164, %v2771, 0
    %v2889 = vsel %vm164, %v2772, 0
    %v2892 = vsel %vm164, %v2773, 0
    %v2895 = vsel %vm164, %v2774, 0
    %v2898 = vsel %vm164, %v2775, 0
    %v2901 = vsel %vm164, %v2776, 0
    %v2904 = vsel %vm164, %v2777, 0
    %v2907 = vsel %vm164, %v2778, 0
    %v2910 = vsel %vm164, %v2779, 0
    %v2913 = vsel %vm164, %v2780, 0
    %v2916 = vsel %vm164, %v2781, 0
    %v2919 = vsel %vm164, %v2782, 0
    %v2922 = vsel %vm164, %v2783, 0
    %v2925 = vsel %vm164, %v2784, 0
    %v2928 = vsel %vm164, %v2785, 0
    %v2931 = vsel %vm164, %v2786, 0
    %v2934 = vsel %vm164, %v2787, 0
    %v2937 = vsel %vm164, %v2788, 0
    %v2940 = vsel %vm164, %v2789, 0
    %v2943 = vsel %vm164, %v2790, 0
    %v2946 = vsel %vm164, %v2791, 0
    %v2949 = vsel %vm164, %v2792, 0
    %v2952 = vsel %vm164, %v2793, 0
    %v2955 = vsel %vm164, %v2794, 0
    %v2958 = vsel %vm164, %v2795, 0
    %v2961 = vsel %vm164, %v2796, 0
    %v2964 = vsel %vm164, %v2797, 0
    %v2967 = vsel %vm164, %v2798, 0
    %v2970 = vsel %vm164, %v2799, 0
    %v2973 = vsel %vm164, %v2800, 0
    %v2976 = vsel %vm164, %v2801, 0
    %v2979 = vsel %vm164, %v2802, 0
    %v2982 = vsel %vm164, %v2803, 0
    %v2985 = vsel %vm164, %v2804, 0
    %v2988 = vsel %vm164, %v2805, 0
    %v2991 = vsel %vm164, %v2806, 0
    %v2994 = vsel %vm164, %v2807, 0
    %v2997 = vsel %vm164, %v2808, 0
    %v3000 = vsel %vm164, %v2809, 0
    %v3003 = vsel %vm164, %v2810, 0
    %v3006 = vsel %vm357, %v2812, 0
    %3008 = vmatprep.subr.mxu0 0.0
    %3009 = vmatpush1.msra.mxu0 0.0
    %3010 = vmatprep.subr.mxu0 0.0
    %3011 = vmatpush1.msra.mxu0 0.0
    %3012 = vmatprep.subr.mxu0 0.0
    %3013 = vmatpush1.msra.mxu0 0.0
    %3014 = vmatprep.subr.mxu0 0.0
    %3015 = vmatpush1.msra.mxu0 0.0
    %3016 = vmatprep.subr.mxu0 0.0
    %3017 = vmatpush1.msra.mxu0 0.0
    %3018 = vmatprep.subr.mxu0 0.0
    %3019 = vmatpush1.msra.mxu0 0.0
    %3020 = vmatprep.subr.mxu0 0.0
    %3021 = vmatpush1.msra.mxu0 0.0
    %3022 = vmatprep.subr.mxu0 0.0
    %3023 = vmatpush1.msra.mxu0 0.0
    %3024 = vmatprep.subr.mxu0 0.0
    %3025 = vmatpush1.msra.mxu0 0.0
    %3026 = vmatprep.subr.mxu0 0.0
    %3027 = vmatpush1.msra.mxu0 0.0
    %3028 = vmatprep.subr.mxu0 0.0
    %3029 = vmatpush1.msra.mxu0 0.0
    %3030 = vmatprep.subr.mxu0 0.0
    %3031 = vmatpush1.msra.mxu0 0.0
    %3032 = vmatprep.subr.mxu0 0.0
    %3033 = vmatpush1.msra.mxu0 0.0
    %3034 = vmatprep.subr.mxu0 0.0
    %3035 = vmatpush1.msra.mxu0 0.0
    %3036 = vmatprep.subr.mxu0 0.0
    %3037 = vmatpush1.msra.mxu0 0.0
    %3038 = vmatprep.subr.mxu0 0.0
    %3039 = vmatpush1.msra.mxu0 %v3006
    %3040 = vmatprep.subr.mxu0 0.0
    %3041 = vmatpush2.msra.mxu0 0.0
    %3042 = vmatprep.subr.mxu0 0.0
    %3043 = vmatpush2.msra.mxu0 0.0
    %3044 = vmatprep.subr.mxu0 0.0
    %3045 = vmatpush2.msra.mxu0 0.0
    %3046 = vmatprep.subr.mxu0 0.0
    %3047 = vmatpush2.msra.mxu0 0.0
    %3048 = vmatprep.subr.mxu0 0.0
    %3049 = vmatpush2.msra.mxu0 0.0
    %3050 = vmatprep.subr.mxu0 0.0
    %3051 = vmatpush2.msra.mxu0 0.0
    %3052 = vmatprep.subr.mxu0 0.0
    %3053 = vmatpush2.msra.mxu0 0.0
    %3054 = vmatprep.subr.mxu0 0.0
    %3055 = vmatpush2.msra.mxu0 0.0
    %3056 = vmatprep.subr.mxu0 0.0
    %3057 = vmatpush2.msra.mxu0 0.0
    %3058 = vmatprep.subr.mxu0 0.0
    %3059 = vmatpush2.msra.mxu0 0.0
    %3060 = vmatprep.subr.mxu0 0.0
    %3061 = vmatpush2.msra.mxu0 0.0
    %3062 = vmatprep.subr.mxu0 0.0
    %3063 = vmatpush2.msra.mxu0 0.0
    %3064 = vmatprep.subr.mxu0 0.0
    %3065 = vmatpush2.msra.mxu0 0.0
    %3066 = vmatprep.subr.mxu0 0.0
    %3067 = vmatpush2.msra.mxu0 0.0
    %3068 = vmatprep.subr.mxu0 0.0
    %3069 = vmatpush2.msra.mxu0 0.0
    %3070 = vmatprep.subr.mxu0 0.0
    %3071 = vmatpush2.msra.mxu0 0.0
    %3072 = vmatprep.mubr.f32.mxu0 0.0
    %3073 = vmatmul.mubr.f32.gmra.mxu0 %v2814
    %v3074 = vpop.f32.mrf.mxu0
    %v3075 = vadd.f32 0.0, %v3074
    %v3076 = vpop.f32.mrf.mxu0
    %3077 = vmatprep.mubr.f32.mxu0 0.0
    %3078 = vmatmul.mubr.f32.gmra.mxu0 %v2817
    %v3079 = vpop.f32.mrf.mxu0
    %v3080 = vadd.f32 0.0, %v3079
    %v3081 = vpop.f32.mrf.mxu0
    %3082 = vmatprep.mubr.f32.mxu0 0.0
    %3083 = vmatmul.mubr.f32.gmra.mxu0 %v2820
    %v3084 = vpop.f32.mrf.mxu0
    %v3085 = vadd.f32 0.0, %v3084
    %v3086 = vpop.f32.mrf.mxu0
    %3087 = vmatprep.mubr.f32.mxu0 0.0
    %3088 = vmatmul.mubr.f32.gmra.mxu0 %v2823
    %v3089 = vpop.f32.mrf.mxu0
    %v3090 = vadd.f32 0.0, %v3089
    %v3091 = vpop.f32.mrf.mxu0
    %3092 = vmatprep.mubr.f32.mxu0 0.0
    %3093 = vmatmul.mubr.f32.gmra.mxu0 %v2826
    %v3094 = vpop.f32.mrf.mxu0
    %v3095 = vadd.f32 0.0, %v3094
    %v3096 = vpop.f32.mrf.mxu0
    %3097 = vmatprep.mubr.f32.mxu0 0.0
    %3098 = vmatmul.mubr.f32.gmra.mxu0 %v2829
    %v3099 = vpop.f32.mrf.mxu0
    %v3100 = vadd.f32 0.0, %v3099
    %v3101 = vpop.f32.mrf.mxu0
    %3102 = vmatprep.mubr.f32.mxu0 0.0
    %3103 = vmatmul.mubr.f32.gmra.mxu0 %v2832
    %v3104 = vpop.f32.mrf.mxu0
    %v3105 = vadd.f32 0.0, %v3104
    %v3106 = vpop.f32.mrf.mxu0
    %3107 = vmatprep.mubr.f32.mxu0 0.0
    %3108 = vmatmul.mubr.f32.gmra.mxu0 %v2835
    %v3109 = vpop.f32.mrf.mxu0
    %v3110 = vadd.f32 0.0, %v3109
    %v3111 = vpop.f32.mrf.mxu0
    %3112 = vmatprep.mubr.f32.mxu0 0.0
    %3113 = vmatmul.mubr.f32.gmra.mxu0 %v2838
    %v3114 = vpop.f32.mrf.mxu0
    %v3115 = vadd.f32 0.0, %v3114
    %v3116 = vpop.f32.mrf.mxu0
    %3117 = vmatprep.mubr.f32.mxu0 0.0
    %3118 = vmatmul.mubr.f32.gmra.mxu0 %v2841
    %v3119 = vpop.f32.mrf.mxu0
    %v3120 = vadd.f32 0.0, %v3119
    %v3121 = vpop.f32.mrf.mxu0
    %3122 = vmatprep.mubr.f32.mxu0 0.0
    %3123 = vmatmul.mubr.f32.gmra.mxu0 %v2844
    %v3124 = vpop.f32.mrf.mxu0
    %v3125 = vadd.f32 0.0, %v3124
    %v3126 = vpop.f32.mrf.mxu0
    %3127 = vmatprep.mubr.f32.mxu0 0.0
    %3128 = vmatmul.mubr.f32.gmra.mxu0 %v2847
    %v3129 = vpop.f32.mrf.mxu0
    %v3130 = vadd.f32 0.0, %v3129
    %v3131 = vpop.f32.mrf.mxu0
    %3132 = vmatprep.mubr.f32.mxu0 0.0
    %3133 = vmatmul.mubr.f32.gmra.mxu0 %v2850
    %v3134 = vpop.f32.mrf.mxu0
    %v3135 = vadd.f32 0.0, %v3134
    %v3136 = vpop.f32.mrf.mxu0
    %3137 = vmatprep.mubr.f32.mxu0 0.0
    %3138 = vmatmul.mubr.f32.gmra.mxu0 %v2853
    %v3139 = vpop.f32.mrf.mxu0
    %v3140 = vadd.f32 0.0, %v3139
    %v3141 = vpop.f32.mrf.mxu0
    %3142 = vmatprep.mubr.f32.mxu0 0.0
    %3143 = vmatmul.mubr.f32.gmra.mxu0 %v2856
    %v3144 = vpop.f32.mrf.mxu0
    %v3145 = vadd.f32 0.0, %v3144
    %v3146 = vpop.f32.mrf.mxu0
    %3147 = vmatprep.mubr.f32.mxu0 0.0
    %3148 = vmatmul.mubr.f32.gmra.mxu0 %v2859
    %v3149 = vpop.f32.mrf.mxu0
    %v3150 = vadd.f32 0.0, %v3149
    %v3151 = vpop.f32.mrf.mxu0
    %3152 = vmatprep.mubr.f32.mxu0 0.0
    %3153 = vmatmul.mubr.f32.gmra.mxu0 %v2862
    %v3154 = vpop.f32.mrf.mxu0
    %v3155 = vadd.f32 0.0, %v3154
    %v3156 = vpop.f32.mrf.mxu0
    %3157 = vmatprep.mubr.f32.mxu0 0.0
    %3158 = vmatmul.mubr.f32.gmra.mxu0 %v2865
    %v3159 = vpop.f32.mrf.mxu0
    %v3160 = vadd.f32 0.0, %v3159
    %v3161 = vpop.f32.mrf.mxu0
    %3162 = vmatprep.mubr.f32.mxu0 0.0
    %3163 = vmatmul.mubr.f32.gmra.mxu0 %v2868
    %v3164 = vpop.f32.mrf.mxu0
    %v3165 = vadd.f32 0.0, %v3164
    %v3166 = vpop.f32.mrf.mxu0
    %3167 = vmatprep.mubr.f32.mxu0 0.0
    %3168 = vmatmul.mubr.f32.gmra.mxu0 %v2871
    %v3169 = vpop.f32.mrf.mxu0
    %v3170 = vadd.f32 0.0, %v3169
    %v3171 = vpop.f32.mrf.mxu0
    %3172 = vmatprep.mubr.f32.mxu0 0.0
    %3173 = vmatmul.mubr.f32.gmra.mxu0 %v2874
    %v3174 = vpop.f32.mrf.mxu0
    %v3175 = vadd.f32 0.0, %v3174
    %v3176 = vpop.f32.mrf.mxu0
    %3177 = vmatprep.mubr.f32.mxu0 0.0
    %3178 = vmatmul.mubr.f32.gmra.mxu0 %v2877
    %v3179 = vpop.f32.mrf.mxu0
    %v3180 = vadd.f32 0.0, %v3179
    %v3181 = vpop.f32.mrf.mxu0
    %3182 = vmatprep.mubr.f32.mxu0 0.0
    %3183 = vmatmul.mubr.f32.gmra.mxu0 %v2880
    %v3184 = vpop.f32.mrf.mxu0
    %v3185 = vadd.f32 0.0, %v3184
    %v3186 = vpop.f32.mrf.mxu0
    %3187 = vmatprep.mubr.f32.mxu0 0.0
    %3188 = vmatmul.mubr.f32.gmra.mxu0 %v2883
    %v3189 = vpop.f32.mrf.mxu0
    %v3190 = vadd.f32 0.0, %v3189
    %v3191 = vpop.f32.mrf.mxu0
    %3192 = vmatprep.mubr.f32.mxu0 0.0
    %3193 = vmatmul.mubr.f32.gmra.mxu0 %v2886
    %v3194 = vpop.f32.mrf.mxu0
    %v3195 = vadd.f32 0.0, %v3194
    %v3196 = vpop.f32.mrf.mxu0
    %3197 = vmatprep.mubr.f32.mxu0 0.0
    %3198 = vmatmul.mubr.f32.gmra.mxu0 %v2889
    %v3199 = vpop.f32.mrf.mxu0
    %v3200 = vadd.f32 0.0, %v3199
    %v3201 = vpop.f32.mrf.mxu0
    %3202 = vmatprep.mubr.f32.mxu0 0.0
    %3203 = vmatmul.mubr.f32.gmra.mxu0 %v2892
    %v3204 = vpop.f32.mrf.mxu0
    %v3205 = vadd.f32 0.0, %v3204
    %v3206 = vpop.f32.mrf.mxu0
    %3207 = vmatprep.mubr.f32.mxu0 0.0
    %3208 = vmatmul.mubr.f32.gmra.mxu0 %v2895
    %v3209 = vpop.f32.mrf.mxu0
    %v3210 = vadd.f32 0.0, %v3209
    %v3211 = vpop.f32.mrf.mxu0
    %3212 = vmatprep.mubr.f32.mxu0 0.0
    %3213 = vmatmul.mubr.f32.gmra.mxu0 %v2898
    %v3214 = vpop.f32.mrf.mxu0
    %v3215 = vadd.f32 0.0, %v3214
    %v3216 = vpop.f32.mrf.mxu0
    %3217 = vmatprep.mubr.f32.mxu0 0.0
    %3218 = vmatmul.mubr.f32.gmra.mxu0 %v2901
    %v3219 = vpop.f32.mrf.mxu0
    %v3220 = vadd.f32 0.0, %v3219
    %v3221 = vpop.f32.mrf.mxu0
    %3222 = vmatprep.mubr.f32.mxu0 0.0
    %3223 = vmatmul.mubr.f32.gmra.mxu0 %v2904
    %v3224 = vpop.f32.mrf.mxu0
    %v3225 = vadd.f32 0.0, %v3224
    %v3226 = vpop.f32.mrf.mxu0
    %3227 = vmatprep.mubr.f32.mxu0 0.0
    %3228 = vmatmul.mubr.f32.gmra.mxu0 %v2907
    %v3229 = vpop.f32.mrf.mxu0
    %v3230 = vadd.f32 0.0, %v3229
    %v3231 = vpop.f32.mrf.mxu0
    %3232 = vmatprep.mubr.f32.mxu0 0.0
    %3233 = vmatmul.mubr.f32.gmra.mxu0 %v2910
    %v3234 = vpop.f32.mrf.mxu0
    %v3235 = vadd.f32 0.0, %v3234
    %v3236 = vpop.f32.mrf.mxu0
    %3237 = vmatprep.mubr.f32.mxu0 0.0
    %3238 = vmatmul.mubr.f32.gmra.mxu0 %v2913
    %v3239 = vpop.f32.mrf.mxu0
    %v3240 = vadd.f32 0.0, %v3239
    %v3241 = vpop.f32.mrf.mxu0
    %3242 = vmatprep.mubr.f32.mxu0 0.0
    %3243 = vmatmul.mubr.f32.gmra.mxu0 %v2916
    %v3244 = vpop.f32.mrf.mxu0
    %v3245 = vadd.f32 0.0, %v3244
    %v3246 = vpop.f32.mrf.mxu0
    %3247 = vmatprep.mubr.f32.mxu0 0.0
    %3248 = vmatmul.mubr.f32.gmra.mxu0 %v2919
    %v3249 = vpop.f32.mrf.mxu0
    %v3250 = vadd.f32 0.0, %v3249
    %v3251 = vpop.f32.mrf.mxu0
    %3252 = vmatprep.mubr.f32.mxu0 0.0
    %3253 = vmatmul.mubr.f32.gmra.mxu0 %v2922
    %v3254 = vpop.f32.mrf.mxu0
    %v3255 = vadd.f32 0.0, %v3254
    %v3256 = vpop.f32.mrf.mxu0
    %3257 = vmatprep.mubr.f32.mxu0 0.0
    %3258 = vmatmul.mubr.f32.gmra.mxu0 %v2925
    %v3259 = vpop.f32.mrf.mxu0
    %v3260 = vadd.f32 0.0, %v3259
    %v3261 = vpop.f32.mrf.mxu0
    %3262 = vmatprep.mubr.f32.mxu0 0.0
    %3263 = vmatmul.mubr.f32.gmra.mxu0 %v2928
    %v3264 = vpop.f32.mrf.mxu0
    %v3265 = vadd.f32 0.0, %v3264
    %v3266 = vpop.f32.mrf.mxu0
    %3267 = vmatprep.mubr.f32.mxu0 0.0
    %3268 = vmatmul.mubr.f32.gmra.mxu0 %v2931
    %v3269 = vpop.f32.mrf.mxu0
    %v3270 = vadd.f32 0.0, %v3269
    %v3271 = vpop.f32.mrf.mxu0
    %3272 = vmatprep.mubr.f32.mxu0 0.0
    %3273 = vmatmul.mubr.f32.gmra.mxu0 %v2934
    %v3274 = vpop.f32.mrf.mxu0
    %v3275 = vadd.f32 0.0, %v3274
    %v3276 = vpop.f32.mrf.mxu0
    %3277 = vmatprep.mubr.f32.mxu0 0.0
    %3278 = vmatmul.mubr.f32.gmra.mxu0 %v2937
    %v3279 = vpop.f32.mrf.mxu0
    %v3280 = vadd.f32 0.0, %v3279
    %v3281 = vpop.f32.mrf.mxu0
    %3282 = vmatprep.mubr.f32.mxu0 0.0
    %3283 = vmatmul.mubr.f32.gmra.mxu0 %v2940
    %v3284 = vpop.f32.mrf.mxu0
    %v3285 = vadd.f32 0.0, %v3284
    %v3286 = vpop.f32.mrf.mxu0
    %3287 = vmatprep.mubr.f32.mxu0 0.0
    %3288 = vmatmul.mubr.f32.gmra.mxu0 %v2943
    %v3289 = vpop.f32.mrf.mxu0
    %v3290 = vadd.f32 0.0, %v3289
    %v3291 = vpop.f32.mrf.mxu0
    %3292 = vmatprep.mubr.f32.mxu0 0.0
    %3293 = vmatmul.mubr.f32.gmra.mxu0 %v2946
    %v3294 = vpop.f32.mrf.mxu0
    %v3295 = vadd.f32 0.0, %v3294
    %v3296 = vpop.f32.mrf.mxu0
    %3297 = vmatprep.mubr.f32.mxu0 0.0
    %3298 = vmatmul.mubr.f32.gmra.mxu0 %v2949
    %v3299 = vpop.f32.mrf.mxu0
    %v3300 = vadd.f32 0.0, %v3299
    %v3301 = vpop.f32.mrf.mxu0
    %3302 = vmatprep.mubr.f32.mxu0 0.0
    %3303 = vmatmul.mubr.f32.gmra.mxu0 %v2952
    %v3304 = vpop.f32.mrf.mxu0
    %v3305 = vadd.f32 0.0, %v3304
    %v3306 = vpop.f32.mrf.mxu0
    %3307 = vmatprep.mubr.f32.mxu0 0.0
    %3308 = vmatmul.mubr.f32.gmra.mxu0 %v2955
    %v3309 = vpop.f32.mrf.mxu0
    %v3310 = vadd.f32 0.0, %v3309
    %v3311 = vpop.f32.mrf.mxu0
    %3312 = vmatprep.mubr.f32.mxu0 0.0
    %3313 = vmatmul.mubr.f32.gmra.mxu0 %v2958
    %v3314 = vpop.f32.mrf.mxu0
    %v3315 = vadd.f32 0.0, %v3314
    %v3316 = vpop.f32.mrf.mxu0
    %3317 = vmatprep.mubr.f32.mxu0 0.0
    %3318 = vmatmul.mubr.f32.gmra.mxu0 %v2961
    %v3319 = vpop.f32.mrf.mxu0
    %v3320 = vadd.f32 0.0, %v3319
    %v3321 = vpop.f32.mrf.mxu0
    %3322 = vmatprep.mubr.f32.mxu0 0.0
    %3323 = vmatmul.mubr.f32.gmra.mxu0 %v2964
    %v3324 = vpop.f32.mrf.mxu0
    %v3325 = vadd.f32 0.0, %v3324
    %v3326 = vpop.f32.mrf.mxu0
    %3327 = vmatprep.mubr.f32.mxu0 0.0
    %3328 = vmatmul.mubr.f32.gmra.mxu0 %v2967
    %v3329 = vpop.f32.mrf.mxu0
    %v3330 = vadd.f32 0.0, %v3329
    %v3331 = vpop.f32.mrf.mxu0
    %3332 = vmatprep.mubr.f32.mxu0 0.0
    %3333 = vmatmul.mubr.f32.gmra.mxu0 %v2970
    %v3334 = vpop.f32.mrf.mxu0
    %v3335 = vadd.f32 0.0, %v3334
    %v3336 = vpop.f32.mrf.mxu0
    %3337 = vmatprep.mubr.f32.mxu0 0.0
    %3338 = vmatmul.mubr.f32.gmra.mxu0 %v2973
    %v3339 = vpop.f32.mrf.mxu0
    %v3340 = vadd.f32 0.0, %v3339
    %v3341 = vpop.f32.mrf.mxu0
    %3342 = vmatprep.mubr.f32.mxu0 0.0
    %3343 = vmatmul.mubr.f32.gmra.mxu0 %v2976
    %v3344 = vpop.f32.mrf.mxu0
    %v3345 = vadd.f32 0.0, %v3344
    %v3346 = vpop.f32.mrf.mxu0
    %3347 = vmatprep.mubr.f32.mxu0 0.0
    %3348 = vmatmul.mubr.f32.gmra.mxu0 %v2979
    %v3349 = vpop.f32.mrf.mxu0
    %v3350 = vadd.f32 0.0, %v3349
    %v3351 = vpop.f32.mrf.mxu0
    %3352 = vmatprep.mubr.f32.mxu0 0.0
    %3353 = vmatmul.mubr.f32.gmra.mxu0 %v2982
    %v3354 = vpop.f32.mrf.mxu0
    %v3355 = vadd.f32 0.0, %v3354
    %v3356 = vpop.f32.mrf.mxu0
    %3357 = vmatprep.mubr.f32.mxu0 0.0
    %3358 = vmatmul.mubr.f32.gmra.mxu0 %v2985
    %v3359 = vpop.f32.mrf.mxu0
    %v3360 = vadd.f32 0.0, %v3359
    %v3361 = vpop.f32.mrf.mxu0
    %3362 = vmatprep.mubr.f32.mxu0 0.0
    %3363 = vmatmul.mubr.f32.gmra.mxu0 %v2988
    %v3364 = vpop.f32.mrf.mxu0
    %v3365 = vadd.f32 0.0, %v3364
    %v3366 = vpop.f32.mrf.mxu0
    %3367 = vmatprep.mubr.f32.mxu0 0.0
    %3368 = vmatmul.mubr.f32.gmra.mxu0 %v2991
    %v3369 = vpop.f32.mrf.mxu0
    %v3370 = vadd.f32 0.0, %v3369
    %v3371 = vpop.f32.mrf.mxu0
    %3372 = vmatprep.mubr.f32.mxu0 0.0
    %3373 = vmatmul.mubr.f32.gmra.mxu0 %v2994
    %v3374 = vpop.f32.mrf.mxu0
    %v3375 = vadd.f32 0.0, %v3374
    %v3376 = vpop.f32.mrf.mxu0
    %3377 = vmatprep.mubr.f32.mxu0 0.0
    %3378 = vmatmul.mubr.f32.gmra.mxu0 %v2997
    %v3379 = vpop.f32.mrf.mxu0
    %v3380 = vadd.f32 0.0, %v3379
    %v3381 = vpop.f32.mrf.mxu0
    %3382 = vmatprep.mubr.f32.mxu0 0.0
    %3383 = vmatmul.mubr.f32.gmra.mxu0 %v3000
    %v3384 = vpop.f32.mrf.mxu0
    %v3385 = vadd.f32 0.0, %v3384
    %v3386 = vpop.f32.mrf.mxu0
    %3387 = vmatprep.mubr.f32.mxu0 0.0
    %3388 = vmatmul.mubr.f32.gmra.mxu0 %v3003
    %v3389 = vpop.f32.mrf.mxu0
    %v3390 = vadd.f32 0.0, %v3389
    %v3391 = vpop.f32.mrf.mxu0
    %3392 = vdwg.mxu0
    %v3393 = vadd.f32 %v2683, %v3075
    %v3394 = vadd.f32 %v2684, %v3080
    %v3395 = vadd.f32 %v2685, %v3085
    %v3396 = vadd.f32 %v2686, %v3090
    %v3397 = vadd.f32 %v2687, %v3095
    %v3398 = vadd.f32 %v2688, %v3100
    %v3399 = vadd.f32 %v2689, %v3105
    %v3400 = vadd.f32 %v2690, %v3110
    %v3401 = vadd.f32 %v2691, %v3115
    %v3402 = vadd.f32 %v2692, %v3120
    %v3403 = vadd.f32 %v2693, %v3125
    %v3404 = vadd.f32 %v2694, %v3130
    %v3405 = vadd.f32 %v2695, %v3135
    %v3406 = vadd.f32 %v2696, %v3140
    %v3407 = vadd.f32 %v2697, %v3145
    %v3408 = vadd.f32 %v2698, %v3150
    %v3409 = vadd.f32 %v2699, %v3155
    %v3410 = vadd.f32 %v2700, %v3160
    %v3411 = vadd.f32 %v2701, %v3165
    %v3412 = vadd.f32 %v2702, %v3170
    %v3413 = vadd.f32 %v2703, %v3175
    %v3414 = vadd.f32 %v2704, %v3180
    %v3415 = vadd.f32 %v2705, %v3185
    %v3416 = vadd.f32 %v2706, %v3190
    %v3417 = vadd.f32 %v2707, %v3195
    %v3418 = vadd.f32 %v2708, %v3200
    %v3419 = vadd.f32 %v2709, %v3205
    %v3420 = vadd.f32 %v2710, %v3210
    %v3421 = vadd.f32 %v2711, %v3215
    %v3422 = vadd.f32 %v2712, %v3220
    %v3423 = vadd.f32 %v2713, %v3225
    %v3424 = vadd.f32 %v2714, %v3230
    %v3425 = vadd.f32 %v2715, %v3235
    %v3426 = vadd.f32 %v2716, %v3240
    %v3427 = vadd.f32 %v2717, %v3245
    %v3428 = vadd.f32 %v2718, %v3250
    %v3429 = vadd.f32 %v2719, %v3255
    %v3430 = vadd.f32 %v2720, %v3260
    %v3431 = vadd.f32 %v2721, %v3265
    %v3432 = vadd.f32 %v2722, %v3270
    %v3433 = vadd.f32 %v2723, %v3275
    %v3434 = vadd.f32 %v2724, %v3280
    %v3435 = vadd.f32 %v2725, %v3285
    %v3436 = vadd.f32 %v2726, %v3290
    %v3437 = vadd.f32 %v2727, %v3295
    %v3438 = vadd.f32 %v2728, %v3300
    %v3439 = vadd.f32 %v2729, %v3305
    %v3440 = vadd.f32 %v2730, %v3310
    %v3441 = vadd.f32 %v2731, %v3315
    %v3442 = vadd.f32 %v2732, %v3320
    %v3443 = vadd.f32 %v2733, %v3325
    %v3444 = vadd.f32 %v2734, %v3330
    %v3445 = vadd.f32 %v2735, %v3335
    %v3446 = vadd.f32 %v2736, %v3340
    %v3447 = vadd.f32 %v2737, %v3345
    %v3448 = vadd.f32 %v2738, %v3350
    %v3449 = vadd.f32 %v2739, %v3355
    %v3450 = vadd.f32 %v2740, %v3360
    %v3451 = vadd.f32 %v2741, %v3365
    %v3452 = vadd.f32 %v2742, %v3370
    %v3453 = vadd.f32 %v2743, %v3375
    %v3454 = vadd.f32 %v2744, %v3380
    %v3455 = vadd.f32 %v2745, %v3385
    %v3456 = vadd.f32 %v2746, %v3390
    %v3457 = vld [vmem:[%s2036 + $0x2] sm:$0xff]
    %v3458 = vld [vmem:[%s2036 + $0xa] sm:$0xff]
    %v3459 = vld [vmem:[%s2036 + $0x1a] sm:$0xff]
    %v3460 = vld [vmem:[%s2036 + $0x22] sm:$0xff]
    %v3461 = vld [vmem:[%s2036 + $0x32] sm:$0xff]
    %v3462 = vld [vmem:[%s2036 + $0x3a] sm:$0xff]
    %v3463 = vld [vmem:[%s2036 + $0x4a] sm:$0xff]
    %v3464 = vld [vmem:[%s2036 + $0x52] sm:$0xff]
    %v3465 = vld [vmem:[%s2036 + $0x62] sm:$0xff]
    %v3466 = vld [vmem:[%s2036 + $0x6a] sm:$0xff]
    %v3467 = vld [vmem:[%s2036 + $0x7a] sm:$0xff]
    %v3468 = vld [vmem:[%s2036 + $0x82] sm:$0xff]
    %v3469 = vld [vmem:[%s2036 + $0x92] sm:$0xff]
    %v3470 = vld [vmem:[%s2036 + $0x9a] sm:$0xff]
    %v3471 = vld [vmem:[%s2036 + $0xaa] sm:$0xff]
    %v3472 = vld [vmem:[%s2036 + $0xb2] sm:$0xff]
    %v3473 = vld [vmem:[%s2036 + $0xc2] sm:$0xff]
    %v3474 = vld [vmem:[%s2036 + $0xca] sm:$0xff]
    %v3475 = vld [vmem:[%s2036 + $0xda] sm:$0xff]
    %v3476 = vld [vmem:[%s2036 + $0xe2] sm:$0xff]
    %v3477 = vld [vmem:[%s2036 + $0xf2] sm:$0xff]
    %v3478 = vld [vmem:[%s2036 + $0xfa] sm:$0xff]
    %v3479 = vld [vmem:[%s2036 + $0x10a] sm:$0xff]
    %v3480 = vld [vmem:[%s2036 + $0x112] sm:$0xff]
    %v3481 = vld [vmem:[%s2036 + $0x122] sm:$0xff]
    %v3482 = vld [vmem:[%s2036 + $0x12a] sm:$0xff]
    %v3483 = vld [vmem:[%s2036 + $0x13a] sm:$0xff]
    %v3484 = vld [vmem:[%s2036 + $0x142] sm:$0xff]
    %v3485 = vld [vmem:[%s2036 + $0x152] sm:$0xff]
    %v3486 = vld [vmem:[%s2036 + $0x15a] sm:$0xff]
    %v3487 = vld [vmem:[%s2036 + $0x16a] sm:$0xff]
    %v3488 = vld [vmem:[%s2036 + $0x172] sm:$0xff]
    %v3489 = vld [vmem:[%s2036 + $0x1b2] sm:$0xff]
    %v3490 = vld [vmem:[%s2036 + $0x1ba] sm:$0xff]
    %v3491 = vld [vmem:[%s2036 + $0x1ca] sm:$0xff]
    %v3492 = vld [vmem:[%s2036 + $0x1d2] sm:$0xff]
    %v3493 = vld [vmem:[%s2036 + $0x1e2] sm:$0xff]
    %v3494 = vld [vmem:[%s2036 + $0x1ea] sm:$0xff]
    %v3495 = vld [vmem:[%s2036 + $0x1fa] sm:$0xff]
    %v3496 = vld [vmem:[%s2036 + $0x202] sm:$0xff]
    %v3497 = vld [vmem:[%s2036 + $0x212] sm:$0xff]
    %v3498 = vld [vmem:[%s2036 + $0x21a] sm:$0xff]
    %v3499 = vld [vmem:[%s2036 + $0x22a] sm:$0xff]
    %v3500 = vld [vmem:[%s2036 + $0x232] sm:$0xff]
    %v3501 = vld [vmem:[%s2036 + $0x242] sm:$0xff]
    %v3502 = vld [vmem:[%s2036 + $0x24a] sm:$0xff]
    %v3503 = vld [vmem:[%s2036 + $0x25a] sm:$0xff]
    %v3504 = vld [vmem:[%s2036 + $0x262] sm:$0xff]
    %v3505 = vld [vmem:[%s2036 + $0x272] sm:$0xff]
    %v3506 = vld [vmem:[%s2036 + $0x27a] sm:$0xff]
    %v3507 = vld [vmem:[%s2036 + $0x28a] sm:$0xff]
    %v3508 = vld [vmem:[%s2036 + $0x292] sm:$0xff]
    %v3509 = vld [vmem:[%s2036 + $0x2a2] sm:$0xff]
    %v3510 = vld [vmem:[%s2036 + $0x2aa] sm:$0xff]
    %v3511 = vld [vmem:[%s2036 + $0x2ba] sm:$0xff]
    %v3512 = vld [vmem:[%s2036 + $0x2c2] sm:$0xff]
    %v3513 = vld [vmem:[%s2036 + $0x2d2] sm:$0xff]
    %v3514 = vld [vmem:[%s2036 + $0x2da] sm:$0xff]
    %v3515 = vld [vmem:[%s2036 + $0x2ea] sm:$0xff]
    %v3516 = vld [vmem:[%s2036 + $0x2f2] sm:$0xff]
    %v3517 = vld [vmem:[%s2036 + $0x302] sm:$0xff]
    %v3518 = vld [vmem:[%s2036 + $0x30a] sm:$0xff]
    %v3519 = vld [vmem:[%s2036 + $0x31a] sm:$0xff]
    %v3520 = vld [vmem:[%s2036 + $0x322] sm:$0xff]
    %s3521 = scalar_lea.vmem %s1, 20
    %v3522 = vld [vmem:[%s3521] sm:$0xf]
    %v3524 = vsel %vm164, %v3457, 0
    %v3527 = vsel %vm164, %v3458, 0
    %v3530 = vsel %vm164, %v3459, 0
    %v3533 = vsel %vm164, %v3460, 0
    %v3536 = vsel %vm164, %v3461, 0
    %v3539 = vsel %vm164, %v3462, 0
    %v3542 = vsel %vm164, %v3463, 0
    %v3545 = vsel %vm164, %v3464, 0
    %v3548 = vsel %vm164, %v3465, 0
    %v3551 = vsel %vm164, %v3466, 0
    %v3554 = vsel %vm164, %v3467, 0
    %v3557 = vsel %vm164, %v3468, 0
    %v3560 = vsel %vm164, %v3469, 0
    %v3563 = vsel %vm164, %v3470, 0
    %v3566 = vsel %vm164, %v3471, 0
    %v3569 = vsel %vm164, %v3472, 0
    %v3572 = vsel %vm164, %v3473, 0
    %v3575 = vsel %vm164, %v3474, 0
    %v3578 = vsel %vm164, %v3475, 0
    %v3581 = vsel %vm164, %v3476, 0
    %v3584 = vsel %vm164, %v3477, 0
    %v3587 = vsel %vm164, %v3478, 0
    %v3590 = vsel %vm164, %v3479, 0
    %v3593 = vsel %vm164, %v3480, 0
    %v3596 = vsel %vm164, %v3481, 0
    %v3599 = vsel %vm164, %v3482, 0
    %v3602 = vsel %vm164, %v3483, 0
    %v3605 = vsel %vm164, %v3484, 0
    %v3608 = vsel %vm164, %v3485, 0
    %v3611 = vsel %vm164, %v3486, 0
    %v3614 = vsel %vm164, %v3487, 0
    %v3617 = vsel %vm164, %v3488, 0
    %v3620 = vsel %vm164, %v3489, 0
    %v3623 = vsel %vm164, %v3490, 0
    %v3626 = vsel %vm164, %v3491, 0
    %v3629 = vsel %vm164, %v3492, 0
    %v3632 = vsel %vm164, %v3493, 0
    %v3635 = vsel %vm164, %v3494, 0
    %v3638 = vsel %vm164, %v3495, 0
    %v3641 = vsel %vm164, %v3496, 0
    %v3644 = vsel %vm164, %v3497, 0
    %v3647 = vsel %vm164, %v3498, 0
    %v3650 = vsel %vm164, %v3499, 0
    %v3653 = vsel %vm164, %v3500, 0
    %v3656 = vsel %vm164, %v3501, 0
    %v3659 = vsel %vm164, %v3502, 0
    %v3662 = vsel %vm164, %v3503, 0
    %v3665 = vsel %vm164, %v3504, 0
    %v3668 = vsel %vm164, %v3505, 0
    %v3671 = vsel %vm164, %v3506, 0
    %v3674 = vsel %vm164, %v3507, 0
    %v3677 = vsel %vm164, %v3508, 0
    %v3680 = vsel %vm164, %v3509, 0
    %v3683 = vsel %vm164, %v3510, 0
    %v3686 = vsel %vm164, %v3511, 0
    %v3689 = vsel %vm164, %v3512, 0
    %v3692 = vsel %vm164, %v3513, 0
    %v3695 = vsel %vm164, %v3514, 0
    %v3698 = vsel %vm164, %v3515, 0
    %v3701 = vsel %vm164, %v3516, 0
    %v3704 = vsel %vm164, %v3517, 0
    %v3707 = vsel %vm164, %v3518, 0
    %v3710 = vsel %vm164, %v3519, 0
    %v3713 = vsel %vm164, %v3520, 0
    %v3716 = vsel %vm357, %v3522, 0
    %3718 = vmatprep.subr.mxu0 0.0
    %3719 = vmatpush1.msra.mxu0 0.0
    %3720 = vmatprep.subr.mxu0 0.0
    %3721 = vmatpush1.msra.mxu0 0.0
    %3722 = vmatprep.subr.mxu0 0.0
    %3723 = vmatpush1.msra.mxu0 0.0
    %3724 = vmatprep.subr.mxu0 0.0
    %3725 = vmatpush1.msra.mxu0 0.0
    %3726 = vmatprep.subr.mxu0 0.0
    %3727 = vmatpush1.msra.mxu0 0.0
    %3728 = vmatprep.subr.mxu0 0.0
    %3729 = vmatpush1.msra.mxu0 0.0
    %3730 = vmatprep.subr.mxu0 0.0
    %3731 = vmatpush1.msra.mxu0 0.0
    %3732 = vmatprep.subr.mxu0 0.0
    %3733 = vmatpush1.msra.mxu0 0.0
    %3734 = vmatprep.subr.mxu0 0.0
    %3735 = vmatpush1.msra.mxu0 0.0
    %3736 = vmatprep.subr.mxu0 0.0
    %3737 = vmatpush1.msra.mxu0 0.0
    %3738 = vmatprep.subr.mxu0 0.0
    %3739 = vmatpush1.msra.mxu0 0.0
    %3740 = vmatprep.subr.mxu0 0.0
    %3741 = vmatpush1.msra.mxu0 0.0
    %3742 = vmatprep.subr.mxu0 0.0
    %3743 = vmatpush1.msra.mxu0 0.0
    %3744 = vmatprep.subr.mxu0 0.0
    %3745 = vmatpush1.msra.mxu0 0.0
    %3746 = vmatprep.subr.mxu0 0.0
    %3747 = vmatpush1.msra.mxu0 0.0
    %3748 = vmatprep.subr.mxu0 0.0
    %3749 = vmatpush1.msra.mxu0 %v3716
    %3750 = vmatprep.subr.mxu0 0.0
    %3751 = vmatpush2.msra.mxu0 0.0
    %3752 = vmatprep.subr.mxu0 0.0
    %3753 = vmatpush2.msra.mxu0 0.0
    %3754 = vmatprep.subr.mxu0 0.0
    %3755 = vmatpush2.msra.mxu0 0.0
    %3756 = vmatprep.subr.mxu0 0.0
    %3757 = vmatpush2.msra.mxu0 0.0
    %3758 = vmatprep.subr.mxu0 0.0
    %3759 = vmatpush2.msra.mxu0 0.0
    %3760 = vmatprep.subr.mxu0 0.0
    %3761 = vmatpush2.msra.mxu0 0.0
    %3762 = vmatprep.subr.mxu0 0.0
    %3763 = vmatpush2.msra.mxu0 0.0
    %3764 = vmatprep.subr.mxu0 0.0
    %3765 = vmatpush2.msra.mxu0 0.0
    %3766 = vmatprep.subr.mxu0 0.0
    %3767 = vmatpush2.msra.mxu0 0.0
    %3768 = vmatprep.subr.mxu0 0.0
    %3769 = vmatpush2.msra.mxu0 0.0
    %3770 = vmatprep.subr.mxu0 0.0
    %3771 = vmatpush2.msra.mxu0 0.0
    %3772 = vmatprep.subr.mxu0 0.0
    %3773 = vmatpush2.msra.mxu0 0.0
    %3774 = vmatprep.subr.mxu0 0.0
    %3775 = vmatpush2.msra.mxu0 0.0
    %3776 = vmatprep.subr.mxu0 0.0
    %3777 = vmatpush2.msra.mxu0 0.0
    %3778 = vmatprep.subr.mxu0 0.0
    %3779 = vmatpush2.msra.mxu0 0.0
    %3780 = vmatprep.subr.mxu0 0.0
    %3781 = vmatpush2.msra.mxu0 0.0
    %3782 = vmatprep.mubr.f32.mxu0 0.0
    %3783 = vmatmul.mubr.f32.gmra.mxu0 %v3524
    %v3784 = vpop.f32.mrf.mxu0
    %v3785 = vadd.f32 0.0, %v3784
    %v3786 = vpop.f32.mrf.mxu0
    %3787 = vmatprep.mubr.f32.mxu0 0.0
    %3788 = vmatmul.mubr.f32.gmra.mxu0 %v3527
    %v3789 = vpop.f32.mrf.mxu0
    %v3790 = vadd.f32 0.0, %v3789
    %v3791 = vpop.f32.mrf.mxu0
    %3792 = vmatprep.mubr.f32.mxu0 0.0
    %3793 = vmatmul.mubr.f32.gmra.mxu0 %v3530
    %v3794 = vpop.f32.mrf.mxu0
    %v3795 = vadd.f32 0.0, %v3794
    %v3796 = vpop.f32.mrf.mxu0
    %3797 = vmatprep.mubr.f32.mxu0 0.0
    %3798 = vmatmul.mubr.f32.gmra.mxu0 %v3533
    %v3799 = vpop.f32.mrf.mxu0
    %v3800 = vadd.f32 0.0, %v3799
    %v3801 = vpop.f32.mrf.mxu0
    %3802 = vmatprep.mubr.f32.mxu0 0.0
    %3803 = vmatmul.mubr.f32.gmra.mxu0 %v3536
    %v3804 = vpop.f32.mrf.mxu0
    %v3805 = vadd.f32 0.0, %v3804
    %v3806 = vpop.f32.mrf.mxu0
    %3807 = vmatprep.mubr.f32.mxu0 0.0
    %3808 = vmatmul.mubr.f32.gmra.mxu0 %v3539
    %v3809 = vpop.f32.mrf.mxu0
    %v3810 = vadd.f32 0.0, %v3809
    %v3811 = vpop.f32.mrf.mxu0
    %3812 = vmatprep.mubr.f32.mxu0 0.0
    %3813 = vmatmul.mubr.f32.gmra.mxu0 %v3542
    %v3814 = vpop.f32.mrf.mxu0
    %v3815 = vadd.f32 0.0, %v3814
    %v3816 = vpop.f32.mrf.mxu0
    %3817 = vmatprep.mubr.f32.mxu0 0.0
    %3818 = vmatmul.mubr.f32.gmra.mxu0 %v3545
    %v3819 = vpop.f32.mrf.mxu0
    %v3820 = vadd.f32 0.0, %v3819
    %v3821 = vpop.f32.mrf.mxu0
    %3822 = vmatprep.mubr.f32.mxu0 0.0
    %3823 = vmatmul.mubr.f32.gmra.mxu0 %v3548
    %v3824 = vpop.f32.mrf.mxu0
    %v3825 = vadd.f32 0.0, %v3824
    %v3826 = vpop.f32.mrf.mxu0
    %3827 = vmatprep.mubr.f32.mxu0 0.0
    %3828 = vmatmul.mubr.f32.gmra.mxu0 %v3551
    %v3829 = vpop.f32.mrf.mxu0
    %v3830 = vadd.f32 0.0, %v3829
    %v3831 = vpop.f32.mrf.mxu0
    %3832 = vmatprep.mubr.f32.mxu0 0.0
    %3833 = vmatmul.mubr.f32.gmra.mxu0 %v3554
    %v3834 = vpop.f32.mrf.mxu0
    %v3835 = vadd.f32 0.0, %v3834
    %v3836 = vpop.f32.mrf.mxu0
    %3837 = vmatprep.mubr.f32.mxu0 0.0
    %3838 = vmatmul.mubr.f32.gmra.mxu0 %v3557
    %v3839 = vpop.f32.mrf.mxu0
    %v3840 = vadd.f32 0.0, %v3839
    %v3841 = vpop.f32.mrf.mxu0
    %3842 = vmatprep.mubr.f32.mxu0 0.0
    %3843 = vmatmul.mubr.f32.gmra.mxu0 %v3560
    %v3844 = vpop.f32.mrf.mxu0
    %v3845 = vadd.f32 0.0, %v3844
    %v3846 = vpop.f32.mrf.mxu0
    %3847 = vmatprep.mubr.f32.mxu0 0.0
    %3848 = vmatmul.mubr.f32.gmra.mxu0 %v3563
    %v3849 = vpop.f32.mrf.mxu0
    %v3850 = vadd.f32 0.0, %v3849
    %v3851 = vpop.f32.mrf.mxu0
    %3852 = vmatprep.mubr.f32.mxu0 0.0
    %3853 = vmatmul.mubr.f32.gmra.mxu0 %v3566
    %v3854 = vpop.f32.mrf.mxu0
    %v3855 = vadd.f32 0.0, %v3854
    %v3856 = vpop.f32.mrf.mxu0
    %3857 = vmatprep.mubr.f32.mxu0 0.0
    %3858 = vmatmul.mubr.f32.gmra.mxu0 %v3569
    %v3859 = vpop.f32.mrf.mxu0
    %v3860 = vadd.f32 0.0, %v3859
    %v3861 = vpop.f32.mrf.mxu0
    %3862 = vmatprep.mubr.f32.mxu0 0.0
    %3863 = vmatmul.mubr.f32.gmra.mxu0 %v3572
    %v3864 = vpop.f32.mrf.mxu0
    %v3865 = vadd.f32 0.0, %v3864
    %v3866 = vpop.f32.mrf.mxu0
    %3867 = vmatprep.mubr.f32.mxu0 0.0
    %3868 = vmatmul.mubr.f32.gmra.mxu0 %v3575
    %v3869 = vpop.f32.mrf.mxu0
    %v3870 = vadd.f32 0.0, %v3869
    %v3871 = vpop.f32.mrf.mxu0
    %3872 = vmatprep.mubr.f32.mxu0 0.0
    %3873 = vmatmul.mubr.f32.gmra.mxu0 %v3578
    %v3874 = vpop.f32.mrf.mxu0
    %v3875 = vadd.f32 0.0, %v3874
    %v3876 = vpop.f32.mrf.mxu0
    %3877 = vmatprep.mubr.f32.mxu0 0.0
    %3878 = vmatmul.mubr.f32.gmra.mxu0 %v3581
    %v3879 = vpop.f32.mrf.mxu0
    %v3880 = vadd.f32 0.0, %v3879
    %v3881 = vpop.f32.mrf.mxu0
    %3882 = vmatprep.mubr.f32.mxu0 0.0
    %3883 = vmatmul.mubr.f32.gmra.mxu0 %v3584
    %v3884 = vpop.f32.mrf.mxu0
    %v3885 = vadd.f32 0.0, %v3884
    %v3886 = vpop.f32.mrf.mxu0
    %3887 = vmatprep.mubr.f32.mxu0 0.0
    %3888 = vmatmul.mubr.f32.gmra.mxu0 %v3587
    %v3889 = vpop.f32.mrf.mxu0
    %v3890 = vadd.f32 0.0, %v3889
    %v3891 = vpop.f32.mrf.mxu0
    %3892 = vmatprep.mubr.f32.mxu0 0.0
    %3893 = vmatmul.mubr.f32.gmra.mxu0 %v3590
    %v3894 = vpop.f32.mrf.mxu0
    %v3895 = vadd.f32 0.0, %v3894
    %v3896 = vpop.f32.mrf.mxu0
    %3897 = vmatprep.mubr.f32.mxu0 0.0
    %3898 = vmatmul.mubr.f32.gmra.mxu0 %v3593
    %v3899 = vpop.f32.mrf.mxu0
    %v3900 = vadd.f32 0.0, %v3899
    %v3901 = vpop.f32.mrf.mxu0
    %3902 = vmatprep.mubr.f32.mxu0 0.0
    %3903 = vmatmul.mubr.f32.gmra.mxu0 %v3596
    %v3904 = vpop.f32.mrf.mxu0
    %v3905 = vadd.f32 0.0, %v3904
    %v3906 = vpop.f32.mrf.mxu0
    %3907 = vmatprep.mubr.f32.mxu0 0.0
    %3908 = vmatmul.mubr.f32.gmra.mxu0 %v3599
    %v3909 = vpop.f32.mrf.mxu0
    %v3910 = vadd.f32 0.0, %v3909
    %v3911 = vpop.f32.mrf.mxu0
    %3912 = vmatprep.mubr.f32.mxu0 0.0
    %3913 = vmatmul.mubr.f32.gmra.mxu0 %v3602
    %v3914 = vpop.f32.mrf.mxu0
    %v3915 = vadd.f32 0.0, %v3914
    %v3916 = vpop.f32.mrf.mxu0
    %3917 = vmatprep.mubr.f32.mxu0 0.0
    %3918 = vmatmul.mubr.f32.gmra.mxu0 %v3605
    %v3919 = vpop.f32.mrf.mxu0
    %v3920 = vadd.f32 0.0, %v3919
    %v3921 = vpop.f32.mrf.mxu0
    %3922 = vmatprep.mubr.f32.mxu0 0.0
    %3923 = vmatmul.mubr.f32.gmra.mxu0 %v3608
    %v3924 = vpop.f32.mrf.mxu0
    %v3925 = vadd.f32 0.0, %v3924
    %v3926 = vpop.f32.mrf.mxu0
    %3927 = vmatprep.mubr.f32.mxu0 0.0
    %3928 = vmatmul.mubr.f32.gmra.mxu0 %v3611
    %v3929 = vpop.f32.mrf.mxu0
    %v3930 = vadd.f32 0.0, %v3929
    %v3931 = vpop.f32.mrf.mxu0
    %3932 = vmatprep.mubr.f32.mxu0 0.0
    %3933 = vmatmul.mubr.f32.gmra.mxu0 %v3614
    %v3934 = vpop.f32.mrf.mxu0
    %v3935 = vadd.f32 0.0, %v3934
    %v3936 = vpop.f32.mrf.mxu0
    %3937 = vmatprep.mubr.f32.mxu0 0.0
    %3938 = vmatmul.mubr.f32.gmra.mxu0 %v3617
    %v3939 = vpop.f32.mrf.mxu0
    %v3940 = vadd.f32 0.0, %v3939
    %v3941 = vpop.f32.mrf.mxu0
    %3942 = vmatprep.mubr.f32.mxu0 0.0
    %3943 = vmatmul.mubr.f32.gmra.mxu0 %v3620
    %v3944 = vpop.f32.mrf.mxu0
    %v3945 = vadd.f32 0.0, %v3944
    %v3946 = vpop.f32.mrf.mxu0
    %3947 = vmatprep.mubr.f32.mxu0 0.0
    %3948 = vmatmul.mubr.f32.gmra.mxu0 %v3623
    %v3949 = vpop.f32.mrf.mxu0
    %v3950 = vadd.f32 0.0, %v3949
    %v3951 = vpop.f32.mrf.mxu0
    %3952 = vmatprep.mubr.f32.mxu0 0.0
    %3953 = vmatmul.mubr.f32.gmra.mxu0 %v3626
    %v3954 = vpop.f32.mrf.mxu0
    %v3955 = vadd.f32 0.0, %v3954
    %v3956 = vpop.f32.mrf.mxu0
    %3957 = vmatprep.mubr.f32.mxu0 0.0
    %3958 = vmatmul.mubr.f32.gmra.mxu0 %v3629
    %v3959 = vpop.f32.mrf.mxu0
    %v3960 = vadd.f32 0.0, %v3959
    %v3961 = vpop.f32.mrf.mxu0
    %3962 = vmatprep.mubr.f32.mxu0 0.0
    %3963 = vmatmul.mubr.f32.gmra.mxu0 %v3632
    %v3964 = vpop.f32.mrf.mxu0
    %v3965 = vadd.f32 0.0, %v3964
    %v3966 = vpop.f32.mrf.mxu0
    %3967 = vmatprep.mubr.f32.mxu0 0.0
    %3968 = vmatmul.mubr.f32.gmra.mxu0 %v3635
    %v3969 = vpop.f32.mrf.mxu0
    %v3970 = vadd.f32 0.0, %v3969
    %v3971 = vpop.f32.mrf.mxu0
    %3972 = vmatprep.mubr.f32.mxu0 0.0
    %3973 = vmatmul.mubr.f32.gmra.mxu0 %v3638
    %v3974 = vpop.f32.mrf.mxu0
    %v3975 = vadd.f32 0.0, %v3974
    %v3976 = vpop.f32.mrf.mxu0
    %3977 = vmatprep.mubr.f32.mxu0 0.0
    %3978 = vmatmul.mubr.f32.gmra.mxu0 %v3641
    %v3979 = vpop.f32.mrf.mxu0
    %v3980 = vadd.f32 0.0, %v3979
    %v3981 = vpop.f32.mrf.mxu0
    %3982 = vmatprep.mubr.f32.mxu0 0.0
    %3983 = vmatmul.mubr.f32.gmra.mxu0 %v3644
    %v3984 = vpop.f32.mrf.mxu0
    %v3985 = vadd.f32 0.0, %v3984
    %v3986 = vpop.f32.mrf.mxu0
    %3987 = vmatprep.mubr.f32.mxu0 0.0
    %3988 = vmatmul.mubr.f32.gmra.mxu0 %v3647
    %v3989 = vpop.f32.mrf.mxu0
    %v3990 = vadd.f32 0.0, %v3989
    %v3991 = vpop.f32.mrf.mxu0
    %3992 = vmatprep.mubr.f32.mxu0 0.0
    %3993 = vmatmul.mubr.f32.gmra.mxu0 %v3650
    %v3994 = vpop.f32.mrf.mxu0
    %v3995 = vadd.f32 0.0, %v3994
    %v3996 = vpop.f32.mrf.mxu0
    %3997 = vmatprep.mubr.f32.mxu0 0.0
    %3998 = vmatmul.mubr.f32.gmra.mxu0 %v3653
    %v3999 = vpop.f32.mrf.mxu0
    %v4000 = vadd.f32 0.0, %v3999
    %v4001 = vpop.f32.mrf.mxu0
    %4002 = vmatprep.mubr.f32.mxu0 0.0
    %4003 = vmatmul.mubr.f32.gmra.mxu0 %v3656
    %v4004 = vpop.f32.mrf.mxu0
    %v4005 = vadd.f32 0.0, %v4004
    %v4006 = vpop.f32.mrf.mxu0
    %4007 = vmatprep.mubr.f32.mxu0 0.0
    %4008 = vmatmul.mubr.f32.gmra.mxu0 %v3659
    %v4009 = vpop.f32.mrf.mxu0
    %v4010 = vadd.f32 0.0, %v4009
    %v4011 = vpop.f32.mrf.mxu0
    %4012 = vmatprep.mubr.f32.mxu0 0.0
    %4013 = vmatmul.mubr.f32.gmra.mxu0 %v3662
    %v4014 = vpop.f32.mrf.mxu0
    %v4015 = vadd.f32 0.0, %v4014
    %v4016 = vpop.f32.mrf.mxu0
    %4017 = vmatprep.mubr.f32.mxu0 0.0
    %4018 = vmatmul.mubr.f32.gmra.mxu0 %v3665
    %v4019 = vpop.f32.mrf.mxu0
    %v4020 = vadd.f32 0.0, %v4019
    %v4021 = vpop.f32.mrf.mxu0
    %4022 = vmatprep.mubr.f32.mxu0 0.0
    %4023 = vmatmul.mubr.f32.gmra.mxu0 %v3668
    %v4024 = vpop.f32.mrf.mxu0
    %v4025 = vadd.f32 0.0, %v4024
    %v4026 = vpop.f32.mrf.mxu0
    %4027 = vmatprep.mubr.f32.mxu0 0.0
    %4028 = vmatmul.mubr.f32.gmra.mxu0 %v3671
    %v4029 = vpop.f32.mrf.mxu0
    %v4030 = vadd.f32 0.0, %v4029
    %v4031 = vpop.f32.mrf.mxu0
    %4032 = vmatprep.mubr.f32.mxu0 0.0
    %4033 = vmatmul.mubr.f32.gmra.mxu0 %v3674
    %v4034 = vpop.f32.mrf.mxu0
    %v4035 = vadd.f32 0.0, %v4034
    %v4036 = vpop.f32.mrf.mxu0
    %4037 = vmatprep.mubr.f32.mxu0 0.0
    %4038 = vmatmul.mubr.f32.gmra.mxu0 %v3677
    %v4039 = vpop.f32.mrf.mxu0
    %v4040 = vadd.f32 0.0, %v4039
    %v4041 = vpop.f32.mrf.mxu0
    %4042 = vmatprep.mubr.f32.mxu0 0.0
    %4043 = vmatmul.mubr.f32.gmra.mxu0 %v3680
    %v4044 = vpop.f32.mrf.mxu0
    %v4045 = vadd.f32 0.0, %v4044
    %v4046 = vpop.f32.mrf.mxu0
    %4047 = vmatprep.mubr.f32.mxu0 0.0
    %4048 = vmatmul.mubr.f32.gmra.mxu0 %v3683
    %v4049 = vpop.f32.mrf.mxu0
    %v4050 = vadd.f32 0.0, %v4049
    %v4051 = vpop.f32.mrf.mxu0
    %4052 = vmatprep.mubr.f32.mxu0 0.0
    %4053 = vmatmul.mubr.f32.gmra.mxu0 %v3686
    %v4054 = vpop.f32.mrf.mxu0
    %v4055 = vadd.f32 0.0, %v4054
    %v4056 = vpop.f32.mrf.mxu0
    %4057 = vmatprep.mubr.f32.mxu0 0.0
    %4058 = vmatmul.mubr.f32.gmra.mxu0 %v3689
    %v4059 = vpop.f32.mrf.mxu0
    %v4060 = vadd.f32 0.0, %v4059
    %v4061 = vpop.f32.mrf.mxu0
    %4062 = vmatprep.mubr.f32.mxu0 0.0
    %4063 = vmatmul.mubr.f32.gmra.mxu0 %v3692
    %v4064 = vpop.f32.mrf.mxu0
    %v4065 = vadd.f32 0.0, %v4064
    %v4066 = vpop.f32.mrf.mxu0
    %4067 = vmatprep.mubr.f32.mxu0 0.0
    %4068 = vmatmul.mubr.f32.gmra.mxu0 %v3695
    %v4069 = vpop.f32.mrf.mxu0
    %v4070 = vadd.f32 0.0, %v4069
    %v4071 = vpop.f32.mrf.mxu0
    %4072 = vmatprep.mubr.f32.mxu0 0.0
    %4073 = vmatmul.mubr.f32.gmra.mxu0 %v3698
    %v4074 = vpop.f32.mrf.mxu0
    %v4075 = vadd.f32 0.0, %v4074
    %v4076 = vpop.f32.mrf.mxu0
    %4077 = vmatprep.mubr.f32.mxu0 0.0
    %4078 = vmatmul.mubr.f32.gmra.mxu0 %v3701
    %v4079 = vpop.f32.mrf.mxu0
    %v4080 = vadd.f32 0.0, %v4079
    %v4081 = vpop.f32.mrf.mxu0
    %4082 = vmatprep.mubr.f32.mxu0 0.0
    %4083 = vmatmul.mubr.f32.gmra.mxu0 %v3704
    %v4084 = vpop.f32.mrf.mxu0
    %v4085 = vadd.f32 0.0, %v4084
    %v4086 = vpop.f32.mrf.mxu0
    %4087 = vmatprep.mubr.f32.mxu0 0.0
    %4088 = vmatmul.mubr.f32.gmra.mxu0 %v3707
    %v4089 = vpop.f32.mrf.mxu0
    %v4090 = vadd.f32 0.0, %v4089
    %v4091 = vpop.f32.mrf.mxu0
    %4092 = vmatprep.mubr.f32.mxu0 0.0
    %4093 = vmatmul.mubr.f32.gmra.mxu0 %v3710
    %v4094 = vpop.f32.mrf.mxu0
    %v4095 = vadd.f32 0.0, %v4094
    %v4096 = vpop.f32.mrf.mxu0
    %4097 = vmatprep.mubr.f32.mxu0 0.0
    %4098 = vmatmul.mubr.f32.gmra.mxu0 %v3713
    %v4099 = vpop.f32.mrf.mxu0
    %v4100 = vadd.f32 0.0, %v4099
    %v4101 = vpop.f32.mrf.mxu0
    %4102 = vdwg.mxu0
    %v4103 = vadd.f32 %v3393, %v3785
    %v4104 = vadd.f32 %v3394, %v3790
    %v4105 = vadd.f32 %v3395, %v3795
    %v4106 = vadd.f32 %v3396, %v3800
    %v4107 = vadd.f32 %v3397, %v3805
    %v4108 = vadd.f32 %v3398, %v3810
    %v4109 = vadd.f32 %v3399, %v3815
    %v4110 = vadd.f32 %v3400, %v3820
    %v4111 = vadd.f32 %v3401, %v3825
    %v4112 = vadd.f32 %v3402, %v3830
    %v4113 = vadd.f32 %v3403, %v3835
    %v4114 = vadd.f32 %v3404, %v3840
    %v4115 = vadd.f32 %v3405, %v3845
    %v4116 = vadd.f32 %v3406, %v3850
    %v4117 = vadd.f32 %v3407, %v3855
    %v4118 = vadd.f32 %v3408, %v3860
    %v4119 = vadd.f32 %v3409, %v3865
    %v4120 = vadd.f32 %v3410, %v3870
    %v4121 = vadd.f32 %v3411, %v3875
    %v4122 = vadd.f32 %v3412, %v3880
    %v4123 = vadd.f32 %v3413, %v3885
    %v4124 = vadd.f32 %v3414, %v3890
    %v4125 = vadd.f32 %v3415, %v3895
    %v4126 = vadd.f32 %v3416, %v3900
    %v4127 = vadd.f32 %v3417, %v3905
    %v4128 = vadd.f32 %v3418, %v3910
    %v4129 = vadd.f32 %v3419, %v3915
    %v4130 = vadd.f32 %v3420, %v3920
    %v4131 = vadd.f32 %v3421, %v3925
    %v4132 = vadd.f32 %v3422, %v3930
    %v4133 = vadd.f32 %v3423, %v3935
    %v4134 = vadd.f32 %v3424, %v3940
    %v4135 = vadd.f32 %v3425, %v3945
    %v4136 = vadd.f32 %v3426, %v3950
    %v4137 = vadd.f32 %v3427, %v3955
    %v4138 = vadd.f32 %v3428, %v3960
    %v4139 = vadd.f32 %v3429, %v3965
    %v4140 = vadd.f32 %v3430, %v3970
    %v4141 = vadd.f32 %v3431, %v3975
    %v4142 = vadd.f32 %v3432, %v3980
    %v4143 = vadd.f32 %v3433, %v3985
    %v4144 = vadd.f32 %v3434, %v3990
    %v4145 = vadd.f32 %v3435, %v3995
    %v4146 = vadd.f32 %v3436, %v4000
    %v4147 = vadd.f32 %v3437, %v4005
    %v4148 = vadd.f32 %v3438, %v4010
    %v4149 = vadd.f32 %v3439, %v4015
    %v4150 = vadd.f32 %v3440, %v4020
    %v4151 = vadd.f32 %v3441, %v4025
    %v4152 = vadd.f32 %v3442, %v4030
    %v4153 = vadd.f32 %v3443, %v4035
    %v4154 = vadd.f32 %v3444, %v4040
    %v4155 = vadd.f32 %v3445, %v4045
    %v4156 = vadd.f32 %v3446, %v4050
    %v4157 = vadd.f32 %v3447, %v4055
    %v4158 = vadd.f32 %v3448, %v4060
    %v4159 = vadd.f32 %v3449, %v4065
    %v4160 = vadd.f32 %v3450, %v4070
    %v4161 = vadd.f32 %v3451, %v4075
    %v4162 = vadd.f32 %v3452, %v4080
    %v4163 = vadd.f32 %v3453, %v4085
    %v4164 = vadd.f32 %v3454, %v4090
    %v4165 = vadd.f32 %v3455, %v4095
    %v4166 = vadd.f32 %v3456, %v4100
    %s4167 = scalar_lea.vmem %s0, 48
    %v4168 = vld [vmem:[%s4167] sm:$0xff]
    %v4169 = vld [vmem:[%s4167 + $0x8] sm:$0xff]
    %v4170 = vld [vmem:[%s4167 + $0x18] sm:$0xff]
    %v4171 = vld [vmem:[%s4167 + $0x20] sm:$0xff]
    %v4172 = vld [vmem:[%s4167 + $0x30] sm:$0xff]
    %v4173 = vld [vmem:[%s4167 + $0x38] sm:$0xff]
    %v4174 = vld [vmem:[%s4167 + $0x48] sm:$0xff]
    %v4175 = vld [vmem:[%s4167 + $0x50] sm:$0xff]
    %v4176 = vld [vmem:[%s4167 + $0x60] sm:$0xff]
    %v4177 = vld [vmem:[%s4167 + $0x68] sm:$0xff]
    %v4178 = vld [vmem:[%s4167 + $0x78] sm:$0xff]
    %v4179 = vld [vmem:[%s4167 + $0x80] sm:$0xff]
    %v4180 = vld [vmem:[%s4167 + $0x90] sm:$0xff]
    %v4181 = vld [vmem:[%s4167 + $0x98] sm:$0xff]
    %v4182 = vld [vmem:[%s4167 + $0xa8] sm:$0xff]
    %v4183 = vld [vmem:[%s4167 + $0xb0] sm:$0xff]
    %v4184 = vld [vmem:[%s4167 + $0xc0] sm:$0xff]
    %v4185 = vld [vmem:[%s4167 + $0xc8] sm:$0xff]
    %v4186 = vld [vmem:[%s4167 + $0xd8] sm:$0xff]
    %v4187 = vld [vmem:[%s4167 + $0xe0] sm:$0xff]
    %v4188 = vld [vmem:[%s4167 + $0xf0] sm:$0xff]
    %v4189 = vld [vmem:[%s4167 + $0xf8] sm:$0xff]
    %v4190 = vld [vmem:[%s4167 + $0x108] sm:$0xff]
    %v4191 = vld [vmem:[%s4167 + $0x110] sm:$0xff]
    %v4192 = vld [vmem:[%s4167 + $0x120] sm:$0xff]
    %v4193 = vld [vmem:[%s4167 + $0x128] sm:$0xff]
    %v4194 = vld [vmem:[%s4167 + $0x138] sm:$0xff]
    %v4195 = vld [vmem:[%s4167 + $0x140] sm:$0xff]
    %v4196 = vld [vmem:[%s4167 + $0x150] sm:$0xff]
    %v4197 = vld [vmem:[%s4167 + $0x158] sm:$0xff]
    %v4198 = vld [vmem:[%s4167 + $0x168] sm:$0xff]
    %v4199 = vld [vmem:[%s4167 + $0x170] sm:$0xff]
    %v4200 = vld [vmem:[%s4167 + $0x1b0] sm:$0xff]
    %v4201 = vld [vmem:[%s4167 + $0x1b8] sm:$0xff]
    %v4202 = vld [vmem:[%s4167 + $0x1c8] sm:$0xff]
    %v4203 = vld [vmem:[%s4167 + $0x1d0] sm:$0xff]
    %v4204 = vld [vmem:[%s4167 + $0x1e0] sm:$0xff]
    %v4205 = vld [vmem:[%s4167 + $0x1e8] sm:$0xff]
    %v4206 = vld [vmem:[%s4167 + $0x1f8] sm:$0xff]
    %v4207 = vld [vmem:[%s4167 + $0x200] sm:$0xff]
    %v4208 = vld [vmem:[%s4167 + $0x210] sm:$0xff]
    %v4209 = vld [vmem:[%s4167 + $0x218] sm:$0xff]
    %v4210 = vld [vmem:[%s4167 + $0x228] sm:$0xff]
    %v4211 = vld [vmem:[%s4167 + $0x230] sm:$0xff]
    %v4212 = vld [vmem:[%s4167 + $0x240] sm:$0xff]
    %v4213 = vld [vmem:[%s4167 + $0x248] sm:$0xff]
    %v4214 = vld [vmem:[%s4167 + $0x258] sm:$0xff]
    %v4215 = vld [vmem:[%s4167 + $0x260] sm:$0xff]
    %v4216 = vld [vmem:[%s4167 + $0x270] sm:$0xff]
    %v4217 = vld [vmem:[%s4167 + $0x278] sm:$0xff]
    %v4218 = vld [vmem:[%s4167 + $0x288] sm:$0xff]
    %v4219 = vld [vmem:[%s4167 + $0x290] sm:$0xff]
    %v4220 = vld [vmem:[%s4167 + $0x2a0] sm:$0xff]
    %v4221 = vld [vmem:[%s4167 + $0x2a8] sm:$0xff]
    %v4222 = vld [vmem:[%s4167 + $0x2b8] sm:$0xff]
    %v4223 = vld [vmem:[%s4167 + $0x2c0] sm:$0xff]
    %v4224 = vld [vmem:[%s4167 + $0x2d0] sm:$0xff]
    %v4225 = vld [vmem:[%s4167 + $0x2d8] sm:$0xff]
    %v4226 = vld [vmem:[%s4167 + $0x2e8] sm:$0xff]
    %v4227 = vld [vmem:[%s4167 + $0x2f0] sm:$0xff]
    %v4228 = vld [vmem:[%s4167 + $0x300] sm:$0xff]
    %v4229 = vld [vmem:[%s4167 + $0x308] sm:$0xff]
    %v4230 = vld [vmem:[%s4167 + $0x318] sm:$0xff]
    %v4231 = vld [vmem:[%s4167 + $0x320] sm:$0xff]
    %s4232 = scalar_lea.vmem %s1, 24
    %v4233 = vld [vmem:[%s4232] sm:$0xf]
    %v4235 = vsel %vm164, %v4168, 0
    %v4238 = vsel %vm164, %v4169, 0
    %v4241 = vsel %vm164, %v4170, 0
    %v4244 = vsel %vm164, %v4171, 0
    %v4247 = vsel %vm164, %v4172, 0
    %v4250 = vsel %vm164, %v4173, 0
    %v4253 = vsel %vm164, %v4174, 0
    %v4256 = vsel %vm164, %v4175, 0
    %v4259 = vsel %vm164, %v4176, 0
    %v4262 = vsel %vm164, %v4177, 0
    %v4265 = vsel %vm164, %v4178, 0
    %v4268 = vsel %vm164, %v4179, 0
    %v4271 = vsel %vm164, %v4180, 0
    %v4274 = vsel %vm164, %v4181, 0
    %v4277 = vsel %vm164, %v4182, 0
    %v4280 = vsel %vm164, %v4183, 0
    %v4283 = vsel %vm164, %v4184, 0
    %v4286 = vsel %vm164, %v4185, 0
    %v4289 = vsel %vm164, %v4186, 0
    %v4292 = vsel %vm164, %v4187, 0
    %v4295 = vsel %vm164, %v4188, 0
    %v4298 = vsel %vm164, %v4189, 0
    %v4301 = vsel %vm164, %v4190, 0
    %v4304 = vsel %vm164, %v4191, 0
    %v4307 = vsel %vm164, %v4192, 0
    %v4310 = vsel %vm164, %v4193, 0
    %v4313 = vsel %vm164, %v4194, 0
    %v4316 = vsel %vm164, %v4195, 0
    %v4319 = vsel %vm164, %v4196, 0
    %v4322 = vsel %vm164, %v4197, 0
    %v4325 = vsel %vm164, %v4198, 0
    %v4328 = vsel %vm164, %v4199, 0
    %v4331 = vsel %vm164, %v4200, 0
    %v4334 = vsel %vm164, %v4201, 0
    %v4337 = vsel %vm164, %v4202, 0
    %v4340 = vsel %vm164, %v4203, 0
    %v4343 = vsel %vm164, %v4204, 0
    %v4346 = vsel %vm164, %v4205, 0
    %v4349 = vsel %vm164, %v4206, 0
    %v4352 = vsel %vm164, %v4207, 0
    %v4355 = vsel %vm164, %v4208, 0
    %v4358 = vsel %vm164, %v4209, 0
    %v4361 = vsel %vm164, %v4210, 0
    %v4364 = vsel %vm164, %v4211, 0
    %v4367 = vsel %vm164, %v4212, 0
    %v4370 = vsel %vm164, %v4213, 0
    %v4373 = vsel %vm164, %v4214, 0
    %v4376 = vsel %vm164, %v4215, 0
    %v4379 = vsel %vm164, %v4216, 0
    %v4382 = vsel %vm164, %v4217, 0
    %v4385 = vsel %vm164, %v4218, 0
    %v4388 = vsel %vm164, %v4219, 0
    %v4391 = vsel %vm164, %v4220, 0
    %v4394 = vsel %vm164, %v4221, 0
    %v4397 = vsel %vm164, %v4222, 0
    %v4400 = vsel %vm164, %v4223, 0
    %v4403 = vsel %vm164, %v4224, 0
    %v4406 = vsel %vm164, %v4225, 0
    %v4409 = vsel %vm164, %v4226, 0
    %v4412 = vsel %vm164, %v4227, 0
    %v4415 = vsel %vm164, %v4228, 0
    %v4418 = vsel %vm164, %v4229, 0
    %v4421 = vsel %vm164, %v4230, 0
    %v4424 = vsel %vm164, %v4231, 0
    %v4427 = vsel %vm357, %v4233, 0
    %4429 = vmatprep.subr.mxu0 0.0
    %4430 = vmatpush1.msra.mxu0 0.0
    %4431 = vmatprep.subr.mxu0 0.0
    %4432 = vmatpush1.msra.mxu0 0.0
    %4433 = vmatprep.subr.mxu0 0.0
    %4434 = vmatpush1.msra.mxu0 0.0
    %4435 = vmatprep.subr.mxu0 0.0
    %4436 = vmatpush1.msra.mxu0 0.0
    %4437 = vmatprep.subr.mxu0 0.0
    %4438 = vmatpush1.msra.mxu0 0.0
    %4439 = vmatprep.subr.mxu0 0.0
    %4440 = vmatpush1.msra.mxu0 0.0
    %4441 = vmatprep.subr.mxu0 0.0
    %4442 = vmatpush1.msra.mxu0 0.0
    %4443 = vmatprep.subr.mxu0 0.0
    %4444 = vmatpush1.msra.mxu0 0.0
    %4445 = vmatprep.subr.mxu0 0.0
    %4446 = vmatpush1.msra.mxu0 0.0
    %4447 = vmatprep.subr.mxu0 0.0
    %4448 = vmatpush1.msra.mxu0 0.0
    %4449 = vmatprep.subr.mxu0 0.0
    %4450 = vmatpush1.msra.mxu0 0.0
    %4451 = vmatprep.subr.mxu0 0.0
    %4452 = vmatpush1.msra.mxu0 0.0
    %4453 = vmatprep.subr.mxu0 0.0
    %4454 = vmatpush1.msra.mxu0 0.0
    %4455 = vmatprep.subr.mxu0 0.0
    %4456 = vmatpush1.msra.mxu0 0.0
    %4457 = vmatprep.subr.mxu0 0.0
    %4458 = vmatpush1.msra.mxu0 0.0
    %4459 = vmatprep.subr.mxu0 0.0
    %4460 = vmatpush1.msra.mxu0 %v4427
    %4461 = vmatprep.subr.mxu0 0.0
    %4462 = vmatpush2.msra.mxu0 0.0
    %4463 = vmatprep.subr.mxu0 0.0
    %4464 = vmatpush2.msra.mxu0 0.0
    %4465 = vmatprep.subr.mxu0 0.0
    %4466 = vmatpush2.msra.mxu0 0.0
    %4467 = vmatprep.subr.mxu0 0.0
    %4468 = vmatpush2.msra.mxu0 0.0
    %4469 = vmatprep.subr.mxu0 0.0
    %4470 = vmatpush2.msra.mxu0 0.0
    %4471 = vmatprep.subr.mxu0 0.0
    %4472 = vmatpush2.msra.mxu0 0.0
    %4473 = vmatprep.subr.mxu0 0.0
    %4474 = vmatpush2.msra.mxu0 0.0
    %4475 = vmatprep.subr.mxu0 0.0
    %4476 = vmatpush2.msra.mxu0 0.0
    %4477 = vmatprep.subr.mxu0 0.0
    %4478 = vmatpush2.msra.mxu0 0.0
    %4479 = vmatprep.subr.mxu0 0.0
    %4480 = vmatpush2.msra.mxu0 0.0
    %4481 = vmatprep.subr.mxu0 0.0
    %4482 = vmatpush2.msra.mxu0 0.0
    %4483 = vmatprep.subr.mxu0 0.0
    %4484 = vmatpush2.msra.mxu0 0.0
    %4485 = vmatprep.subr.mxu0 0.0
    %4486 = vmatpush2.msra.mxu0 0.0
    %4487 = vmatprep.subr.mxu0 0.0
    %4488 = vmatpush2.msra.mxu0 0.0
    %4489 = vmatprep.subr.mxu0 0.0
    %4490 = vmatpush2.msra.mxu0 0.0
    %4491 = vmatprep.subr.mxu0 0.0
    %4492 = vmatpush2.msra.mxu0 0.0
    %4493 = vmatprep.mubr.f32.mxu0 0.0
    %4494 = vmatmul.mubr.f32.gmra.mxu0 %v4235
    %v4495 = vpop.f32.mrf.mxu0
    %v4496 = vadd.f32 0.0, %v4495
    %v4497 = vpop.f32.mrf.mxu0
    %4498 = vmatprep.mubr.f32.mxu0 0.0
    %4499 = vmatmul.mubr.f32.gmra.mxu0 %v4238
    %v4500 = vpop.f32.mrf.mxu0
    %v4501 = vadd.f32 0.0, %v4500
    %v4502 = vpop.f32.mrf.mxu0
    %4503 = vmatprep.mubr.f32.mxu0 0.0
    %4504 = vmatmul.mubr.f32.gmra.mxu0 %v4241
    %v4505 = vpop.f32.mrf.mxu0
    %v4506 = vadd.f32 0.0, %v4505
    %v4507 = vpop.f32.mrf.mxu0
    %4508 = vmatprep.mubr.f32.mxu0 0.0
    %4509 = vmatmul.mubr.f32.gmra.mxu0 %v4244
    %v4510 = vpop.f32.mrf.mxu0
    %v4511 = vadd.f32 0.0, %v4510
    %v4512 = vpop.f32.mrf.mxu0
    %4513 = vmatprep.mubr.f32.mxu0 0.0
    %4514 = vmatmul.mubr.f32.gmra.mxu0 %v4247
    %v4515 = vpop.f32.mrf.mxu0
    %v4516 = vadd.f32 0.0, %v4515
    %v4517 = vpop.f32.mrf.mxu0
    %4518 = vmatprep.mubr.f32.mxu0 0.0
    %4519 = vmatmul.mubr.f32.gmra.mxu0 %v4250
    %v4520 = vpop.f32.mrf.mxu0
    %v4521 = vadd.f32 0.0, %v4520
    %v4522 = vpop.f32.mrf.mxu0
    %4523 = vmatprep.mubr.f32.mxu0 0.0
    %4524 = vmatmul.mubr.f32.gmra.mxu0 %v4253
    %v4525 = vpop.f32.mrf.mxu0
    %v4526 = vadd.f32 0.0, %v4525
    %v4527 = vpop.f32.mrf.mxu0
    %4528 = vmatprep.mubr.f32.mxu0 0.0
    %4529 = vmatmul.mubr.f32.gmra.mxu0 %v4256
    %v4530 = vpop.f32.mrf.mxu0
    %v4531 = vadd.f32 0.0, %v4530
    %v4532 = vpop.f32.mrf.mxu0
    %4533 = vmatprep.mubr.f32.mxu0 0.0
    %4534 = vmatmul.mubr.f32.gmra.mxu0 %v4259
    %v4535 = vpop.f32.mrf.mxu0
    %v4536 = vadd.f32 0.0, %v4535
    %v4537 = vpop.f32.mrf.mxu0
    %4538 = vmatprep.mubr.f32.mxu0 0.0
    %4539 = vmatmul.mubr.f32.gmra.mxu0 %v4262
    %v4540 = vpop.f32.mrf.mxu0
    %v4541 = vadd.f32 0.0, %v4540
    %v4542 = vpop.f32.mrf.mxu0
    %4543 = vmatprep.mubr.f32.mxu0 0.0
    %4544 = vmatmul.mubr.f32.gmra.mxu0 %v4265
    %v4545 = vpop.f32.mrf.mxu0
    %v4546 = vadd.f32 0.0, %v4545
    %v4547 = vpop.f32.mrf.mxu0
    %4548 = vmatprep.mubr.f32.mxu0 0.0
    %4549 = vmatmul.mubr.f32.gmra.mxu0 %v4268
    %v4550 = vpop.f32.mrf.mxu0
    %v4551 = vadd.f32 0.0, %v4550
    %v4552 = vpop.f32.mrf.mxu0
    %4553 = vmatprep.mubr.f32.mxu0 0.0
    %4554 = vmatmul.mubr.f32.gmra.mxu0 %v4271
    %v4555 = vpop.f32.mrf.mxu0
    %v4556 = vadd.f32 0.0, %v4555
    %v4557 = vpop.f32.mrf.mxu0
    %4558 = vmatprep.mubr.f32.mxu0 0.0
    %4559 = vmatmul.mubr.f32.gmra.mxu0 %v4274
    %v4560 = vpop.f32.mrf.mxu0
    %v4561 = vadd.f32 0.0, %v4560
    %v4562 = vpop.f32.mrf.mxu0
    %4563 = vmatprep.mubr.f32.mxu0 0.0
    %4564 = vmatmul.mubr.f32.gmra.mxu0 %v4277
    %v4565 = vpop.f32.mrf.mxu0
    %v4566 = vadd.f32 0.0, %v4565
    %v4567 = vpop.f32.mrf.mxu0
    %4568 = vmatprep.mubr.f32.mxu0 0.0
    %4569 = vmatmul.mubr.f32.gmra.mxu0 %v4280
    %v4570 = vpop.f32.mrf.mxu0
    %v4571 = vadd.f32 0.0, %v4570
    %v4572 = vpop.f32.mrf.mxu0
    %4573 = vmatprep.mubr.f32.mxu0 0.0
    %4574 = vmatmul.mubr.f32.gmra.mxu0 %v4283
    %v4575 = vpop.f32.mrf.mxu0
    %v4576 = vadd.f32 0.0, %v4575
    %v4577 = vpop.f32.mrf.mxu0
    %4578 = vmatprep.mubr.f32.mxu0 0.0
    %4579 = vmatmul.mubr.f32.gmra.mxu0 %v4286
    %v4580 = vpop.f32.mrf.mxu0
    %v4581 = vadd.f32 0.0, %v4580
    %v4582 = vpop.f32.mrf.mxu0
    %4583 = vmatprep.mubr.f32.mxu0 0.0
    %4584 = vmatmul.mubr.f32.gmra.mxu0 %v4289
    %v4585 = vpop.f32.mrf.mxu0
    %v4586 = vadd.f32 0.0, %v4585
    %v4587 = vpop.f32.mrf.mxu0
    %4588 = vmatprep.mubr.f32.mxu0 0.0
    %4589 = vmatmul.mubr.f32.gmra.mxu0 %v4292
    %v4590 = vpop.f32.mrf.mxu0
    %v4591 = vadd.f32 0.0, %v4590
    %v4592 = vpop.f32.mrf.mxu0
    %4593 = vmatprep.mubr.f32.mxu0 0.0
    %4594 = vmatmul.mubr.f32.gmra.mxu0 %v4295
    %v4595 = vpop.f32.mrf.mxu0
    %v4596 = vadd.f32 0.0, %v4595
    %v4597 = vpop.f32.mrf.mxu0
    %4598 = vmatprep.mubr.f32.mxu0 0.0
    %4599 = vmatmul.mubr.f32.gmra.mxu0 %v4298
    %v4600 = vpop.f32.mrf.mxu0
    %v4601 = vadd.f32 0.0, %v4600
    %v4602 = vpop.f32.mrf.mxu0
    %4603 = vmatprep.mubr.f32.mxu0 0.0
    %4604 = vmatmul.mubr.f32.gmra.mxu0 %v4301
    %v4605 = vpop.f32.mrf.mxu0
    %v4606 = vadd.f32 0.0, %v4605
    %v4607 = vpop.f32.mrf.mxu0
    %4608 = vmatprep.mubr.f32.mxu0 0.0
    %4609 = vmatmul.mubr.f32.gmra.mxu0 %v4304
    %v4610 = vpop.f32.mrf.mxu0
    %v4611 = vadd.f32 0.0, %v4610
    %v4612 = vpop.f32.mrf.mxu0
    %4613 = vmatprep.mubr.f32.mxu0 0.0
    %4614 = vmatmul.mubr.f32.gmra.mxu0 %v4307
    %v4615 = vpop.f32.mrf.mxu0
    %v4616 = vadd.f32 0.0, %v4615
    %v4617 = vpop.f32.mrf.mxu0
    %4618 = vmatprep.mubr.f32.mxu0 0.0
    %4619 = vmatmul.mubr.f32.gmra.mxu0 %v4310
    %v4620 = vpop.f32.mrf.mxu0
    %v4621 = vadd.f32 0.0, %v4620
    %v4622 = vpop.f32.mrf.mxu0
    %4623 = vmatprep.mubr.f32.mxu0 0.0
    %4624 = vmatmul.mubr.f32.gmra.mxu0 %v4313
    %v4625 = vpop.f32.mrf.mxu0
    %v4626 = vadd.f32 0.0, %v4625
    %v4627 = vpop.f32.mrf.mxu0
    %4628 = vmatprep.mubr.f32.mxu0 0.0
    %4629 = vmatmul.mubr.f32.gmra.mxu0 %v4316
    %v4630 = vpop.f32.mrf.mxu0
    %v4631 = vadd.f32 0.0, %v4630
    %v4632 = vpop.f32.mrf.mxu0
    %4633 = vmatprep.mubr.f32.mxu0 0.0
    %4634 = vmatmul.mubr.f32.gmra.mxu0 %v4319
    %v4635 = vpop.f32.mrf.mxu0
    %v4636 = vadd.f32 0.0, %v4635
    %v4637 = vpop.f32.mrf.mxu0
    %4638 = vmatprep.mubr.f32.mxu0 0.0
    %4639 = vmatmul.mubr.f32.gmra.mxu0 %v4322
    %v4640 = vpop.f32.mrf.mxu0
    %v4641 = vadd.f32 0.0, %v4640
    %v4642 = vpop.f32.mrf.mxu0
    %4643 = vmatprep.mubr.f32.mxu0 0.0
    %4644 = vmatmul.mubr.f32.gmra.mxu0 %v4325
    %v4645 = vpop.f32.mrf.mxu0
    %v4646 = vadd.f32 0.0, %v4645
    %v4647 = vpop.f32.mrf.mxu0
    %4648 = vmatprep.mubr.f32.mxu0 0.0
    %4649 = vmatmul.mubr.f32.gmra.mxu0 %v4328
    %v4650 = vpop.f32.mrf.mxu0
    %v4651 = vadd.f32 0.0, %v4650
    %v4652 = vpop.f32.mrf.mxu0
    %4653 = vmatprep.mubr.f32.mxu0 0.0
    %4654 = vmatmul.mubr.f32.gmra.mxu0 %v4331
    %v4655 = vpop.f32.mrf.mxu0
    %v4656 = vadd.f32 0.0, %v4655
    %v4657 = vpop.f32.mrf.mxu0
    %4658 = vmatprep.mubr.f32.mxu0 0.0
    %4659 = vmatmul.mubr.f32.gmra.mxu0 %v4334
    %v4660 = vpop.f32.mrf.mxu0
    %v4661 = vadd.f32 0.0, %v4660
    %v4662 = vpop.f32.mrf.mxu0
    %4663 = vmatprep.mubr.f32.mxu0 0.0
    %4664 = vmatmul.mubr.f32.gmra.mxu0 %v4337
    %v4665 = vpop.f32.mrf.mxu0
    %v4666 = vadd.f32 0.0, %v4665
    %v4667 = vpop.f32.mrf.mxu0
    %4668 = vmatprep.mubr.f32.mxu0 0.0
    %4669 = vmatmul.mubr.f32.gmra.mxu0 %v4340
    %v4670 = vpop.f32.mrf.mxu0
    %v4671 = vadd.f32 0.0, %v4670
    %v4672 = vpop.f32.mrf.mxu0
    %4673 = vmatprep.mubr.f32.mxu0 0.0
    %4674 = vmatmul.mubr.f32.gmra.mxu0 %v4343
    %v4675 = vpop.f32.mrf.mxu0
    %v4676 = vadd.f32 0.0, %v4675
    %v4677 = vpop.f32.mrf.mxu0
    %4678 = vmatprep.mubr.f32.mxu0 0.0
    %4679 = vmatmul.mubr.f32.gmra.mxu0 %v4346
    %v4680 = vpop.f32.mrf.mxu0
    %v4681 = vadd.f32 0.0, %v4680
    %v4682 = vpop.f32.mrf.mxu0
    %4683 = vmatprep.mubr.f32.mxu0 0.0
    %4684 = vmatmul.mubr.f32.gmra.mxu0 %v4349
    %v4685 = vpop.f32.mrf.mxu0
    %v4686 = vadd.f32 0.0, %v4685
    %v4687 = vpop.f32.mrf.mxu0
    %4688 = vmatprep.mubr.f32.mxu0 0.0
    %4689 = vmatmul.mubr.f32.gmra.mxu0 %v4352
    %v4690 = vpop.f32.mrf.mxu0
    %v4691 = vadd.f32 0.0, %v4690
    %v4692 = vpop.f32.mrf.mxu0
    %4693 = vmatprep.mubr.f32.mxu0 0.0
    %4694 = vmatmul.mubr.f32.gmra.mxu0 %v4355
    %v4695 = vpop.f32.mrf.mxu0
    %v4696 = vadd.f32 0.0, %v4695
    %v4697 = vpop.f32.mrf.mxu0
    %4698 = vmatprep.mubr.f32.mxu0 0.0
    %4699 = vmatmul.mubr.f32.gmra.mxu0 %v4358
    %v4700 = vpop.f32.mrf.mxu0
    %v4701 = vadd.f32 0.0, %v4700
    %v4702 = vpop.f32.mrf.mxu0
    %4703 = vmatprep.mubr.f32.mxu0 0.0
    %4704 = vmatmul.mubr.f32.gmra.mxu0 %v4361
    %v4705 = vpop.f32.mrf.mxu0
    %v4706 = vadd.f32 0.0, %v4705
    %v4707 = vpop.f32.mrf.mxu0
    %4708 = vmatprep.mubr.f32.mxu0 0.0
    %4709 = vmatmul.mubr.f32.gmra.mxu0 %v4364
    %v4710 = vpop.f32.mrf.mxu0
    %v4711 = vadd.f32 0.0, %v4710
    %v4712 = vpop.f32.mrf.mxu0
    %4713 = vmatprep.mubr.f32.mxu0 0.0
    %4714 = vmatmul.mubr.f32.gmra.mxu0 %v4367
    %v4715 = vpop.f32.mrf.mxu0
    %v4716 = vadd.f32 0.0, %v4715
    %v4717 = vpop.f32.mrf.mxu0
    %4718 = vmatprep.mubr.f32.mxu0 0.0
    %4719 = vmatmul.mubr.f32.gmra.mxu0 %v4370
    %v4720 = vpop.f32.mrf.mxu0
    %v4721 = vadd.f32 0.0, %v4720
    %v4722 = vpop.f32.mrf.mxu0
    %4723 = vmatprep.mubr.f32.mxu0 0.0
    %4724 = vmatmul.mubr.f32.gmra.mxu0 %v4373
    %v4725 = vpop.f32.mrf.mxu0
    %v4726 = vadd.f32 0.0, %v4725
    %v4727 = vpop.f32.mrf.mxu0
    %4728 = vmatprep.mubr.f32.mxu0 0.0
    %4729 = vmatmul.mubr.f32.gmra.mxu0 %v4376
    %v4730 = vpop.f32.mrf.mxu0
    %v4731 = vadd.f32 0.0, %v4730
    %v4732 = vpop.f32.mrf.mxu0
    %4733 = vmatprep.mubr.f32.mxu0 0.0
    %4734 = vmatmul.mubr.f32.gmra.mxu0 %v4379
    %v4735 = vpop.f32.mrf.mxu0
    %v4736 = vadd.f32 0.0, %v4735
    %v4737 = vpop.f32.mrf.mxu0
    %4738 = vmatprep.mubr.f32.mxu0 0.0
    %4739 = vmatmul.mubr.f32.gmra.mxu0 %v4382
    %v4740 = vpop.f32.mrf.mxu0
    %v4741 = vadd.f32 0.0, %v4740
    %v4742 = vpop.f32.mrf.mxu0
    %4743 = vmatprep.mubr.f32.mxu0 0.0
    %4744 = vmatmul.mubr.f32.gmra.mxu0 %v4385
    %v4745 = vpop.f32.mrf.mxu0
    %v4746 = vadd.f32 0.0, %v4745
    %v4747 = vpop.f32.mrf.mxu0
    %4748 = vmatprep.mubr.f32.mxu0 0.0
    %4749 = vmatmul.mubr.f32.gmra.mxu0 %v4388
    %v4750 = vpop.f32.mrf.mxu0
    %v4751 = vadd.f32 0.0, %v4750
    %v4752 = vpop.f32.mrf.mxu0
    %4753 = vmatprep.mubr.f32.mxu0 0.0
    %4754 = vmatmul.mubr.f32.gmra.mxu0 %v4391
    %v4755 = vpop.f32.mrf.mxu0
    %v4756 = vadd.f32 0.0, %v4755
    %v4757 = vpop.f32.mrf.mxu0
    %4758 = vmatprep.mubr.f32.mxu0 0.0
    %4759 = vmatmul.mubr.f32.gmra.mxu0 %v4394
    %v4760 = vpop.f32.mrf.mxu0
    %v4761 = vadd.f32 0.0, %v4760
    %v4762 = vpop.f32.mrf.mxu0
    %4763 = vmatprep.mubr.f32.mxu0 0.0
    %4764 = vmatmul.mubr.f32.gmra.mxu0 %v4397
    %v4765 = vpop.f32.mrf.mxu0
    %v4766 = vadd.f32 0.0, %v4765
    %v4767 = vpop.f32.mrf.mxu0
    %4768 = vmatprep.mubr.f32.mxu0 0.0
    %4769 = vmatmul.mubr.f32.gmra.mxu0 %v4400
    %v4770 = vpop.f32.mrf.mxu0
    %v4771 = vadd.f32 0.0, %v4770
    %v4772 = vpop.f32.mrf.mxu0
    %4773 = vmatprep.mubr.f32.mxu0 0.0
    %4774 = vmatmul.mubr.f32.gmra.mxu0 %v4403
    %v4775 = vpop.f32.mrf.mxu0
    %v4776 = vadd.f32 0.0, %v4775
    %v4777 = vpop.f32.mrf.mxu0
    %4778 = vmatprep.mubr.f32.mxu0 0.0
    %4779 = vmatmul.mubr.f32.gmra.mxu0 %v4406
    %v4780 = vpop.f32.mrf.mxu0
    %v4781 = vadd.f32 0.0, %v4780
    %v4782 = vpop.f32.mrf.mxu0
    %4783 = vmatprep.mubr.f32.mxu0 0.0
    %4784 = vmatmul.mubr.f32.gmra.mxu0 %v4409
    %v4785 = vpop.f32.mrf.mxu0
    %v4786 = vadd.f32 0.0, %v4785
    %v4787 = vpop.f32.mrf.mxu0
    %4788 = vmatprep.mubr.f32.mxu0 0.0
    %4789 = vmatmul.mubr.f32.gmra.mxu0 %v4412
    %v4790 = vpop.f32.mrf.mxu0
    %v4791 = vadd.f32 0.0, %v4790
    %v4792 = vpop.f32.mrf.mxu0
    %4793 = vmatprep.mubr.f32.mxu0 0.0
    %4794 = vmatmul.mubr.f32.gmra.mxu0 %v4415
    %v4795 = vpop.f32.mrf.mxu0
    %v4796 = vadd.f32 0.0, %v4795
    %v4797 = vpop.f32.mrf.mxu0
    %4798 = vmatprep.mubr.f32.mxu0 0.0
    %4799 = vmatmul.mubr.f32.gmra.mxu0 %v4418
    %v4800 = vpop.f32.mrf.mxu0
    %v4801 = vadd.f32 0.0, %v4800
    %v4802 = vpop.f32.mrf.mxu0
    %4803 = vmatprep.mubr.f32.mxu0 0.0
    %4804 = vmatmul.mubr.f32.gmra.mxu0 %v4421
    %v4805 = vpop.f32.mrf.mxu0
    %v4806 = vadd.f32 0.0, %v4805
    %v4807 = vpop.f32.mrf.mxu0
    %4808 = vmatprep.mubr.f32.mxu0 0.0
    %4809 = vmatmul.mubr.f32.gmra.mxu0 %v4424
    %v4810 = vpop.f32.mrf.mxu0
    %v4811 = vadd.f32 0.0, %v4810
    %v4812 = vpop.f32.mrf.mxu0
    %4813 = vdwg.mxu0
    %v4814 = vadd.f32 %v4103, %v4496
    %v4815 = vadd.f32 %v4104, %v4501
    %v4816 = vadd.f32 %v4105, %v4506
    %v4817 = vadd.f32 %v4106, %v4511
    %v4818 = vadd.f32 %v4107, %v4516
    %v4819 = vadd.f32 %v4108, %v4521
    %v4820 = vadd.f32 %v4109, %v4526
    %v4821 = vadd.f32 %v4110, %v4531
    %v4822 = vadd.f32 %v4111, %v4536
    %v4823 = vadd.f32 %v4112, %v4541
    %v4824 = vadd.f32 %v4113, %v4546
    %v4825 = vadd.f32 %v4114, %v4551
    %v4826 = vadd.f32 %v4115, %v4556
    %v4827 = vadd.f32 %v4116, %v4561
    %v4828 = vadd.f32 %v4117, %v4566
    %v4829 = vadd.f32 %v4118, %v4571
    %v4830 = vadd.f32 %v4119, %v4576
    %v4831 = vadd.f32 %v4120, %v4581
    %v4832 = vadd.f32 %v4121, %v4586
    %v4833 = vadd.f32 %v4122, %v4591
    %v4834 = vadd.f32 %v4123, %v4596
    %v4835 = vadd.f32 %v4124, %v4601
    %v4836 = vadd.f32 %v4125, %v4606
    %v4837 = vadd.f32 %v4126, %v4611
    %v4838 = vadd.f32 %v4127, %v4616
    %v4839 = vadd.f32 %v4128, %v4621
    %v4840 = vadd.f32 %v4129, %v4626
    %v4841 = vadd.f32 %v4130, %v4631
    %v4842 = vadd.f32 %v4131, %v4636
    %v4843 = vadd.f32 %v4132, %v4641
    %v4844 = vadd.f32 %v4133, %v4646
    %v4845 = vadd.f32 %v4134, %v4651
    %v4846 = vadd.f32 %v4135, %v4656
    %v4847 = vadd.f32 %v4136, %v4661
    %v4848 = vadd.f32 %v4137, %v4666
    %v4849 = vadd.f32 %v4138, %v4671
    %v4850 = vadd.f32 %v4139, %v4676
    %v4851 = vadd.f32 %v4140, %v4681
    %v4852 = vadd.f32 %v4141, %v4686
    %v4853 = vadd.f32 %v4142, %v4691
    %v4854 = vadd.f32 %v4143, %v4696
    %v4855 = vadd.f32 %v4144, %v4701
    %v4856 = vadd.f32 %v4145, %v4706
    %v4857 = vadd.f32 %v4146, %v4711
    %v4858 = vadd.f32 %v4147, %v4716
    %v4859 = vadd.f32 %v4148, %v4721
    %v4860 = vadd.f32 %v4149, %v4726
    %v4861 = vadd.f32 %v4150, %v4731
    %v4862 = vadd.f32 %v4151, %v4736
    %v4863 = vadd.f32 %v4152, %v4741
    %v4864 = vadd.f32 %v4153, %v4746
    %v4865 = vadd.f32 %v4154, %v4751
    %v4866 = vadd.f32 %v4155, %v4756
    %v4867 = vadd.f32 %v4156, %v4761
    %v4868 = vadd.f32 %v4157, %v4766
    %v4869 = vadd.f32 %v4158, %v4771
    %v4870 = vadd.f32 %v4159, %v4776
    %v4871 = vadd.f32 %v4160, %v4781
    %v4872 = vadd.f32 %v4161, %v4786
    %v4873 = vadd.f32 %v4162, %v4791
    %v4874 = vadd.f32 %v4163, %v4796
    %v4875 = vadd.f32 %v4164, %v4801
    %v4876 = vadd.f32 %v4165, %v4806
    %v4877 = vadd.f32 %v4166, %v4811
    %v4878 = vld [vmem:[%s4167 + $0x1] sm:$0xff]
    %v4879 = vld [vmem:[%s4167 + $0x9] sm:$0xff]
    %v4880 = vld [vmem:[%s4167 + $0x19] sm:$0xff]
    %v4881 = vld [vmem:[%s4167 + $0x21] sm:$0xff]
    %v4882 = vld [vmem:[%s4167 + $0x31] sm:$0xff]
    %v4883 = vld [vmem:[%s4167 + $0x39] sm:$0xff]
    %v4884 = vld [vmem:[%s4167 + $0x49] sm:$0xff]
    %v4885 = vld [vmem:[%s4167 + $0x51] sm:$0xff]
    %v4886 = vld [vmem:[%s4167 + $0x61] sm:$0xff]
    %v4887 = vld [vmem:[%s4167 + $0x69] sm:$0xff]
    %v4888 = vld [vmem:[%s4167 + $0x79] sm:$0xff]
    %v4889 = vld [vmem:[%s4167 + $0x81] sm:$0xff]
    %v4890 = vld [vmem:[%s4167 + $0x91] sm:$0xff]
    %v4891 = vld [vmem:[%s4167 + $0x99] sm:$0xff]
    %v4892 = vld [vmem:[%s4167 + $0xa9] sm:$0xff]
    %v4893 = vld [vmem:[%s4167 + $0xb1] sm:$0xff]
    %v4894 = vld [vmem:[%s4167 + $0xc1] sm:$0xff]
    %v4895 = vld [vmem:[%s4167 + $0xc9] sm:$0xff]
    %v4896 = vld [vmem:[%s4167 + $0xd9] sm:$0xff]
    %v4897 = vld [vmem:[%s4167 + $0xe1] sm:$0xff]
    %v4898 = vld [vmem:[%s4167 + $0xf1] sm:$0xff]
    %v4899 = vld [vmem:[%s4167 + $0xf9] sm:$0xff]
    %v4900 = vld [vmem:[%s4167 + $0x109] sm:$0xff]
    %v4901 = vld [vmem:[%s4167 + $0x111] sm:$0xff]
    %v4902 = vld [vmem:[%s4167 + $0x121] sm:$0xff]
    %v4903 = vld [vmem:[%s4167 + $0x129] sm:$0xff]
    %v4904 = vld [vmem:[%s4167 + $0x139] sm:$0xff]
    %v4905 = vld [vmem:[%s4167 + $0x141] sm:$0xff]
    %v4906 = vld [vmem:[%s4167 + $0x151] sm:$0xff]
    %v4907 = vld [vmem:[%s4167 + $0x159] sm:$0xff]
    %v4908 = vld [vmem:[%s4167 + $0x169] sm:$0xff]
    %v4909 = vld [vmem:[%s4167 + $0x171] sm:$0xff]
    %v4910 = vld [vmem:[%s4167 + $0x1b1] sm:$0xff]
    %v4911 = vld [vmem:[%s4167 + $0x1b9] sm:$0xff]
    %v4912 = vld [vmem:[%s4167 + $0x1c9] sm:$0xff]
    %v4913 = vld [vmem:[%s4167 + $0x1d1] sm:$0xff]
    %v4914 = vld [vmem:[%s4167 + $0x1e1] sm:$0xff]
    %v4915 = vld [vmem:[%s4167 + $0x1e9] sm:$0xff]
    %v4916 = vld [vmem:[%s4167 + $0x1f9] sm:$0xff]
    %v4917 = vld [vmem:[%s4167 + $0x201] sm:$0xff]
    %v4918 = vld [vmem:[%s4167 + $0x211] sm:$0xff]
    %v4919 = vld [vmem:[%s4167 + $0x219] sm:$0xff]
    %v4920 = vld [vmem:[%s4167 + $0x229] sm:$0xff]
    %v4921 = vld [vmem:[%s4167 + $0x231] sm:$0xff]
    %v4922 = vld [vmem:[%s4167 + $0x241] sm:$0xff]
    %v4923 = vld [vmem:[%s4167 + $0x249] sm:$0xff]
    %v4924 = vld [vmem:[%s4167 + $0x259] sm:$0xff]
    %v4925 = vld [vmem:[%s4167 + $0x261] sm:$0xff]
    %v4926 = vld [vmem:[%s4167 + $0x271] sm:$0xff]
    %v4927 = vld [vmem:[%s4167 + $0x279] sm:$0xff]
    %v4928 = vld [vmem:[%s4167 + $0x289] sm:$0xff]
    %v4929 = vld [vmem:[%s4167 + $0x291] sm:$0xff]
    %v4930 = vld [vmem:[%s4167 + $0x2a1] sm:$0xff]
    %v4931 = vld [vmem:[%s4167 + $0x2a9] sm:$0xff]
    %v4932 = vld [vmem:[%s4167 + $0x2b9] sm:$0xff]
    %v4933 = vld [vmem:[%s4167 + $0x2c1] sm:$0xff]
    %v4934 = vld [vmem:[%s4167 + $0x2d1] sm:$0xff]
    %v4935 = vld [vmem:[%s4167 + $0x2d9] sm:$0xff]
    %v4936 = vld [vmem:[%s4167 + $0x2e9] sm:$0xff]
    %v4937 = vld [vmem:[%s4167 + $0x2f1] sm:$0xff]
    %v4938 = vld [vmem:[%s4167 + $0x301] sm:$0xff]
    %v4939 = vld [vmem:[%s4167 + $0x309] sm:$0xff]
    %v4940 = vld [vmem:[%s4167 + $0x319] sm:$0xff]
    %v4941 = vld [vmem:[%s4167 + $0x321] sm:$0xff]
    %s4942 = scalar_lea.vmem %s1, 28
    %v4943 = vld [vmem:[%s4942] sm:$0xf]
    %v4945 = vsel %vm164, %v4878, 0
    %v4948 = vsel %vm164, %v4879, 0
    %v4951 = vsel %vm164, %v4880, 0
    %v4954 = vsel %vm164, %v4881, 0
    %v4957 = vsel %vm164, %v4882, 0
    %v4960 = vsel %vm164, %v4883, 0
    %v4963 = vsel %vm164, %v4884, 0
    %v4966 = vsel %vm164, %v4885, 0
    %v4969 = vsel %vm164, %v4886, 0
    %v4972 = vsel %vm164, %v4887, 0
    %v4975 = vsel %vm164, %v4888, 0
    %v4978 = vsel %vm164, %v4889, 0
    %v4981 = vsel %vm164, %v4890, 0
    %v4984 = vsel %vm164, %v4891, 0
    %v4987 = vsel %vm164, %v4892, 0
    %v4990 = vsel %vm164, %v4893, 0
    %v4993 = vsel %vm164, %v4894, 0
    %v4996 = vsel %vm164, %v4895, 0
    %v4999 = vsel %vm164, %v4896, 0
    %v5002 = vsel %vm164, %v4897, 0
    %v5005 = vsel %vm164, %v4898, 0
    %v5008 = vsel %vm164, %v4899, 0
    %v5011 = vsel %vm164, %v4900, 0
    %v5014 = vsel %vm164, %v4901, 0
    %v5017 = vsel %vm164, %v4902, 0
    %v5020 = vsel %vm164, %v4903, 0
    %v5023 = vsel %vm164, %v4904, 0
    %v5026 = vsel %vm164, %v4905, 0
    %v5029 = vsel %vm164, %v4906, 0
    %v5032 = vsel %vm164, %v4907, 0
    %v5035 = vsel %vm164, %v4908, 0
    %v5038 = vsel %vm164, %v4909, 0
    %v5041 = vsel %vm164, %v4910, 0
    %v5044 = vsel %vm164, %v4911, 0
    %v5047 = vsel %vm164, %v4912, 0
    %v5050 = vsel %vm164, %v4913, 0
    %v5053 = vsel %vm164, %v4914, 0
    %v5056 = vsel %vm164, %v4915, 0
    %v5059 = vsel %vm164, %v4916, 0
    %v5062 = vsel %vm164, %v4917, 0
    %v5065 = vsel %vm164, %v4918, 0
    %v5068 = vsel %vm164, %v4919, 0
    %v5071 = vsel %vm164, %v4920, 0
    %v5074 = vsel %vm164, %v4921, 0
    %v5077 = vsel %vm164, %v4922, 0
    %v5080 = vsel %vm164, %v4923, 0
    %v5083 = vsel %vm164, %v4924, 0
    %v5086 = vsel %vm164, %v4925, 0
    %v5089 = vsel %vm164, %v4926, 0
    %v5092 = vsel %vm164, %v4927, 0
    %v5095 = vsel %vm164, %v4928, 0
    %v5098 = vsel %vm164, %v4929, 0
    %v5101 = vsel %vm164, %v4930, 0
    %v5104 = vsel %vm164, %v4931, 0
    %v5107 = vsel %vm164, %v4932, 0
    %v5110 = vsel %vm164, %v4933, 0
    %v5113 = vsel %vm164, %v4934, 0
    %v5116 = vsel %vm164, %v4935, 0
    %v5119 = vsel %vm164, %v4936, 0
    %v5122 = vsel %vm164, %v4937, 0
    %v5125 = vsel %vm164, %v4938, 0
    %v5128 = vsel %vm164, %v4939, 0
    %v5131 = vsel %vm164, %v4940, 0
    %v5134 = vsel %vm164, %v4941, 0
    %v5137 = vsel %vm357, %v4943, 0
    %5139 = vmatprep.subr.mxu0 0.0
    %5140 = vmatpush1.msra.mxu0 0.0
    %5141 = vmatprep.subr.mxu0 0.0
    %5142 = vmatpush1.msra.mxu0 0.0
    %5143 = vmatprep.subr.mxu0 0.0
    %5144 = vmatpush1.msra.mxu0 0.0
    %5145 = vmatprep.subr.mxu0 0.0
    %5146 = vmatpush1.msra.mxu0 0.0
    %5147 = vmatprep.subr.mxu0 0.0
    %5148 = vmatpush1.msra.mxu0 0.0
    %5149 = vmatprep.subr.mxu0 0.0
    %5150 = vmatpush1.msra.mxu0 0.0
    %5151 = vmatprep.subr.mxu0 0.0
    %5152 = vmatpush1.msra.mxu0 0.0
    %5153 = vmatprep.subr.mxu0 0.0
    %5154 = vmatpush1.msra.mxu0 0.0
    %5155 = vmatprep.subr.mxu0 0.0
    %5156 = vmatpush1.msra.mxu0 0.0
    %5157 = vmatprep.subr.mxu0 0.0
    %5158 = vmatpush1.msra.mxu0 0.0
    %5159 = vmatprep.subr.mxu0 0.0
    %5160 = vmatpush1.msra.mxu0 0.0
    %5161 = vmatprep.subr.mxu0 0.0
    %5162 = vmatpush1.msra.mxu0 0.0
    %5163 = vmatprep.subr.mxu0 0.0
    %5164 = vmatpush1.msra.mxu0 0.0
    %5165 = vmatprep.subr.mxu0 0.0
    %5166 = vmatpush1.msra.mxu0 0.0
    %5167 = vmatprep.subr.mxu0 0.0
    %5168 = vmatpush1.msra.mxu0 0.0
    %5169 = vmatprep.subr.mxu0 0.0
    %5170 = vmatpush1.msra.mxu0 %v5137
    %5171 = vmatprep.subr.mxu0 0.0
    %5172 = vmatpush2.msra.mxu0 0.0
    %5173 = vmatprep.subr.mxu0 0.0
    %5174 = vmatpush2.msra.mxu0 0.0
    %5175 = vmatprep.subr.mxu0 0.0
    %5176 = vmatpush2.msra.mxu0 0.0
    %5177 = vmatprep.subr.mxu0 0.0
    %5178 = vmatpush2.msra.mxu0 0.0
    %5179 = vmatprep.subr.mxu0 0.0
    %5180 = vmatpush2.msra.mxu0 0.0
    %5181 = vmatprep.subr.mxu0 0.0
    %5182 = vmatpush2.msra.mxu0 0.0
    %5183 = vmatprep.subr.mxu0 0.0
    %5184 = vmatpush2.msra.mxu0 0.0
    %5185 = vmatprep.subr.mxu0 0.0
    %5186 = vmatpush2.msra.mxu0 0.0
    %5187 = vmatprep.subr.mxu0 0.0
    %5188 = vmatpush2.msra.mxu0 0.0
    %5189 = vmatprep.subr.mxu0 0.0
    %5190 = vmatpush2.msra.mxu0 0.0
    %5191 = vmatprep.subr.mxu0 0.0
    %5192 = vmatpush2.msra.mxu0 0.0
    %5193 = vmatprep.subr.mxu0 0.0
    %5194 = vmatpush2.msra.mxu0 0.0
    %5195 = vmatprep.subr.mxu0 0.0
    %5196 = vmatpush2.msra.mxu0 0.0
    %5197 = vmatprep.subr.mxu0 0.0
    %5198 = vmatpush2.msra.mxu0 0.0
    %5199 = vmatprep.subr.mxu0 0.0
    %5200 = vmatpush2.msra.mxu0 0.0
    %5201 = vmatprep.subr.mxu0 0.0
    %5202 = vmatpush2.msra.mxu0 0.0
    %5203 = vmatprep.mubr.f32.mxu0 0.0
    %5204 = vmatmul.mubr.f32.gmra.mxu0 %v4945
    %v5205 = vpop.f32.mrf.mxu0
    %v5206 = vadd.f32 0.0, %v5205
    %v5207 = vpop.f32.mrf.mxu0
    %5208 = vmatprep.mubr.f32.mxu0 0.0
    %5209 = vmatmul.mubr.f32.gmra.mxu0 %v4948
    %v5210 = vpop.f32.mrf.mxu0
    %v5211 = vadd.f32 0.0, %v5210
    %v5212 = vpop.f32.mrf.mxu0
    %5213 = vmatprep.mubr.f32.mxu0 0.0
    %5214 = vmatmul.mubr.f32.gmra.mxu0 %v4951
    %v5215 = vpop.f32.mrf.mxu0
    %v5216 = vadd.f32 0.0, %v5215
    %v5217 = vpop.f32.mrf.mxu0
    %5218 = vmatprep.mubr.f32.mxu0 0.0
    %5219 = vmatmul.mubr.f32.gmra.mxu0 %v4954
    %v5220 = vpop.f32.mrf.mxu0
    %v5221 = vadd.f32 0.0, %v5220
    %v5222 = vpop.f32.mrf.mxu0
    %5223 = vmatprep.mubr.f32.mxu0 0.0
    %5224 = vmatmul.mubr.f32.gmra.mxu0 %v4957
    %v5225 = vpop.f32.mrf.mxu0
    %v5226 = vadd.f32 0.0, %v5225
    %v5227 = vpop.f32.mrf.mxu0
    %5228 = vmatprep.mubr.f32.mxu0 0.0
    %5229 = vmatmul.mubr.f32.gmra.mxu0 %v4960
    %v5230 = vpop.f32.mrf.mxu0
    %v5231 = vadd.f32 0.0, %v5230
    %v5232 = vpop.f32.mrf.mxu0
    %5233 = vmatprep.mubr.f32.mxu0 0.0
    %5234 = vmatmul.mubr.f32.gmra.mxu0 %v4963
    %v5235 = vpop.f32.mrf.mxu0
    %v5236 = vadd.f32 0.0, %v5235
    %v5237 = vpop.f32.mrf.mxu0
    %5238 = vmatprep.mubr.f32.mxu0 0.0
    %5239 = vmatmul.mubr.f32.gmra.mxu0 %v4966
    %v5240 = vpop.f32.mrf.mxu0
    %v5241 = vadd.f32 0.0, %v5240
    %v5242 = vpop.f32.mrf.mxu0
    %5243 = vmatprep.mubr.f32.mxu0 0.0
    %5244 = vmatmul.mubr.f32.gmra.mxu0 %v4969
    %v5245 = vpop.f32.mrf.mxu0
    %v5246 = vadd.f32 0.0, %v5245
    %v5247 = vpop.f32.mrf.mxu0
    %5248 = vmatprep.mubr.f32.mxu0 0.0
    %5249 = vmatmul.mubr.f32.gmra.mxu0 %v4972
    %v5250 = vpop.f32.mrf.mxu0
    %v5251 = vadd.f32 0.0, %v5250
    %v5252 = vpop.f32.mrf.mxu0
    %5253 = vmatprep.mubr.f32.mxu0 0.0
    %5254 = vmatmul.mubr.f32.gmra.mxu0 %v4975
    %v5255 = vpop.f32.mrf.mxu0
    %v5256 = vadd.f32 0.0, %v5255
    %v5257 = vpop.f32.mrf.mxu0
    %5258 = vmatprep.mubr.f32.mxu0 0.0
    %5259 = vmatmul.mubr.f32.gmra.mxu0 %v4978
    %v5260 = vpop.f32.mrf.mxu0
    %v5261 = vadd.f32 0.0, %v5260
    %v5262 = vpop.f32.mrf.mxu0
    %5263 = vmatprep.mubr.f32.mxu0 0.0
    %5264 = vmatmul.mubr.f32.gmra.mxu0 %v4981
    %v5265 = vpop.f32.mrf.mxu0
    %v5266 = vadd.f32 0.0, %v5265
    %v5267 = vpop.f32.mrf.mxu0
    %5268 = vmatprep.mubr.f32.mxu0 0.0
    %5269 = vmatmul.mubr.f32.gmra.mxu0 %v4984
    %v5270 = vpop.f32.mrf.mxu0
    %v5271 = vadd.f32 0.0, %v5270
    %v5272 = vpop.f32.mrf.mxu0
    %5273 = vmatprep.mubr.f32.mxu0 0.0
    %5274 = vmatmul.mubr.f32.gmra.mxu0 %v4987
    %v5275 = vpop.f32.mrf.mxu0
    %v5276 = vadd.f32 0.0, %v5275
    %v5277 = vpop.f32.mrf.mxu0
    %5278 = vmatprep.mubr.f32.mxu0 0.0
    %5279 = vmatmul.mubr.f32.gmra.mxu0 %v4990
    %v5280 = vpop.f32.mrf.mxu0
    %v5281 = vadd.f32 0.0, %v5280
    %v5282 = vpop.f32.mrf.mxu0
    %5283 = vmatprep.mubr.f32.mxu0 0.0
    %5284 = vmatmul.mubr.f32.gmra.mxu0 %v4993
    %v5285 = vpop.f32.mrf.mxu0
    %v5286 = vadd.f32 0.0, %v5285
    %v5287 = vpop.f32.mrf.mxu0
    %5288 = vmatprep.mubr.f32.mxu0 0.0
    %5289 = vmatmul.mubr.f32.gmra.mxu0 %v4996
    %v5290 = vpop.f32.mrf.mxu0
    %v5291 = vadd.f32 0.0, %v5290
    %v5292 = vpop.f32.mrf.mxu0
    %5293 = vmatprep.mubr.f32.mxu0 0.0
    %5294 = vmatmul.mubr.f32.gmra.mxu0 %v4999
    %v5295 = vpop.f32.mrf.mxu0
    %v5296 = vadd.f32 0.0, %v5295
    %v5297 = vpop.f32.mrf.mxu0
    %5298 = vmatprep.mubr.f32.mxu0 0.0
    %5299 = vmatmul.mubr.f32.gmra.mxu0 %v5002
    %v5300 = vpop.f32.mrf.mxu0
    %v5301 = vadd.f32 0.0, %v5300
    %v5302 = vpop.f32.mrf.mxu0
    %5303 = vmatprep.mubr.f32.mxu0 0.0
    %5304 = vmatmul.mubr.f32.gmra.mxu0 %v5005
    %v5305 = vpop.f32.mrf.mxu0
    %v5306 = vadd.f32 0.0, %v5305
    %v5307 = vpop.f32.mrf.mxu0
    %5308 = vmatprep.mubr.f32.mxu0 0.0
    %5309 = vmatmul.mubr.f32.gmra.mxu0 %v5008
    %v5310 = vpop.f32.mrf.mxu0
    %v5311 = vadd.f32 0.0, %v5310
    %v5312 = vpop.f32.mrf.mxu0
    %5313 = vmatprep.mubr.f32.mxu0 0.0
    %5314 = vmatmul.mubr.f32.gmra.mxu0 %v5011
    %v5315 = vpop.f32.mrf.mxu0
    %v5316 = vadd.f32 0.0, %v5315
    %v5317 = vpop.f32.mrf.mxu0
    %5318 = vmatprep.mubr.f32.mxu0 0.0
    %5319 = vmatmul.mubr.f32.gmra.mxu0 %v5014
    %v5320 = vpop.f32.mrf.mxu0
    %v5321 = vadd.f32 0.0, %v5320
    %v5322 = vpop.f32.mrf.mxu0
    %5323 = vmatprep.mubr.f32.mxu0 0.0
    %5324 = vmatmul.mubr.f32.gmra.mxu0 %v5017
    %v5325 = vpop.f32.mrf.mxu0
    %v5326 = vadd.f32 0.0, %v5325
    %v5327 = vpop.f32.mrf.mxu0
    %5328 = vmatprep.mubr.f32.mxu0 0.0
    %5329 = vmatmul.mubr.f32.gmra.mxu0 %v5020
    %v5330 = vpop.f32.mrf.mxu0
    %v5331 = vadd.f32 0.0, %v5330
    %v5332 = vpop.f32.mrf.mxu0
    %5333 = vmatprep.mubr.f32.mxu0 0.0
    %5334 = vmatmul.mubr.f32.gmra.mxu0 %v5023
    %v5335 = vpop.f32.mrf.mxu0
    %v5336 = vadd.f32 0.0, %v5335
    %v5337 = vpop.f32.mrf.mxu0
    %5338 = vmatprep.mubr.f32.mxu0 0.0
    %5339 = vmatmul.mubr.f32.gmra.mxu0 %v5026
    %v5340 = vpop.f32.mrf.mxu0
    %v5341 = vadd.f32 0.0, %v5340
    %v5342 = vpop.f32.mrf.mxu0
    %5343 = vmatprep.mubr.f32.mxu0 0.0
    %5344 = vmatmul.mubr.f32.gmra.mxu0 %v5029
    %v5345 = vpop.f32.mrf.mxu0
    %v5346 = vadd.f32 0.0, %v5345
    %v5347 = vpop.f32.mrf.mxu0
    %5348 = vmatprep.mubr.f32.mxu0 0.0
    %5349 = vmatmul.mubr.f32.gmra.mxu0 %v5032
    %v5350 = vpop.f32.mrf.mxu0
    %v5351 = vadd.f32 0.0, %v5350
    %v5352 = vpop.f32.mrf.mxu0
    %5353 = vmatprep.mubr.f32.mxu0 0.0
    %5354 = vmatmul.mubr.f32.gmra.mxu0 %v5035
    %v5355 = vpop.f32.mrf.mxu0
    %v5356 = vadd.f32 0.0, %v5355
    %v5357 = vpop.f32.mrf.mxu0
    %5358 = vmatprep.mubr.f32.mxu0 0.0
    %5359 = vmatmul.mubr.f32.gmra.mxu0 %v5038
    %v5360 = vpop.f32.mrf.mxu0
    %v5361 = vadd.f32 0.0, %v5360
    %v5362 = vpop.f32.mrf.mxu0
    %5363 = vmatprep.mubr.f32.mxu0 0.0
    %5364 = vmatmul.mubr.f32.gmra.mxu0 %v5041
    %v5365 = vpop.f32.mrf.mxu0
    %v5366 = vadd.f32 0.0, %v5365
    %v5367 = vpop.f32.mrf.mxu0
    %5368 = vmatprep.mubr.f32.mxu0 0.0
    %5369 = vmatmul.mubr.f32.gmra.mxu0 %v5044
    %v5370 = vpop.f32.mrf.mxu0
    %v5371 = vadd.f32 0.0, %v5370
    %v5372 = vpop.f32.mrf.mxu0
    %5373 = vmatprep.mubr.f32.mxu0 0.0
    %5374 = vmatmul.mubr.f32.gmra.mxu0 %v5047
    %v5375 = vpop.f32.mrf.mxu0
    %v5376 = vadd.f32 0.0, %v5375
    %v5377 = vpop.f32.mrf.mxu0
    %5378 = vmatprep.mubr.f32.mxu0 0.0
    %5379 = vmatmul.mubr.f32.gmra.mxu0 %v5050
    %v5380 = vpop.f32.mrf.mxu0
    %v5381 = vadd.f32 0.0, %v5380
    %v5382 = vpop.f32.mrf.mxu0
    %5383 = vmatprep.mubr.f32.mxu0 0.0
    %5384 = vmatmul.mubr.f32.gmra.mxu0 %v5053
    %v5385 = vpop.f32.mrf.mxu0
    %v5386 = vadd.f32 0.0, %v5385
    %v5387 = vpop.f32.mrf.mxu0
    %5388 = vmatprep.mubr.f32.mxu0 0.0
    %5389 = vmatmul.mubr.f32.gmra.mxu0 %v5056
    %v5390 = vpop.f32.mrf.mxu0
    %v5391 = vadd.f32 0.0, %v5390
    %v5392 = vpop.f32.mrf.mxu0
    %5393 = vmatprep.mubr.f32.mxu0 0.0
    %5394 = vmatmul.mubr.f32.gmra.mxu0 %v5059
    %v5395 = vpop.f32.mrf.mxu0
    %v5396 = vadd.f32 0.0, %v5395
    %v5397 = vpop.f32.mrf.mxu0
    %5398 = vmatprep.mubr.f32.mxu0 0.0
    %5399 = vmatmul.mubr.f32.gmra.mxu0 %v5062
    %v5400 = vpop.f32.mrf.mxu0
    %v5401 = vadd.f32 0.0, %v5400
    %v5402 = vpop.f32.mrf.mxu0
    %5403 = vmatprep.mubr.f32.mxu0 0.0
    %5404 = vmatmul.mubr.f32.gmra.mxu0 %v5065
    %v5405 = vpop.f32.mrf.mxu0
    %v5406 = vadd.f32 0.0, %v5405
    %v5407 = vpop.f32.mrf.mxu0
    %5408 = vmatprep.mubr.f32.mxu0 0.0
    %5409 = vmatmul.mubr.f32.gmra.mxu0 %v5068
    %v5410 = vpop.f32.mrf.mxu0
    %v5411 = vadd.f32 0.0, %v5410
    %v5412 = vpop.f32.mrf.mxu0
    %5413 = vmatprep.mubr.f32.mxu0 0.0
    %5414 = vmatmul.mubr.f32.gmra.mxu0 %v5071
    %v5415 = vpop.f32.mrf.mxu0
    %v5416 = vadd.f32 0.0, %v5415
    %v5417 = vpop.f32.mrf.mxu0
    %5418 = vmatprep.mubr.f32.mxu0 0.0
    %5419 = vmatmul.mubr.f32.gmra.mxu0 %v5074
    %v5420 = vpop.f32.mrf.mxu0
    %v5421 = vadd.f32 0.0, %v5420
    %v5422 = vpop.f32.mrf.mxu0
    %5423 = vmatprep.mubr.f32.mxu0 0.0
    %5424 = vmatmul.mubr.f32.gmra.mxu0 %v5077
    %v5425 = vpop.f32.mrf.mxu0
    %v5426 = vadd.f32 0.0, %v5425
    %v5427 = vpop.f32.mrf.mxu0
    %5428 = vmatprep.mubr.f32.mxu0 0.0
    %5429 = vmatmul.mubr.f32.gmra.mxu0 %v5080
    %v5430 = vpop.f32.mrf.mxu0
    %v5431 = vadd.f32 0.0, %v5430
    %v5432 = vpop.f32.mrf.mxu0
    %5433 = vmatprep.mubr.f32.mxu0 0.0
    %5434 = vmatmul.mubr.f32.gmra.mxu0 %v5083
    %v5435 = vpop.f32.mrf.mxu0
    %v5436 = vadd.f32 0.0, %v5435
    %v5437 = vpop.f32.mrf.mxu0
    %5438 = vmatprep.mubr.f32.mxu0 0.0
    %5439 = vmatmul.mubr.f32.gmra.mxu0 %v5086
    %v5440 = vpop.f32.mrf.mxu0
    %v5441 = vadd.f32 0.0, %v5440
    %v5442 = vpop.f32.mrf.mxu0
    %5443 = vmatprep.mubr.f32.mxu0 0.0
    %5444 = vmatmul.mubr.f32.gmra.mxu0 %v5089
    %v5445 = vpop.f32.mrf.mxu0
    %v5446 = vadd.f32 0.0, %v5445
    %v5447 = vpop.f32.mrf.mxu0
    %5448 = vmatprep.mubr.f32.mxu0 0.0
    %5449 = vmatmul.mubr.f32.gmra.mxu0 %v5092
    %v5450 = vpop.f32.mrf.mxu0
    %v5451 = vadd.f32 0.0, %v5450
    %v5452 = vpop.f32.mrf.mxu0
    %5453 = vmatprep.mubr.f32.mxu0 0.0
    %5454 = vmatmul.mubr.f32.gmra.mxu0 %v5095
    %v5455 = vpop.f32.mrf.mxu0
    %v5456 = vadd.f32 0.0, %v5455
    %v5457 = vpop.f32.mrf.mxu0
    %5458 = vmatprep.mubr.f32.mxu0 0.0
    %5459 = vmatmul.mubr.f32.gmra.mxu0 %v5098
    %v5460 = vpop.f32.mrf.mxu0
    %v5461 = vadd.f32 0.0, %v5460
    %v5462 = vpop.f32.mrf.mxu0
    %5463 = vmatprep.mubr.f32.mxu0 0.0
    %5464 = vmatmul.mubr.f32.gmra.mxu0 %v5101
    %v5465 = vpop.f32.mrf.mxu0
    %v5466 = vadd.f32 0.0, %v5465
    %v5467 = vpop.f32.mrf.mxu0
    %5468 = vmatprep.mubr.f32.mxu0 0.0
    %5469 = vmatmul.mubr.f32.gmra.mxu0 %v5104
    %v5470 = vpop.f32.mrf.mxu0
    %v5471 = vadd.f32 0.0, %v5470
    %v5472 = vpop.f32.mrf.mxu0
    %5473 = vmatprep.mubr.f32.mxu0 0.0
    %5474 = vmatmul.mubr.f32.gmra.mxu0 %v5107
    %v5475 = vpop.f32.mrf.mxu0
    %v5476 = vadd.f32 0.0, %v5475
    %v5477 = vpop.f32.mrf.mxu0
    %5478 = vmatprep.mubr.f32.mxu0 0.0
    %5479 = vmatmul.mubr.f32.gmra.mxu0 %v5110
    %v5480 = vpop.f32.mrf.mxu0
    %v5481 = vadd.f32 0.0, %v5480
    %v5482 = vpop.f32.mrf.mxu0
    %5483 = vmatprep.mubr.f32.mxu0 0.0
    %5484 = vmatmul.mubr.f32.gmra.mxu0 %v5113
    %v5485 = vpop.f32.mrf.mxu0
    %v5486 = vadd.f32 0.0, %v5485
    %v5487 = vpop.f32.mrf.mxu0
    %5488 = vmatprep.mubr.f32.mxu0 0.0
    %5489 = vmatmul.mubr.f32.gmra.mxu0 %v5116
    %v5490 = vpop.f32.mrf.mxu0
    %v5491 = vadd.f32 0.0, %v5490
    %v5492 = vpop.f32.mrf.mxu0
    %5493 = vmatprep.mubr.f32.mxu0 0.0
    %5494 = vmatmul.mubr.f32.gmra.mxu0 %v5119
    %v5495 = vpop.f32.mrf.mxu0
    %v5496 = vadd.f32 0.0, %v5495
    %v5497 = vpop.f32.mrf.mxu0
    %5498 = vmatprep.mubr.f32.mxu0 0.0
    %5499 = vmatmul.mubr.f32.gmra.mxu0 %v5122
    %v5500 = vpop.f32.mrf.mxu0
    %v5501 = vadd.f32 0.0, %v5500
    %v5502 = vpop.f32.mrf.mxu0
    %5503 = vmatprep.mubr.f32.mxu0 0.0
    %5504 = vmatmul.mubr.f32.gmra.mxu0 %v5125
    %v5505 = vpop.f32.mrf.mxu0
    %v5506 = vadd.f32 0.0, %v5505
    %v5507 = vpop.f32.mrf.mxu0
    %5508 = vmatprep.mubr.f32.mxu0 0.0
    %5509 = vmatmul.mubr.f32.gmra.mxu0 %v5128
    %v5510 = vpop.f32.mrf.mxu0
    %v5511 = vadd.f32 0.0, %v5510
    %v5512 = vpop.f32.mrf.mxu0
    %5513 = vmatprep.mubr.f32.mxu0 0.0
    %5514 = vmatmul.mubr.f32.gmra.mxu0 %v5131
    %v5515 = vpop.f32.mrf.mxu0
    %v5516 = vadd.f32 0.0, %v5515
    %v5517 = vpop.f32.mrf.mxu0
    %5518 = vmatprep.mubr.f32.mxu0 0.0
    %5519 = vmatmul.mubr.f32.gmra.mxu0 %v5134
    %v5520 = vpop.f32.mrf.mxu0
    %v5521 = vadd.f32 0.0, %v5520
    %v5522 = vpop.f32.mrf.mxu0
    %5523 = vdwg.mxu0
    %v5524 = vadd.f32 %v4814, %v5206
    %v5525 = vadd.f32 %v4815, %v5211
    %v5526 = vadd.f32 %v4816, %v5216
    %v5527 = vadd.f32 %v4817, %v5221
    %v5528 = vadd.f32 %v4818, %v5226
    %v5529 = vadd.f32 %v4819, %v5231
    %v5530 = vadd.f32 %v4820, %v5236
    %v5531 = vadd.f32 %v4821, %v5241
    %v5532 = vadd.f32 %v4822, %v5246
    %v5533 = vadd.f32 %v4823, %v5251
    %v5534 = vadd.f32 %v4824, %v5256
    %v5535 = vadd.f32 %v4825, %v5261
    %v5536 = vadd.f32 %v4826, %v5266
    %v5537 = vadd.f32 %v4827, %v5271
    %v5538 = vadd.f32 %v4828, %v5276
    %v5539 = vadd.f32 %v4829, %v5281
    %v5540 = vadd.f32 %v4830, %v5286
    %v5541 = vadd.f32 %v4831, %v5291
    %v5542 = vadd.f32 %v4832, %v5296
    %v5543 = vadd.f32 %v4833, %v5301
    %v5544 = vadd.f32 %v4834, %v5306
    %v5545 = vadd.f32 %v4835, %v5311
    %v5546 = vadd.f32 %v4836, %v5316
    %v5547 = vadd.f32 %v4837, %v5321
    %v5548 = vadd.f32 %v4838, %v5326
    %v5549 = vadd.f32 %v4839, %v5331
    %v5550 = vadd.f32 %v4840, %v5336
    %v5551 = vadd.f32 %v4841, %v5341
    %v5552 = vadd.f32 %v4842, %v5346
    %v5553 = vadd.f32 %v4843, %v5351
    %v5554 = vadd.f32 %v4844, %v5356
    %v5555 = vadd.f32 %v4845, %v5361
    %v5556 = vadd.f32 %v4846, %v5366
    %v5557 = vadd.f32 %v4847, %v5371
    %v5558 = vadd.f32 %v4848, %v5376
    %v5559 = vadd.f32 %v4849, %v5381
    %v5560 = vadd.f32 %v4850, %v5386
    %v5561 = vadd.f32 %v4851, %v5391
    %v5562 = vadd.f32 %v4852, %v5396
    %v5563 = vadd.f32 %v4853, %v5401
    %v5564 = vadd.f32 %v4854, %v5406
    %v5565 = vadd.f32 %v4855, %v5411
    %v5566 = vadd.f32 %v4856, %v5416
    %v5567 = vadd.f32 %v4857, %v5421
    %v5568 = vadd.f32 %v4858, %v5426
    %v5569 = vadd.f32 %v4859, %v5431
    %v5570 = vadd.f32 %v4860, %v5436
    %v5571 = vadd.f32 %v4861, %v5441
    %v5572 = vadd.f32 %v4862, %v5446
    %v5573 = vadd.f32 %v4863, %v5451
    %v5574 = vadd.f32 %v4864, %v5456
    %v5575 = vadd.f32 %v4865, %v5461
    %v5576 = vadd.f32 %v4866, %v5466
    %v5577 = vadd.f32 %v4867, %v5471
    %v5578 = vadd.f32 %v4868, %v5476
    %v5579 = vadd.f32 %v4869, %v5481
    %v5580 = vadd.f32 %v4870, %v5486
    %v5581 = vadd.f32 %v4871, %v5491
    %v5582 = vadd.f32 %v4872, %v5496
    %v5583 = vadd.f32 %v4873, %v5501
    %v5584 = vadd.f32 %v4874, %v5506
    %v5585 = vadd.f32 %v4875, %v5511
    %v5586 = vadd.f32 %v4876, %v5516
    %v5587 = vadd.f32 %v4877, %v5521
    %v5588 = vld [vmem:[%s4167 + $0x2] sm:$0xff]
    %v5589 = vld [vmem:[%s4167 + $0xa] sm:$0xff]
    %v5590 = vld [vmem:[%s4167 + $0x1a] sm:$0xff]
    %v5591 = vld [vmem:[%s4167 + $0x22] sm:$0xff]
    %v5592 = vld [vmem:[%s4167 + $0x32] sm:$0xff]
    %v5593 = vld [vmem:[%s4167 + $0x3a] sm:$0xff]
    %v5594 = vld [vmem:[%s4167 + $0x4a] sm:$0xff]
    %v5595 = vld [vmem:[%s4167 + $0x52] sm:$0xff]
    %v5596 = vld [vmem:[%s4167 + $0x62] sm:$0xff]
    %v5597 = vld [vmem:[%s4167 + $0x6a] sm:$0xff]
    %v5598 = vld [vmem:[%s4167 + $0x7a] sm:$0xff]
    %v5599 = vld [vmem:[%s4167 + $0x82] sm:$0xff]
    %v5600 = vld [vmem:[%s4167 + $0x92] sm:$0xff]
    %v5601 = vld [vmem:[%s4167 + $0x9a] sm:$0xff]
    %v5602 = vld [vmem:[%s4167 + $0xaa] sm:$0xff]
    %v5603 = vld [vmem:[%s4167 + $0xb2] sm:$0xff]
    %v5604 = vld [vmem:[%s4167 + $0xc2] sm:$0xff]
    %v5605 = vld [vmem:[%s4167 + $0xca] sm:$0xff]
    %v5606 = vld [vmem:[%s4167 + $0xda] sm:$0xff]
    %v5607 = vld [vmem:[%s4167 + $0xe2] sm:$0xff]
    %v5608 = vld [vmem:[%s4167 + $0xf2] sm:$0xff]
    %v5609 = vld [vmem:[%s4167 + $0xfa] sm:$0xff]
    %v5610 = vld [vmem:[%s4167 + $0x10a] sm:$0xff]
    %v5611 = vld [vmem:[%s4167 + $0x112] sm:$0xff]
    %v5612 = vld [vmem:[%s4167 + $0x122] sm:$0xff]
    %v5613 = vld [vmem:[%s4167 + $0x12a] sm:$0xff]
    %v5614 = vld [vmem:[%s4167 + $0x13a] sm:$0xff]
    %v5615 = vld [vmem:[%s4167 + $0x142] sm:$0xff]
    %v5616 = vld [vmem:[%s4167 + $0x152] sm:$0xff]
    %v5617 = vld [vmem:[%s4167 + $0x15a] sm:$0xff]
    %v5618 = vld [vmem:[%s4167 + $0x16a] sm:$0xff]
    %v5619 = vld [vmem:[%s4167 + $0x172] sm:$0xff]
    %v5620 = vld [vmem:[%s4167 + $0x1b2] sm:$0xff]
    %v5621 = vld [vmem:[%s4167 + $0x1ba] sm:$0xff]
    %v5622 = vld [vmem:[%s4167 + $0x1ca] sm:$0xff]
    %v5623 = vld [vmem:[%s4167 + $0x1d2] sm:$0xff]
    %v5624 = vld [vmem:[%s4167 + $0x1e2] sm:$0xff]
    %v5625 = vld [vmem:[%s4167 + $0x1ea] sm:$0xff]
    %v5626 = vld [vmem:[%s4167 + $0x1fa] sm:$0xff]
    %v5627 = vld [vmem:[%s4167 + $0x202] sm:$0xff]
    %v5628 = vld [vmem:[%s4167 + $0x212] sm:$0xff]
    %v5629 = vld [vmem:[%s4167 + $0x21a] sm:$0xff]
    %v5630 = vld [vmem:[%s4167 + $0x22a] sm:$0xff]
    %v5631 = vld [vmem:[%s4167 + $0x232] sm:$0xff]
    %v5632 = vld [vmem:[%s4167 + $0x242] sm:$0xff]
    %v5633 = vld [vmem:[%s4167 + $0x24a] sm:$0xff]
    %v5634 = vld [vmem:[%s4167 + $0x25a] sm:$0xff]
    %v5635 = vld [vmem:[%s4167 + $0x262] sm:$0xff]
    %v5636 = vld [vmem:[%s4167 + $0x272] sm:$0xff]
    %v5637 = vld [vmem:[%s4167 + $0x27a] sm:$0xff]
    %v5638 = vld [vmem:[%s4167 + $0x28a] sm:$0xff]
    %v5639 = vld [vmem:[%s4167 + $0x292] sm:$0xff]
    %v5640 = vld [vmem:[%s4167 + $0x2a2] sm:$0xff]
    %v5641 = vld [vmem:[%s4167 + $0x2aa] sm:$0xff]
    %v5642 = vld [vmem:[%s4167 + $0x2ba] sm:$0xff]
    %v5643 = vld [vmem:[%s4167 + $0x2c2] sm:$0xff]
    %v5644 = vld [vmem:[%s4167 + $0x2d2] sm:$0xff]
    %v5645 = vld [vmem:[%s4167 + $0x2da] sm:$0xff]
    %v5646 = vld [vmem:[%s4167 + $0x2ea] sm:$0xff]
    %v5647 = vld [vmem:[%s4167 + $0x2f2] sm:$0xff]
    %v5648 = vld [vmem:[%s4167 + $0x302] sm:$0xff]
    %v5649 = vld [vmem:[%s4167 + $0x30a] sm:$0xff]
    %v5650 = vld [vmem:[%s4167 + $0x31a] sm:$0xff]
    %v5651 = vld [vmem:[%s4167 + $0x322] sm:$0xff]
    %s5652 = scalar_lea.vmem %s1, 32
    %v5653 = vld [vmem:[%s5652] sm:$0xf]
    %v5655 = vsel %vm164, %v5588, 0
    %v5658 = vsel %vm164, %v5589, 0
    %v5661 = vsel %vm164, %v5590, 0
    %v5664 = vsel %vm164, %v5591, 0
    %v5667 = vsel %vm164, %v5592, 0
    %v5670 = vsel %vm164, %v5593, 0
    %v5673 = vsel %vm164, %v5594, 0
    %v5676 = vsel %vm164, %v5595, 0
    %v5679 = vsel %vm164, %v5596, 0
    %v5682 = vsel %vm164, %v5597, 0
    %v5685 = vsel %vm164, %v5598, 0
    %v5688 = vsel %vm164, %v5599, 0
    %v5691 = vsel %vm164, %v5600, 0
    %v5694 = vsel %vm164, %v5601, 0
    %v5697 = vsel %vm164, %v5602, 0
    %v5700 = vsel %vm164, %v5603, 0
    %v5703 = vsel %vm164, %v5604, 0
    %v5706 = vsel %vm164, %v5605, 0
    %v5709 = vsel %vm164, %v5606, 0
    %v5712 = vsel %vm164, %v5607, 0
    %v5715 = vsel %vm164, %v5608, 0
    %v5718 = vsel %vm164, %v5609, 0
    %v5721 = vsel %vm164, %v5610, 0
    %v5724 = vsel %vm164, %v5611, 0
    %v5727 = vsel %vm164, %v5612, 0
    %v5730 = vsel %vm164, %v5613, 0
    %v5733 = vsel %vm164, %v5614, 0
    %v5736 = vsel %vm164, %v5615, 0
    %v5739 = vsel %vm164, %v5616, 0
    %v5742 = vsel %vm164, %v5617, 0
    %v5745 = vsel %vm164, %v5618, 0
    %v5748 = vsel %vm164, %v5619, 0
    %v5751 = vsel %vm164, %v5620, 0
    %v5754 = vsel %vm164, %v5621, 0
    %v5757 = vsel %vm164, %v5622, 0
    %v5760 = vsel %vm164, %v5623, 0
    %v5763 = vsel %vm164, %v5624, 0
    %v5766 = vsel %vm164, %v5625, 0
    %v5769 = vsel %vm164, %v5626, 0
    %v5772 = vsel %vm164, %v5627, 0
    %v5775 = vsel %vm164, %v5628, 0
    %v5778 = vsel %vm164, %v5629, 0
    %v5781 = vsel %vm164, %v5630, 0
    %v5784 = vsel %vm164, %v5631, 0
    %v5787 = vsel %vm164, %v5632, 0
    %v5790 = vsel %vm164, %v5633, 0
    %v5793 = vsel %vm164, %v5634, 0
    %v5796 = vsel %vm164, %v5635, 0
    %v5799 = vsel %vm164, %v5636, 0
    %v5802 = vsel %vm164, %v5637, 0
    %v5805 = vsel %vm164, %v5638, 0
    %v5808 = vsel %vm164, %v5639, 0
    %v5811 = vsel %vm164, %v5640, 0
    %v5814 = vsel %vm164, %v5641, 0
    %v5817 = vsel %vm164, %v5642, 0
    %v5820 = vsel %vm164, %v5643, 0
    %v5823 = vsel %vm164, %v5644, 0
    %v5826 = vsel %vm164, %v5645, 0
    %v5829 = vsel %vm164, %v5646, 0
    %v5832 = vsel %vm164, %v5647, 0
    %v5835 = vsel %vm164, %v5648, 0
    %v5838 = vsel %vm164, %v5649, 0
    %v5841 = vsel %vm164, %v5650, 0
    %v5844 = vsel %vm164, %v5651, 0
    %v5847 = vsel %vm357, %v5653, 0
    %5849 = vmatprep.subr.mxu0 0.0
    %5850 = vmatpush1.msra.mxu0 0.0
    %5851 = vmatprep.subr.mxu0 0.0
    %5852 = vmatpush1.msra.mxu0 0.0
    %5853 = vmatprep.subr.mxu0 0.0
    %5854 = vmatpush1.msra.mxu0 0.0
    %5855 = vmatprep.subr.mxu0 0.0
    %5856 = vmatpush1.msra.mxu0 0.0
    %5857 = vmatprep.subr.mxu0 0.0
    %5858 = vmatpush1.msra.mxu0 0.0
    %5859 = vmatprep.subr.mxu0 0.0
    %5860 = vmatpush1.msra.mxu0 0.0
    %5861 = vmatprep.subr.mxu0 0.0
    %5862 = vmatpush1.msra.mxu0 0.0
    %5863 = vmatprep.subr.mxu0 0.0
    %5864 = vmatpush1.msra.mxu0 0.0
    %5865 = vmatprep.subr.mxu0 0.0
    %5866 = vmatpush1.msra.mxu0 0.0
    %5867 = vmatprep.subr.mxu0 0.0
    %5868 = vmatpush1.msra.mxu0 0.0
    %5869 = vmatprep.subr.mxu0 0.0
    %5870 = vmatpush1.msra.mxu0 0.0
    %5871 = vmatprep.subr.mxu0 0.0
    %5872 = vmatpush1.msra.mxu0 0.0
    %5873 = vmatprep.subr.mxu0 0.0
    %5874 = vmatpush1.msra.mxu0 0.0
    %5875 = vmatprep.subr.mxu0 0.0
    %5876 = vmatpush1.msra.mxu0 0.0
    %5877 = vmatprep.subr.mxu0 0.0
    %5878 = vmatpush1.msra.mxu0 0.0
    %5879 = vmatprep.subr.mxu0 0.0
    %5880 = vmatpush1.msra.mxu0 %v5847
    %5881 = vmatprep.subr.mxu0 0.0
    %5882 = vmatpush2.msra.mxu0 0.0
    %5883 = vmatprep.subr.mxu0 0.0
    %5884 = vmatpush2.msra.mxu0 0.0
    %5885 = vmatprep.subr.mxu0 0.0
    %5886 = vmatpush2.msra.mxu0 0.0
    %5887 = vmatprep.subr.mxu0 0.0
    %5888 = vmatpush2.msra.mxu0 0.0
    %5889 = vmatprep.subr.mxu0 0.0
    %5890 = vmatpush2.msra.mxu0 0.0
    %5891 = vmatprep.subr.mxu0 0.0
    %5892 = vmatpush2.msra.mxu0 0.0
    %5893 = vmatprep.subr.mxu0 0.0
    %5894 = vmatpush2.msra.mxu0 0.0
    %5895 = vmatprep.subr.mxu0 0.0
    %5896 = vmatpush2.msra.mxu0 0.0
    %5897 = vmatprep.subr.mxu0 0.0
    %5898 = vmatpush2.msra.mxu0 0.0
    %5899 = vmatprep.subr.mxu0 0.0
    %5900 = vmatpush2.msra.mxu0 0.0
    %5901 = vmatprep.subr.mxu0 0.0
    %5902 = vmatpush2.msra.mxu0 0.0
    %5903 = vmatprep.subr.mxu0 0.0
    %5904 = vmatpush2.msra.mxu0 0.0
    %5905 = vmatprep.subr.mxu0 0.0
    %5906 = vmatpush2.msra.mxu0 0.0
    %5907 = vmatprep.subr.mxu0 0.0
    %5908 = vmatpush2.msra.mxu0 0.0
    %5909 = vmatprep.subr.mxu0 0.0
    %5910 = vmatpush2.msra.mxu0 0.0
    %5911 = vmatprep.subr.mxu0 0.0
    %5912 = vmatpush2.msra.mxu0 0.0
    %5913 = vmatprep.mubr.f32.mxu0 0.0
    %5914 = vmatmul.mubr.f32.gmra.mxu0 %v5655
    %v5915 = vpop.f32.mrf.mxu0
    %v5916 = vadd.f32 0.0, %v5915
    %v5917 = vpop.f32.mrf.mxu0
    %5918 = vmatprep.mubr.f32.mxu0 0.0
    %5919 = vmatmul.mubr.f32.gmra.mxu0 %v5658
    %v5920 = vpop.f32.mrf.mxu0
    %v5921 = vadd.f32 0.0, %v5920
    %v5922 = vpop.f32.mrf.mxu0
    %5923 = vmatprep.mubr.f32.mxu0 0.0
    %5924 = vmatmul.mubr.f32.gmra.mxu0 %v5661
    %v5925 = vpop.f32.mrf.mxu0
    %v5926 = vadd.f32 0.0, %v5925
    %v5927 = vpop.f32.mrf.mxu0
    %5928 = vmatprep.mubr.f32.mxu0 0.0
    %5929 = vmatmul.mubr.f32.gmra.mxu0 %v5664
    %v5930 = vpop.f32.mrf.mxu0
    %v5931 = vadd.f32 0.0, %v5930
    %v5932 = vpop.f32.mrf.mxu0
    %5933 = vmatprep.mubr.f32.mxu0 0.0
    %5934 = vmatmul.mubr.f32.gmra.mxu0 %v5667
    %v5935 = vpop.f32.mrf.mxu0
    %v5936 = vadd.f32 0.0, %v5935
    %v5937 = vpop.f32.mrf.mxu0
    %5938 = vmatprep.mubr.f32.mxu0 0.0
    %5939 = vmatmul.mubr.f32.gmra.mxu0 %v5670
    %v5940 = vpop.f32.mrf.mxu0
    %v5941 = vadd.f32 0.0, %v5940
    %v5942 = vpop.f32.mrf.mxu0
    %5943 = vmatprep.mubr.f32.mxu0 0.0
    %5944 = vmatmul.mubr.f32.gmra.mxu0 %v5673
    %v5945 = vpop.f32.mrf.mxu0
    %v5946 = vadd.f32 0.0, %v5945
    %v5947 = vpop.f32.mrf.mxu0
    %5948 = vmatprep.mubr.f32.mxu0 0.0
    %5949 = vmatmul.mubr.f32.gmra.mxu0 %v5676
    %v5950 = vpop.f32.mrf.mxu0
    %v5951 = vadd.f32 0.0, %v5950
    %v5952 = vpop.f32.mrf.mxu0
    %5953 = vmatprep.mubr.f32.mxu0 0.0
    %5954 = vmatmul.mubr.f32.gmra.mxu0 %v5679
    %v5955 = vpop.f32.mrf.mxu0
    %v5956 = vadd.f32 0.0, %v5955
    %v5957 = vpop.f32.mrf.mxu0
    %5958 = vmatprep.mubr.f32.mxu0 0.0
    %5959 = vmatmul.mubr.f32.gmra.mxu0 %v5682
    %v5960 = vpop.f32.mrf.mxu0
    %v5961 = vadd.f32 0.0, %v5960
    %v5962 = vpop.f32.mrf.mxu0
    %5963 = vmatprep.mubr.f32.mxu0 0.0
    %5964 = vmatmul.mubr.f32.gmra.mxu0 %v5685
    %v5965 = vpop.f32.mrf.mxu0
    %v5966 = vadd.f32 0.0, %v5965
    %v5967 = vpop.f32.mrf.mxu0
    %5968 = vmatprep.mubr.f32.mxu0 0.0
    %5969 = vmatmul.mubr.f32.gmra.mxu0 %v5688
    %v5970 = vpop.f32.mrf.mxu0
    %v5971 = vadd.f32 0.0, %v5970
    %v5972 = vpop.f32.mrf.mxu0
    %5973 = vmatprep.mubr.f32.mxu0 0.0
    %5974 = vmatmul.mubr.f32.gmra.mxu0 %v5691
    %v5975 = vpop.f32.mrf.mxu0
    %v5976 = vadd.f32 0.0, %v5975
    %v5977 = vpop.f32.mrf.mxu0
    %5978 = vmatprep.mubr.f32.mxu0 0.0
    %5979 = vmatmul.mubr.f32.gmra.mxu0 %v5694
    %v5980 = vpop.f32.mrf.mxu0
    %v5981 = vadd.f32 0.0, %v5980
    %v5982 = vpop.f32.mrf.mxu0
    %5983 = vmatprep.mubr.f32.mxu0 0.0
    %5984 = vmatmul.mubr.f32.gmra.mxu0 %v5697
    %v5985 = vpop.f32.mrf.mxu0
    %v5986 = vadd.f32 0.0, %v5985
    %v5987 = vpop.f32.mrf.mxu0
    %5988 = vmatprep.mubr.f32.mxu0 0.0
    %5989 = vmatmul.mubr.f32.gmra.mxu0 %v5700
    %v5990 = vpop.f32.mrf.mxu0
    %v5991 = vadd.f32 0.0, %v5990
    %v5992 = vpop.f32.mrf.mxu0
    %5993 = vmatprep.mubr.f32.mxu0 0.0
    %5994 = vmatmul.mubr.f32.gmra.mxu0 %v5703
    %v5995 = vpop.f32.mrf.mxu0
    %v5996 = vadd.f32 0.0, %v5995
    %v5997 = vpop.f32.mrf.mxu0
    %5998 = vmatprep.mubr.f32.mxu0 0.0
    %5999 = vmatmul.mubr.f32.gmra.mxu0 %v5706
    %v6000 = vpop.f32.mrf.mxu0
    %v6001 = vadd.f32 0.0, %v6000
    %v6002 = vpop.f32.mrf.mxu0
    %6003 = vmatprep.mubr.f32.mxu0 0.0
    %6004 = vmatmul.mubr.f32.gmra.mxu0 %v5709
    %v6005 = vpop.f32.mrf.mxu0
    %v6006 = vadd.f32 0.0, %v6005
    %v6007 = vpop.f32.mrf.mxu0
    %6008 = vmatprep.mubr.f32.mxu0 0.0
    %6009 = vmatmul.mubr.f32.gmra.mxu0 %v5712
    %v6010 = vpop.f32.mrf.mxu0
    %v6011 = vadd.f32 0.0, %v6010
    %v6012 = vpop.f32.mrf.mxu0
    %6013 = vmatprep.mubr.f32.mxu0 0.0
    %6014 = vmatmul.mubr.f32.gmra.mxu0 %v5715
    %v6015 = vpop.f32.mrf.mxu0
    %v6016 = vadd.f32 0.0, %v6015
    %v6017 = vpop.f32.mrf.mxu0
    %6018 = vmatprep.mubr.f32.mxu0 0.0
    %6019 = vmatmul.mubr.f32.gmra.mxu0 %v5718
    %v6020 = vpop.f32.mrf.mxu0
    %v6021 = vadd.f32 0.0, %v6020
    %v6022 = vpop.f32.mrf.mxu0
    %6023 = vmatprep.mubr.f32.mxu0 0.0
    %6024 = vmatmul.mubr.f32.gmra.mxu0 %v5721
    %v6025 = vpop.f32.mrf.mxu0
    %v6026 = vadd.f32 0.0, %v6025
    %v6027 = vpop.f32.mrf.mxu0
    %6028 = vmatprep.mubr.f32.mxu0 0.0
    %6029 = vmatmul.mubr.f32.gmra.mxu0 %v5724
    %v6030 = vpop.f32.mrf.mxu0
    %v6031 = vadd.f32 0.0, %v6030
    %v6032 = vpop.f32.mrf.mxu0
    %6033 = vmatprep.mubr.f32.mxu0 0.0
    %6034 = vmatmul.mubr.f32.gmra.mxu0 %v5727
    %v6035 = vpop.f32.mrf.mxu0
    %v6036 = vadd.f32 0.0, %v6035
    %v6037 = vpop.f32.mrf.mxu0
    %6038 = vmatprep.mubr.f32.mxu0 0.0
    %6039 = vmatmul.mubr.f32.gmra.mxu0 %v5730
    %v6040 = vpop.f32.mrf.mxu0
    %v6041 = vadd.f32 0.0, %v6040
    %v6042 = vpop.f32.mrf.mxu0
    %6043 = vmatprep.mubr.f32.mxu0 0.0
    %6044 = vmatmul.mubr.f32.gmra.mxu0 %v5733
    %v6045 = vpop.f32.mrf.mxu0
    %v6046 = vadd.f32 0.0, %v6045
    %v6047 = vpop.f32.mrf.mxu0
    %6048 = vmatprep.mubr.f32.mxu0 0.0
    %6049 = vmatmul.mubr.f32.gmra.mxu0 %v5736
    %v6050 = vpop.f32.mrf.mxu0
    %v6051 = vadd.f32 0.0, %v6050
    %v6052 = vpop.f32.mrf.mxu0
    %6053 = vmatprep.mubr.f32.mxu0 0.0
    %6054 = vmatmul.mubr.f32.gmra.mxu0 %v5739
    %v6055 = vpop.f32.mrf.mxu0
    %v6056 = vadd.f32 0.0, %v6055
    %v6057 = vpop.f32.mrf.mxu0
    %6058 = vmatprep.mubr.f32.mxu0 0.0
    %6059 = vmatmul.mubr.f32.gmra.mxu0 %v5742
    %v6060 = vpop.f32.mrf.mxu0
    %v6061 = vadd.f32 0.0, %v6060
    %v6062 = vpop.f32.mrf.mxu0
    %6063 = vmatprep.mubr.f32.mxu0 0.0
    %6064 = vmatmul.mubr.f32.gmra.mxu0 %v5745
    %v6065 = vpop.f32.mrf.mxu0
    %v6066 = vadd.f32 0.0, %v6065
    %v6067 = vpop.f32.mrf.mxu0
    %6068 = vmatprep.mubr.f32.mxu0 0.0
    %6069 = vmatmul.mubr.f32.gmra.mxu0 %v5748
    %v6070 = vpop.f32.mrf.mxu0
    %v6071 = vadd.f32 0.0, %v6070
    %v6072 = vpop.f32.mrf.mxu0
    %6073 = vmatprep.mubr.f32.mxu0 0.0
    %6074 = vmatmul.mubr.f32.gmra.mxu0 %v5751
    %v6075 = vpop.f32.mrf.mxu0
    %v6076 = vadd.f32 0.0, %v6075
    %v6077 = vpop.f32.mrf.mxu0
    %6078 = vmatprep.mubr.f32.mxu0 0.0
    %6079 = vmatmul.mubr.f32.gmra.mxu0 %v5754
    %v6080 = vpop.f32.mrf.mxu0
    %v6081 = vadd.f32 0.0, %v6080
    %v6082 = vpop.f32.mrf.mxu0
    %6083 = vmatprep.mubr.f32.mxu0 0.0
    %6084 = vmatmul.mubr.f32.gmra.mxu0 %v5757
    %v6085 = vpop.f32.mrf.mxu0
    %v6086 = vadd.f32 0.0, %v6085
    %v6087 = vpop.f32.mrf.mxu0
    %6088 = vmatprep.mubr.f32.mxu0 0.0
    %6089 = vmatmul.mubr.f32.gmra.mxu0 %v5760
    %v6090 = vpop.f32.mrf.mxu0
    %v6091 = vadd.f32 0.0, %v6090
    %v6092 = vpop.f32.mrf.mxu0
    %6093 = vmatprep.mubr.f32.mxu0 0.0
    %6094 = vmatmul.mubr.f32.gmra.mxu0 %v5763
    %v6095 = vpop.f32.mrf.mxu0
    %v6096 = vadd.f32 0.0, %v6095
    %v6097 = vpop.f32.mrf.mxu0
    %6098 = vmatprep.mubr.f32.mxu0 0.0
    %6099 = vmatmul.mubr.f32.gmra.mxu0 %v5766
    %v6100 = vpop.f32.mrf.mxu0
    %v6101 = vadd.f32 0.0, %v6100
    %v6102 = vpop.f32.mrf.mxu0
    %6103 = vmatprep.mubr.f32.mxu0 0.0
    %6104 = vmatmul.mubr.f32.gmra.mxu0 %v5769
    %v6105 = vpop.f32.mrf.mxu0
    %v6106 = vadd.f32 0.0, %v6105
    %v6107 = vpop.f32.mrf.mxu0
    %6108 = vmatprep.mubr.f32.mxu0 0.0
    %6109 = vmatmul.mubr.f32.gmra.mxu0 %v5772
    %v6110 = vpop.f32.mrf.mxu0
    %v6111 = vadd.f32 0.0, %v6110
    %v6112 = vpop.f32.mrf.mxu0
    %6113 = vmatprep.mubr.f32.mxu0 0.0
    %6114 = vmatmul.mubr.f32.gmra.mxu0 %v5775
    %v6115 = vpop.f32.mrf.mxu0
    %v6116 = vadd.f32 0.0, %v6115
    %v6117 = vpop.f32.mrf.mxu0
    %6118 = vmatprep.mubr.f32.mxu0 0.0
    %6119 = vmatmul.mubr.f32.gmra.mxu0 %v5778
    %v6120 = vpop.f32.mrf.mxu0
    %v6121 = vadd.f32 0.0, %v6120
    %v6122 = vpop.f32.mrf.mxu0
    %6123 = vmatprep.mubr.f32.mxu0 0.0
    %6124 = vmatmul.mubr.f32.gmra.mxu0 %v5781
    %v6125 = vpop.f32.mrf.mxu0
    %v6126 = vadd.f32 0.0, %v6125
    %v6127 = vpop.f32.mrf.mxu0
    %6128 = vmatprep.mubr.f32.mxu0 0.0
    %6129 = vmatmul.mubr.f32.gmra.mxu0 %v5784
    %v6130 = vpop.f32.mrf.mxu0
    %v6131 = vadd.f32 0.0, %v6130
    %v6132 = vpop.f32.mrf.mxu0
    %6133 = vmatprep.mubr.f32.mxu0 0.0
    %6134 = vmatmul.mubr.f32.gmra.mxu0 %v5787
    %v6135 = vpop.f32.mrf.mxu0
    %v6136 = vadd.f32 0.0, %v6135
    %v6137 = vpop.f32.mrf.mxu0
    %6138 = vmatprep.mubr.f32.mxu0 0.0
    %6139 = vmatmul.mubr.f32.gmra.mxu0 %v5790
    %v6140 = vpop.f32.mrf.mxu0
    %v6141 = vadd.f32 0.0, %v6140
    %v6142 = vpop.f32.mrf.mxu0
    %6143 = vmatprep.mubr.f32.mxu0 0.0
    %6144 = vmatmul.mubr.f32.gmra.mxu0 %v5793
    %v6145 = vpop.f32.mrf.mxu0
    %v6146 = vadd.f32 0.0, %v6145
    %v6147 = vpop.f32.mrf.mxu0
    %6148 = vmatprep.mubr.f32.mxu0 0.0
    %6149 = vmatmul.mubr.f32.gmra.mxu0 %v5796
    %v6150 = vpop.f32.mrf.mxu0
    %v6151 = vadd.f32 0.0, %v6150
    %v6152 = vpop.f32.mrf.mxu0
    %6153 = vmatprep.mubr.f32.mxu0 0.0
    %6154 = vmatmul.mubr.f32.gmra.mxu0 %v5799
    %v6155 = vpop.f32.mrf.mxu0
    %v6156 = vadd.f32 0.0, %v6155
    %v6157 = vpop.f32.mrf.mxu0
    %6158 = vmatprep.mubr.f32.mxu0 0.0
    %6159 = vmatmul.mubr.f32.gmra.mxu0 %v5802
    %v6160 = vpop.f32.mrf.mxu0
    %v6161 = vadd.f32 0.0, %v6160
    %v6162 = vpop.f32.mrf.mxu0
    %6163 = vmatprep.mubr.f32.mxu0 0.0
    %6164 = vmatmul.mubr.f32.gmra.mxu0 %v5805
    %v6165 = vpop.f32.mrf.mxu0
    %v6166 = vadd.f32 0.0, %v6165
    %v6167 = vpop.f32.mrf.mxu0
    %6168 = vmatprep.mubr.f32.mxu0 0.0
    %6169 = vmatmul.mubr.f32.gmra.mxu0 %v5808
    %v6170 = vpop.f32.mrf.mxu0
    %v6171 = vadd.f32 0.0, %v6170
    %v6172 = vpop.f32.mrf.mxu0
    %6173 = vmatprep.mubr.f32.mxu0 0.0
    %6174 = vmatmul.mubr.f32.gmra.mxu0 %v5811
    %v6175 = vpop.f32.mrf.mxu0
    %v6176 = vadd.f32 0.0, %v6175
    %v6177 = vpop.f32.mrf.mxu0
    %6178 = vmatprep.mubr.f32.mxu0 0.0
    %6179 = vmatmul.mubr.f32.gmra.mxu0 %v5814
    %v6180 = vpop.f32.mrf.mxu0
    %v6181 = vadd.f32 0.0, %v6180
    %v6182 = vpop.f32.mrf.mxu0
    %6183 = vmatprep.mubr.f32.mxu0 0.0
    %6184 = vmatmul.mubr.f32.gmra.mxu0 %v5817
    %v6185 = vpop.f32.mrf.mxu0
    %v6186 = vadd.f32 0.0, %v6185
    %v6187 = vpop.f32.mrf.mxu0
    %6188 = vmatprep.mubr.f32.mxu0 0.0
    %6189 = vmatmul.mubr.f32.gmra.mxu0 %v5820
    %v6190 = vpop.f32.mrf.mxu0
    %v6191 = vadd.f32 0.0, %v6190
    %v6192 = vpop.f32.mrf.mxu0
    %6193 = vmatprep.mubr.f32.mxu0 0.0
    %6194 = vmatmul.mubr.f32.gmra.mxu0 %v5823
    %v6195 = vpop.f32.mrf.mxu0
    %v6196 = vadd.f32 0.0, %v6195
    %v6197 = vpop.f32.mrf.mxu0
    %6198 = vmatprep.mubr.f32.mxu0 0.0
    %6199 = vmatmul.mubr.f32.gmra.mxu0 %v5826
    %v6200 = vpop.f32.mrf.mxu0
    %v6201 = vadd.f32 0.0, %v6200
    %v6202 = vpop.f32.mrf.mxu0
    %6203 = vmatprep.mubr.f32.mxu0 0.0
    %6204 = vmatmul.mubr.f32.gmra.mxu0 %v5829
    %v6205 = vpop.f32.mrf.mxu0
    %v6206 = vadd.f32 0.0, %v6205
    %v6207 = vpop.f32.mrf.mxu0
    %6208 = vmatprep.mubr.f32.mxu0 0.0
    %6209 = vmatmul.mubr.f32.gmra.mxu0 %v5832
    %v6210 = vpop.f32.mrf.mxu0
    %v6211 = vadd.f32 0.0, %v6210
    %v6212 = vpop.f32.mrf.mxu0
    %6213 = vmatprep.mubr.f32.mxu0 0.0
    %6214 = vmatmul.mubr.f32.gmra.mxu0 %v5835
    %v6215 = vpop.f32.mrf.mxu0
    %v6216 = vadd.f32 0.0, %v6215
    %v6217 = vpop.f32.mrf.mxu0
    %6218 = vmatprep.mubr.f32.mxu0 0.0
    %6219 = vmatmul.mubr.f32.gmra.mxu0 %v5838
    %v6220 = vpop.f32.mrf.mxu0
    %v6221 = vadd.f32 0.0, %v6220
    %v6222 = vpop.f32.mrf.mxu0
    %6223 = vmatprep.mubr.f32.mxu0 0.0
    %6224 = vmatmul.mubr.f32.gmra.mxu0 %v5841
    %v6225 = vpop.f32.mrf.mxu0
    %v6226 = vadd.f32 0.0, %v6225
    %v6227 = vpop.f32.mrf.mxu0
    %6228 = vmatprep.mubr.f32.mxu0 0.0
    %6229 = vmatmul.mubr.f32.gmra.mxu0 %v5844
    %v6230 = vpop.f32.mrf.mxu0
    %v6231 = vadd.f32 0.0, %v6230
    %v6232 = vpop.f32.mrf.mxu0
    %6233 = vdwg.mxu0
    %v6234 = vadd.f32 %v5524, %v5916
    %v6235 = vadd.f32 %v5525, %v5921
    %v6236 = vadd.f32 %v5526, %v5926
    %v6237 = vadd.f32 %v5527, %v5931
    %v6238 = vadd.f32 %v5528, %v5936
    %v6239 = vadd.f32 %v5529, %v5941
    %v6240 = vadd.f32 %v5530, %v5946
    %v6241 = vadd.f32 %v5531, %v5951
    %v6242 = vadd.f32 %v5532, %v5956
    %v6243 = vadd.f32 %v5533, %v5961
    %v6244 = vadd.f32 %v5534, %v5966
    %v6245 = vadd.f32 %v5535, %v5971
    %v6246 = vadd.f32 %v5536, %v5976
    %v6247 = vadd.f32 %v5537, %v5981
    %v6248 = vadd.f32 %v5538, %v5986
    %v6249 = vadd.f32 %v5539, %v5991
    %v6250 = vadd.f32 %v5540, %v5996
    %v6251 = vadd.f32 %v5541, %v6001
    %v6252 = vadd.f32 %v5542, %v6006
    %v6253 = vadd.f32 %v5543, %v6011
    %v6254 = vadd.f32 %v5544, %v6016
    %v6255 = vadd.f32 %v5545, %v6021
    %v6256 = vadd.f32 %v5546, %v6026
    %v6257 = vadd.f32 %v5547, %v6031
    %v6258 = vadd.f32 %v5548, %v6036
    %v6259 = vadd.f32 %v5549, %v6041
    %v6260 = vadd.f32 %v5550, %v6046
    %v6261 = vadd.f32 %v5551, %v6051
    %v6262 = vadd.f32 %v5552, %v6056
    %v6263 = vadd.f32 %v5553, %v6061
    %v6264 = vadd.f32 %v5554, %v6066
    %v6265 = vadd.f32 %v5555, %v6071
    %v6266 = vadd.f32 %v5556, %v6076
    %v6267 = vadd.f32 %v5557, %v6081
    %v6268 = vadd.f32 %v5558, %v6086
    %v6269 = vadd.f32 %v5559, %v6091
    %v6270 = vadd.f32 %v5560, %v6096
    %v6271 = vadd.f32 %v5561, %v6101
    %v6272 = vadd.f32 %v5562, %v6106
    %v6273 = vadd.f32 %v5563, %v6111
    %v6274 = vadd.f32 %v5564, %v6116
    %v6275 = vadd.f32 %v5565, %v6121
    %v6276 = vadd.f32 %v5566, %v6126
    %v6277 = vadd.f32 %v5567, %v6131
    %v6278 = vadd.f32 %v5568, %v6136
    %v6279 = vadd.f32 %v5569, %v6141
    %v6280 = vadd.f32 %v5570, %v6146
    %v6281 = vadd.f32 %v5571, %v6151
    %v6282 = vadd.f32 %v5572, %v6156
    %v6283 = vadd.f32 %v5573, %v6161
    %v6284 = vadd.f32 %v5574, %v6166
    %v6285 = vadd.f32 %v5575, %v6171
    %v6286 = vadd.f32 %v5576, %v6176
    %v6287 = vadd.f32 %v5577, %v6181
    %v6288 = vadd.f32 %v5578, %v6186
    %v6289 = vadd.f32 %v5579, %v6191
    %v6290 = vadd.f32 %v5580, %v6196
    %v6291 = vadd.f32 %v5581, %v6201
    %v6292 = vadd.f32 %v5582, %v6206
    %v6293 = vadd.f32 %v5583, %v6211
    %v6294 = vadd.f32 %v5584, %v6216
    %v6295 = vadd.f32 %v5585, %v6221
    %v6296 = vadd.f32 %v5586, %v6226
    %v6297 = vadd.f32 %v5587, %v6231
    %v6298 = vld [vmem:[%s2] sm:$0x1]
    %v6300 = vlaneseq
    %v6301 = vshrl.u32 %v6300, 7
    %v6302 = vsub.s32 0, %v6301
    %v6303 = vrot.slane %v6298, %v6302
    %v6305 = vadd.f32 %v6234, %v6303
    %v6306 = vadd.f32 %v6235, %v6303
    %v6307 = vadd.f32 %v6236, %v6303
    %v6308 = vadd.f32 %v6237, %v6303
    %v6309 = vadd.f32 %v6238, %v6303
    %v6310 = vadd.f32 %v6239, %v6303
    %v6311 = vadd.f32 %v6240, %v6303
    %v6312 = vadd.f32 %v6241, %v6303
    %v6313 = vadd.f32 %v6242, %v6303
    %v6314 = vadd.f32 %v6243, %v6303
    %v6315 = vadd.f32 %v6244, %v6303
    %v6316 = vadd.f32 %v6245, %v6303
    %v6317 = vadd.f32 %v6246, %v6303
    %v6318 = vadd.f32 %v6247, %v6303
    %v6319 = vadd.f32 %v6248, %v6303
    %v6320 = vadd.f32 %v6249, %v6303
    %v6321 = vadd.f32 %v6250, %v6303
    %v6322 = vadd.f32 %v6251, %v6303
    %v6323 = vadd.f32 %v6252, %v6303
    %v6324 = vadd.f32 %v6253, %v6303
    %v6325 = vadd.f32 %v6254, %v6303
    %v6326 = vadd.f32 %v6255, %v6303
    %v6327 = vadd.f32 %v6256, %v6303
    %v6328 = vadd.f32 %v6257, %v6303
    %v6329 = vadd.f32 %v6258, %v6303
    %v6330 = vadd.f32 %v6259, %v6303
    %v6331 = vadd.f32 %v6260, %v6303
    %v6332 = vadd.f32 %v6261, %v6303
    %v6333 = vadd.f32 %v6262, %v6303
    %v6334 = vadd.f32 %v6263, %v6303
    %v6335 = vadd.f32 %v6264, %v6303
    %v6336 = vadd.f32 %v6265, %v6303
    %v6337 = vadd.f32 %v6266, %v6303
    %v6338 = vadd.f32 %v6267, %v6303
    %v6339 = vadd.f32 %v6268, %v6303
    %v6340 = vadd.f32 %v6269, %v6303
    %v6341 = vadd.f32 %v6270, %v6303
    %v6342 = vadd.f32 %v6271, %v6303
    %v6343 = vadd.f32 %v6272, %v6303
    %v6344 = vadd.f32 %v6273, %v6303
    %v6345 = vadd.f32 %v6274, %v6303
    %v6346 = vadd.f32 %v6275, %v6303
    %v6347 = vadd.f32 %v6276, %v6303
    %v6348 = vadd.f32 %v6277, %v6303
    %v6349 = vadd.f32 %v6278, %v6303
    %v6350 = vadd.f32 %v6279, %v6303
    %v6351 = vadd.f32 %v6280, %v6303
    %v6352 = vadd.f32 %v6281, %v6303
    %v6353 = vadd.f32 %v6282, %v6303
    %v6354 = vadd.f32 %v6283, %v6303
    %v6355 = vadd.f32 %v6284, %v6303
    %v6356 = vadd.f32 %v6285, %v6303
    %v6357 = vadd.f32 %v6286, %v6303
    %v6358 = vadd.f32 %v6287, %v6303
    %v6359 = vadd.f32 %v6288, %v6303
    %v6360 = vadd.f32 %v6289, %v6303
    %v6361 = vadd.f32 %v6290, %v6303
    %v6362 = vadd.f32 %v6291, %v6303
    %v6363 = vadd.f32 %v6292, %v6303
    %v6364 = vadd.f32 %v6293, %v6303
    %v6365 = vadd.f32 %v6294, %v6303
    %v6366 = vadd.f32 %v6295, %v6303
    %v6367 = vadd.f32 %v6296, %v6303
    %v6368 = vadd.f32 %v6297, %v6303
    %v6369 = vmax.f32 %v6305, 0.0
    %v6370 = vmax.f32 %v6306, 0.0
    %v6371 = vmax.f32 %v6307, 0.0
    %v6372 = vmax.f32 %v6308, 0.0
    %v6373 = vmax.f32 %v6309, 0.0
    %v6374 = vmax.f32 %v6310, 0.0
    %v6375 = vmax.f32 %v6311, 0.0
    %v6376 = vmax.f32 %v6312, 0.0
    %v6377 = vmax.f32 %v6313, 0.0
    %v6378 = vmax.f32 %v6314, 0.0
    %v6379 = vmax.f32 %v6315, 0.0
    %v6380 = vmax.f32 %v6316, 0.0
    %v6381 = vmax.f32 %v6317, 0.0
    %v6382 = vmax.f32 %v6318, 0.0
    %v6383 = vmax.f32 %v6319, 0.0
    %v6384 = vmax.f32 %v6320, 0.0
    %v6385 = vmax.f32 %v6321, 0.0
    %v6386 = vmax.f32 %v6322, 0.0
    %v6387 = vmax.f32 %v6323, 0.0
    %v6388 = vmax.f32 %v6324, 0.0
    %v6389 = vmax.f32 %v6325, 0.0
    %v6390 = vmax.f32 %v6326, 0.0
    %v6391 = vmax.f32 %v6327, 0.0
    %v6392 = vmax.f32 %v6328, 0.0
    %v6393 = vmax.f32 %v6329, 0.0
    %v6394 = vmax.f32 %v6330, 0.0
    %v6395 = vmax.f32 %v6331, 0.0
    %v6396 = vmax.f32 %v6332, 0.0
    %v6397 = vmax.f32 %v6333, 0.0
    %v6398 = vmax.f32 %v6334, 0.0
    %v6399 = vmax.f32 %v6335, 0.0
    %v6400 = vmax.f32 %v6336, 0.0
    %v6401 = vmax.f32 %v6337, 0.0
    %v6402 = vmax.f32 %v6338, 0.0
    %v6403 = vmax.f32 %v6339, 0.0
    %v6404 = vmax.f32 %v6340, 0.0
    %v6405 = vmax.f32 %v6341, 0.0
    %v6406 = vmax.f32 %v6342, 0.0
    %v6407 = vmax.f32 %v6343, 0.0
    %v6408 = vmax.f32 %v6344, 0.0
    %v6409 = vmax.f32 %v6345, 0.0
    %v6410 = vmax.f32 %v6346, 0.0
    %v6411 = vmax.f32 %v6347, 0.0
    %v6412 = vmax.f32 %v6348, 0.0
    %v6413 = vmax.f32 %v6349, 0.0
    %v6414 = vmax.f32 %v6350, 0.0
    %v6415 = vmax.f32 %v6351, 0.0
    %v6416 = vmax.f32 %v6352, 0.0
    %v6417 = vmax.f32 %v6353, 0.0
    %v6418 = vmax.f32 %v6354, 0.0
    %v6419 = vmax.f32 %v6355, 0.0
    %v6420 = vmax.f32 %v6356, 0.0
    %v6421 = vmax.f32 %v6357, 0.0
    %v6422 = vmax.f32 %v6358, 0.0
    %v6423 = vmax.f32 %v6359, 0.0
    %v6424 = vmax.f32 %v6360, 0.0
    %v6425 = vmax.f32 %v6361, 0.0
    %v6426 = vmax.f32 %v6362, 0.0
    %v6427 = vmax.f32 %v6363, 0.0
    %v6428 = vmax.f32 %v6364, 0.0
    %v6429 = vmax.f32 %v6365, 0.0
    %v6430 = vmax.f32 %v6366, 0.0
    %v6431 = vmax.f32 %v6367, 0.0
    %v6432 = vmax.f32 %v6368, 0.0
    %v6433 = vmax.f32 %v6369, %v6371
    %v6434 = vmax.f32 %v6370, %v6372
    %v6435 = vmax.f32 %v6373, %v6375
    %v6436 = vmax.f32 %v6374, %v6376
    %v6437 = vmax.f32 %v6377, %v6379
    %v6438 = vmax.f32 %v6378, %v6380
    %v6439 = vmax.f32 %v6381, %v6383
    %v6440 = vmax.f32 %v6382, %v6384
    %v6441 = vmax.f32 %v6385, %v6387
    %v6442 = vmax.f32 %v6386, %v6388
    %v6443 = vmax.f32 %v6389, %v6391
    %v6444 = vmax.f32 %v6390, %v6392
    %v6445 = vmax.f32 %v6393, %v6395
    %v6446 = vmax.f32 %v6394, %v6396
    %v6447 = vmax.f32 %v6397, %v6399
    %v6448 = vmax.f32 %v6398, %v6400
    %v6449 = vmax.f32 %v6401, %v6403
    %v6450 = vmax.f32 %v6402, %v6404
    %v6451 = vmax.f32 %v6405, %v6407
    %v6452 = vmax.f32 %v6406, %v6408
    %v6453 = vmax.f32 %v6409, %v6411
    %v6454 = vmax.f32 %v6410, %v6412
    %v6455 = vmax.f32 %v6413, %v6415
    %v6456 = vmax.f32 %v6414, %v6416
    %v6457 = vmax.f32 %v6417, %v6419
    %v6458 = vmax.f32 %v6418, %v6420
    %v6459 = vmax.f32 %v6421, %v6423
    %v6460 = vmax.f32 %v6422, %v6424
    %v6461 = vmax.f32 %v6425, %v6427
    %v6462 = vmax.f32 %v6426, %v6428
    %v6463 = vmax.f32 %v6429, %v6431
    %v6464 = vmax.f32 %v6430, %v6432
    %vm6465 = vcmask 64512
    %6466 = vst.msk [vmem:[#allocation2] sm:$0xff] %vm6465, %v6433
    %6467 = vst.msk [vmem:[#allocation2 + $0x8] sm:$0xff] %vm6465, %v6434
    %6468 = vst.msk [vmem:[#allocation2 + $0x10] sm:$0xff] %vm6465, %v6435
    %6469 = vst.msk [vmem:[#allocation2 + $0x18] sm:$0xff] %vm6465, %v6436
    %6470 = vst.msk [vmem:[#allocation2 + $0x20] sm:$0xff] %vm6465, %v6437
    %6471 = vst.msk [vmem:[#allocation2 + $0x28] sm:$0xff] %vm6465, %v6438
    %6472 = vst.msk [vmem:[#allocation2 + $0x30] sm:$0xff] %vm6465, %v6439
    %6473 = vst.msk [vmem:[#allocation2 + $0x38] sm:$0xff] %vm6465, %v6440
    %6474 = vst.msk [vmem:[#allocation2 + $0x40] sm:$0xff] %vm6465, %v6441
    %6475 = vst.msk [vmem:[#allocation2 + $0x48] sm:$0xff] %vm6465, %v6442
    %6476 = vst.msk [vmem:[#allocation2 + $0x50] sm:$0xff] %vm6465, %v6443
    %6477 = vst.msk [vmem:[#allocation2 + $0x58] sm:$0xff] %vm6465, %v6444
    %6478 = vst.msk [vmem:[#allocation2 + $0x60] sm:$0xff] %vm6465, %v6445
    %6479 = vst.msk [vmem:[#allocation2 + $0x68] sm:$0xff] %vm6465, %v6446
    %6480 = vst.msk [vmem:[#allocation2 + $0x70] sm:$0xff] %vm6465, %v6447
    %6481 = vst.msk [vmem:[#allocation2 + $0x78] sm:$0xff] %vm6465, %v6448
    %6482 = vst.msk [vmem:[#allocation2 + $0x80] sm:$0xff] %vm6465, %v6449
    %6483 = vst.msk [vmem:[#allocation2 + $0x88] sm:$0xff] %vm6465, %v6450
    %6484 = vst.msk [vmem:[#allocation2 + $0x90] sm:$0xff] %vm6465, %v6451
    %6485 = vst.msk [vmem:[#allocation2 + $0x98] sm:$0xff] %vm6465, %v6452
    %6486 = vst.msk [vmem:[#allocation2 + $0xa0] sm:$0xff] %vm6465, %v6453
    %6487 = vst.msk [vmem:[#allocation2 + $0xa8] sm:$0xff] %vm6465, %v6454
    %6488 = vst.msk [vmem:[#allocation2 + $0xb0] sm:$0xff] %vm6465, %v6455
    %6489 = vst.msk [vmem:[#allocation2 + $0xb8] sm:$0xff] %vm6465, %v6456
    %6490 = vst.msk [vmem:[#allocation2 + $0xc0] sm:$0xff] %vm6465, %v6457
    %6491 = vst.msk [vmem:[#allocation2 + $0xc8] sm:$0xff] %vm6465, %v6458
    %6492 = vst.msk [vmem:[#allocation2 + $0xd0] sm:$0xff] %vm6465, %v6459
    %6493 = vst.msk [vmem:[#allocation2 + $0xd8] sm:$0xff] %vm6465, %v6460
    %6494 = vst.msk [vmem:[#allocation2 + $0xe0] sm:$0xff] %vm6465, %v6461
    %6495 = vst.msk [vmem:[#allocation2 + $0xe8] sm:$0xff] %vm6465, %v6462
    %6496 = vst.msk [vmem:[#allocation2 + $0xf0] sm:$0xff] %vm6465, %v6463
    %6497 = vst.msk [vmem:[#allocation2 + $0xf8] sm:$0xff] %vm6465, %v6464
    %v6498 = vld [vmem:[#allocation2] ss:$2 sm:$0xff]
    %s6499 = scalar_lea.vmem [#allocation2], 16
    %v6500 = vld [vmem:[%s6499] ss:$2 sm:$0xff]
    %s6501 = scalar_lea.vmem [#allocation2], 32
    %v6502 = vld [vmem:[%s6501] ss:$2 sm:$0xff]
    %s6503 = scalar_lea.vmem [#allocation2], 48
    %v6504 = vld [vmem:[%s6503] ss:$2 sm:$0xff]
    %s6505 = scalar_lea.vmem [#allocation2], 64
    %v6506 = vld [vmem:[%s6505] ss:$2 sm:$0xff]
    %s6507 = scalar_lea.vmem [#allocation2], 80
    %v6508 = vld [vmem:[%s6507] ss:$2 sm:$0xff]
    %s6509 = scalar_lea.vmem [#allocation2], 96
    %v6510 = vld [vmem:[%s6509] ss:$2 sm:$0xff]
    %s6511 = scalar_lea.vmem [#allocation2], 112
    %v6512 = vld [vmem:[%s6511] ss:$2 sm:$0xff]
    %s6513 = scalar_lea.vmem [#allocation2], 128
    %v6514 = vld [vmem:[%s6513] ss:$2 sm:$0xff]
    %s6515 = scalar_lea.vmem [#allocation2], 144
    %v6516 = vld [vmem:[%s6515] ss:$2 sm:$0xff]
    %s6517 = scalar_lea.vmem [#allocation2], 160
    %v6518 = vld [vmem:[%s6517] ss:$2 sm:$0xff]
    %s6519 = scalar_lea.vmem [#allocation2], 176
    %v6520 = vld [vmem:[%s6519] ss:$2 sm:$0xff]
    %s6521 = scalar_lea.vmem [#allocation2], 192
    %v6522 = vld [vmem:[%s6521] ss:$2 sm:$0xff]
    %s6523 = scalar_lea.vmem [#allocation2], 208
    %v6524 = vld [vmem:[%s6523] ss:$2 sm:$0xff]
    %s6525 = scalar_lea.vmem [#allocation2], 224
    %v6526 = vld [vmem:[%s6525] ss:$2 sm:$0xff]
    %s6527 = scalar_lea.vmem [#allocation2], 240
    %v6528 = vld [vmem:[%s6527] ss:$2 sm:$0xff]
    %s6529 = scalar_lea.vmem [#allocation2], 1
    %v6530 = vld [vmem:[%s6529] ss:$2 sm:$0xff]
    %s6531 = scalar_lea.vmem [#allocation2], 17
    %v6532 = vld [vmem:[%s6531] ss:$2 sm:$0xff]
    %s6533 = scalar_lea.vmem [#allocation2], 33
    %v6534 = vld [vmem:[%s6533] ss:$2 sm:$0xff]
    %s6535 = scalar_lea.vmem [#allocation2], 49
    %v6536 = vld [vmem:[%s6535] ss:$2 sm:$0xff]
    %s6537 = scalar_lea.vmem [#allocation2], 65
    %v6538 = vld [vmem:[%s6537] ss:$2 sm:$0xff]
    %s6539 = scalar_lea.vmem [#allocation2], 81
    %v6540 = vld [vmem:[%s6539] ss:$2 sm:$0xff]
    %s6541 = scalar_lea.vmem [#allocation2], 97
    %v6542 = vld [vmem:[%s6541] ss:$2 sm:$0xff]
    %s6543 = scalar_lea.vmem [#allocation2], 113
    %v6544 = vld [vmem:[%s6543] ss:$2 sm:$0xff]
    %s6545 = scalar_lea.vmem [#allocation2], 129
    %v6546 = vld [vmem:[%s6545] ss:$2 sm:$0xff]
    %s6547 = scalar_lea.vmem [#allocation2], 145
    %v6548 = vld [vmem:[%s6547] ss:$2 sm:$0xff]
    %s6549 = scalar_lea.vmem [#allocation2], 161
    %v6550 = vld [vmem:[%s6549] ss:$2 sm:$0xff]
    %s6551 = scalar_lea.vmem [#allocation2], 177
    %v6552 = vld [vmem:[%s6551] ss:$2 sm:$0xff]
    %s6553 = scalar_lea.vmem [#allocation2], 193
    %v6554 = vld [vmem:[%s6553] ss:$2 sm:$0xff]
    %s6555 = scalar_lea.vmem [#allocation2], 209
    %v6556 = vld [vmem:[%s6555] ss:$2 sm:$0xff]
    %s6557 = scalar_lea.vmem [#allocation2], 225
    %v6558 = vld [vmem:[%s6557] ss:$2 sm:$0xff]
    %s6559 = scalar_lea.vmem [#allocation2], 241
    %v6560 = vld [vmem:[%s6559] ss:$2 sm:$0xff]
    %v6561 = vmax.f32 %v6498, %v6530
    %v6562 = vmax.f32 %v6500, %v6532
    %v6563 = vmax.f32 %v6502, %v6534
    %v6564 = vmax.f32 %v6504, %v6536
    %v6565 = vmax.f32 %v6506, %v6538
    %v6566 = vmax.f32 %v6508, %v6540
    %v6567 = vmax.f32 %v6510, %v6542
    %v6568 = vmax.f32 %v6512, %v6544
    %v6569 = vmax.f32 %v6514, %v6546
    %v6570 = vmax.f32 %v6516, %v6548
    %v6571 = vmax.f32 %v6518, %v6550
    %v6572 = vmax.f32 %v6520, %v6552
    %v6573 = vmax.f32 %v6522, %v6554
    %v6574 = vmax.f32 %v6524, %v6556
    %v6575 = vmax.f32 %v6526, %v6558
    %v6576 = vmax.f32 %v6528, %v6560
    %6577 = vst.msk [vmem:[#allocation3] sm:$0xff] %vm6465, 0.0
    %6578 = vst.msk [vmem:[#allocation3 + $0x8] sm:$0xff] %vm6465, 0.0
    %6579 = vst.msk [vmem:[#allocation3 + $0x10] sm:$0xff] %vm6465, 0.0
    %6580 = vst.msk [vmem:[#allocation3 + $0x18] sm:$0xff] %vm6465, 0.0
    %6581 = vst.msk [vmem:[#allocation3 + $0x20] sm:$0xff] %vm6465, 0.0
    %6582 = vst.msk [vmem:[#allocation3 + $0x28] sm:$0xff] %vm6465, 0.0
    %6583 = vst.msk [vmem:[#allocation3 + $0x30] sm:$0xff] %vm6465, 0.0
    %6584 = vst.msk [vmem:[#allocation3 + $0x38] sm:$0xff] %vm6465, 0.0
    %6585 = vst.msk [vmem:[#allocation3 + $0x40] sm:$0xff] %vm6465, 0.0
    %6586 = vst.msk [vmem:[#allocation3 + $0x48] sm:$0xff] %vm6465, 0.0
    %6587 = vst.msk [vmem:[#allocation3 + $0x50] sm:$0xff] %vm6465, 0.0
    %6588 = vst.msk [vmem:[#allocation3 + $0x58] sm:$0xff] %vm6465, 0.0
    %6589 = vst.msk [vmem:[#allocation3 + $0x60] sm:$0xff] %vm6465, 0.0
    %6590 = vst.msk [vmem:[#allocation3 + $0x68] sm:$0xff] %vm6465, 0.0
    %6591 = vst.msk [vmem:[#allocation3 + $0x70] sm:$0xff] %vm6465, 0.0
    %6592 = vst.msk [vmem:[#allocation3 + $0x78] sm:$0xff] %vm6465, 0.0
    %6593 = vst.msk [vmem:[#allocation3 + $0x80] sm:$0xff] %vm6465, 0.0
    %6594 = vst.msk [vmem:[#allocation3 + $0x88] sm:$0xff] %vm6465, 0.0
    %6595 = vst.msk [vmem:[#allocation3 + $0x90] sm:$0xff] %vm6465, 0.0
    %6596 = vst.msk [vmem:[#allocation3 + $0x98] sm:$0xff] %vm6465, 0.0
    %6597 = vst.msk [vmem:[#allocation3 + $0xa0] sm:$0xff] %vm6465, 0.0
    %6598 = vst.msk [vmem:[#allocation3 + $0xa8] sm:$0xff] %vm6465, 0.0
    %6599 = vst.msk [vmem:[#allocation3 + $0xb0] sm:$0xff] %vm6465, 0.0
    %6600 = vst.msk [vmem:[#allocation3 + $0xb8] sm:$0xff] %vm6465, 0.0
    %6601 = vst.msk [vmem:[#allocation3 + $0xc0] sm:$0xff] %vm6465, 0.0
    %6602 = vst.msk [vmem:[#allocation3 + $0xc8] sm:$0xff] %vm6465, 0.0
    %6603 = vst.msk [vmem:[#allocation3 + $0xd0] sm:$0xff] %vm6465, 0.0
    %6604 = vst.msk [vmem:[#allocation3 + $0xd8] sm:$0xff] %vm6465, 0.0
    %6605 = vst.msk [vmem:[#allocation3 + $0xe0] sm:$0xff] %vm6465, 0.0
    %6606 = vst.msk [vmem:[#allocation3 + $0xe8] sm:$0xff] %vm6465, 0.0
    %6607 = vst.msk [vmem:[#allocation3 + $0xf0] sm:$0xff] %vm6465, 0.0
    %6608 = vst.msk [vmem:[#allocation3 + $0xf8] sm:$0xff] %vm6465, 0.0
    %6609 = vst.msk [vmem:[#allocation3 + $0x100] sm:$0xff] %vm6465, 0.0
    %6610 = vst.msk [vmem:[#allocation3 + $0x108] sm:$0xff] %vm6465, 0.0
    %6611 = vst.msk [vmem:[#allocation3 + $0x110] sm:$0xff] %vm6465, 0.0
    %6612 = vst.msk [vmem:[#allocation3 + $0x118] sm:$0xff] %vm6465, 0.0
    %6613 = vst.msk [vmem:[#allocation3 + $0x120] sm:$0xff] %vm6465, 0.0
    %6614 = vst.msk [vmem:[#allocation3 + $0x128] sm:$0xff] %vm6465, 0.0
    %6615 = vst.msk [vmem:[#allocation3 + $0x130] sm:$0xff] %vm6465, 0.0
    %6616 = vst.msk [vmem:[#allocation3 + $0x138] sm:$0xff] %vm6465, 0.0
    %6617 = vst.msk [vmem:[#allocation3 + $0x140] sm:$0xff] %vm6465, 0.0
    %6618 = vst.msk [vmem:[#allocation3 + $0x148] sm:$0xff] %vm6465, 0.0
    %6619 = vst.msk [vmem:[#allocation3 + $0x150] sm:$0xff] %vm6465, 0.0
    %6620 = vst.msk [vmem:[#allocation3 + $0x158] sm:$0xff] %vm6465, 0.0
    %6621 = vst.msk [vmem:[#allocation3 + $0x160] sm:$0xff] %vm6465, 0.0
    %6622 = vst.msk [vmem:[#allocation3 + $0x168] sm:$0xff] %vm6465, 0.0
    %6623 = vst.msk [vmem:[#allocation3 + $0x170] sm:$0xff] %vm6465, 0.0
    %6624 = vst.msk [vmem:[#allocation3 + $0x178] sm:$0xff] %vm6465, 0.0
    %6625 = vst.msk [vmem:[#allocation3 + $0x180] sm:$0xff] %vm6465, 0.0
    %6626 = vst.msk [vmem:[#allocation3 + $0x188] sm:$0xff] %vm6465, 0.0
    %6627 = vst.msk [vmem:[#allocation3 + $0x190] sm:$0xff] %vm6465, 0.0
    %6628 = vst.msk [vmem:[#allocation3 + $0x198] sm:$0xff] %vm6465, 0.0
    %6629 = vst.msk [vmem:[#allocation3 + $0x1a0] sm:$0xff] %vm6465, 0.0
    %6630 = vst.msk [vmem:[#allocation3 + $0x1a8] sm:$0xff] %vm6465, 0.0
    %6631 = vst.msk [vmem:[#allocation3 + $0x1b0] sm:$0xff] %vm6465, 0.0
    %6632 = vst.msk [vmem:[#allocation3 + $0x1b8] sm:$0xff] %vm6465, 0.0
    %6633 = vst.msk [vmem:[#allocation3 + $0x1c0] sm:$0xff] %vm6465, 0.0
    %6634 = vst.msk [vmem:[#allocation3 + $0x1c8] sm:$0xff] %vm6465, 0.0
    %6635 = vst.msk [vmem:[#allocation3 + $0x1d0] sm:$0xff] %vm6465, 0.0
    %6636 = vst.msk [vmem:[#allocation3 + $0x1d8] sm:$0xff] %vm6465, 0.0
    %s6637 = scalar_lea.vmem [#allocation3], 24
    %6638 = vst.msk [vmem:[%s6637 + $0x8] sm:$0xff] %vm6465, %v6561
    %6639 = vst.msk [vmem:[%s6637 + $0x20] sm:$0xff] %vm6465, %v6562
    %6640 = vst.msk [vmem:[%s6637 + $0x38] sm:$0xff] %vm6465, %v6563
    %6641 = vst.msk [vmem:[%s6637 + $0x50] sm:$0xff] %vm6465, %v6564
    %6642 = vst.msk [vmem:[%s6637 + $0x68] sm:$0xff] %vm6465, %v6565
    %6643 = vst.msk [vmem:[%s6637 + $0x80] sm:$0xff] %vm6465, %v6566
    %6644 = vst.msk [vmem:[%s6637 + $0x98] sm:$0xff] %vm6465, %v6567
    %6645 = vst.msk [vmem:[%s6637 + $0xb0] sm:$0xff] %vm6465, %v6568
    %6646 = vst.msk [vmem:[%s6637 + $0xf8] sm:$0xff] %vm6465, %v6569
    %6647 = vst.msk [vmem:[%s6637 + $0x110] sm:$0xff] %vm6465, %v6570
    %6648 = vst.msk [vmem:[%s6637 + $0x128] sm:$0xff] %vm6465, %v6571
    %6649 = vst.msk [vmem:[%s6637 + $0x140] sm:$0xff] %vm6465, %v6572
    %6650 = vst.msk [vmem:[%s6637 + $0x158] sm:$0xff] %vm6465, %v6573
    %6651 = vst.msk [vmem:[%s6637 + $0x170] sm:$0xff] %vm6465, %v6574
    %6652 = vst.msk [vmem:[%s6637 + $0x188] sm:$0xff] %vm6465, %v6575
    %6653 = vst.msk [vmem:[%s6637 + $0x1a0] sm:$0xff] %vm6465, %v6576
    %v6654 = vld [vmem:[#allocation3 + $0x7] sm:$0xff]
    %v6655 = vld [vmem:[#allocation3 + $0x1f] sm:$0xff]
    %v6656 = vld [vmem:[#allocation3 + $0x37] sm:$0xff]
    %v6657 = vld [vmem:[#allocation3 + $0x4f] sm:$0xff]
    %v6658 = vld [vmem:[#allocation3 + $0x67] sm:$0xff]
    %v6659 = vld [vmem:[#allocation3 + $0x7f] sm:$0xff]
    %v6660 = vld [vmem:[#allocation3 + $0x97] sm:$0xff]
    %v6661 = vld [vmem:[#allocation3 + $0xaf] sm:$0xff]
    %v6662 = vld [vmem:[#allocation3 + $0xf7] sm:$0xff]
    %v6663 = vld [vmem:[#allocation3 + $0x10f] sm:$0xff]
    %v6664 = vld [vmem:[#allocation3 + $0x127] sm:$0xff]
    %v6665 = vld [vmem:[#allocation3 + $0x13f] sm:$0xff]
    %v6666 = vld [vmem:[#allocation3 + $0x157] sm:$0xff]
    %v6667 = vld [vmem:[#allocation3 + $0x16f] sm:$0xff]
    %v6668 = vld [vmem:[#allocation3 + $0x187] sm:$0xff]
    %v6669 = vld [vmem:[#allocation3 + $0x19f] sm:$0xff]
    %v6670 = vld [vmem:[%s3] sm:$0xff]
    %v6671 = vld [vmem:[#allocation3 + $0x8] sm:$0xff]
    %v6672 = vld [vmem:[#allocation3 + $0x20] sm:$0xff]
    %v6673 = vld [vmem:[#allocation3 + $0x38] sm:$0xff]
    %v6674 = vld [vmem:[#allocation3 + $0x50] sm:$0xff]
    %v6675 = vld [vmem:[#allocation3 + $0x68] sm:$0xff]
    %v6676 = vld [vmem:[#allocation3 + $0x80] sm:$0xff]
    %v6677 = vld [vmem:[#allocation3 + $0x98] sm:$0xff]
    %v6678 = vld [vmem:[#allocation3 + $0xb0] sm:$0xff]
    %v6679 = vld [vmem:[#allocation3 + $0xf8] sm:$0xff]
    %v6680 = vld [vmem:[#allocation3 + $0x110] sm:$0xff]
    %v6681 = vld [vmem:[#allocation3 + $0x128] sm:$0xff]
    %v6682 = vld [vmem:[#allocation3 + $0x140] sm:$0xff]
    %v6683 = vld [vmem:[#allocation3 + $0x158] sm:$0xff]
    %v6684 = vld [vmem:[#allocation3 + $0x170] sm:$0xff]
    %v6685 = vld [vmem:[#allocation3 + $0x188] sm:$0xff]
    %v6686 = vld [vmem:[#allocation3 + $0x1a0] sm:$0xff]
    %s6687 = scalar_lea.vmem %s3, 8
    %v6688 = vld [vmem:[%s6687] sm:$0xff]
    %v6690 = vsel %vm6465, %v6671, 0
    %v6693 = vsel %vm6465, %v6672, 0
    %v6696 = vsel %vm6465, %v6673, 0
    %v6699 = vsel %vm6465, %v6674, 0
    %v6702 = vsel %vm6465, %v6675, 0
    %v6705 = vsel %vm6465, %v6676, 0
    %v6708 = vsel %vm6465, %v6677, 0
    %v6711 = vsel %vm6465, %v6678, 0
    %v6714 = vsel %vm6465, %v6679, 0
    %v6717 = vsel %vm6465, %v6680, 0
    %v6720 = vsel %vm6465, %v6681, 0
    %v6723 = vsel %vm6465, %v6682, 0
    %v6726 = vsel %vm6465, %v6683, 0
    %v6729 = vsel %vm6465, %v6684, 0
    %v6732 = vsel %vm6465, %v6685, 0
    %v6735 = vsel %vm6465, %v6686, 0
    %6737 = vmatprep.subr.mxu0 0.0
    %6738 = vmatpush1.msra.mxu0 0.0
    %6739 = vmatprep.subr.mxu0 0.0
    %6740 = vmatpush1.msra.mxu0 0.0
    %6741 = vmatprep.subr.mxu0 0.0
    %6742 = vmatpush1.msra.mxu0 0.0
    %6743 = vmatprep.subr.mxu0 0.0
    %6744 = vmatpush1.msra.mxu0 0.0
    %6745 = vmatprep.subr.mxu0 0.0
    %6746 = vmatpush1.msra.mxu0 0.0
    %6747 = vmatprep.subr.mxu0 0.0
    %6748 = vmatpush1.msra.mxu0 0.0
    %6749 = vmatprep.subr.mxu0 0.0
    %6750 = vmatpush1.msra.mxu0 0.0
    %6751 = vmatprep.subr.mxu0 0.0
    %6752 = vmatpush1.msra.mxu0 0.0
    %6753 = vmatprep.subr.mxu0 0.0
    %6754 = vmatpush1.msra.mxu0 0.0
    %6755 = vmatprep.subr.mxu0 0.0
    %6756 = vmatpush1.msra.mxu0 0.0
    %6757 = vmatprep.subr.mxu0 0.0
    %6758 = vmatpush1.msra.mxu0 0.0
    %6759 = vmatprep.subr.mxu0 0.0
    %6760 = vmatpush1.msra.mxu0 0.0
    %6761 = vmatprep.subr.mxu0 0.0
    %6762 = vmatpush1.msra.mxu0 0.0
    %6763 = vmatprep.subr.mxu0 0.0
    %6764 = vmatpush1.msra.mxu0 0.0
    %6765 = vmatprep.subr.mxu0 0.0
    %6766 = vmatpush1.msra.mxu0 0.0
    %6767 = vmatprep.subr.mxu0 0.0
    %6768 = vmatpush1.msra.mxu0 %v6688
    %6769 = vmatprep.subr.mxu0 0.0
    %6770 = vmatpush2.msra.mxu0 0.0
    %6771 = vmatprep.subr.mxu0 0.0
    %6772 = vmatpush2.msra.mxu0 0.0
    %6773 = vmatprep.subr.mxu0 0.0
    %6774 = vmatpush2.msra.mxu0 0.0
    %6775 = vmatprep.subr.mxu0 0.0
    %6776 = vmatpush2.msra.mxu0 0.0
    %6777 = vmatprep.subr.mxu0 0.0
    %6778 = vmatpush2.msra.mxu0 0.0
    %6779 = vmatprep.subr.mxu0 0.0
    %6780 = vmatpush2.msra.mxu0 0.0
    %6781 = vmatprep.subr.mxu0 0.0
    %6782 = vmatpush2.msra.mxu0 0.0
    %6783 = vmatprep.subr.mxu0 0.0
    %6784 = vmatpush2.msra.mxu0 0.0
    %6785 = vmatprep.subr.mxu0 0.0
    %6786 = vmatpush2.msra.mxu0 0.0
    %6787 = vmatprep.subr.mxu0 0.0
    %6788 = vmatpush2.msra.mxu0 0.0
    %6789 = vmatprep.subr.mxu0 0.0
    %6790 = vmatpush2.msra.mxu0 0.0
    %6791 = vmatprep.subr.mxu0 0.0
    %6792 = vmatpush2.msra.mxu0 0.0
    %6793 = vmatprep.subr.mxu0 0.0
    %6794 = vmatpush2.msra.mxu0 0.0
    %6795 = vmatprep.subr.mxu0 0.0
    %6796 = vmatpush2.msra.mxu0 0.0
    %6797 = vmatprep.subr.mxu0 0.0
    %6798 = vmatpush2.msra.mxu0 0.0
    %6799 = vmatprep.subr.mxu0 0.0
    %6800 = vmatpush2.msra.mxu0 0.0
    %6801 = vmatprep.mubr.f32.mxu0 0.0
    %6802 = vmatmul.mubr.f32.gmra.mxu0 %v6690
    %v6803 = vpop.f32.mrf.mxu0
    %v6804 = vadd.f32 0.0, %v6803
    %v6805 = vpop.f32.mrf.mxu0
    %6806 = vmatprep.mubr.f32.mxu0 0.0
    %6807 = vmatmul.mubr.f32.gmra.mxu0 %v6693
    %v6808 = vpop.f32.mrf.mxu0
    %v6809 = vadd.f32 0.0, %v6808
    %v6810 = vpop.f32.mrf.mxu0
    %6811 = vmatprep.mubr.f32.mxu0 0.0
    %6812 = vmatmul.mubr.f32.gmra.mxu0 %v6696
    %v6813 = vpop.f32.mrf.mxu0
    %v6814 = vadd.f32 0.0, %v6813
    %v6815 = vpop.f32.mrf.mxu0
    %6816 = vmatprep.mubr.f32.mxu0 0.0
    %6817 = vmatmul.mubr.f32.gmra.mxu0 %v6699
    %v6818 = vpop.f32.mrf.mxu0
    %v6819 = vadd.f32 0.0, %v6818
    %v6820 = vpop.f32.mrf.mxu0
    %6821 = vmatprep.mubr.f32.mxu0 0.0
    %6822 = vmatmul.mubr.f32.gmra.mxu0 %v6702
    %v6823 = vpop.f32.mrf.mxu0
    %v6824 = vadd.f32 0.0, %v6823
    %v6825 = vpop.f32.mrf.mxu0
    %6826 = vmatprep.mubr.f32.mxu0 0.0
    %6827 = vmatmul.mubr.f32.gmra.mxu0 %v6705
    %v6828 = vpop.f32.mrf.mxu0
    %v6829 = vadd.f32 0.0, %v6828
    %v6830 = vpop.f32.mrf.mxu0
    %6831 = vmatprep.mubr.f32.mxu0 0.0
    %6832 = vmatmul.mubr.f32.gmra.mxu0 %v6708
    %v6833 = vpop.f32.mrf.mxu0
    %v6834 = vadd.f32 0.0, %v6833
    %v6835 = vpop.f32.mrf.mxu0
    %6836 = vmatprep.mubr.f32.mxu0 0.0
    %6837 = vmatmul.mubr.f32.gmra.mxu0 %v6711
    %v6838 = vpop.f32.mrf.mxu0
    %v6839 = vadd.f32 0.0, %v6838
    %v6840 = vpop.f32.mrf.mxu0
    %6841 = vmatprep.mubr.f32.mxu0 0.0
    %6842 = vmatmul.mubr.f32.gmra.mxu0 %v6714
    %v6843 = vpop.f32.mrf.mxu0
    %v6844 = vadd.f32 0.0, %v6843
    %v6845 = vpop.f32.mrf.mxu0
    %6846 = vmatprep.mubr.f32.mxu0 0.0
    %6847 = vmatmul.mubr.f32.gmra.mxu0 %v6717
    %v6848 = vpop.f32.mrf.mxu0
    %v6849 = vadd.f32 0.0, %v6848
    %v6850 = vpop.f32.mrf.mxu0
    %6851 = vmatprep.mubr.f32.mxu0 0.0
    %6852 = vmatmul.mubr.f32.gmra.mxu0 %v6720
    %v6853 = vpop.f32.mrf.mxu0
    %v6854 = vadd.f32 0.0, %v6853
    %v6855 = vpop.f32.mrf.mxu0
    %6856 = vmatprep.mubr.f32.mxu0 0.0
    %6857 = vmatmul.mubr.f32.gmra.mxu0 %v6723
    %v6858 = vpop.f32.mrf.mxu0
    %v6859 = vadd.f32 0.0, %v6858
    %v6860 = vpop.f32.mrf.mxu0
    %6861 = vmatprep.mubr.f32.mxu0 0.0
    %6862 = vmatmul.mubr.f32.gmra.mxu0 %v6726
    %v6863 = vpop.f32.mrf.mxu0
    %v6864 = vadd.f32 0.0, %v6863
    %v6865 = vpop.f32.mrf.mxu0
    %6866 = vmatprep.mubr.f32.mxu0 0.0
    %6867 = vmatmul.mubr.f32.gmra.mxu0 %v6729
    %v6868 = vpop.f32.mrf.mxu0
    %v6869 = vadd.f32 0.0, %v6868
    %v6870 = vpop.f32.mrf.mxu0
    %6871 = vmatprep.mubr.f32.mxu0 0.0
    %6872 = vmatmul.mubr.f32.gmra.mxu0 %v6732
    %v6873 = vpop.f32.mrf.mxu0
    %v6874 = vadd.f32 0.0, %v6873
    %v6875 = vpop.f32.mrf.mxu0
    %6876 = vmatprep.mubr.f32.mxu0 0.0
    %6877 = vmatmul.mubr.f32.gmra.mxu0 %v6735
    %v6878 = vpop.f32.mrf.mxu0
    %v6879 = vadd.f32 0.0, %v6878
    %v6880 = vpop.f32.mrf.mxu0
    %6881 = vdwg.mxu0
    %v6883 = vsel %vm6465, %v6654, 0
    %v6886 = vsel %vm6465, %v6655, 0
    %v6889 = vsel %vm6465, %v6656, 0
    %v6892 = vsel %vm6465, %v6657, 0
    %v6895 = vsel %vm6465, %v6658, 0
    %v6898 = vsel %vm6465, %v6659, 0
    %v6901 = vsel %vm6465, %v6660, 0
    %v6904 = vsel %vm6465, %v6661, 0
    %v6907 = vsel %vm6465, %v6662, 0
    %v6910 = vsel %vm6465, %v6663, 0
    %v6913 = vsel %vm6465, %v6664, 0
    %v6916 = vsel %vm6465, %v6665, 0
    %v6919 = vsel %vm6465, %v6666, 0
    %v6922 = vsel %vm6465, %v6667, 0
    %v6925 = vsel %vm6465, %v6668, 0
    %v6928 = vsel %vm6465, %v6669, 0
    %6930 = vmatprep.subr.mxu0 0.0
    %6931 = vmatpush1.msra.mxu0 0.0
    %6932 = vmatprep.subr.mxu0 0.0
    %6933 = vmatpush1.msra.mxu0 0.0
    %6934 = vmatprep.subr.mxu0 0.0
    %6935 = vmatpush1.msra.mxu0 0.0
    %6936 = vmatprep.subr.mxu0 0.0
    %6937 = vmatpush1.msra.mxu0 0.0
    %6938 = vmatprep.subr.mxu0 0.0
    %6939 = vmatpush1.msra.mxu0 0.0
    %6940 = vmatprep.subr.mxu0 0.0
    %6941 = vmatpush1.msra.mxu0 0.0
    %6942 = vmatprep.subr.mxu0 0.0
    %6943 = vmatpush1.msra.mxu0 0.0
    %6944 = vmatprep.subr.mxu0 0.0
    %6945 = vmatpush1.msra.mxu0 0.0
    %6946 = vmatprep.subr.mxu0 0.0
    %6947 = vmatpush1.msra.mxu0 0.0
    %6948 = vmatprep.subr.mxu0 0.0
    %6949 = vmatpush1.msra.mxu0 0.0
    %6950 = vmatprep.subr.mxu0 0.0
    %6951 = vmatpush1.msra.mxu0 0.0
    %6952 = vmatprep.subr.mxu0 0.0
    %6953 = vmatpush1.msra.mxu0 0.0
    %6954 = vmatprep.subr.mxu0 0.0
    %6955 = vmatpush1.msra.mxu0 0.0
    %6956 = vmatprep.subr.mxu0 0.0
    %6957 = vmatpush1.msra.mxu0 0.0
    %6958 = vmatprep.subr.mxu0 0.0
    %6959 = vmatpush1.msra.mxu0 0.0
    %6960 = vmatprep.subr.mxu0 0.0
    %6961 = vmatpush1.msra.mxu0 %v6670
    %6962 = vmatprep.subr.mxu0 0.0
    %6963 = vmatpush2.msra.mxu0 0.0
    %6964 = vmatprep.subr.mxu0 0.0
    %6965 = vmatpush2.msra.mxu0 0.0
    %6966 = vmatprep.subr.mxu0 0.0
    %6967 = vmatpush2.msra.mxu0 0.0
    %6968 = vmatprep.subr.mxu0 0.0
    %6969 = vmatpush2.msra.mxu0 0.0
    %6970 = vmatprep.subr.mxu0 0.0
    %6971 = vmatpush2.msra.mxu0 0.0
    %6972 = vmatprep.subr.mxu0 0.0
    %6973 = vmatpush2.msra.mxu0 0.0
    %6974 = vmatprep.subr.mxu0 0.0
    %6975 = vmatpush2.msra.mxu0 0.0
    %6976 = vmatprep.subr.mxu0 0.0
    %6977 = vmatpush2.msra.mxu0 0.0
    %6978 = vmatprep.subr.mxu0 0.0
    %6979 = vmatpush2.msra.mxu0 0.0
    %6980 = vmatprep.subr.mxu0 0.0
    %6981 = vmatpush2.msra.mxu0 0.0
    %6982 = vmatprep.subr.mxu0 0.0
    %6983 = vmatpush2.msra.mxu0 0.0
    %6984 = vmatprep.subr.mxu0 0.0
    %6985 = vmatpush2.msra.mxu0 0.0
    %6986 = vmatprep.subr.mxu0 0.0
    %6987 = vmatpush2.msra.mxu0 0.0
    %6988 = vmatprep.subr.mxu0 0.0
    %6989 = vmatpush2.msra.mxu0 0.0
    %6990 = vmatprep.subr.mxu0 0.0
    %6991 = vmatpush2.msra.mxu0 0.0
    %6992 = vmatprep.subr.mxu0 0.0
    %6993 = vmatpush2.msra.mxu0 0.0
    %6994 = vmatprep.mubr.f32.mxu0 0.0
    %6995 = vmatmul.mubr.f32.gmra.mxu0 %v6883
    %v6996 = vpop.f32.mrf.mxu0
    %v6997 = vadd.f32 %v6804, %v6996
    %v6998 = vpop.f32.mrf.mxu0
    %6999 = vmatprep.mubr.f32.mxu0 0.0
    %7000 = vmatmul.mubr.f32.gmra.mxu0 %v6886
    %v7001 = vpop.f32.mrf.mxu0
    %v7002 = vadd.f32 %v6809, %v7001
    %v7003 = vpop.f32.mrf.mxu0
    %7004 = vmatprep.mubr.f32.mxu0 0.0
    %7005 = vmatmul.mubr.f32.gmra.mxu0 %v6889
    %v7006 = vpop.f32.mrf.mxu0
    %v7007 = vadd.f32 %v6814, %v7006
    %v7008 = vpop.f32.mrf.mxu0
    %7009 = vmatprep.mubr.f32.mxu0 0.0
    %7010 = vmatmul.mubr.f32.gmra.mxu0 %v6892
    %v7011 = vpop.f32.mrf.mxu0
    %v7012 = vadd.f32 %v6819, %v7011
    %v7013 = vpop.f32.mrf.mxu0
    %7014 = vmatprep.mubr.f32.mxu0 0.0
    %7015 = vmatmul.mubr.f32.gmra.mxu0 %v6895
    %v7016 = vpop.f32.mrf.mxu0
    %v7017 = vadd.f32 %v6824, %v7016
    %v7018 = vpop.f32.mrf.mxu0
    %7019 = vmatprep.mubr.f32.mxu0 0.0
    %7020 = vmatmul.mubr.f32.gmra.mxu0 %v6898
    %v7021 = vpop.f32.mrf.mxu0
    %v7022 = vadd.f32 %v6829, %v7021
    %v7023 = vpop.f32.mrf.mxu0
    %7024 = vmatprep.mubr.f32.mxu0 0.0
    %7025 = vmatmul.mubr.f32.gmra.mxu0 %v6901
    %v7026 = vpop.f32.mrf.mxu0
    %v7027 = vadd.f32 %v6834, %v7026
    %v7028 = vpop.f32.mrf.mxu0
    %7029 = vmatprep.mubr.f32.mxu0 0.0
    %7030 = vmatmul.mubr.f32.gmra.mxu0 %v6904
    %v7031 = vpop.f32.mrf.mxu0
    %v7032 = vadd.f32 %v6839, %v7031
    %v7033 = vpop.f32.mrf.mxu0
    %7034 = vmatprep.mubr.f32.mxu0 0.0
    %7035 = vmatmul.mubr.f32.gmra.mxu0 %v6907
    %v7036 = vpop.f32.mrf.mxu0
    %v7037 = vadd.f32 %v6844, %v7036
    %v7038 = vpop.f32.mrf.mxu0
    %7039 = vmatprep.mubr.f32.mxu0 0.0
    %7040 = vmatmul.mubr.f32.gmra.mxu0 %v6910
    %v7041 = vpop.f32.mrf.mxu0
    %v7042 = vadd.f32 %v6849, %v7041
    %v7043 = vpop.f32.mrf.mxu0
    %7044 = vmatprep.mubr.f32.mxu0 0.0
    %7045 = vmatmul.mubr.f32.gmra.mxu0 %v6913
    %v7046 = vpop.f32.mrf.mxu0
    %v7047 = vadd.f32 %v6854, %v7046
    %v7048 = vpop.f32.mrf.mxu0
    %7049 = vmatprep.mubr.f32.mxu0 0.0
    %7050 = vmatmul.mubr.f32.gmra.mxu0 %v6916
    %v7051 = vpop.f32.mrf.mxu0
    %v7052 = vadd.f32 %v6859, %v7051
    %v7053 = vpop.f32.mrf.mxu0
    %7054 = vmatprep.mubr.f32.mxu0 0.0
    %7055 = vmatmul.mubr.f32.gmra.mxu0 %v6919
    %v7056 = vpop.f32.mrf.mxu0
    %v7057 = vadd.f32 %v6864, %v7056
    %v7058 = vpop.f32.mrf.mxu0
    %7059 = vmatprep.mubr.f32.mxu0 0.0
    %7060 = vmatmul.mubr.f32.gmra.mxu0 %v6922
    %v7061 = vpop.f32.mrf.mxu0
    %v7062 = vadd.f32 %v6869, %v7061
    %v7063 = vpop.f32.mrf.mxu0
    %7064 = vmatprep.mubr.f32.mxu0 0.0
    %7065 = vmatmul.mubr.f32.gmra.mxu0 %v6925
    %v7066 = vpop.f32.mrf.mxu0
    %v7067 = vadd.f32 %v6874, %v7066
    %v7068 = vpop.f32.mrf.mxu0
    %7069 = vmatprep.mubr.f32.mxu0 0.0
    %7070 = vmatmul.mubr.f32.gmra.mxu0 %v6928
    %v7071 = vpop.f32.mrf.mxu0
    %v7072 = vadd.f32 %v6879, %v7071
    %v7073 = vpop.f32.mrf.mxu0
    %7074 = vdwg.mxu0
    %v7075 = vld [vmem:[#allocation3 + $0x9] sm:$0xff]
    %v7076 = vld [vmem:[#allocation3 + $0x21] sm:$0xff]
    %v7077 = vld [vmem:[#allocation3 + $0x39] sm:$0xff]
    %v7078 = vld [vmem:[#allocation3 + $0x51] sm:$0xff]
    %v7079 = vld [vmem:[#allocation3 + $0x69] sm:$0xff]
    %v7080 = vld [vmem:[#allocation3 + $0x81] sm:$0xff]
    %v7081 = vld [vmem:[#allocation3 + $0x99] sm:$0xff]
    %v7082 = vld [vmem:[#allocation3 + $0xb1] sm:$0xff]
    %v7083 = vld [vmem:[#allocation3 + $0xf9] sm:$0xff]
    %v7084 = vld [vmem:[#allocation3 + $0x111] sm:$0xff]
    %v7085 = vld [vmem:[#allocation3 + $0x129] sm:$0xff]
    %v7086 = vld [vmem:[#allocation3 + $0x141] sm:$0xff]
    %v7087 = vld [vmem:[#allocation3 + $0x159] sm:$0xff]
    %v7088 = vld [vmem:[#allocation3 + $0x171] sm:$0xff]
    %v7089 = vld [vmem:[#allocation3 + $0x189] sm:$0xff]
    %v7090 = vld [vmem:[#allocation3 + $0x1a1] sm:$0xff]
    %s7091 = scalar_lea.vmem %s3, 16
    %v7092 = vld [vmem:[%s7091] sm:$0xff]
    %v7094 = vsel %vm6465, %v7075, 0
    %v7097 = vsel %vm6465, %v7076, 0
    %v7100 = vsel %vm6465, %v7077, 0
    %v7103 = vsel %vm6465, %v7078, 0
    %v7106 = vsel %vm6465, %v7079, 0
    %v7109 = vsel %vm6465, %v7080, 0
    %v7112 = vsel %vm6465, %v7081, 0
    %v7115 = vsel %vm6465, %v7082, 0
    %v7118 = vsel %vm6465, %v7083, 0
    %v7121 = vsel %vm6465, %v7084, 0
    %v7124 = vsel %vm6465, %v7085, 0
    %v7127 = vsel %vm6465, %v7086, 0
    %v7130 = vsel %vm6465, %v7087, 0
    %v7133 = vsel %vm6465, %v7088, 0
    %v7136 = vsel %vm6465, %v7089, 0
    %v7139 = vsel %vm6465, %v7090, 0
    %7141 = vmatprep.subr.mxu0 0.0
    %7142 = vmatpush1.msra.mxu0 0.0
    %7143 = vmatprep.subr.mxu0 0.0
    %7144 = vmatpush1.msra.mxu0 0.0
    %7145 = vmatprep.subr.mxu0 0.0
    %7146 = vmatpush1.msra.mxu0 0.0
    %7147 = vmatprep.subr.mxu0 0.0
    %7148 = vmatpush1.msra.mxu0 0.0
    %7149 = vmatprep.subr.mxu0 0.0
    %7150 = vmatpush1.msra.mxu0 0.0
    %7151 = vmatprep.subr.mxu0 0.0
    %7152 = vmatpush1.msra.mxu0 0.0
    %7153 = vmatprep.subr.mxu0 0.0
    %7154 = vmatpush1.msra.mxu0 0.0
    %7155 = vmatprep.subr.mxu0 0.0
    %7156 = vmatpush1.msra.mxu0 0.0
    %7157 = vmatprep.subr.mxu0 0.0
    %7158 = vmatpush1.msra.mxu0 0.0
    %7159 = vmatprep.subr.mxu0 0.0
    %7160 = vmatpush1.msra.mxu0 0.0
    %7161 = vmatprep.subr.mxu0 0.0
    %7162 = vmatpush1.msra.mxu0 0.0
    %7163 = vmatprep.subr.mxu0 0.0
    %7164 = vmatpush1.msra.mxu0 0.0
    %7165 = vmatprep.subr.mxu0 0.0
    %7166 = vmatpush1.msra.mxu0 0.0
    %7167 = vmatprep.subr.mxu0 0.0
    %7168 = vmatpush1.msra.mxu0 0.0
    %7169 = vmatprep.subr.mxu0 0.0
    %7170 = vmatpush1.msra.mxu0 0.0
    %7171 = vmatprep.subr.mxu0 0.0
    %7172 = vmatpush1.msra.mxu0 %v7092
    %7173 = vmatprep.subr.mxu0 0.0
    %7174 = vmatpush2.msra.mxu0 0.0
    %7175 = vmatprep.subr.mxu0 0.0
    %7176 = vmatpush2.msra.mxu0 0.0
    %7177 = vmatprep.subr.mxu0 0.0
    %7178 = vmatpush2.msra.mxu0 0.0
    %7179 = vmatprep.subr.mxu0 0.0
    %7180 = vmatpush2.msra.mxu0 0.0
    %7181 = vmatprep.subr.mxu0 0.0
    %7182 = vmatpush2.msra.mxu0 0.0
    %7183 = vmatprep.subr.mxu0 0.0
    %7184 = vmatpush2.msra.mxu0 0.0
    %7185 = vmatprep.subr.mxu0 0.0
    %7186 = vmatpush2.msra.mxu0 0.0
    %7187 = vmatprep.subr.mxu0 0.0
    %7188 = vmatpush2.msra.mxu0 0.0
    %7189 = vmatprep.subr.mxu0 0.0
    %7190 = vmatpush2.msra.mxu0 0.0
    %7191 = vmatprep.subr.mxu0 0.0
    %7192 = vmatpush2.msra.mxu0 0.0
    %7193 = vmatprep.subr.mxu0 0.0
    %7194 = vmatpush2.msra.mxu0 0.0
    %7195 = vmatprep.subr.mxu0 0.0
    %7196 = vmatpush2.msra.mxu0 0.0
    %7197 = vmatprep.subr.mxu0 0.0
    %7198 = vmatpush2.msra.mxu0 0.0
    %7199 = vmatprep.subr.mxu0 0.0
    %7200 = vmatpush2.msra.mxu0 0.0
    %7201 = vmatprep.subr.mxu0 0.0
    %7202 = vmatpush2.msra.mxu0 0.0
    %7203 = vmatprep.subr.mxu0 0.0
    %7204 = vmatpush2.msra.mxu0 0.0
    %7205 = vmatprep.mubr.f32.mxu0 0.0
    %7206 = vmatmul.mubr.f32.gmra.mxu0 %v7094
    %v7207 = vpop.f32.mrf.mxu0
    %v7208 = vadd.f32 0.0, %v7207
    %v7209 = vpop.f32.mrf.mxu0
    %7210 = vmatprep.mubr.f32.mxu0 0.0
    %7211 = vmatmul.mubr.f32.gmra.mxu0 %v7097
    %v7212 = vpop.f32.mrf.mxu0
    %v7213 = vadd.f32 0.0, %v7212
    %v7214 = vpop.f32.mrf.mxu0
    %7215 = vmatprep.mubr.f32.mxu0 0.0
    %7216 = vmatmul.mubr.f32.gmra.mxu0 %v7100
    %v7217 = vpop.f32.mrf.mxu0
    %v7218 = vadd.f32 0.0, %v7217
    %v7219 = vpop.f32.mrf.mxu0
    %7220 = vmatprep.mubr.f32.mxu0 0.0
    %7221 = vmatmul.mubr.f32.gmra.mxu0 %v7103
    %v7222 = vpop.f32.mrf.mxu0
    %v7223 = vadd.f32 0.0, %v7222
    %v7224 = vpop.f32.mrf.mxu0
    %7225 = vmatprep.mubr.f32.mxu0 0.0
    %7226 = vmatmul.mubr.f32.gmra.mxu0 %v7106
    %v7227 = vpop.f32.mrf.mxu0
    %v7228 = vadd.f32 0.0, %v7227
    %v7229 = vpop.f32.mrf.mxu0
    %7230 = vmatprep.mubr.f32.mxu0 0.0
    %7231 = vmatmul.mubr.f32.gmra.mxu0 %v7109
    %v7232 = vpop.f32.mrf.mxu0
    %v7233 = vadd.f32 0.0, %v7232
    %v7234 = vpop.f32.mrf.mxu0
    %7235 = vmatprep.mubr.f32.mxu0 0.0
    %7236 = vmatmul.mubr.f32.gmra.mxu0 %v7112
    %v7237 = vpop.f32.mrf.mxu0
    %v7238 = vadd.f32 0.0, %v7237
    %v7239 = vpop.f32.mrf.mxu0
    %7240 = vmatprep.mubr.f32.mxu0 0.0
    %7241 = vmatmul.mubr.f32.gmra.mxu0 %v7115
    %v7242 = vpop.f32.mrf.mxu0
    %v7243 = vadd.f32 0.0, %v7242
    %v7244 = vpop.f32.mrf.mxu0
    %7245 = vmatprep.mubr.f32.mxu0 0.0
    %7246 = vmatmul.mubr.f32.gmra.mxu0 %v7118
    %v7247 = vpop.f32.mrf.mxu0
    %v7248 = vadd.f32 0.0, %v7247
    %v7249 = vpop.f32.mrf.mxu0
    %7250 = vmatprep.mubr.f32.mxu0 0.0
    %7251 = vmatmul.mubr.f32.gmra.mxu0 %v7121
    %v7252 = vpop.f32.mrf.mxu0
    %v7253 = vadd.f32 0.0, %v7252
    %v7254 = vpop.f32.mrf.mxu0
    %7255 = vmatprep.mubr.f32.mxu0 0.0
    %7256 = vmatmul.mubr.f32.gmra.mxu0 %v7124
    %v7257 = vpop.f32.mrf.mxu0
    %v7258 = vadd.f32 0.0, %v7257
    %v7259 = vpop.f32.mrf.mxu0
    %7260 = vmatprep.mubr.f32.mxu0 0.0
    %7261 = vmatmul.mubr.f32.gmra.mxu0 %v7127
    %v7262 = vpop.f32.mrf.mxu0
    %v7263 = vadd.f32 0.0, %v7262
    %v7264 = vpop.f32.mrf.mxu0
    %7265 = vmatprep.mubr.f32.mxu0 0.0
    %7266 = vmatmul.mubr.f32.gmra.mxu0 %v7130
    %v7267 = vpop.f32.mrf.mxu0
    %v7268 = vadd.f32 0.0, %v7267
    %v7269 = vpop.f32.mrf.mxu0
    %7270 = vmatprep.mubr.f32.mxu0 0.0
    %7271 = vmatmul.mubr.f32.gmra.mxu0 %v7133
    %v7272 = vpop.f32.mrf.mxu0
    %v7273 = vadd.f32 0.0, %v7272
    %v7274 = vpop.f32.mrf.mxu0
    %7275 = vmatprep.mubr.f32.mxu0 0.0
    %7276 = vmatmul.mubr.f32.gmra.mxu0 %v7136
    %v7277 = vpop.f32.mrf.mxu0
    %v7278 = vadd.f32 0.0, %v7277
    %v7279 = vpop.f32.mrf.mxu0
    %7280 = vmatprep.mubr.f32.mxu0 0.0
    %7281 = vmatmul.mubr.f32.gmra.mxu0 %v7139
    %v7282 = vpop.f32.mrf.mxu0
    %v7283 = vadd.f32 0.0, %v7282
    %v7284 = vpop.f32.mrf.mxu0
    %7285 = vdwg.mxu0
    %v7286 = vadd.f32 %v6997, %v7208
    %v7287 = vadd.f32 %v7002, %v7213
    %v7288 = vadd.f32 %v7007, %v7218
    %v7289 = vadd.f32 %v7012, %v7223
    %v7290 = vadd.f32 %v7017, %v7228
    %v7291 = vadd.f32 %v7022, %v7233
    %v7292 = vadd.f32 %v7027, %v7238
    %v7293 = vadd.f32 %v7032, %v7243
    %v7294 = vadd.f32 %v7037, %v7248
    %v7295 = vadd.f32 %v7042, %v7253
    %v7296 = vadd.f32 %v7047, %v7258
    %v7297 = vadd.f32 %v7052, %v7263
    %v7298 = vadd.f32 %v7057, %v7268
    %v7299 = vadd.f32 %v7062, %v7273
    %v7300 = vadd.f32 %v7067, %v7278
    %v7301 = vadd.f32 %v7072, %v7283
    %v7302 = vld [vmem:[%s6637 + $0x7] sm:$0xff]
    %v7303 = vld [vmem:[%s6637 + $0x1f] sm:$0xff]
    %v7304 = vld [vmem:[%s6637 + $0x37] sm:$0xff]
    %v7305 = vld [vmem:[%s6637 + $0x4f] sm:$0xff]
    %v7306 = vld [vmem:[%s6637 + $0x67] sm:$0xff]
    %v7307 = vld [vmem:[%s6637 + $0x7f] sm:$0xff]
    %v7308 = vld [vmem:[%s6637 + $0x97] sm:$0xff]
    %v7309 = vld [vmem:[%s6637 + $0xaf] sm:$0xff]
    %v7310 = vld [vmem:[%s6637 + $0xf7] sm:$0xff]
    %v7311 = vld [vmem:[%s6637 + $0x10f] sm:$0xff]
    %v7312 = vld [vmem:[%s6637 + $0x127] sm:$0xff]
    %v7313 = vld [vmem:[%s6637 + $0x13f] sm:$0xff]
    %v7314 = vld [vmem:[%s6637 + $0x157] sm:$0xff]
    %v7315 = vld [vmem:[%s6637 + $0x16f] sm:$0xff]
    %v7316 = vld [vmem:[%s6637 + $0x187] sm:$0xff]
    %v7317 = vld [vmem:[%s6637 + $0x19f] sm:$0xff]
    %s7318 = scalar_lea.vmem %s3, 24
    %v7319 = vld [vmem:[%s7318] sm:$0xff]
    %v7321 = vsel %vm6465, %v7302, 0
    %v7324 = vsel %vm6465, %v7303, 0
    %v7327 = vsel %vm6465, %v7304, 0
    %v7330 = vsel %vm6465, %v7305, 0
    %v7333 = vsel %vm6465, %v7306, 0
    %v7336 = vsel %vm6465, %v7307, 0
    %v7339 = vsel %vm6465, %v7308, 0
    %v7342 = vsel %vm6465, %v7309, 0
    %v7345 = vsel %vm6465, %v7310, 0
    %v7348 = vsel %vm6465, %v7311, 0
    %v7351 = vsel %vm6465, %v7312, 0
    %v7354 = vsel %vm6465, %v7313, 0
    %v7357 = vsel %vm6465, %v7314, 0
    %v7360 = vsel %vm6465, %v7315, 0
    %v7363 = vsel %vm6465, %v7316, 0
    %v7366 = vsel %vm6465, %v7317, 0
    %7368 = vmatprep.subr.mxu0 0.0
    %7369 = vmatpush1.msra.mxu0 0.0
    %7370 = vmatprep.subr.mxu0 0.0
    %7371 = vmatpush1.msra.mxu0 0.0
    %7372 = vmatprep.subr.mxu0 0.0
    %7373 = vmatpush1.msra.mxu0 0.0
    %7374 = vmatprep.subr.mxu0 0.0
    %7375 = vmatpush1.msra.mxu0 0.0
    %7376 = vmatprep.subr.mxu0 0.0
    %7377 = vmatpush1.msra.mxu0 0.0
    %7378 = vmatprep.subr.mxu0 0.0
    %7379 = vmatpush1.msra.mxu0 0.0
    %7380 = vmatprep.subr.mxu0 0.0
    %7381 = vmatpush1.msra.mxu0 0.0
    %7382 = vmatprep.subr.mxu0 0.0
    %7383 = vmatpush1.msra.mxu0 0.0
    %7384 = vmatprep.subr.mxu0 0.0
    %7385 = vmatpush1.msra.mxu0 0.0
    %7386 = vmatprep.subr.mxu0 0.0
    %7387 = vmatpush1.msra.mxu0 0.0
    %7388 = vmatprep.subr.mxu0 0.0
    %7389 = vmatpush1.msra.mxu0 0.0
    %7390 = vmatprep.subr.mxu0 0.0
    %7391 = vmatpush1.msra.mxu0 0.0
    %7392 = vmatprep.subr.mxu0 0.0
    %7393 = vmatpush1.msra.mxu0 0.0
    %7394 = vmatprep.subr.mxu0 0.0
    %7395 = vmatpush1.msra.mxu0 0.0
    %7396 = vmatprep.subr.mxu0 0.0
    %7397 = vmatpush1.msra.mxu0 0.0
    %7398 = vmatprep.subr.mxu0 0.0
    %7399 = vmatpush1.msra.mxu0 %v7319
    %7400 = vmatprep.subr.mxu0 0.0
    %7401 = vmatpush2.msra.mxu0 0.0
    %7402 = vmatprep.subr.mxu0 0.0
    %7403 = vmatpush2.msra.mxu0 0.0
    %7404 = vmatprep.subr.mxu0 0.0
    %7405 = vmatpush2.msra.mxu0 0.0
    %7406 = vmatprep.subr.mxu0 0.0
    %7407 = vmatpush2.msra.mxu0 0.0
    %7408 = vmatprep.subr.mxu0 0.0
    %7409 = vmatpush2.msra.mxu0 0.0
    %7410 = vmatprep.subr.mxu0 0.0
    %7411 = vmatpush2.msra.mxu0 0.0
    %7412 = vmatprep.subr.mxu0 0.0
    %7413 = vmatpush2.msra.mxu0 0.0
    %7414 = vmatprep.subr.mxu0 0.0
    %7415 = vmatpush2.msra.mxu0 0.0
    %7416 = vmatprep.subr.mxu0 0.0
    %7417 = vmatpush2.msra.mxu0 0.0
    %7418 = vmatprep.subr.mxu0 0.0
    %7419 = vmatpush2.msra.mxu0 0.0
    %7420 = vmatprep.subr.mxu0 0.0
    %7421 = vmatpush2.msra.mxu0 0.0
    %7422 = vmatprep.subr.mxu0 0.0
    %7423 = vmatpush2.msra.mxu0 0.0
    %7424 = vmatprep.subr.mxu0 0.0
    %7425 = vmatpush2.msra.mxu0 0.0
    %7426 = vmatprep.subr.mxu0 0.0
    %7427 = vmatpush2.msra.mxu0 0.0
    %7428 = vmatprep.subr.mxu0 0.0
    %7429 = vmatpush2.msra.mxu0 0.0
    %7430 = vmatprep.subr.mxu0 0.0
    %7431 = vmatpush2.msra.mxu0 0.0
    %7432 = vmatprep.mubr.f32.mxu0 0.0
    %7433 = vmatmul.mubr.f32.gmra.mxu0 %v7321
    %v7434 = vpop.f32.mrf.mxu0
    %v7435 = vadd.f32 0.0, %v7434
    %v7436 = vpop.f32.mrf.mxu0
    %7437 = vmatprep.mubr.f32.mxu0 0.0
    %7438 = vmatmul.mubr.f32.gmra.mxu0 %v7324
    %v7439 = vpop.f32.mrf.mxu0
    %v7440 = vadd.f32 0.0, %v7439
    %v7441 = vpop.f32.mrf.mxu0
    %7442 = vmatprep.mubr.f32.mxu0 0.0
    %7443 = vmatmul.mubr.f32.gmra.mxu0 %v7327
    %v7444 = vpop.f32.mrf.mxu0
    %v7445 = vadd.f32 0.0, %v7444
    %v7446 = vpop.f32.mrf.mxu0
    %7447 = vmatprep.mubr.f32.mxu0 0.0
    %7448 = vmatmul.mubr.f32.gmra.mxu0 %v7330
    %v7449 = vpop.f32.mrf.mxu0
    %v7450 = vadd.f32 0.0, %v7449
    %v7451 = vpop.f32.mrf.mxu0
    %7452 = vmatprep.mubr.f32.mxu0 0.0
    %7453 = vmatmul.mubr.f32.gmra.mxu0 %v7333
    %v7454 = vpop.f32.mrf.mxu0
    %v7455 = vadd.f32 0.0, %v7454
    %v7456 = vpop.f32.mrf.mxu0
    %7457 = vmatprep.mubr.f32.mxu0 0.0
    %7458 = vmatmul.mubr.f32.gmra.mxu0 %v7336
    %v7459 = vpop.f32.mrf.mxu0
    %v7460 = vadd.f32 0.0, %v7459
    %v7461 = vpop.f32.mrf.mxu0
    %7462 = vmatprep.mubr.f32.mxu0 0.0
    %7463 = vmatmul.mubr.f32.gmra.mxu0 %v7339
    %v7464 = vpop.f32.mrf.mxu0
    %v7465 = vadd.f32 0.0, %v7464
    %v7466 = vpop.f32.mrf.mxu0
    %7467 = vmatprep.mubr.f32.mxu0 0.0
    %7468 = vmatmul.mubr.f32.gmra.mxu0 %v7342
    %v7469 = vpop.f32.mrf.mxu0
    %v7470 = vadd.f32 0.0, %v7469
    %v7471 = vpop.f32.mrf.mxu0
    %7472 = vmatprep.mubr.f32.mxu0 0.0
    %7473 = vmatmul.mubr.f32.gmra.mxu0 %v7345
    %v7474 = vpop.f32.mrf.mxu0
    %v7475 = vadd.f32 0.0, %v7474
    %v7476 = vpop.f32.mrf.mxu0
    %7477 = vmatprep.mubr.f32.mxu0 0.0
    %7478 = vmatmul.mubr.f32.gmra.mxu0 %v7348
    %v7479 = vpop.f32.mrf.mxu0
    %v7480 = vadd.f32 0.0, %v7479
    %v7481 = vpop.f32.mrf.mxu0
    %7482 = vmatprep.mubr.f32.mxu0 0.0
    %7483 = vmatmul.mubr.f32.gmra.mxu0 %v7351
    %v7484 = vpop.f32.mrf.mxu0
    %v7485 = vadd.f32 0.0, %v7484
    %v7486 = vpop.f32.mrf.mxu0
    %7487 = vmatprep.mubr.f32.mxu0 0.0
    %7488 = vmatmul.mubr.f32.gmra.mxu0 %v7354
    %v7489 = vpop.f32.mrf.mxu0
    %v7490 = vadd.f32 0.0, %v7489
    %v7491 = vpop.f32.mrf.mxu0
    %7492 = vmatprep.mubr.f32.mxu0 0.0
    %7493 = vmatmul.mubr.f32.gmra.mxu0 %v7357
    %v7494 = vpop.f32.mrf.mxu0
    %v7495 = vadd.f32 0.0, %v7494
    %v7496 = vpop.f32.mrf.mxu0
    %7497 = vmatprep.mubr.f32.mxu0 0.0
    %7498 = vmatmul.mubr.f32.gmra.mxu0 %v7360
    %v7499 = vpop.f32.mrf.mxu0
    %v7500 = vadd.f32 0.0, %v7499
    %v7501 = vpop.f32.mrf.mxu0
    %7502 = vmatprep.mubr.f32.mxu0 0.0
    %7503 = vmatmul.mubr.f32.gmra.mxu0 %v7363
    %v7504 = vpop.f32.mrf.mxu0
    %v7505 = vadd.f32 0.0, %v7504
    %v7506 = vpop.f32.mrf.mxu0
    %7507 = vmatprep.mubr.f32.mxu0 0.0
    %7508 = vmatmul.mubr.f32.gmra.mxu0 %v7366
    %v7509 = vpop.f32.mrf.mxu0
    %v7510 = vadd.f32 0.0, %v7509
    %v7511 = vpop.f32.mrf.mxu0
    %7512 = vdwg.mxu0
    %v7513 = vadd.f32 %v7286, %v7435
    %v7514 = vadd.f32 %v7287, %v7440
    %v7515 = vadd.f32 %v7288, %v7445
    %v7516 = vadd.f32 %v7289, %v7450
    %v7517 = vadd.f32 %v7290, %v7455
    %v7518 = vadd.f32 %v7291, %v7460
    %v7519 = vadd.f32 %v7292, %v7465
    %v7520 = vadd.f32 %v7293, %v7470
    %v7521 = vadd.f32 %v7294, %v7475
    %v7522 = vadd.f32 %v7295, %v7480
    %v7523 = vadd.f32 %v7296, %v7485
    %v7524 = vadd.f32 %v7297, %v7490
    %v7525 = vadd.f32 %v7298, %v7495
    %v7526 = vadd.f32 %v7299, %v7500
    %v7527 = vadd.f32 %v7300, %v7505
    %v7528 = vadd.f32 %v7301, %v7510
    %v7529 = vld [vmem:[%s6637 + $0x8] sm:$0xff]
    %v7530 = vld [vmem:[%s6637 + $0x20] sm:$0xff]
    %v7531 = vld [vmem:[%s6637 + $0x38] sm:$0xff]
    %v7532 = vld [vmem:[%s6637 + $0x50] sm:$0xff]
    %v7533 = vld [vmem:[%s6637 + $0x68] sm:$0xff]
    %v7534 = vld [vmem:[%s6637 + $0x80] sm:$0xff]
    %v7535 = vld [vmem:[%s6637 + $0x98] sm:$0xff]
    %v7536 = vld [vmem:[%s6637 + $0xb0] sm:$0xff]
    %v7537 = vld [vmem:[%s6637 + $0xf8] sm:$0xff]
    %v7538 = vld [vmem:[%s6637 + $0x110] sm:$0xff]
    %v7539 = vld [vmem:[%s6637 + $0x128] sm:$0xff]
    %v7540 = vld [vmem:[%s6637 + $0x140] sm:$0xff]
    %v7541 = vld [vmem:[%s6637 + $0x158] sm:$0xff]
    %v7542 = vld [vmem:[%s6637 + $0x170] sm:$0xff]
    %v7543 = vld [vmem:[%s6637 + $0x188] sm:$0xff]
    %v7544 = vld [vmem:[%s6637 + $0x1a0] sm:$0xff]
    %s7545 = scalar_lea.vmem %s3, 32
    %v7546 = vld [vmem:[%s7545] sm:$0xff]
    %v7548 = vsel %vm6465, %v7529, 0
    %v7551 = vsel %vm6465, %v7530, 0
    %v7554 = vsel %vm6465, %v7531, 0
    %v7557 = vsel %vm6465, %v7532, 0
    %v7560 = vsel %vm6465, %v7533, 0
    %v7563 = vsel %vm6465, %v7534, 0
    %v7566 = vsel %vm6465, %v7535, 0
    %v7569 = vsel %vm6465, %v7536, 0
    %v7572 = vsel %vm6465, %v7537, 0
    %v7575 = vsel %vm6465, %v7538, 0
    %v7578 = vsel %vm6465, %v7539, 0
    %v7581 = vsel %vm6465, %v7540, 0
    %v7584 = vsel %vm6465, %v7541, 0
    %v7587 = vsel %vm6465, %v7542, 0
    %v7590 = vsel %vm6465, %v7543, 0
    %v7593 = vsel %vm6465, %v7544, 0
    %7595 = vmatprep.subr.mxu0 0.0
    %7596 = vmatpush1.msra.mxu0 0.0
    %7597 = vmatprep.subr.mxu0 0.0
    %7598 = vmatpush1.msra.mxu0 0.0
    %7599 = vmatprep.subr.mxu0 0.0
    %7600 = vmatpush1.msra.mxu0 0.0
    %7601 = vmatprep.subr.mxu0 0.0
    %7602 = vmatpush1.msra.mxu0 0.0
    %7603 = vmatprep.subr.mxu0 0.0
    %7604 = vmatpush1.msra.mxu0 0.0
    %7605 = vmatprep.subr.mxu0 0.0
    %7606 = vmatpush1.msra.mxu0 0.0
    %7607 = vmatprep.subr.mxu0 0.0
    %7608 = vmatpush1.msra.mxu0 0.0
    %7609 = vmatprep.subr.mxu0 0.0
    %7610 = vmatpush1.msra.mxu0 0.0
    %7611 = vmatprep.subr.mxu0 0.0
    %7612 = vmatpush1.msra.mxu0 0.0
    %7613 = vmatprep.subr.mxu0 0.0
    %7614 = vmatpush1.msra.mxu0 0.0
    %7615 = vmatprep.subr.mxu0 0.0
    %7616 = vmatpush1.msra.mxu0 0.0
    %7617 = vmatprep.subr.mxu0 0.0
    %7618 = vmatpush1.msra.mxu0 0.0
    %7619 = vmatprep.subr.mxu0 0.0
    %7620 = vmatpush1.msra.mxu0 0.0
    %7621 = vmatprep.subr.mxu0 0.0
    %7622 = vmatpush1.msra.mxu0 0.0
    %7623 = vmatprep.subr.mxu0 0.0
    %7624 = vmatpush1.msra.mxu0 0.0
    %7625 = vmatprep.subr.mxu0 0.0
    %7626 = vmatpush1.msra.mxu0 %v7546
    %7627 = vmatprep.subr.mxu0 0.0
    %7628 = vmatpush2.msra.mxu0 0.0
    %7629 = vmatprep.subr.mxu0 0.0
    %7630 = vmatpush2.msra.mxu0 0.0
    %7631 = vmatprep.subr.mxu0 0.0
    %7632 = vmatpush2.msra.mxu0 0.0
    %7633 = vmatprep.subr.mxu0 0.0
    %7634 = vmatpush2.msra.mxu0 0.0
    %7635 = vmatprep.subr.mxu0 0.0
    %7636 = vmatpush2.msra.mxu0 0.0
    %7637 = vmatprep.subr.mxu0 0.0
    %7638 = vmatpush2.msra.mxu0 0.0
    %7639 = vmatprep.subr.mxu0 0.0
    %7640 = vmatpush2.msra.mxu0 0.0
    %7641 = vmatprep.subr.mxu0 0.0
    %7642 = vmatpush2.msra.mxu0 0.0
    %7643 = vmatprep.subr.mxu0 0.0
    %7644 = vmatpush2.msra.mxu0 0.0
    %7645 = vmatprep.subr.mxu0 0.0
    %7646 = vmatpush2.msra.mxu0 0.0
    %7647 = vmatprep.subr.mxu0 0.0
    %7648 = vmatpush2.msra.mxu0 0.0
    %7649 = vmatprep.subr.mxu0 0.0
    %7650 = vmatpush2.msra.mxu0 0.0
    %7651 = vmatprep.subr.mxu0 0.0
    %7652 = vmatpush2.msra.mxu0 0.0
    %7653 = vmatprep.subr.mxu0 0.0
    %7654 = vmatpush2.msra.mxu0 0.0
    %7655 = vmatprep.subr.mxu0 0.0
    %7656 = vmatpush2.msra.mxu0 0.0
    %7657 = vmatprep.subr.mxu0 0.0
    %7658 = vmatpush2.msra.mxu0 0.0
    %7659 = vmatprep.mubr.f32.mxu0 0.0
    %7660 = vmatmul.mubr.f32.gmra.mxu0 %v7548
    %v7661 = vpop.f32.mrf.mxu0
    %v7662 = vadd.f32 0.0, %v7661
    %v7663 = vpop.f32.mrf.mxu0
    %7664 = vmatprep.mubr.f32.mxu0 0.0
    %7665 = vmatmul.mubr.f32.gmra.mxu0 %v7551
    %v7666 = vpop.f32.mrf.mxu0
    %v7667 = vadd.f32 0.0, %v7666
    %v7668 = vpop.f32.mrf.mxu0
    %7669 = vmatprep.mubr.f32.mxu0 0.0
    %7670 = vmatmul.mubr.f32.gmra.mxu0 %v7554
    %v7671 = vpop.f32.mrf.mxu0
    %v7672 = vadd.f32 0.0, %v7671
    %v7673 = vpop.f32.mrf.mxu0
    %7674 = vmatprep.mubr.f32.mxu0 0.0
    %7675 = vmatmul.mubr.f32.gmra.mxu0 %v7557
    %v7676 = vpop.f32.mrf.mxu0
    %v7677 = vadd.f32 0.0, %v7676
    %v7678 = vpop.f32.mrf.mxu0
    %7679 = vmatprep.mubr.f32.mxu0 0.0
    %7680 = vmatmul.mubr.f32.gmra.mxu0 %v7560
    %v7681 = vpop.f32.mrf.mxu0
    %v7682 = vadd.f32 0.0, %v7681
    %v7683 = vpop.f32.mrf.mxu0
    %7684 = vmatprep.mubr.f32.mxu0 0.0
    %7685 = vmatmul.mubr.f32.gmra.mxu0 %v7563
    %v7686 = vpop.f32.mrf.mxu0
    %v7687 = vadd.f32 0.0, %v7686
    %v7688 = vpop.f32.mrf.mxu0
    %7689 = vmatprep.mubr.f32.mxu0 0.0
    %7690 = vmatmul.mubr.f32.gmra.mxu0 %v7566
    %v7691 = vpop.f32.mrf.mxu0
    %v7692 = vadd.f32 0.0, %v7691
    %v7693 = vpop.f32.mrf.mxu0
    %7694 = vmatprep.mubr.f32.mxu0 0.0
    %7695 = vmatmul.mubr.f32.gmra.mxu0 %v7569
    %v7696 = vpop.f32.mrf.mxu0
    %v7697 = vadd.f32 0.0, %v7696
    %v7698 = vpop.f32.mrf.mxu0
    %7699 = vmatprep.mubr.f32.mxu0 0.0
    %7700 = vmatmul.mubr.f32.gmra.mxu0 %v7572
    %v7701 = vpop.f32.mrf.mxu0
    %v7702 = vadd.f32 0.0, %v7701
    %v7703 = vpop.f32.mrf.mxu0
    %7704 = vmatprep.mubr.f32.mxu0 0.0
    %7705 = vmatmul.mubr.f32.gmra.mxu0 %v7575
    %v7706 = vpop.f32.mrf.mxu0
    %v7707 = vadd.f32 0.0, %v7706
    %v7708 = vpop.f32.mrf.mxu0
    %7709 = vmatprep.mubr.f32.mxu0 0.0
    %7710 = vmatmul.mubr.f32.gmra.mxu0 %v7578
    %v7711 = vpop.f32.mrf.mxu0
    %v7712 = vadd.f32 0.0, %v7711
    %v7713 = vpop.f32.mrf.mxu0
    %7714 = vmatprep.mubr.f32.mxu0 0.0
    %7715 = vmatmul.mubr.f32.gmra.mxu0 %v7581
    %v7716 = vpop.f32.mrf.mxu0
    %v7717 = vadd.f32 0.0, %v7716
    %v7718 = vpop.f32.mrf.mxu0
    %7719 = vmatprep.mubr.f32.mxu0 0.0
    %7720 = vmatmul.mubr.f32.gmra.mxu0 %v7584
    %v7721 = vpop.f32.mrf.mxu0
    %v7722 = vadd.f32 0.0, %v7721
    %v7723 = vpop.f32.mrf.mxu0
    %7724 = vmatprep.mubr.f32.mxu0 0.0
    %7725 = vmatmul.mubr.f32.gmra.mxu0 %v7587
    %v7726 = vpop.f32.mrf.mxu0
    %v7727 = vadd.f32 0.0, %v7726
    %v7728 = vpop.f32.mrf.mxu0
    %7729 = vmatprep.mubr.f32.mxu0 0.0
    %7730 = vmatmul.mubr.f32.gmra.mxu0 %v7590
    %v7731 = vpop.f32.mrf.mxu0
    %v7732 = vadd.f32 0.0, %v7731
    %v7733 = vpop.f32.mrf.mxu0
    %7734 = vmatprep.mubr.f32.mxu0 0.0
    %7735 = vmatmul.mubr.f32.gmra.mxu0 %v7593
    %v7736 = vpop.f32.mrf.mxu0
    %v7737 = vadd.f32 0.0, %v7736
    %v7738 = vpop.f32.mrf.mxu0
    %7739 = vdwg.mxu0
    %v7740 = vadd.f32 %v7513, %v7662
    %v7741 = vadd.f32 %v7514, %v7667
    %v7742 = vadd.f32 %v7515, %v7672
    %v7743 = vadd.f32 %v7516, %v7677
    %v7744 = vadd.f32 %v7517, %v7682
    %v7745 = vadd.f32 %v7518, %v7687
    %v7746 = vadd.f32 %v7519, %v7692
    %v7747 = vadd.f32 %v7520, %v7697
    %v7748 = vadd.f32 %v7521, %v7702
    %v7749 = vadd.f32 %v7522, %v7707
    %v7750 = vadd.f32 %v7523, %v7712
    %v7751 = vadd.f32 %v7524, %v7717
    %v7752 = vadd.f32 %v7525, %v7722
    %v7753 = vadd.f32 %v7526, %v7727
    %v7754 = vadd.f32 %v7527, %v7732
    %v7755 = vadd.f32 %v7528, %v7737
    %v7756 = vld [vmem:[%s6637 + $0x9] sm:$0xff]
    %v7757 = vld [vmem:[%s6637 + $0x21] sm:$0xff]
    %v7758 = vld [vmem:[%s6637 + $0x39] sm:$0xff]
    %v7759 = vld [vmem:[%s6637 + $0x51] sm:$0xff]
    %v7760 = vld [vmem:[%s6637 + $0x69] sm:$0xff]
    %v7761 = vld [vmem:[%s6637 + $0x81] sm:$0xff]
    %v7762 = vld [vmem:[%s6637 + $0x99] sm:$0xff]
    %v7763 = vld [vmem:[%s6637 + $0xb1] sm:$0xff]
    %v7764 = vld [vmem:[%s6637 + $0xf9] sm:$0xff]
    %v7765 = vld [vmem:[%s6637 + $0x111] sm:$0xff]
    %v7766 = vld [vmem:[%s6637 + $0x129] sm:$0xff]
    %v7767 = vld [vmem:[%s6637 + $0x141] sm:$0xff]
    %v7768 = vld [vmem:[%s6637 + $0x159] sm:$0xff]
    %v7769 = vld [vmem:[%s6637 + $0x171] sm:$0xff]
    %v7770 = vld [vmem:[%s6637 + $0x189] sm:$0xff]
    %v7771 = vld [vmem:[%s6637 + $0x1a1] sm:$0xff]
    %s7772 = scalar_lea.vmem %s3, 40
    %v7773 = vld [vmem:[%s7772] sm:$0xff]
    %v7775 = vsel %vm6465, %v7756, 0
    %v7778 = vsel %vm6465, %v7757, 0
    %v7781 = vsel %vm6465, %v7758, 0
    %v7784 = vsel %vm6465, %v7759, 0
    %v7787 = vsel %vm6465, %v7760, 0
    %v7790 = vsel %vm6465, %v7761, 0
    %v7793 = vsel %vm6465, %v7762, 0
    %v7796 = vsel %vm6465, %v7763, 0
    %v7799 = vsel %vm6465, %v7764, 0
    %v7802 = vsel %vm6465, %v7765, 0
    %v7805 = vsel %vm6465, %v7766, 0
    %v7808 = vsel %vm6465, %v7767, 0
    %v7811 = vsel %vm6465, %v7768, 0
    %v7814 = vsel %vm6465, %v7769, 0
    %v7817 = vsel %vm6465, %v7770, 0
    %v7820 = vsel %vm6465, %v7771, 0
    %7822 = vmatprep.subr.mxu0 0.0
    %7823 = vmatpush1.msra.mxu0 0.0
    %7824 = vmatprep.subr.mxu0 0.0
    %7825 = vmatpush1.msra.mxu0 0.0
    %7826 = vmatprep.subr.mxu0 0.0
    %7827 = vmatpush1.msra.mxu0 0.0
    %7828 = vmatprep.subr.mxu0 0.0
    %7829 = vmatpush1.msra.mxu0 0.0
    %7830 = vmatprep.subr.mxu0 0.0
    %7831 = vmatpush1.msra.mxu0 0.0
    %7832 = vmatprep.subr.mxu0 0.0
    %7833 = vmatpush1.msra.mxu0 0.0
    %7834 = vmatprep.subr.mxu0 0.0
    %7835 = vmatpush1.msra.mxu0 0.0
    %7836 = vmatprep.subr.mxu0 0.0
    %7837 = vmatpush1.msra.mxu0 0.0
    %7838 = vmatprep.subr.mxu0 0.0
    %7839 = vmatpush1.msra.mxu0 0.0
    %7840 = vmatprep.subr.mxu0 0.0
    %7841 = vmatpush1.msra.mxu0 0.0
    %7842 = vmatprep.subr.mxu0 0.0
    %7843 = vmatpush1.msra.mxu0 0.0
    %7844 = vmatprep.subr.mxu0 0.0
    %7845 = vmatpush1.msra.mxu0 0.0
    %7846 = vmatprep.subr.mxu0 0.0
    %7847 = vmatpush1.msra.mxu0 0.0
    %7848 = vmatprep.subr.mxu0 0.0
    %7849 = vmatpush1.msra.mxu0 0.0
    %7850 = vmatprep.subr.mxu0 0.0
    %7851 = vmatpush1.msra.mxu0 0.0
    %7852 = vmatprep.subr.mxu0 0.0
    %7853 = vmatpush1.msra.mxu0 %v7773
    %7854 = vmatprep.subr.mxu0 0.0
    %7855 = vmatpush2.msra.mxu0 0.0
    %7856 = vmatprep.subr.mxu0 0.0
    %7857 = vmatpush2.msra.mxu0 0.0
    %7858 = vmatprep.subr.mxu0 0.0
    %7859 = vmatpush2.msra.mxu0 0.0
    %7860 = vmatprep.subr.mxu0 0.0
    %7861 = vmatpush2.msra.mxu0 0.0
    %7862 = vmatprep.subr.mxu0 0.0
    %7863 = vmatpush2.msra.mxu0 0.0
    %7864 = vmatprep.subr.mxu0 0.0
    %7865 = vmatpush2.msra.mxu0 0.0
    %7866 = vmatprep.subr.mxu0 0.0
    %7867 = vmatpush2.msra.mxu0 0.0
    %7868 = vmatprep.subr.mxu0 0.0
    %7869 = vmatpush2.msra.mxu0 0.0
    %7870 = vmatprep.subr.mxu0 0.0
    %7871 = vmatpush2.msra.mxu0 0.0
    %7872 = vmatprep.subr.mxu0 0.0
    %7873 = vmatpush2.msra.mxu0 0.0
    %7874 = vmatprep.subr.mxu0 0.0
    %7875 = vmatpush2.msra.mxu0 0.0
    %7876 = vmatprep.subr.mxu0 0.0
    %7877 = vmatpush2.msra.mxu0 0.0
    %7878 = vmatprep.subr.mxu0 0.0
    %7879 = vmatpush2.msra.mxu0 0.0
    %7880 = vmatprep.subr.mxu0 0.0
    %7881 = vmatpush2.msra.mxu0 0.0
    %7882 = vmatprep.subr.mxu0 0.0
    %7883 = vmatpush2.msra.mxu0 0.0
    %7884 = vmatprep.subr.mxu0 0.0
    %7885 = vmatpush2.msra.mxu0 0.0
    %7886 = vmatprep.mubr.f32.mxu0 0.0
    %7887 = vmatmul.mubr.f32.gmra.mxu0 %v7775
    %v7888 = vpop.f32.mrf.mxu0
    %v7889 = vadd.f32 0.0, %v7888
    %v7890 = vpop.f32.mrf.mxu0
    %7891 = vmatprep.mubr.f32.mxu0 0.0
    %7892 = vmatmul.mubr.f32.gmra.mxu0 %v7778
    %v7893 = vpop.f32.mrf.mxu0
    %v7894 = vadd.f32 0.0, %v7893
    %v7895 = vpop.f32.mrf.mxu0
    %7896 = vmatprep.mubr.f32.mxu0 0.0
    %7897 = vmatmul.mubr.f32.gmra.mxu0 %v7781
    %v7898 = vpop.f32.mrf.mxu0
    %v7899 = vadd.f32 0.0, %v7898
    %v7900 = vpop.f32.mrf.mxu0
    %7901 = vmatprep.mubr.f32.mxu0 0.0
    %7902 = vmatmul.mubr.f32.gmra.mxu0 %v7784
    %v7903 = vpop.f32.mrf.mxu0
    %v7904 = vadd.f32 0.0, %v7903
    %v7905 = vpop.f32.mrf.mxu0
    %7906 = vmatprep.mubr.f32.mxu0 0.0
    %7907 = vmatmul.mubr.f32.gmra.mxu0 %v7787
    %v7908 = vpop.f32.mrf.mxu0
    %v7909 = vadd.f32 0.0, %v7908
    %v7910 = vpop.f32.mrf.mxu0
    %7911 = vmatprep.mubr.f32.mxu0 0.0
    %7912 = vmatmul.mubr.f32.gmra.mxu0 %v7790
    %v7913 = vpop.f32.mrf.mxu0
    %v7914 = vadd.f32 0.0, %v7913
    %v7915 = vpop.f32.mrf.mxu0
    %7916 = vmatprep.mubr.f32.mxu0 0.0
    %7917 = vmatmul.mubr.f32.gmra.mxu0 %v7793
    %v7918 = vpop.f32.mrf.mxu0
    %v7919 = vadd.f32 0.0, %v7918
    %v7920 = vpop.f32.mrf.mxu0
    %7921 = vmatprep.mubr.f32.mxu0 0.0
    %7922 = vmatmul.mubr.f32.gmra.mxu0 %v7796
    %v7923 = vpop.f32.mrf.mxu0
    %v7924 = vadd.f32 0.0, %v7923
    %v7925 = vpop.f32.mrf.mxu0
    %7926 = vmatprep.mubr.f32.mxu0 0.0
    %7927 = vmatmul.mubr.f32.gmra.mxu0 %v7799
    %v7928 = vpop.f32.mrf.mxu0
    %v7929 = vadd.f32 0.0, %v7928
    %v7930 = vpop.f32.mrf.mxu0
    %7931 = vmatprep.mubr.f32.mxu0 0.0
    %7932 = vmatmul.mubr.f32.gmra.mxu0 %v7802
    %v7933 = vpop.f32.mrf.mxu0
    %v7934 = vadd.f32 0.0, %v7933
    %v7935 = vpop.f32.mrf.mxu0
    %7936 = vmatprep.mubr.f32.mxu0 0.0
    %7937 = vmatmul.mubr.f32.gmra.mxu0 %v7805
    %v7938 = vpop.f32.mrf.mxu0
    %v7939 = vadd.f32 0.0, %v7938
    %v7940 = vpop.f32.mrf.mxu0
    %7941 = vmatprep.mubr.f32.mxu0 0.0
    %7942 = vmatmul.mubr.f32.gmra.mxu0 %v7808
    %v7943 = vpop.f32.mrf.mxu0
    %v7944 = vadd.f32 0.0, %v7943
    %v7945 = vpop.f32.mrf.mxu0
    %7946 = vmatprep.mubr.f32.mxu0 0.0
    %7947 = vmatmul.mubr.f32.gmra.mxu0 %v7811
    %v7948 = vpop.f32.mrf.mxu0
    %v7949 = vadd.f32 0.0, %v7948
    %v7950 = vpop.f32.mrf.mxu0
    %7951 = vmatprep.mubr.f32.mxu0 0.0
    %7952 = vmatmul.mubr.f32.gmra.mxu0 %v7814
    %v7953 = vpop.f32.mrf.mxu0
    %v7954 = vadd.f32 0.0, %v7953
    %v7955 = vpop.f32.mrf.mxu0
    %7956 = vmatprep.mubr.f32.mxu0 0.0
    %7957 = vmatmul.mubr.f32.gmra.mxu0 %v7817
    %v7958 = vpop.f32.mrf.mxu0
    %v7959 = vadd.f32 0.0, %v7958
    %v7960 = vpop.f32.mrf.mxu0
    %7961 = vmatprep.mubr.f32.mxu0 0.0
    %7962 = vmatmul.mubr.f32.gmra.mxu0 %v7820
    %v7963 = vpop.f32.mrf.mxu0
    %v7964 = vadd.f32 0.0, %v7963
    %v7965 = vpop.f32.mrf.mxu0
    %7966 = vdwg.mxu0
    %v7967 = vadd.f32 %v7740, %v7889
    %v7968 = vadd.f32 %v7741, %v7894
    %v7969 = vadd.f32 %v7742, %v7899
    %v7970 = vadd.f32 %v7743, %v7904
    %v7971 = vadd.f32 %v7744, %v7909
    %v7972 = vadd.f32 %v7745, %v7914
    %v7973 = vadd.f32 %v7746, %v7919
    %v7974 = vadd.f32 %v7747, %v7924
    %v7975 = vadd.f32 %v7748, %v7929
    %v7976 = vadd.f32 %v7749, %v7934
    %v7977 = vadd.f32 %v7750, %v7939
    %v7978 = vadd.f32 %v7751, %v7944
    %v7979 = vadd.f32 %v7752, %v7949
    %v7980 = vadd.f32 %v7753, %v7954
    %v7981 = vadd.f32 %v7754, %v7959
    %v7982 = vadd.f32 %v7755, %v7964
    %s7983 = scalar_lea.vmem [#allocation3], 48
    %v7984 = vld [vmem:[%s7983 + $0x7] sm:$0xff]
    %v7985 = vld [vmem:[%s7983 + $0x1f] sm:$0xff]
    %v7986 = vld [vmem:[%s7983 + $0x37] sm:$0xff]
    %v7987 = vld [vmem:[%s7983 + $0x4f] sm:$0xff]
    %v7988 = vld [vmem:[%s7983 + $0x67] sm:$0xff]
    %v7989 = vld [vmem:[%s7983 + $0x7f] sm:$0xff]
    %v7990 = vld [vmem:[%s7983 + $0x97] sm:$0xff]
    %v7991 = vld [vmem:[%s7983 + $0xaf] sm:$0xff]
    %v7992 = vld [vmem:[%s7983 + $0xf7] sm:$0xff]
    %v7993 = vld [vmem:[%s7983 + $0x10f] sm:$0xff]
    %v7994 = vld [vmem:[%s7983 + $0x127] sm:$0xff]
    %v7995 = vld [vmem:[%s7983 + $0x13f] sm:$0xff]
    %v7996 = vld [vmem:[%s7983 + $0x157] sm:$0xff]
    %v7997 = vld [vmem:[%s7983 + $0x16f] sm:$0xff]
    %v7998 = vld [vmem:[%s7983 + $0x187] sm:$0xff]
    %v7999 = vld [vmem:[%s7983 + $0x19f] sm:$0xff]
    %s8000 = scalar_lea.vmem %s3, 48
    %v8001 = vld [vmem:[%s8000] sm:$0xff]
    %v8003 = vsel %vm6465, %v7984, 0
    %v8006 = vsel %vm6465, %v7985, 0
    %v8009 = vsel %vm6465, %v7986, 0
    %v8012 = vsel %vm6465, %v7987, 0
    %v8015 = vsel %vm6465, %v7988, 0
    %v8018 = vsel %vm6465, %v7989, 0
    %v8021 = vsel %vm6465, %v7990, 0
    %v8024 = vsel %vm6465, %v7991, 0
    %v8027 = vsel %vm6465, %v7992, 0
    %v8030 = vsel %vm6465, %v7993, 0
    %v8033 = vsel %vm6465, %v7994, 0
    %v8036 = vsel %vm6465, %v7995, 0
    %v8039 = vsel %vm6465, %v7996, 0
    %v8042 = vsel %vm6465, %v7997, 0
    %v8045 = vsel %vm6465, %v7998, 0
    %v8048 = vsel %vm6465, %v7999, 0
    %8050 = vmatprep.subr.mxu0 0.0
    %8051 = vmatpush1.msra.mxu0 0.0
    %8052 = vmatprep.subr.mxu0 0.0
    %8053 = vmatpush1.msra.mxu0 0.0
    %8054 = vmatprep.subr.mxu0 0.0
    %8055 = vmatpush1.msra.mxu0 0.0
    %8056 = vmatprep.subr.mxu0 0.0
    %8057 = vmatpush1.msra.mxu0 0.0
    %8058 = vmatprep.subr.mxu0 0.0
    %8059 = vmatpush1.msra.mxu0 0.0
    %8060 = vmatprep.subr.mxu0 0.0
    %8061 = vmatpush1.msra.mxu0 0.0
    %8062 = vmatprep.subr.mxu0 0.0
    %8063 = vmatpush1.msra.mxu0 0.0
    %8064 = vmatprep.subr.mxu0 0.0
    %8065 = vmatpush1.msra.mxu0 0.0
    %8066 = vmatprep.subr.mxu0 0.0
    %8067 = vmatpush1.msra.mxu0 0.0
    %8068 = vmatprep.subr.mxu0 0.0
    %8069 = vmatpush1.msra.mxu0 0.0
    %8070 = vmatprep.subr.mxu0 0.0
    %8071 = vmatpush1.msra.mxu0 0.0
    %8072 = vmatprep.subr.mxu0 0.0
    %8073 = vmatpush1.msra.mxu0 0.0
    %8074 = vmatprep.subr.mxu0 0.0
    %8075 = vmatpush1.msra.mxu0 0.0
    %8076 = vmatprep.subr.mxu0 0.0
    %8077 = vmatpush1.msra.mxu0 0.0
    %8078 = vmatprep.subr.mxu0 0.0
    %8079 = vmatpush1.msra.mxu0 0.0
    %8080 = vmatprep.subr.mxu0 0.0
    %8081 = vmatpush1.msra.mxu0 %v8001
    %8082 = vmatprep.subr.mxu0 0.0
    %8083 = vmatpush2.msra.mxu0 0.0
    %8084 = vmatprep.subr.mxu0 0.0
    %8085 = vmatpush2.msra.mxu0 0.0
    %8086 = vmatprep.subr.mxu0 0.0
    %8087 = vmatpush2.msra.mxu0 0.0
    %8088 = vmatprep.subr.mxu0 0.0
    %8089 = vmatpush2.msra.mxu0 0.0
    %8090 = vmatprep.subr.mxu0 0.0
    %8091 = vmatpush2.msra.mxu0 0.0
    %8092 = vmatprep.subr.mxu0 0.0
    %8093 = vmatpush2.msra.mxu0 0.0
    %8094 = vmatprep.subr.mxu0 0.0
    %8095 = vmatpush2.msra.mxu0 0.0
    %8096 = vmatprep.subr.mxu0 0.0
    %8097 = vmatpush2.msra.mxu0 0.0
    %8098 = vmatprep.subr.mxu0 0.0
    %8099 = vmatpush2.msra.mxu0 0.0
    %8100 = vmatprep.subr.mxu0 0.0
    %8101 = vmatpush2.msra.mxu0 0.0
    %8102 = vmatprep.subr.mxu0 0.0
    %8103 = vmatpush2.msra.mxu0 0.0
    %8104 = vmatprep.subr.mxu0 0.0
    %8105 = vmatpush2.msra.mxu0 0.0
    %8106 = vmatprep.subr.mxu0 0.0
    %8107 = vmatpush2.msra.mxu0 0.0
    %8108 = vmatprep.subr.mxu0 0.0
    %8109 = vmatpush2.msra.mxu0 0.0
    %8110 = vmatprep.subr.mxu0 0.0
    %8111 = vmatpush2.msra.mxu0 0.0
    %8112 = vmatprep.subr.mxu0 0.0
    %8113 = vmatpush2.msra.mxu0 0.0
    %8114 = vmatprep.mubr.f32.mxu0 0.0
    %8115 = vmatmul.mubr.f32.gmra.mxu0 %v8003
    %v8116 = vpop.f32.mrf.mxu0
    %v8117 = vadd.f32 0.0, %v8116
    %v8118 = vpop.f32.mrf.mxu0
    %8119 = vmatprep.mubr.f32.mxu0 0.0
    %8120 = vmatmul.mubr.f32.gmra.mxu0 %v8006
    %v8121 = vpop.f32.mrf.mxu0
    %v8122 = vadd.f32 0.0, %v8121
    %v8123 = vpop.f32.mrf.mxu0
    %8124 = vmatprep.mubr.f32.mxu0 0.0
    %8125 = vmatmul.mubr.f32.gmra.mxu0 %v8009
    %v8126 = vpop.f32.mrf.mxu0
    %v8127 = vadd.f32 0.0, %v8126
    %v8128 = vpop.f32.mrf.mxu0
    %8129 = vmatprep.mubr.f32.mxu0 0.0
    %8130 = vmatmul.mubr.f32.gmra.mxu0 %v8012
    %v8131 = vpop.f32.mrf.mxu0
    %v8132 = vadd.f32 0.0, %v8131
    %v8133 = vpop.f32.mrf.mxu0
    %8134 = vmatprep.mubr.f32.mxu0 0.0
    %8135 = vmatmul.mubr.f32.gmra.mxu0 %v8015
    %v8136 = vpop.f32.mrf.mxu0
    %v8137 = vadd.f32 0.0, %v8136
    %v8138 = vpop.f32.mrf.mxu0
    %8139 = vmatprep.mubr.f32.mxu0 0.0
    %8140 = vmatmul.mubr.f32.gmra.mxu0 %v8018
    %v8141 = vpop.f32.mrf.mxu0
    %v8142 = vadd.f32 0.0, %v8141
    %v8143 = vpop.f32.mrf.mxu0
    %8144 = vmatprep.mubr.f32.mxu0 0.0
    %8145 = vmatmul.mubr.f32.gmra.mxu0 %v8021
    %v8146 = vpop.f32.mrf.mxu0
    %v8147 = vadd.f32 0.0, %v8146
    %v8148 = vpop.f32.mrf.mxu0
    %8149 = vmatprep.mubr.f32.mxu0 0.0
    %8150 = vmatmul.mubr.f32.gmra.mxu0 %v8024
    %v8151 = vpop.f32.mrf.mxu0
    %v8152 = vadd.f32 0.0, %v8151
    %v8153 = vpop.f32.mrf.mxu0
    %8154 = vmatprep.mubr.f32.mxu0 0.0
    %8155 = vmatmul.mubr.f32.gmra.mxu0 %v8027
    %v8156 = vpop.f32.mrf.mxu0
    %v8157 = vadd.f32 0.0, %v8156
    %v8158 = vpop.f32.mrf.mxu0
    %8159 = vmatprep.mubr.f32.mxu0 0.0
    %8160 = vmatmul.mubr.f32.gmra.mxu0 %v8030
    %v8161 = vpop.f32.mrf.mxu0
    %v8162 = vadd.f32 0.0, %v8161
    %v8163 = vpop.f32.mrf.mxu0
    %8164 = vmatprep.mubr.f32.mxu0 0.0
    %8165 = vmatmul.mubr.f32.gmra.mxu0 %v8033
    %v8166 = vpop.f32.mrf.mxu0
    %v8167 = vadd.f32 0.0, %v8166
    %v8168 = vpop.f32.mrf.mxu0
    %8169 = vmatprep.mubr.f32.mxu0 0.0
    %8170 = vmatmul.mubr.f32.gmra.mxu0 %v8036
    %v8171 = vpop.f32.mrf.mxu0
    %v8172 = vadd.f32 0.0, %v8171
    %v8173 = vpop.f32.mrf.mxu0
    %8174 = vmatprep.mubr.f32.mxu0 0.0
    %8175 = vmatmul.mubr.f32.gmra.mxu0 %v8039
    %v8176 = vpop.f32.mrf.mxu0
    %v8177 = vadd.f32 0.0, %v8176
    %v8178 = vpop.f32.mrf.mxu0
    %8179 = vmatprep.mubr.f32.mxu0 0.0
    %8180 = vmatmul.mubr.f32.gmra.mxu0 %v8042
    %v8181 = vpop.f32.mrf.mxu0
    %v8182 = vadd.f32 0.0, %v8181
    %v8183 = vpop.f32.mrf.mxu0
    %8184 = vmatprep.mubr.f32.mxu0 0.0
    %8185 = vmatmul.mubr.f32.gmra.mxu0 %v8045
    %v8186 = vpop.f32.mrf.mxu0
    %v8187 = vadd.f32 0.0, %v8186
    %v8188 = vpop.f32.mrf.mxu0
    %8189 = vmatprep.mubr.f32.mxu0 0.0
    %8190 = vmatmul.mubr.f32.gmra.mxu0 %v8048
    %v8191 = vpop.f32.mrf.mxu0
    %v8192 = vadd.f32 0.0, %v8191
    %v8193 = vpop.f32.mrf.mxu0
    %8194 = vdwg.mxu0
    %v8195 = vadd.f32 %v7967, %v8117
    %v8196 = vadd.f32 %v7968, %v8122
    %v8197 = vadd.f32 %v7969, %v8127
    %v8198 = vadd.f32 %v7970, %v8132
    %v8199 = vadd.f32 %v7971, %v8137
    %v8200 = vadd.f32 %v7972, %v8142
    %v8201 = vadd.f32 %v7973, %v8147
    %v8202 = vadd.f32 %v7974, %v8152
    %v8203 = vadd.f32 %v7975, %v8157
    %v8204 = vadd.f32 %v7976, %v8162
    %v8205 = vadd.f32 %v7977, %v8167
    %v8206 = vadd.f32 %v7978, %v8172
    %v8207 = vadd.f32 %v7979, %v8177
    %v8208 = vadd.f32 %v7980, %v8182
    %v8209 = vadd.f32 %v7981, %v8187
    %v8210 = vadd.f32 %v7982, %v8192
    %v8211 = vld [vmem:[%s7983 + $0x8] sm:$0xff]
    %v8212 = vld [vmem:[%s7983 + $0x20] sm:$0xff]
    %v8213 = vld [vmem:[%s7983 + $0x38] sm:$0xff]
    %v8214 = vld [vmem:[%s7983 + $0x50] sm:$0xff]
    %v8215 = vld [vmem:[%s7983 + $0x68] sm:$0xff]
    %v8216 = vld [vmem:[%s7983 + $0x80] sm:$0xff]
    %v8217 = vld [vmem:[%s7983 + $0x98] sm:$0xff]
    %v8218 = vld [vmem:[%s7983 + $0xb0] sm:$0xff]
    %v8219 = vld [vmem:[%s7983 + $0xf8] sm:$0xff]
    %v8220 = vld [vmem:[%s7983 + $0x110] sm:$0xff]
    %v8221 = vld [vmem:[%s7983 + $0x128] sm:$0xff]
    %v8222 = vld [vmem:[%s7983 + $0x140] sm:$0xff]
    %v8223 = vld [vmem:[%s7983 + $0x158] sm:$0xff]
    %v8224 = vld [vmem:[%s7983 + $0x170] sm:$0xff]
    %v8225 = vld [vmem:[%s7983 + $0x188] sm:$0xff]
    %v8226 = vld [vmem:[%s7983 + $0x1a0] sm:$0xff]
    %s8227 = scalar_lea.vmem %s3, 56
    %v8228 = vld [vmem:[%s8227] sm:$0xff]
    %v8230 = vsel %vm6465, %v8211, 0
    %v8233 = vsel %vm6465, %v8212, 0
    %v8236 = vsel %vm6465, %v8213, 0
    %v8239 = vsel %vm6465, %v8214, 0
    %v8242 = vsel %vm6465, %v8215, 0
    %v8245 = vsel %vm6465, %v8216, 0
    %v8248 = vsel %vm6465, %v8217, 0
    %v8251 = vsel %vm6465, %v8218, 0
    %v8254 = vsel %vm6465, %v8219, 0
    %v8257 = vsel %vm6465, %v8220, 0
    %v8260 = vsel %vm6465, %v8221, 0
    %v8263 = vsel %vm6465, %v8222, 0
    %v8266 = vsel %vm6465, %v8223, 0
    %v8269 = vsel %vm6465, %v8224, 0
    %v8272 = vsel %vm6465, %v8225, 0
    %v8275 = vsel %vm6465, %v8226, 0
    %8277 = vmatprep.subr.mxu0 0.0
    %8278 = vmatpush1.msra.mxu0 0.0
    %8279 = vmatprep.subr.mxu0 0.0
    %8280 = vmatpush1.msra.mxu0 0.0
    %8281 = vmatprep.subr.mxu0 0.0
    %8282 = vmatpush1.msra.mxu0 0.0
    %8283 = vmatprep.subr.mxu0 0.0
    %8284 = vmatpush1.msra.mxu0 0.0
    %8285 = vmatprep.subr.mxu0 0.0
    %8286 = vmatpush1.msra.mxu0 0.0
    %8287 = vmatprep.subr.mxu0 0.0
    %8288 = vmatpush1.msra.mxu0 0.0
    %8289 = vmatprep.subr.mxu0 0.0
    %8290 = vmatpush1.msra.mxu0 0.0
    %8291 = vmatprep.subr.mxu0 0.0
    %8292 = vmatpush1.msra.mxu0 0.0
    %8293 = vmatprep.subr.mxu0 0.0
    %8294 = vmatpush1.msra.mxu0 0.0
    %8295 = vmatprep.subr.mxu0 0.0
    %8296 = vmatpush1.msra.mxu0 0.0
    %8297 = vmatprep.subr.mxu0 0.0
    %8298 = vmatpush1.msra.mxu0 0.0
    %8299 = vmatprep.subr.mxu0 0.0
    %8300 = vmatpush1.msra.mxu0 0.0
    %8301 = vmatprep.subr.mxu0 0.0
    %8302 = vmatpush1.msra.mxu0 0.0
    %8303 = vmatprep.subr.mxu0 0.0
    %8304 = vmatpush1.msra.mxu0 0.0
    %8305 = vmatprep.subr.mxu0 0.0
    %8306 = vmatpush1.msra.mxu0 0.0
    %8307 = vmatprep.subr.mxu0 0.0
    %8308 = vmatpush1.msra.mxu0 %v8228
    %8309 = vmatprep.subr.mxu0 0.0
    %8310 = vmatpush2.msra.mxu0 0.0
    %8311 = vmatprep.subr.mxu0 0.0
    %8312 = vmatpush2.msra.mxu0 0.0
    %8313 = vmatprep.subr.mxu0 0.0
    %8314 = vmatpush2.msra.mxu0 0.0
    %8315 = vmatprep.subr.mxu0 0.0
    %8316 = vmatpush2.msra.mxu0 0.0
    %8317 = vmatprep.subr.mxu0 0.0
    %8318 = vmatpush2.msra.mxu0 0.0
    %8319 = vmatprep.subr.mxu0 0.0
    %8320 = vmatpush2.msra.mxu0 0.0
    %8321 = vmatprep.subr.mxu0 0.0
    %8322 = vmatpush2.msra.mxu0 0.0
    %8323 = vmatprep.subr.mxu0 0.0
    %8324 = vmatpush2.msra.mxu0 0.0
    %8325 = vmatprep.subr.mxu0 0.0
    %8326 = vmatpush2.msra.mxu0 0.0
    %8327 = vmatprep.subr.mxu0 0.0
    %8328 = vmatpush2.msra.mxu0 0.0
    %8329 = vmatprep.subr.mxu0 0.0
    %8330 = vmatpush2.msra.mxu0 0.0
    %8331 = vmatprep.subr.mxu0 0.0
    %8332 = vmatpush2.msra.mxu0 0.0
    %8333 = vmatprep.subr.mxu0 0.0
    %8334 = vmatpush2.msra.mxu0 0.0
    %8335 = vmatprep.subr.mxu0 0.0
    %8336 = vmatpush2.msra.mxu0 0.0
    %8337 = vmatprep.subr.mxu0 0.0
    %8338 = vmatpush2.msra.mxu0 0.0
    %8339 = vmatprep.subr.mxu0 0.0
    %8340 = vmatpush2.msra.mxu0 0.0
    %8341 = vmatprep.mubr.f32.mxu0 0.0
    %8342 = vmatmul.mubr.f32.gmra.mxu0 %v8230
    %v8343 = vpop.f32.mrf.mxu0
    %v8344 = vadd.f32 0.0, %v8343
    %v8345 = vpop.f32.mrf.mxu0
    %8346 = vmatprep.mubr.f32.mxu0 0.0
    %8347 = vmatmul.mubr.f32.gmra.mxu0 %v8233
    %v8348 = vpop.f32.mrf.mxu0
    %v8349 = vadd.f32 0.0, %v8348
    %v8350 = vpop.f32.mrf.mxu0
    %8351 = vmatprep.mubr.f32.mxu0 0.0
    %8352 = vmatmul.mubr.f32.gmra.mxu0 %v8236
    %v8353 = vpop.f32.mrf.mxu0
    %v8354 = vadd.f32 0.0, %v8353
    %v8355 = vpop.f32.mrf.mxu0
    %8356 = vmatprep.mubr.f32.mxu0 0.0
    %8357 = vmatmul.mubr.f32.gmra.mxu0 %v8239
    %v8358 = vpop.f32.mrf.mxu0
    %v8359 = vadd.f32 0.0, %v8358
    %v8360 = vpop.f32.mrf.mxu0
    %8361 = vmatprep.mubr.f32.mxu0 0.0
    %8362 = vmatmul.mubr.f32.gmra.mxu0 %v8242
    %v8363 = vpop.f32.mrf.mxu0
    %v8364 = vadd.f32 0.0, %v8363
    %v8365 = vpop.f32.mrf.mxu0
    %8366 = vmatprep.mubr.f32.mxu0 0.0
    %8367 = vmatmul.mubr.f32.gmra.mxu0 %v8245
    %v8368 = vpop.f32.mrf.mxu0
    %v8369 = vadd.f32 0.0, %v8368
    %v8370 = vpop.f32.mrf.mxu0
    %8371 = vmatprep.mubr.f32.mxu0 0.0
    %8372 = vmatmul.mubr.f32.gmra.mxu0 %v8248
    %v8373 = vpop.f32.mrf.mxu0
    %v8374 = vadd.f32 0.0, %v8373
    %v8375 = vpop.f32.mrf.mxu0
    %8376 = vmatprep.mubr.f32.mxu0 0.0
    %8377 = vmatmul.mubr.f32.gmra.mxu0 %v8251
    %v8378 = vpop.f32.mrf.mxu0
    %v8379 = vadd.f32 0.0, %v8378
    %v8380 = vpop.f32.mrf.mxu0
    %8381 = vmatprep.mubr.f32.mxu0 0.0
    %8382 = vmatmul.mubr.f32.gmra.mxu0 %v8254
    %v8383 = vpop.f32.mrf.mxu0
    %v8384 = vadd.f32 0.0, %v8383
    %v8385 = vpop.f32.mrf.mxu0
    %8386 = vmatprep.mubr.f32.mxu0 0.0
    %8387 = vmatmul.mubr.f32.gmra.mxu0 %v8257
    %v8388 = vpop.f32.mrf.mxu0
    %v8389 = vadd.f32 0.0, %v8388
    %v8390 = vpop.f32.mrf.mxu0
    %8391 = vmatprep.mubr.f32.mxu0 0.0
    %8392 = vmatmul.mubr.f32.gmra.mxu0 %v8260
    %v8393 = vpop.f32.mrf.mxu0
    %v8394 = vadd.f32 0.0, %v8393
    %v8395 = vpop.f32.mrf.mxu0
    %8396 = vmatprep.mubr.f32.mxu0 0.0
    %8397 = vmatmul.mubr.f32.gmra.mxu0 %v8263
    %v8398 = vpop.f32.mrf.mxu0
    %v8399 = vadd.f32 0.0, %v8398
    %v8400 = vpop.f32.mrf.mxu0
    %8401 = vmatprep.mubr.f32.mxu0 0.0
    %8402 = vmatmul.mubr.f32.gmra.mxu0 %v8266
    %v8403 = vpop.f32.mrf.mxu0
    %v8404 = vadd.f32 0.0, %v8403
    %v8405 = vpop.f32.mrf.mxu0
    %8406 = vmatprep.mubr.f32.mxu0 0.0
    %8407 = vmatmul.mubr.f32.gmra.mxu0 %v8269
    %v8408 = vpop.f32.mrf.mxu0
    %v8409 = vadd.f32 0.0, %v8408
    %v8410 = vpop.f32.mrf.mxu0
    %8411 = vmatprep.mubr.f32.mxu0 0.0
    %8412 = vmatmul.mubr.f32.gmra.mxu0 %v8272
    %v8413 = vpop.f32.mrf.mxu0
    %v8414 = vadd.f32 0.0, %v8413
    %v8415 = vpop.f32.mrf.mxu0
    %8416 = vmatprep.mubr.f32.mxu0 0.0
    %8417 = vmatmul.mubr.f32.gmra.mxu0 %v8275
    %v8418 = vpop.f32.mrf.mxu0
    %v8419 = vadd.f32 0.0, %v8418
    %v8420 = vpop.f32.mrf.mxu0
    %8421 = vdwg.mxu0
    %v8422 = vadd.f32 %v8195, %v8344
    %v8423 = vadd.f32 %v8196, %v8349
    %v8424 = vadd.f32 %v8197, %v8354
    %v8425 = vadd.f32 %v8198, %v8359
    %v8426 = vadd.f32 %v8199, %v8364
    %v8427 = vadd.f32 %v8200, %v8369
    %v8428 = vadd.f32 %v8201, %v8374
    %v8429 = vadd.f32 %v8202, %v8379
    %v8430 = vadd.f32 %v8203, %v8384
    %v8431 = vadd.f32 %v8204, %v8389
    %v8432 = vadd.f32 %v8205, %v8394
    %v8433 = vadd.f32 %v8206, %v8399
    %v8434 = vadd.f32 %v8207, %v8404
    %v8435 = vadd.f32 %v8208, %v8409
    %v8436 = vadd.f32 %v8209, %v8414
    %v8437 = vadd.f32 %v8210, %v8419
    %v8438 = vld [vmem:[%s7983 + $0x9] sm:$0xff]
    %v8439 = vld [vmem:[%s7983 + $0x21] sm:$0xff]
    %v8440 = vld [vmem:[%s7983 + $0x39] sm:$0xff]
    %v8441 = vld [vmem:[%s7983 + $0x51] sm:$0xff]
    %v8442 = vld [vmem:[%s7983 + $0x69] sm:$0xff]
    %v8443 = vld [vmem:[%s7983 + $0x81] sm:$0xff]
    %v8444 = vld [vmem:[%s7983 + $0x99] sm:$0xff]
    %v8445 = vld [vmem:[%s7983 + $0xb1] sm:$0xff]
    %v8446 = vld [vmem:[%s7983 + $0xf9] sm:$0xff]
    %v8447 = vld [vmem:[%s7983 + $0x111] sm:$0xff]
    %v8448 = vld [vmem:[%s7983 + $0x129] sm:$0xff]
    %v8449 = vld [vmem:[%s7983 + $0x141] sm:$0xff]
    %v8450 = vld [vmem:[%s7983 + $0x159] sm:$0xff]
    %v8451 = vld [vmem:[%s7983 + $0x171] sm:$0xff]
    %v8452 = vld [vmem:[%s7983 + $0x189] sm:$0xff]
    %v8453 = vld [vmem:[%s7983 + $0x1a1] sm:$0xff]
    %s8454 = scalar_lea.vmem %s3, 64
    %v8455 = vld [vmem:[%s8454] sm:$0xff]
    %v8457 = vsel %vm6465, %v8438, 0
    %v8460 = vsel %vm6465, %v8439, 0
    %v8463 = vsel %vm6465, %v8440, 0
    %v8466 = vsel %vm6465, %v8441, 0
    %v8469 = vsel %vm6465, %v8442, 0
    %v8472 = vsel %vm6465, %v8443, 0
    %v8475 = vsel %vm6465, %v8444, 0
    %v8478 = vsel %vm6465, %v8445, 0
    %v8481 = vsel %vm6465, %v8446, 0
    %v8484 = vsel %vm6465, %v8447, 0
    %v8487 = vsel %vm6465, %v8448, 0
    %v8490 = vsel %vm6465, %v8449, 0
    %v8493 = vsel %vm6465, %v8450, 0
    %v8496 = vsel %vm6465, %v8451, 0
    %v8499 = vsel %vm6465, %v8452, 0
    %v8502 = vsel %vm6465, %v8453, 0
    %8504 = vmatprep.subr.mxu0 0.0
    %8505 = vmatpush1.msra.mxu0 0.0
    %8506 = vmatprep.subr.mxu0 0.0
    %8507 = vmatpush1.msra.mxu0 0.0
    %8508 = vmatprep.subr.mxu0 0.0
    %8509 = vmatpush1.msra.mxu0 0.0
    %8510 = vmatprep.subr.mxu0 0.0
    %8511 = vmatpush1.msra.mxu0 0.0
    %8512 = vmatprep.subr.mxu0 0.0
    %8513 = vmatpush1.msra.mxu0 0.0
    %8514 = vmatprep.subr.mxu0 0.0
    %8515 = vmatpush1.msra.mxu0 0.0
    %8516 = vmatprep.subr.mxu0 0.0
    %8517 = vmatpush1.msra.mxu0 0.0
    %8518 = vmatprep.subr.mxu0 0.0
    %8519 = vmatpush1.msra.mxu0 0.0
    %8520 = vmatprep.subr.mxu0 0.0
    %8521 = vmatpush1.msra.mxu0 0.0
    %8522 = vmatprep.subr.mxu0 0.0
    %8523 = vmatpush1.msra.mxu0 0.0
    %8524 = vmatprep.subr.mxu0 0.0
    %8525 = vmatpush1.msra.mxu0 0.0
    %8526 = vmatprep.subr.mxu0 0.0
    %8527 = vmatpush1.msra.mxu0 0.0
    %8528 = vmatprep.subr.mxu0 0.0
    %8529 = vmatpush1.msra.mxu0 0.0
    %8530 = vmatprep.subr.mxu0 0.0
    %8531 = vmatpush1.msra.mxu0 0.0
    %8532 = vmatprep.subr.mxu0 0.0
    %8533 = vmatpush1.msra.mxu0 0.0
    %8534 = vmatprep.subr.mxu0 0.0
    %8535 = vmatpush1.msra.mxu0 %v8455
    %8536 = vmatprep.subr.mxu0 0.0
    %8537 = vmatpush2.msra.mxu0 0.0
    %8538 = vmatprep.subr.mxu0 0.0
    %8539 = vmatpush2.msra.mxu0 0.0
    %8540 = vmatprep.subr.mxu0 0.0
    %8541 = vmatpush2.msra.mxu0 0.0
    %8542 = vmatprep.subr.mxu0 0.0
    %8543 = vmatpush2.msra.mxu0 0.0
    %8544 = vmatprep.subr.mxu0 0.0
    %8545 = vmatpush2.msra.mxu0 0.0
    %8546 = vmatprep.subr.mxu0 0.0
    %8547 = vmatpush2.msra.mxu0 0.0
    %8548 = vmatprep.subr.mxu0 0.0
    %8549 = vmatpush2.msra.mxu0 0.0
    %8550 = vmatprep.subr.mxu0 0.0
    %8551 = vmatpush2.msra.mxu0 0.0
    %8552 = vmatprep.subr.mxu0 0.0
    %8553 = vmatpush2.msra.mxu0 0.0
    %8554 = vmatprep.subr.mxu0 0.0
    %8555 = vmatpush2.msra.mxu0 0.0
    %8556 = vmatprep.subr.mxu0 0.0
    %8557 = vmatpush2.msra.mxu0 0.0
    %8558 = vmatprep.subr.mxu0 0.0
    %8559 = vmatpush2.msra.mxu0 0.0
    %8560 = vmatprep.subr.mxu0 0.0
    %8561 = vmatpush2.msra.mxu0 0.0
    %8562 = vmatprep.subr.mxu0 0.0
    %8563 = vmatpush2.msra.mxu0 0.0
    %8564 = vmatprep.subr.mxu0 0.0
    %8565 = vmatpush2.msra.mxu0 0.0
    %8566 = vmatprep.subr.mxu0 0.0
    %8567 = vmatpush2.msra.mxu0 0.0
    %8568 = vmatprep.mubr.f32.mxu0 0.0
    %8569 = vmatmul.mubr.f32.gmra.mxu0 %v8457
    %v8570 = vpop.f32.mrf.mxu0
    %v8571 = vadd.f32 0.0, %v8570
    %v8572 = vpop.f32.mrf.mxu0
    %8573 = vmatprep.mubr.f32.mxu0 0.0
    %8574 = vmatmul.mubr.f32.gmra.mxu0 %v8460
    %v8575 = vpop.f32.mrf.mxu0
    %v8576 = vadd.f32 0.0, %v8575
    %v8577 = vpop.f32.mrf.mxu0
    %8578 = vmatprep.mubr.f32.mxu0 0.0
    %8579 = vmatmul.mubr.f32.gmra.mxu0 %v8463
    %v8580 = vpop.f32.mrf.mxu0
    %v8581 = vadd.f32 0.0, %v8580
    %v8582 = vpop.f32.mrf.mxu0
    %8583 = vmatprep.mubr.f32.mxu0 0.0
    %8584 = vmatmul.mubr.f32.gmra.mxu0 %v8466
    %v8585 = vpop.f32.mrf.mxu0
    %v8586 = vadd.f32 0.0, %v8585
    %v8587 = vpop.f32.mrf.mxu0
    %8588 = vmatprep.mubr.f32.mxu0 0.0
    %8589 = vmatmul.mubr.f32.gmra.mxu0 %v8469
    %v8590 = vpop.f32.mrf.mxu0
    %v8591 = vadd.f32 0.0, %v8590
    %v8592 = vpop.f32.mrf.mxu0
    %8593 = vmatprep.mubr.f32.mxu0 0.0
    %8594 = vmatmul.mubr.f32.gmra.mxu0 %v8472
    %v8595 = vpop.f32.mrf.mxu0
    %v8596 = vadd.f32 0.0, %v8595
    %v8597 = vpop.f32.mrf.mxu0
    %8598 = vmatprep.mubr.f32.mxu0 0.0
    %8599 = vmatmul.mubr.f32.gmra.mxu0 %v8475
    %v8600 = vpop.f32.mrf.mxu0
    %v8601 = vadd.f32 0.0, %v8600
    %v8602 = vpop.f32.mrf.mxu0
    %8603 = vmatprep.mubr.f32.mxu0 0.0
    %8604 = vmatmul.mubr.f32.gmra.mxu0 %v8478
    %v8605 = vpop.f32.mrf.mxu0
    %v8606 = vadd.f32 0.0, %v8605
    %v8607 = vpop.f32.mrf.mxu0
    %8608 = vmatprep.mubr.f32.mxu0 0.0
    %8609 = vmatmul.mubr.f32.gmra.mxu0 %v8481
    %v8610 = vpop.f32.mrf.mxu0
    %v8611 = vadd.f32 0.0, %v8610
    %v8612 = vpop.f32.mrf.mxu0
    %8613 = vmatprep.mubr.f32.mxu0 0.0
    %8614 = vmatmul.mubr.f32.gmra.mxu0 %v8484
    %v8615 = vpop.f32.mrf.mxu0
    %v8616 = vadd.f32 0.0, %v8615
    %v8617 = vpop.f32.mrf.mxu0
    %8618 = vmatprep.mubr.f32.mxu0 0.0
    %8619 = vmatmul.mubr.f32.gmra.mxu0 %v8487
    %v8620 = vpop.f32.mrf.mxu0
    %v8621 = vadd.f32 0.0, %v8620
    %v8622 = vpop.f32.mrf.mxu0
    %8623 = vmatprep.mubr.f32.mxu0 0.0
    %8624 = vmatmul.mubr.f32.gmra.mxu0 %v8490
    %v8625 = vpop.f32.mrf.mxu0
    %v8626 = vadd.f32 0.0, %v8625
    %v8627 = vpop.f32.mrf.mxu0
    %8628 = vmatprep.mubr.f32.mxu0 0.0
    %8629 = vmatmul.mubr.f32.gmra.mxu0 %v8493
    %v8630 = vpop.f32.mrf.mxu0
    %v8631 = vadd.f32 0.0, %v8630
    %v8632 = vpop.f32.mrf.mxu0
    %8633 = vmatprep.mubr.f32.mxu0 0.0
    %8634 = vmatmul.mubr.f32.gmra.mxu0 %v8496
    %v8635 = vpop.f32.mrf.mxu0
    %v8636 = vadd.f32 0.0, %v8635
    %v8637 = vpop.f32.mrf.mxu0
    %8638 = vmatprep.mubr.f32.mxu0 0.0
    %8639 = vmatmul.mubr.f32.gmra.mxu0 %v8499
    %v8640 = vpop.f32.mrf.mxu0
    %v8641 = vadd.f32 0.0, %v8640
    %v8642 = vpop.f32.mrf.mxu0
    %8643 = vmatprep.mubr.f32.mxu0 0.0
    %8644 = vmatmul.mubr.f32.gmra.mxu0 %v8502
    %v8645 = vpop.f32.mrf.mxu0
    %v8646 = vadd.f32 0.0, %v8645
    %v8647 = vpop.f32.mrf.mxu0
    %8648 = vdwg.mxu0
    %v8649 = vadd.f32 %v8422, %v8571
    %v8650 = vadd.f32 %v8423, %v8576
    %v8651 = vadd.f32 %v8424, %v8581
    %v8652 = vadd.f32 %v8425, %v8586
    %v8653 = vadd.f32 %v8426, %v8591
    %v8654 = vadd.f32 %v8427, %v8596
    %v8655 = vadd.f32 %v8428, %v8601
    %v8656 = vadd.f32 %v8429, %v8606
    %v8657 = vadd.f32 %v8430, %v8611
    %v8658 = vadd.f32 %v8431, %v8616
    %v8659 = vadd.f32 %v8432, %v8621
    %v8660 = vadd.f32 %v8433, %v8626
    %v8661 = vadd.f32 %v8434, %v8631
    %v8662 = vadd.f32 %v8435, %v8636
    %v8663 = vadd.f32 %v8436, %v8641
    %v8664 = vadd.f32 %v8437, %v8646
    %v8665 = vld [vmem:[%s4] sm:$0x1]
    %v8667 = vlaneseq
    %v8668 = vshrl.u32 %v8667, 7
    %v8669 = vsub.s32 0, %v8668
    %v8670 = vrot.slane %v8665, %v8669
    %v8672 = vadd.f32 %v8649, %v8670
    %v8673 = vadd.f32 %v8650, %v8670
    %v8674 = vadd.f32 %v8651, %v8670
    %v8675 = vadd.f32 %v8652, %v8670
    %v8676 = vadd.f32 %v8653, %v8670
    %v8677 = vadd.f32 %v8654, %v8670
    %v8678 = vadd.f32 %v8655, %v8670
    %v8679 = vadd.f32 %v8656, %v8670
    %v8680 = vadd.f32 %v8657, %v8670
    %v8681 = vadd.f32 %v8658, %v8670
    %v8682 = vadd.f32 %v8659, %v8670
    %v8683 = vadd.f32 %v8660, %v8670
    %v8684 = vadd.f32 %v8661, %v8670
    %v8685 = vadd.f32 %v8662, %v8670
    %v8686 = vadd.f32 %v8663, %v8670
    %v8687 = vadd.f32 %v8664, %v8670
    %v8688 = vmax.f32 %v8672, 0.0
    %v8689 = vmax.f32 %v8673, 0.0
    %v8690 = vmax.f32 %v8674, 0.0
    %v8691 = vmax.f32 %v8675, 0.0
    %v8692 = vmax.f32 %v8676, 0.0
    %v8693 = vmax.f32 %v8677, 0.0
    %v8694 = vmax.f32 %v8678, 0.0
    %v8695 = vmax.f32 %v8679, 0.0
    %v8696 = vmax.f32 %v8680, 0.0
    %v8697 = vmax.f32 %v8681, 0.0
    %v8698 = vmax.f32 %v8682, 0.0
    %v8699 = vmax.f32 %v8683, 0.0
    %v8700 = vmax.f32 %v8684, 0.0
    %v8701 = vmax.f32 %v8685, 0.0
    %v8702 = vmax.f32 %v8686, 0.0
    %v8703 = vmax.f32 %v8687, 0.0
    %v8704 = vmax.f32 %v8688, %v8689
    %v8705 = vmax.f32 %v8690, %v8691
    %v8706 = vmax.f32 %v8692, %v8693
    %v8707 = vmax.f32 %v8694, %v8695
    %v8708 = vmax.f32 %v8696, %v8697
    %v8709 = vmax.f32 %v8698, %v8699
    %v8710 = vmax.f32 %v8700, %v8701
    %v8711 = vmax.f32 %v8702, %v8703
    %vm8712 = vcmask 130048
    %8713 = vst.msk [vmem:[#allocation4] sm:$0xff] %vm8712, %v8704
    %8714 = vst.msk [vmem:[#allocation4 + $0x8] sm:$0xff] %vm8712, %v8705
    %8715 = vst.msk [vmem:[#allocation4 + $0x10] sm:$0xff] %vm8712, %v8706
    %8716 = vst.msk [vmem:[#allocation4 + $0x18] sm:$0xff] %vm8712, %v8707
    %8717 = vst.msk [vmem:[#allocation4 + $0x20] sm:$0xff] %vm8712, %v8708
    %8718 = vst.msk [vmem:[#allocation4 + $0x28] sm:$0xff] %vm8712, %v8709
    %8719 = vst.msk [vmem:[#allocation4 + $0x30] sm:$0xff] %vm8712, %v8710
    %8720 = vst.msk [vmem:[#allocation4 + $0x38] sm:$0xff] %vm8712, %v8711
    %v8721 = vld [vmem:[#allocation4] ss:$2 sm:$0xf]
    %s8722 = scalar_lea.vmem [#allocation4], 8
    %v8723 = vld [vmem:[%s8722] ss:$2 sm:$0xf]
    %s8724 = scalar_lea.vmem [#allocation4], 16
    %v8725 = vld [vmem:[%s8724] ss:$2 sm:$0xf]
    %s8726 = scalar_lea.vmem [#allocation4], 24
    %v8727 = vld [vmem:[%s8726] ss:$2 sm:$0xf]
    %s8728 = scalar_lea.vmem [#allocation4], 32
    %v8729 = vld [vmem:[%s8728] ss:$2 sm:$0xf]
    %s8730 = scalar_lea.vmem [#allocation4], 40
    %v8731 = vld [vmem:[%s8730] ss:$2 sm:$0xf]
    %s8732 = scalar_lea.vmem [#allocation4], 48
    %v8733 = vld [vmem:[%s8732] ss:$2 sm:$0xf]
    %s8734 = scalar_lea.vmem [#allocation4], 56
    %v8735 = vld [vmem:[%s8734] ss:$2 sm:$0xf]
    %s8736 = scalar_lea.vmem [#allocation4], 1
    %v8737 = vld [vmem:[%s8736] ss:$2 sm:$0xf]
    %s8738 = scalar_lea.vmem [#allocation4], 9
    %v8739 = vld [vmem:[%s8738] ss:$2 sm:$0xf]
    %s8740 = scalar_lea.vmem [#allocation4], 17
    %v8741 = vld [vmem:[%s8740] ss:$2 sm:$0xf]
    %s8742 = scalar_lea.vmem [#allocation4], 25
    %v8743 = vld [vmem:[%s8742] ss:$2 sm:$0xf]
    %s8744 = scalar_lea.vmem [#allocation4], 33
    %v8745 = vld [vmem:[%s8744] ss:$2 sm:$0xf]
    %s8746 = scalar_lea.vmem [#allocation4], 41
    %v8747 = vld [vmem:[%s8746] ss:$2 sm:$0xf]
    %s8748 = scalar_lea.vmem [#allocation4], 49
    %v8749 = vld [vmem:[%s8748] ss:$2 sm:$0xf]
    %s8750 = scalar_lea.vmem [#allocation4], 57
    %v8751 = vld [vmem:[%s8750] ss:$2 sm:$0xf]
    %v8752 = vmax.f32 %v8721, %v8737
    %v8753 = vmax.f32 %v8723, %v8739
    %v8754 = vmax.f32 %v8725, %v8741
    %v8755 = vmax.f32 %v8727, %v8743
    %v8756 = vmax.f32 %v8729, %v8745
    %v8757 = vmax.f32 %v8731, %v8747
    %v8758 = vmax.f32 %v8733, %v8749
    %v8759 = vmax.f32 %v8735, %v8751
    %vm8760 = vcmask 125952
    %8761 = vst.msk [vmem:[#allocation5] sm:$0xf] %vm8760, %v8752
    %8762 = vst.msk [vmem:[#allocation5 + $0x4] sm:$0xf] %vm8760, %v8753
    %8763 = vst.msk [vmem:[#allocation5 + $0x8] sm:$0xf] %vm8760, %v8754
    %8764 = vst.msk [vmem:[#allocation5 + $0xc] sm:$0xf] %vm8760, %v8755
    %8765 = vst.msk [vmem:[#allocation5 + $0x10] sm:$0xf] %vm8760, %v8756
    %8766 = vst.msk [vmem:[#allocation5 + $0x14] sm:$0xf] %vm8760, %v8757
    %8767 = vst.msk [vmem:[#allocation5 + $0x18] sm:$0xf] %vm8760, %v8758
    %8768 = vst.msk [vmem:[#allocation5 + $0x1c] sm:$0xf] %vm8760, %v8759
    %v8769 = vld [vmem:[#allocation5] sm:$0x1]
    %v8770 = vld [vmem:[#allocation5 + $0x10] sm:$0x1]
    %v8771 = vld [vmem:[%s5] sm:$0xff]
    %v8772 = vld [vmem:[%s5 + $0x8] sm:$0xff]
    %v8773 = vld [vmem:[#allocation5 + $0x1] sm:$0x1]
    %v8774 = vld [vmem:[#allocation5 + $0x11] sm:$0x1]
    %s8775 = scalar_lea.vmem %s5, 16
    %v8776 = vld [vmem:[%s8775] sm:$0xff]
    %v8777 = vld [vmem:[%s8775 + $0x8] sm:$0xff]
    %v8780 = vrot.slane %v8774, 7
    %vm8781 = vcmask 1041409
    %v8782 = vsel %vm8781, %v8780, %v8773
    %v8783 = vsel %vm8712, %v8782, 0
    %8785 = vmatprep.subr.mxu0 0.0
    %8786 = vmatpush1.msra.mxu0 0.0
    %8787 = vmatprep.subr.mxu0 0.0
    %8788 = vmatpush1.msra.mxu0 0.0
    %8789 = vmatprep.subr.mxu0 0.0
    %8790 = vmatpush1.msra.mxu0 0.0
    %8791 = vmatprep.subr.mxu0 0.0
    %8792 = vmatpush1.msra.mxu0 0.0
    %8793 = vmatprep.subr.mxu0 0.0
    %8794 = vmatpush1.msra.mxu0 0.0
    %8795 = vmatprep.subr.mxu0 0.0
    %8796 = vmatpush1.msra.mxu0 0.0
    %8797 = vmatprep.subr.mxu0 0.0
    %8798 = vmatpush1.msra.mxu0 0.0
    %8799 = vmatprep.subr.mxu0 0.0
    %8800 = vmatpush1.msra.mxu0 0.0
    %8801 = vmatprep.subr.mxu0 0.0
    %8802 = vmatpush1.msra.mxu0 0.0
    %8803 = vmatprep.subr.mxu0 0.0
    %8804 = vmatpush1.msra.mxu0 0.0
    %8805 = vmatprep.subr.mxu0 0.0
    %8806 = vmatpush1.msra.mxu0 0.0
    %8807 = vmatprep.subr.mxu0 0.0
    %8808 = vmatpush1.msra.mxu0 0.0
    %8809 = vmatprep.subr.mxu0 0.0
    %8810 = vmatpush1.msra.mxu0 0.0
    %8811 = vmatprep.subr.mxu0 0.0
    %8812 = vmatpush1.msra.mxu0 0.0
    %8813 = vmatprep.subr.mxu0 0.0
    %8814 = vmatpush1.msra.mxu0 %v8777
    %8815 = vmatprep.subr.mxu0 0.0
    %8816 = vmatpush1.msra.mxu0 %v8776
    %8817 = vmatprep.subr.mxu0 0.0
    %8818 = vmatpush2.msra.mxu0 0.0
    %8819 = vmatprep.subr.mxu0 0.0
    %8820 = vmatpush2.msra.mxu0 0.0
    %8821 = vmatprep.subr.mxu0 0.0
    %8822 = vmatpush2.msra.mxu0 0.0
    %8823 = vmatprep.subr.mxu0 0.0
    %8824 = vmatpush2.msra.mxu0 0.0
    %8825 = vmatprep.subr.mxu0 0.0
    %8826 = vmatpush2.msra.mxu0 0.0
    %8827 = vmatprep.subr.mxu0 0.0
    %8828 = vmatpush2.msra.mxu0 0.0
    %8829 = vmatprep.subr.mxu0 0.0
    %8830 = vmatpush2.msra.mxu0 0.0
    %8831 = vmatprep.subr.mxu0 0.0
    %8832 = vmatpush2.msra.mxu0 0.0
    %8833 = vmatprep.subr.mxu0 0.0
    %8834 = vmatpush2.msra.mxu0 0.0
    %8835 = vmatprep.subr.mxu0 0.0
    %8836 = vmatpush2.msra.mxu0 0.0
    %8837 = vmatprep.subr.mxu0 0.0
    %8838 = vmatpush2.msra.mxu0 0.0
    %8839 = vmatprep.subr.mxu0 0.0
    %8840 = vmatpush2.msra.mxu0 0.0
    %8841 = vmatprep.subr.mxu0 0.0
    %8842 = vmatpush2.msra.mxu0 0.0
    %8843 = vmatprep.subr.mxu0 0.0
    %8844 = vmatpush2.msra.mxu0 0.0
    %8845 = vmatprep.subr.mxu0 0.0
    %8846 = vmatpush2.msra.mxu0 0.0
    %8847 = vmatprep.subr.mxu0 0.0
    %8848 = vmatpush2.msra.mxu0 0.0
    %8849 = vmatprep.mubr.f32.mxu0 0.0
    %8850 = vmatmul.mubr.f32.gmra.mxu0 %v8783
    %v8851 = vpop.f32.mrf.mxu0
    %v8852 = vadd.f32 0.0, %v8851
    %v8853 = vpop.f32.mrf.mxu0
    %8854 = vdwg.mxu0
    %v8857 = vrot.slane %v8770, 7
    %v8858 = vsel %vm8781, %v8857, %v8769
    %v8859 = vsel %vm8712, %v8858, 0
    %8861 = vmatprep.subr.mxu0 0.0
    %8862 = vmatpush1.msra.mxu0 0.0
    %8863 = vmatprep.subr.mxu0 0.0
    %8864 = vmatpush1.msra.mxu0 0.0
    %8865 = vmatprep.subr.mxu0 0.0
    %8866 = vmatpush1.msra.mxu0 0.0
    %8867 = vmatprep.subr.mxu0 0.0
    %8868 = vmatpush1.msra.mxu0 0.0
    %8869 = vmatprep.subr.mxu0 0.0
    %8870 = vmatpush1.msra.mxu0 0.0
    %8871 = vmatprep.subr.mxu0 0.0
    %8872 = vmatpush1.msra.mxu0 0.0
    %8873 = vmatprep.subr.mxu0 0.0
    %8874 = vmatpush1.msra.mxu0 0.0
    %8875 = vmatprep.subr.mxu0 0.0
    %8876 = vmatpush1.msra.mxu0 0.0
    %8877 = vmatprep.subr.mxu0 0.0
    %8878 = vmatpush1.msra.mxu0 0.0
    %8879 = vmatprep.subr.mxu0 0.0
    %8880 = vmatpush1.msra.mxu0 0.0
    %8881 = vmatprep.subr.mxu0 0.0
    %8882 = vmatpush1.msra.mxu0 0.0
    %8883 = vmatprep.subr.mxu0 0.0
    %8884 = vmatpush1.msra.mxu0 0.0
    %8885 = vmatprep.subr.mxu0 0.0
    %8886 = vmatpush1.msra.mxu0 0.0
    %8887 = vmatprep.subr.mxu0 0.0
    %8888 = vmatpush1.msra.mxu0 0.0
    %8889 = vmatprep.subr.mxu0 0.0
    %8890 = vmatpush1.msra.mxu0 %v8772
    %8891 = vmatprep.subr.mxu0 0.0
    %8892 = vmatpush1.msra.mxu0 %v8771
    %8893 = vmatprep.subr.mxu0 0.0
    %8894 = vmatpush2.msra.mxu0 0.0
    %8895 = vmatprep.subr.mxu0 0.0
    %8896 = vmatpush2.msra.mxu0 0.0
    %8897 = vmatprep.subr.mxu0 0.0
    %8898 = vmatpush2.msra.mxu0 0.0
    %8899 = vmatprep.subr.mxu0 0.0
    %8900 = vmatpush2.msra.mxu0 0.0
    %8901 = vmatprep.subr.mxu0 0.0
    %8902 = vmatpush2.msra.mxu0 0.0
    %8903 = vmatprep.subr.mxu0 0.0
    %8904 = vmatpush2.msra.mxu0 0.0
    %8905 = vmatprep.subr.mxu0 0.0
    %8906 = vmatpush2.msra.mxu0 0.0
    %8907 = vmatprep.subr.mxu0 0.0
    %8908 = vmatpush2.msra.mxu0 0.0
    %8909 = vmatprep.subr.mxu0 0.0
    %8910 = vmatpush2.msra.mxu0 0.0
    %8911 = vmatprep.subr.mxu0 0.0
    %8912 = vmatpush2.msra.mxu0 0.0
    %8913 = vmatprep.subr.mxu0 0.0
    %8914 = vmatpush2.msra.mxu0 0.0
    %8915 = vmatprep.subr.mxu0 0.0
    %8916 = vmatpush2.msra.mxu0 0.0
    %8917 = vmatprep.subr.mxu0 0.0
    %8918 = vmatpush2.msra.mxu0 0.0
    %8919 = vmatprep.subr.mxu0 0.0
    %8920 = vmatpush2.msra.mxu0 0.0
    %8921 = vmatprep.subr.mxu0 0.0
    %8922 = vmatpush2.msra.mxu0 0.0
    %8923 = vmatprep.subr.mxu0 0.0
    %8924 = vmatpush2.msra.mxu0 0.0
    %8925 = vmatprep.mubr.f32.mxu0 0.0
    %8926 = vmatmul.mubr.f32.gmra.mxu0 %v8859
    %v8927 = vpop.f32.mrf.mxu0
    %v8928 = vadd.f32 %v8852, %v8927
    %v8929 = vpop.f32.mrf.mxu0
    %8930 = vdwg.mxu0
    %v8931 = vld [vmem:[#allocation5 + $0x2] sm:$0x1]
    %v8932 = vld [vmem:[#allocation5 + $0x12] sm:$0x1]
    %s8933 = scalar_lea.vmem %s5, 32
    %v8934 = vld [vmem:[%s8933] sm:$0xff]
    %v8935 = vld [vmem:[%s8933 + $0x8] sm:$0xff]
    %v8938 = vrot.slane %v8932, 7
    %v8939 = vsel %vm8781, %v8938, %v8931
    %v8940 = vsel %vm8712, %v8939, 0
    %8942 = vmatprep.subr.mxu0 0.0
    %8943 = vmatpush1.msra.mxu0 0.0
    %8944 = vmatprep.subr.mxu0 0.0
    %8945 = vmatpush1.msra.mxu0 0.0
    %8946 = vmatprep.subr.mxu0 0.0
    %8947 = vmatpush1.msra.mxu0 0.0
    %8948 = vmatprep.subr.mxu0 0.0
    %8949 = vmatpush1.msra.mxu0 0.0
    %8950 = vmatprep.subr.mxu0 0.0
    %8951 = vmatpush1.msra.mxu0 0.0
    %8952 = vmatprep.subr.mxu0 0.0
    %8953 = vmatpush1.msra.mxu0 0.0
    %8954 = vmatprep.subr.mxu0 0.0
    %8955 = vmatpush1.msra.mxu0 0.0
    %8956 = vmatprep.subr.mxu0 0.0
    %8957 = vmatpush1.msra.mxu0 0.0
    %8958 = vmatprep.subr.mxu0 0.0
    %8959 = vmatpush1.msra.mxu0 0.0
    %8960 = vmatprep.subr.mxu0 0.0
    %8961 = vmatpush1.msra.mxu0 0.0
    %8962 = vmatprep.subr.mxu0 0.0
    %8963 = vmatpush1.msra.mxu0 0.0
    %8964 = vmatprep.subr.mxu0 0.0
    %8965 = vmatpush1.msra.mxu0 0.0
    %8966 = vmatprep.subr.mxu0 0.0
    %8967 = vmatpush1.msra.mxu0 0.0
    %8968 = vmatprep.subr.mxu0 0.0
    %8969 = vmatpush1.msra.mxu0 0.0
    %8970 = vmatprep.subr.mxu0 0.0
    %8971 = vmatpush1.msra.mxu0 %v8935
    %8972 = vmatprep.subr.mxu0 0.0
    %8973 = vmatpush1.msra.mxu0 %v8934
    %8974 = vmatprep.subr.mxu0 0.0
    %8975 = vmatpush2.msra.mxu0 0.0
    %8976 = vmatprep.subr.mxu0 0.0
    %8977 = vmatpush2.msra.mxu0 0.0
    %8978 = vmatprep.subr.mxu0 0.0
    %8979 = vmatpush2.msra.mxu0 0.0
    %8980 = vmatprep.subr.mxu0 0.0
    %8981 = vmatpush2.msra.mxu0 0.0
    %8982 = vmatprep.subr.mxu0 0.0
    %8983 = vmatpush2.msra.mxu0 0.0
    %8984 = vmatprep.subr.mxu0 0.0
    %8985 = vmatpush2.msra.mxu0 0.0
    %8986 = vmatprep.subr.mxu0 0.0
    %8987 = vmatpush2.msra.mxu0 0.0
    %8988 = vmatprep.subr.mxu0 0.0
    %8989 = vmatpush2.msra.mxu0 0.0
    %8990 = vmatprep.subr.mxu0 0.0
    %8991 = vmatpush2.msra.mxu0 0.0
    %8992 = vmatprep.subr.mxu0 0.0
    %8993 = vmatpush2.msra.mxu0 0.0
    %8994 = vmatprep.subr.mxu0 0.0
    %8995 = vmatpush2.msra.mxu0 0.0
    %8996 = vmatprep.subr.mxu0 0.0
    %8997 = vmatpush2.msra.mxu0 0.0
    %8998 = vmatprep.subr.mxu0 0.0
    %8999 = vmatpush2.msra.mxu0 0.0
    %9000 = vmatprep.subr.mxu0 0.0
    %9001 = vmatpush2.msra.mxu0 0.0
    %9002 = vmatprep.subr.mxu0 0.0
    %9003 = vmatpush2.msra.mxu0 0.0
    %9004 = vmatprep.subr.mxu0 0.0
    %9005 = vmatpush2.msra.mxu0 0.0
    %9006 = vmatprep.mubr.f32.mxu0 0.0
    %9007 = vmatmul.mubr.f32.gmra.mxu0 %v8940
    %v9008 = vpop.f32.mrf.mxu0
    %v9009 = vadd.f32 0.0, %v9008
    %v9010 = vpop.f32.mrf.mxu0
    %9011 = vdwg.mxu0
    %v9012 = vadd.f32 %v8928, %v9009
    %v9013 = vld [vmem:[#allocation5 + $0x3] sm:$0x1]
    %v9014 = vld [vmem:[#allocation5 + $0x13] sm:$0x1]
    %s9015 = scalar_lea.vmem %s5, 48
    %v9016 = vld [vmem:[%s9015] sm:$0xff]
    %v9017 = vld [vmem:[%s9015 + $0x8] sm:$0xff]
    %v9020 = vrot.slane %v9014, 7
    %v9021 = vsel %vm8781, %v9020, %v9013
    %v9022 = vsel %vm8712, %v9021, 0
    %9024 = vmatprep.subr.mxu0 0.0
    %9025 = vmatpush1.msra.mxu0 0.0
    %9026 = vmatprep.subr.mxu0 0.0
    %9027 = vmatpush1.msra.mxu0 0.0
    %9028 = vmatprep.subr.mxu0 0.0
    %9029 = vmatpush1.msra.mxu0 0.0
    %9030 = vmatprep.subr.mxu0 0.0
    %9031 = vmatpush1.msra.mxu0 0.0
    %9032 = vmatprep.subr.mxu0 0.0
    %9033 = vmatpush1.msra.mxu0 0.0
    %9034 = vmatprep.subr.mxu0 0.0
    %9035 = vmatpush1.msra.mxu0 0.0
    %9036 = vmatprep.subr.mxu0 0.0
    %9037 = vmatpush1.msra.mxu0 0.0
    %9038 = vmatprep.subr.mxu0 0.0
    %9039 = vmatpush1.msra.mxu0 0.0
    %9040 = vmatprep.subr.mxu0 0.0
    %9041 = vmatpush1.msra.mxu0 0.0
    %9042 = vmatprep.subr.mxu0 0.0
    %9043 = vmatpush1.msra.mxu0 0.0
    %9044 = vmatprep.subr.mxu0 0.0
    %9045 = vmatpush1.msra.mxu0 0.0
    %9046 = vmatprep.subr.mxu0 0.0
    %9047 = vmatpush1.msra.mxu0 0.0
    %9048 = vmatprep.subr.mxu0 0.0
    %9049 = vmatpush1.msra.mxu0 0.0
    %9050 = vmatprep.subr.mxu0 0.0
    %9051 = vmatpush1.msra.mxu0 0.0
    %9052 = vmatprep.subr.mxu0 0.0
    %9053 = vmatpush1.msra.mxu0 %v9017
    %9054 = vmatprep.subr.mxu0 0.0
    %9055 = vmatpush1.msra.mxu0 %v9016
    %9056 = vmatprep.subr.mxu0 0.0
    %9057 = vmatpush2.msra.mxu0 0.0
    %9058 = vmatprep.subr.mxu0 0.0
    %9059 = vmatpush2.msra.mxu0 0.0
    %9060 = vmatprep.subr.mxu0 0.0
    %9061 = vmatpush2.msra.mxu0 0.0
    %9062 = vmatprep.subr.mxu0 0.0
    %9063 = vmatpush2.msra.mxu0 0.0
    %9064 = vmatprep.subr.mxu0 0.0
    %9065 = vmatpush2.msra.mxu0 0.0
    %9066 = vmatprep.subr.mxu0 0.0
    %9067 = vmatpush2.msra.mxu0 0.0
    %9068 = vmatprep.subr.mxu0 0.0
    %9069 = vmatpush2.msra.mxu0 0.0
    %9070 = vmatprep.subr.mxu0 0.0
    %9071 = vmatpush2.msra.mxu0 0.0
    %9072 = vmatprep.subr.mxu0 0.0
    %9073 = vmatpush2.msra.mxu0 0.0
    %9074 = vmatprep.subr.mxu0 0.0
    %9075 = vmatpush2.msra.mxu0 0.0
    %9076 = vmatprep.subr.mxu0 0.0
    %9077 = vmatpush2.msra.mxu0 0.0
    %9078 = vmatprep.subr.mxu0 0.0
    %9079 = vmatpush2.msra.mxu0 0.0
    %9080 = vmatprep.subr.mxu0 0.0
    %9081 = vmatpush2.msra.mxu0 0.0
    %9082 = vmatprep.subr.mxu0 0.0
    %9083 = vmatpush2.msra.mxu0 0.0
    %9084 = vmatprep.subr.mxu0 0.0
    %9085 = vmatpush2.msra.mxu0 0.0
    %9086 = vmatprep.subr.mxu0 0.0
    %9087 = vmatpush2.msra.mxu0 0.0
    %9088 = vmatprep.mubr.f32.mxu0 0.0
    %9089 = vmatmul.mubr.f32.gmra.mxu0 %v9022
    %v9090 = vpop.f32.mrf.mxu0
    %v9091 = vadd.f32 0.0, %v9090
    %v9092 = vpop.f32.mrf.mxu0
    %9093 = vdwg.mxu0
    %v9094 = vadd.f32 %v9012, %v9091
    %s9095 = scalar_lea.vmem [#allocation5], 4
    %v9096 = vld [vmem:[%s9095] sm:$0x1]
    %v9097 = vld [vmem:[%s9095 + $0x10] sm:$0x1]
    %s9098 = scalar_lea.vmem %s5, 64
    %v9099 = vld [vmem:[%s9098] sm:$0xff]
    %v9100 = vld [vmem:[%s9098 + $0x8] sm:$0xff]
    %v9103 = vrot.slane %v9097, 7
    %v9104 = vsel %vm8781, %v9103, %v9096
    %v9105 = vsel %vm8712, %v9104, 0
    %9107 = vmatprep.subr.mxu0 0.0
    %9108 = vmatpush1.msra.mxu0 0.0
    %9109 = vmatprep.subr.mxu0 0.0
    %9110 = vmatpush1.msra.mxu0 0.0
    %9111 = vmatprep.subr.mxu0 0.0
    %9112 = vmatpush1.msra.mxu0 0.0
    %9113 = vmatprep.subr.mxu0 0.0
    %9114 = vmatpush1.msra.mxu0 0.0
    %9115 = vmatprep.subr.mxu0 0.0
    %9116 = vmatpush1.msra.mxu0 0.0
    %9117 = vmatprep.subr.mxu0 0.0
    %9118 = vmatpush1.msra.mxu0 0.0
    %9119 = vmatprep.subr.mxu0 0.0
    %9120 = vmatpush1.msra.mxu0 0.0
    %9121 = vmatprep.subr.mxu0 0.0
    %9122 = vmatpush1.msra.mxu0 0.0
    %9123 = vmatprep.subr.mxu0 0.0
    %9124 = vmatpush1.msra.mxu0 0.0
    %9125 = vmatprep.subr.mxu0 0.0
    %9126 = vmatpush1.msra.mxu0 0.0
    %9127 = vmatprep.subr.mxu0 0.0
    %9128 = vmatpush1.msra.mxu0 0.0
    %9129 = vmatprep.subr.mxu0 0.0
    %9130 = vmatpush1.msra.mxu0 0.0
    %9131 = vmatprep.subr.mxu0 0.0
    %9132 = vmatpush1.msra.mxu0 0.0
    %9133 = vmatprep.subr.mxu0 0.0
    %9134 = vmatpush1.msra.mxu0 0.0
    %9135 = vmatprep.subr.mxu0 0.0
    %9136 = vmatpush1.msra.mxu0 %v9100
    %9137 = vmatprep.subr.mxu0 0.0
    %9138 = vmatpush1.msra.mxu0 %v9099
    %9139 = vmatprep.subr.mxu0 0.0
    %9140 = vmatpush2.msra.mxu0 0.0
    %9141 = vmatprep.subr.mxu0 0.0
    %9142 = vmatpush2.msra.mxu0 0.0
    %9143 = vmatprep.subr.mxu0 0.0
    %9144 = vmatpush2.msra.mxu0 0.0
    %9145 = vmatprep.subr.mxu0 0.0
    %9146 = vmatpush2.msra.mxu0 0.0
    %9147 = vmatprep.subr.mxu0 0.0
    %9148 = vmatpush2.msra.mxu0 0.0
    %9149 = vmatprep.subr.mxu0 0.0
    %9150 = vmatpush2.msra.mxu0 0.0
    %9151 = vmatprep.subr.mxu0 0.0
    %9152 = vmatpush2.msra.mxu0 0.0
    %9153 = vmatprep.subr.mxu0 0.0
    %9154 = vmatpush2.msra.mxu0 0.0
    %9155 = vmatprep.subr.mxu0 0.0
    %9156 = vmatpush2.msra.mxu0 0.0
    %9157 = vmatprep.subr.mxu0 0.0
    %9158 = vmatpush2.msra.mxu0 0.0
    %9159 = vmatprep.subr.mxu0 0.0
    %9160 = vmatpush2.msra.mxu0 0.0
    %9161 = vmatprep.subr.mxu0 0.0
    %9162 = vmatpush2.msra.mxu0 0.0
    %9163 = vmatprep.subr.mxu0 0.0
    %9164 = vmatpush2.msra.mxu0 0.0
    %9165 = vmatprep.subr.mxu0 0.0
    %9166 = vmatpush2.msra.mxu0 0.0
    %9167 = vmatprep.subr.mxu0 0.0
    %9168 = vmatpush2.msra.mxu0 0.0
    %9169 = vmatprep.subr.mxu0 0.0
    %9170 = vmatpush2.msra.mxu0 0.0
    %9171 = vmatprep.mubr.f32.mxu0 0.0
    %9172 = vmatmul.mubr.f32.gmra.mxu0 %v9105
    %v9173 = vpop.f32.mrf.mxu0
    %v9174 = vadd.f32 0.0, %v9173
    %v9175 = vpop.f32.mrf.mxu0
    %9176 = vdwg.mxu0
    %v9177 = vadd.f32 %v9094, %v9174
    %v9178 = vld [vmem:[%s9095 + $0x1] sm:$0x1]
    %v9179 = vld [vmem:[%s9095 + $0x11] sm:$0x1]
    %s9180 = scalar_lea.vmem %s5, 80
    %v9181 = vld [vmem:[%s9180] sm:$0xff]
    %v9182 = vld [vmem:[%s9180 + $0x8] sm:$0xff]
    %v9185 = vrot.slane %v9179, 7
    %v9186 = vsel %vm8781, %v9185, %v9178
    %v9187 = vsel %vm8712, %v9186, 0
    %9189 = vmatprep.subr.mxu0 0.0
    %9190 = vmatpush1.msra.mxu0 0.0
    %9191 = vmatprep.subr.mxu0 0.0
    %9192 = vmatpush1.msra.mxu0 0.0
    %9193 = vmatprep.subr.mxu0 0.0
    %9194 = vmatpush1.msra.mxu0 0.0
    %9195 = vmatprep.subr.mxu0 0.0
    %9196 = vmatpush1.msra.mxu0 0.0
    %9197 = vmatprep.subr.mxu0 0.0
    %9198 = vmatpush1.msra.mxu0 0.0
    %9199 = vmatprep.subr.mxu0 0.0
    %9200 = vmatpush1.msra.mxu0 0.0
    %9201 = vmatprep.subr.mxu0 0.0
    %9202 = vmatpush1.msra.mxu0 0.0
    %9203 = vmatprep.subr.mxu0 0.0
    %9204 = vmatpush1.msra.mxu0 0.0
    %9205 = vmatprep.subr.mxu0 0.0
    %9206 = vmatpush1.msra.mxu0 0.0
    %9207 = vmatprep.subr.mxu0 0.0
    %9208 = vmatpush1.msra.mxu0 0.0
    %9209 = vmatprep.subr.mxu0 0.0
    %9210 = vmatpush1.msra.mxu0 0.0
    %9211 = vmatprep.subr.mxu0 0.0
    %9212 = vmatpush1.msra.mxu0 0.0
    %9213 = vmatprep.subr.mxu0 0.0
    %9214 = vmatpush1.msra.mxu0 0.0
    %9215 = vmatprep.subr.mxu0 0.0
    %9216 = vmatpush1.msra.mxu0 0.0
    %9217 = vmatprep.subr.mxu0 0.0
    %9218 = vmatpush1.msra.mxu0 %v9182
    %9219 = vmatprep.subr.mxu0 0.0
    %9220 = vmatpush1.msra.mxu0 %v9181
    %9221 = vmatprep.subr.mxu0 0.0
    %9222 = vmatpush2.msra.mxu0 0.0
    %9223 = vmatprep.subr.mxu0 0.0
    %9224 = vmatpush2.msra.mxu0 0.0
    %9225 = vmatprep.subr.mxu0 0.0
    %9226 = vmatpush2.msra.mxu0 0.0
    %9227 = vmatprep.subr.mxu0 0.0
    %9228 = vmatpush2.msra.mxu0 0.0
    %9229 = vmatprep.subr.mxu0 0.0
    %9230 = vmatpush2.msra.mxu0 0.0
    %9231 = vmatprep.subr.mxu0 0.0
    %9232 = vmatpush2.msra.mxu0 0.0
    %9233 = vmatprep.subr.mxu0 0.0
    %9234 = vmatpush2.msra.mxu0 0.0
    %9235 = vmatprep.subr.mxu0 0.0
    %9236 = vmatpush2.msra.mxu0 0.0
    %9237 = vmatprep.subr.mxu0 0.0
    %9238 = vmatpush2.msra.mxu0 0.0
    %9239 = vmatprep.subr.mxu0 0.0
    %9240 = vmatpush2.msra.mxu0 0.0
    %9241 = vmatprep.subr.mxu0 0.0
    %9242 = vmatpush2.msra.mxu0 0.0
    %9243 = vmatprep.subr.mxu0 0.0
    %9244 = vmatpush2.msra.mxu0 0.0
    %9245 = vmatprep.subr.mxu0 0.0
    %9246 = vmatpush2.msra.mxu0 0.0
    %9247 = vmatprep.subr.mxu0 0.0
    %9248 = vmatpush2.msra.mxu0 0.0
    %9249 = vmatprep.subr.mxu0 0.0
    %9250 = vmatpush2.msra.mxu0 0.0
    %9251 = vmatprep.subr.mxu0 0.0
    %9252 = vmatpush2.msra.mxu0 0.0
    %9253 = vmatprep.mubr.f32.mxu0 0.0
    %9254 = vmatmul.mubr.f32.gmra.mxu0 %v9187
    %v9255 = vpop.f32.mrf.mxu0
    %v9256 = vadd.f32 0.0, %v9255
    %v9257 = vpop.f32.mrf.mxu0
    %9258 = vdwg.mxu0
    %v9259 = vadd.f32 %v9177, %v9256
    %v9260 = vld [vmem:[%s9095 + $0x2] sm:$0x1]
    %v9261 = vld [vmem:[%s9095 + $0x12] sm:$0x1]
    %s9262 = scalar_lea.vmem %s5, 96
    %v9263 = vld [vmem:[%s9262] sm:$0xff]
    %v9264 = vld [vmem:[%s9262 + $0x8] sm:$0xff]
    %v9267 = vrot.slane %v9261, 7
    %v9268 = vsel %vm8781, %v9267, %v9260
    %v9269 = vsel %vm8712, %v9268, 0
    %9271 = vmatprep.subr.mxu0 0.0
    %9272 = vmatpush1.msra.mxu0 0.0
    %9273 = vmatprep.subr.mxu0 0.0
    %9274 = vmatpush1.msra.mxu0 0.0
    %9275 = vmatprep.subr.mxu0 0.0
    %9276 = vmatpush1.msra.mxu0 0.0
    %9277 = vmatprep.subr.mxu0 0.0
    %9278 = vmatpush1.msra.mxu0 0.0
    %9279 = vmatprep.subr.mxu0 0.0
    %9280 = vmatpush1.msra.mxu0 0.0
    %9281 = vmatprep.subr.mxu0 0.0
    %9282 = vmatpush1.msra.mxu0 0.0
    %9283 = vmatprep.subr.mxu0 0.0
    %9284 = vmatpush1.msra.mxu0 0.0
    %9285 = vmatprep.subr.mxu0 0.0
    %9286 = vmatpush1.msra.mxu0 0.0
    %9287 = vmatprep.subr.mxu0 0.0
    %9288 = vmatpush1.msra.mxu0 0.0
    %9289 = vmatprep.subr.mxu0 0.0
    %9290 = vmatpush1.msra.mxu0 0.0
    %9291 = vmatprep.subr.mxu0 0.0
    %9292 = vmatpush1.msra.mxu0 0.0
    %9293 = vmatprep.subr.mxu0 0.0
    %9294 = vmatpush1.msra.mxu0 0.0
    %9295 = vmatprep.subr.mxu0 0.0
    %9296 = vmatpush1.msra.mxu0 0.0
    %9297 = vmatprep.subr.mxu0 0.0
    %9298 = vmatpush1.msra.mxu0 0.0
    %9299 = vmatprep.subr.mxu0 0.0
    %9300 = vmatpush1.msra.mxu0 %v9264
    %9301 = vmatprep.subr.mxu0 0.0
    %9302 = vmatpush1.msra.mxu0 %v9263
    %9303 = vmatprep.subr.mxu0 0.0
    %9304 = vmatpush2.msra.mxu0 0.0
    %9305 = vmatprep.subr.mxu0 0.0
    %9306 = vmatpush2.msra.mxu0 0.0
    %9307 = vmatprep.subr.mxu0 0.0
    %9308 = vmatpush2.msra.mxu0 0.0
    %9309 = vmatprep.subr.mxu0 0.0
    %9310 = vmatpush2.msra.mxu0 0.0
    %9311 = vmatprep.subr.mxu0 0.0
    %9312 = vmatpush2.msra.mxu0 0.0
    %9313 = vmatprep.subr.mxu0 0.0
    %9314 = vmatpush2.msra.mxu0 0.0
    %9315 = vmatprep.subr.mxu0 0.0
    %9316 = vmatpush2.msra.mxu0 0.0
    %9317 = vmatprep.subr.mxu0 0.0
    %9318 = vmatpush2.msra.mxu0 0.0
    %9319 = vmatprep.subr.mxu0 0.0
    %9320 = vmatpush2.msra.mxu0 0.0
    %9321 = vmatprep.subr.mxu0 0.0
    %9322 = vmatpush2.msra.mxu0 0.0
    %9323 = vmatprep.subr.mxu0 0.0
    %9324 = vmatpush2.msra.mxu0 0.0
    %9325 = vmatprep.subr.mxu0 0.0
    %9326 = vmatpush2.msra.mxu0 0.0
    %9327 = vmatprep.subr.mxu0 0.0
    %9328 = vmatpush2.msra.mxu0 0.0
    %9329 = vmatprep.subr.mxu0 0.0
    %9330 = vmatpush2.msra.mxu0 0.0
    %9331 = vmatprep.subr.mxu0 0.0
    %9332 = vmatpush2.msra.mxu0 0.0
    %9333 = vmatprep.subr.mxu0 0.0
    %9334 = vmatpush2.msra.mxu0 0.0
    %9335 = vmatprep.mubr.f32.mxu0 0.0
    %9336 = vmatmul.mubr.f32.gmra.mxu0 %v9269
    %v9337 = vpop.f32.mrf.mxu0
    %v9338 = vadd.f32 0.0, %v9337
    %v9339 = vpop.f32.mrf.mxu0
    %9340 = vdwg.mxu0
    %v9341 = vadd.f32 %v9259, %v9338
    %v9342 = vld [vmem:[%s9095 + $0x3] sm:$0x1]
    %v9343 = vld [vmem:[%s9095 + $0x13] sm:$0x1]
    %s9344 = scalar_lea.vmem %s5, 112
    %v9345 = vld [vmem:[%s9344] sm:$0xff]
    %v9346 = vld [vmem:[%s9344 + $0x8] sm:$0xff]
    %v9349 = vrot.slane %v9343, 7
    %v9350 = vsel %vm8781, %v9349, %v9342
    %v9351 = vsel %vm8712, %v9350, 0
    %9353 = vmatprep.subr.mxu0 0.0
    %9354 = vmatpush1.msra.mxu0 0.0
    %9355 = vmatprep.subr.mxu0 0.0
    %9356 = vmatpush1.msra.mxu0 0.0
    %9357 = vmatprep.subr.mxu0 0.0
    %9358 = vmatpush1.msra.mxu0 0.0
    %9359 = vmatprep.subr.mxu0 0.0
    %9360 = vmatpush1.msra.mxu0 0.0
    %9361 = vmatprep.subr.mxu0 0.0
    %9362 = vmatpush1.msra.mxu0 0.0
    %9363 = vmatprep.subr.mxu0 0.0
    %9364 = vmatpush1.msra.mxu0 0.0
    %9365 = vmatprep.subr.mxu0 0.0
    %9366 = vmatpush1.msra.mxu0 0.0
    %9367 = vmatprep.subr.mxu0 0.0
    %9368 = vmatpush1.msra.mxu0 0.0
    %9369 = vmatprep.subr.mxu0 0.0
    %9370 = vmatpush1.msra.mxu0 0.0
    %9371 = vmatprep.subr.mxu0 0.0
    %9372 = vmatpush1.msra.mxu0 0.0
    %9373 = vmatprep.subr.mxu0 0.0
    %9374 = vmatpush1.msra.mxu0 0.0
    %9375 = vmatprep.subr.mxu0 0.0
    %9376 = vmatpush1.msra.mxu0 0.0
    %9377 = vmatprep.subr.mxu0 0.0
    %9378 = vmatpush1.msra.mxu0 0.0
    %9379 = vmatprep.subr.mxu0 0.0
    %9380 = vmatpush1.msra.mxu0 0.0
    %9381 = vmatprep.subr.mxu0 0.0
    %9382 = vmatpush1.msra.mxu0 %v9346
    %9383 = vmatprep.subr.mxu0 0.0
    %9384 = vmatpush1.msra.mxu0 %v9345
    %9385 = vmatprep.subr.mxu0 0.0
    %9386 = vmatpush2.msra.mxu0 0.0
    %9387 = vmatprep.subr.mxu0 0.0
    %9388 = vmatpush2.msra.mxu0 0.0
    %9389 = vmatprep.subr.mxu0 0.0
    %9390 = vmatpush2.msra.mxu0 0.0
    %9391 = vmatprep.subr.mxu0 0.0
    %9392 = vmatpush2.msra.mxu0 0.0
    %9393 = vmatprep.subr.mxu0 0.0
    %9394 = vmatpush2.msra.mxu0 0.0
    %9395 = vmatprep.subr.mxu0 0.0
    %9396 = vmatpush2.msra.mxu0 0.0
    %9397 = vmatprep.subr.mxu0 0.0
    %9398 = vmatpush2.msra.mxu0 0.0
    %9399 = vmatprep.subr.mxu0 0.0
    %9400 = vmatpush2.msra.mxu0 0.0
    %9401 = vmatprep.subr.mxu0 0.0
    %9402 = vmatpush2.msra.mxu0 0.0
    %9403 = vmatprep.subr.mxu0 0.0
    %9404 = vmatpush2.msra.mxu0 0.0
    %9405 = vmatprep.subr.mxu0 0.0
    %9406 = vmatpush2.msra.mxu0 0.0
    %9407 = vmatprep.subr.mxu0 0.0
    %9408 = vmatpush2.msra.mxu0 0.0
    %9409 = vmatprep.subr.mxu0 0.0
    %9410 = vmatpush2.msra.mxu0 0.0
    %9411 = vmatprep.subr.mxu0 0.0
    %9412 = vmatpush2.msra.mxu0 0.0
    %9413 = vmatprep.subr.mxu0 0.0
    %9414 = vmatpush2.msra.mxu0 0.0
    %9415 = vmatprep.subr.mxu0 0.0
    %9416 = vmatpush2.msra.mxu0 0.0
    %9417 = vmatprep.mubr.f32.mxu0 0.0
    %9418 = vmatmul.mubr.f32.gmra.mxu0 %v9351
    %v9419 = vpop.f32.mrf.mxu0
    %v9420 = vadd.f32 0.0, %v9419
    %v9421 = vpop.f32.mrf.mxu0
    %9422 = vdwg.mxu0
    %v9423 = vadd.f32 %v9341, %v9420
    %s9424 = scalar_lea.vmem [#allocation5], 8
    %v9425 = vld [vmem:[%s9424] sm:$0x1]
    %v9426 = vld [vmem:[%s9424 + $0x10] sm:$0x1]
    %s9427 = scalar_lea.vmem %s5, 128
    %v9428 = vld [vmem:[%s9427] sm:$0xff]
    %v9429 = vld [vmem:[%s9427 + $0x8] sm:$0xff]
    %v9432 = vrot.slane %v9426, 7
    %v9433 = vsel %vm8781, %v9432, %v9425
    %v9434 = vsel %vm8712, %v9433, 0
    %9436 = vmatprep.subr.mxu0 0.0
    %9437 = vmatpush1.msra.mxu0 0.0
    %9438 = vmatprep.subr.mxu0 0.0
    %9439 = vmatpush1.msra.mxu0 0.0
    %9440 = vmatprep.subr.mxu0 0.0
    %9441 = vmatpush1.msra.mxu0 0.0
    %9442 = vmatprep.subr.mxu0 0.0
    %9443 = vmatpush1.msra.mxu0 0.0
    %9444 = vmatprep.subr.mxu0 0.0
    %9445 = vmatpush1.msra.mxu0 0.0
    %9446 = vmatprep.subr.mxu0 0.0
    %9447 = vmatpush1.msra.mxu0 0.0
    %9448 = vmatprep.subr.mxu0 0.0
    %9449 = vmatpush1.msra.mxu0 0.0
    %9450 = vmatprep.subr.mxu0 0.0
    %9451 = vmatpush1.msra.mxu0 0.0
    %9452 = vmatprep.subr.mxu0 0.0
    %9453 = vmatpush1.msra.mxu0 0.0
    %9454 = vmatprep.subr.mxu0 0.0
    %9455 = vmatpush1.msra.mxu0 0.0
    %9456 = vmatprep.subr.mxu0 0.0
    %9457 = vmatpush1.msra.mxu0 0.0
    %9458 = vmatprep.subr.mxu0 0.0
    %9459 = vmatpush1.msra.mxu0 0.0
    %9460 = vmatprep.subr.mxu0 0.0
    %9461 = vmatpush1.msra.mxu0 0.0
    %9462 = vmatprep.subr.mxu0 0.0
    %9463 = vmatpush1.msra.mxu0 0.0
    %9464 = vmatprep.subr.mxu0 0.0
    %9465 = vmatpush1.msra.mxu0 %v9429
    %9466 = vmatprep.subr.mxu0 0.0
    %9467 = vmatpush1.msra.mxu0 %v9428
    %9468 = vmatprep.subr.mxu0 0.0
    %9469 = vmatpush2.msra.mxu0 0.0
    %9470 = vmatprep.subr.mxu0 0.0
    %9471 = vmatpush2.msra.mxu0 0.0
    %9472 = vmatprep.subr.mxu0 0.0
    %9473 = vmatpush2.msra.mxu0 0.0
    %9474 = vmatprep.subr.mxu0 0.0
    %9475 = vmatpush2.msra.mxu0 0.0
    %9476 = vmatprep.subr.mxu0 0.0
    %9477 = vmatpush2.msra.mxu0 0.0
    %9478 = vmatprep.subr.mxu0 0.0
    %9479 = vmatpush2.msra.mxu0 0.0
    %9480 = vmatprep.subr.mxu0 0.0
    %9481 = vmatpush2.msra.mxu0 0.0
    %9482 = vmatprep.subr.mxu0 0.0
    %9483 = vmatpush2.msra.mxu0 0.0
    %9484 = vmatprep.subr.mxu0 0.0
    %9485 = vmatpush2.msra.mxu0 0.0
    %9486 = vmatprep.subr.mxu0 0.0
    %9487 = vmatpush2.msra.mxu0 0.0
    %9488 = vmatprep.subr.mxu0 0.0
    %9489 = vmatpush2.msra.mxu0 0.0
    %9490 = vmatprep.subr.mxu0 0.0
    %9491 = vmatpush2.msra.mxu0 0.0
    %9492 = vmatprep.subr.mxu0 0.0
    %9493 = vmatpush2.msra.mxu0 0.0
    %9494 = vmatprep.subr.mxu0 0.0
    %9495 = vmatpush2.msra.mxu0 0.0
    %9496 = vmatprep.subr.mxu0 0.0
    %9497 = vmatpush2.msra.mxu0 0.0
    %9498 = vmatprep.subr.mxu0 0.0
    %9499 = vmatpush2.msra.mxu0 0.0
    %9500 = vmatprep.mubr.f32.mxu0 0.0
    %9501 = vmatmul.mubr.f32.gmra.mxu0 %v9434
    %v9502 = vpop.f32.mrf.mxu0
    %v9503 = vadd.f32 0.0, %v9502
    %v9504 = vpop.f32.mrf.mxu0
    %9505 = vdwg.mxu0
    %v9506 = vadd.f32 %v9423, %v9503
    %v9507 = vld [vmem:[%s9424 + $0x1] sm:$0x1]
    %v9508 = vld [vmem:[%s9424 + $0x11] sm:$0x1]
    %s9509 = scalar_lea.vmem %s5, 144
    %v9510 = vld [vmem:[%s9509] sm:$0xff]
    %v9511 = vld [vmem:[%s9509 + $0x8] sm:$0xff]
    %v9514 = vrot.slane %v9508, 7
    %v9515 = vsel %vm8781, %v9514, %v9507
    %v9516 = vsel %vm8712, %v9515, 0
    %9518 = vmatprep.subr.mxu0 0.0
    %9519 = vmatpush1.msra.mxu0 0.0
    %9520 = vmatprep.subr.mxu0 0.0
    %9521 = vmatpush1.msra.mxu0 0.0
    %9522 = vmatprep.subr.mxu0 0.0
    %9523 = vmatpush1.msra.mxu0 0.0
    %9524 = vmatprep.subr.mxu0 0.0
    %9525 = vmatpush1.msra.mxu0 0.0
    %9526 = vmatprep.subr.mxu0 0.0
    %9527 = vmatpush1.msra.mxu0 0.0
    %9528 = vmatprep.subr.mxu0 0.0
    %9529 = vmatpush1.msra.mxu0 0.0
    %9530 = vmatprep.subr.mxu0 0.0
    %9531 = vmatpush1.msra.mxu0 0.0
    %9532 = vmatprep.subr.mxu0 0.0
    %9533 = vmatpush1.msra.mxu0 0.0
    %9534 = vmatprep.subr.mxu0 0.0
    %9535 = vmatpush1.msra.mxu0 0.0
    %9536 = vmatprep.subr.mxu0 0.0
    %9537 = vmatpush1.msra.mxu0 0.0
    %9538 = vmatprep.subr.mxu0 0.0
    %9539 = vmatpush1.msra.mxu0 0.0
    %9540 = vmatprep.subr.mxu0 0.0
    %9541 = vmatpush1.msra.mxu0 0.0
    %9542 = vmatprep.subr.mxu0 0.0
    %9543 = vmatpush1.msra.mxu0 0.0
    %9544 = vmatprep.subr.mxu0 0.0
    %9545 = vmatpush1.msra.mxu0 0.0
    %9546 = vmatprep.subr.mxu0 0.0
    %9547 = vmatpush1.msra.mxu0 %v9511
    %9548 = vmatprep.subr.mxu0 0.0
    %9549 = vmatpush1.msra.mxu0 %v9510
    %9550 = vmatprep.subr.mxu0 0.0
    %9551 = vmatpush2.msra.mxu0 0.0
    %9552 = vmatprep.subr.mxu0 0.0
    %9553 = vmatpush2.msra.mxu0 0.0
    %9554 = vmatprep.subr.mxu0 0.0
    %9555 = vmatpush2.msra.mxu0 0.0
    %9556 = vmatprep.subr.mxu0 0.0
    %9557 = vmatpush2.msra.mxu0 0.0
    %9558 = vmatprep.subr.mxu0 0.0
    %9559 = vmatpush2.msra.mxu0 0.0
    %9560 = vmatprep.subr.mxu0 0.0
    %9561 = vmatpush2.msra.mxu0 0.0
    %9562 = vmatprep.subr.mxu0 0.0
    %9563 = vmatpush2.msra.mxu0 0.0
    %9564 = vmatprep.subr.mxu0 0.0
    %9565 = vmatpush2.msra.mxu0 0.0
    %9566 = vmatprep.subr.mxu0 0.0
    %9567 = vmatpush2.msra.mxu0 0.0
    %9568 = vmatprep.subr.mxu0 0.0
    %9569 = vmatpush2.msra.mxu0 0.0
    %9570 = vmatprep.subr.mxu0 0.0
    %9571 = vmatpush2.msra.mxu0 0.0
    %9572 = vmatprep.subr.mxu0 0.0
    %9573 = vmatpush2.msra.mxu0 0.0
    %9574 = vmatprep.subr.mxu0 0.0
    %9575 = vmatpush2.msra.mxu0 0.0
    %9576 = vmatprep.subr.mxu0 0.0
    %9577 = vmatpush2.msra.mxu0 0.0
    %9578 = vmatprep.subr.mxu0 0.0
    %9579 = vmatpush2.msra.mxu0 0.0
    %9580 = vmatprep.subr.mxu0 0.0
    %9581 = vmatpush2.msra.mxu0 0.0
    %9582 = vmatprep.mubr.f32.mxu0 0.0
    %9583 = vmatmul.mubr.f32.gmra.mxu0 %v9516
    %v9584 = vpop.f32.mrf.mxu0
    %v9585 = vadd.f32 0.0, %v9584
    %v9586 = vpop.f32.mrf.mxu0
    %9587 = vdwg.mxu0
    %v9588 = vadd.f32 %v9506, %v9585
    %v9589 = vld [vmem:[%s9424 + $0x2] sm:$0x1]
    %v9590 = vld [vmem:[%s9424 + $0x12] sm:$0x1]
    %s9591 = scalar_lea.vmem %s5, 160
    %v9592 = vld [vmem:[%s9591] sm:$0xff]
    %v9593 = vld [vmem:[%s9591 + $0x8] sm:$0xff]
    %v9596 = vrot.slane %v9590, 7
    %v9597 = vsel %vm8781, %v9596, %v9589
    %v9598 = vsel %vm8712, %v9597, 0
    %9600 = vmatprep.subr.mxu0 0.0
    %9601 = vmatpush1.msra.mxu0 0.0
    %9602 = vmatprep.subr.mxu0 0.0
    %9603 = vmatpush1.msra.mxu0 0.0
    %9604 = vmatprep.subr.mxu0 0.0
    %9605 = vmatpush1.msra.mxu0 0.0
    %9606 = vmatprep.subr.mxu0 0.0
    %9607 = vmatpush1.msra.mxu0 0.0
    %9608 = vmatprep.subr.mxu0 0.0
    %9609 = vmatpush1.msra.mxu0 0.0
    %9610 = vmatprep.subr.mxu0 0.0
    %9611 = vmatpush1.msra.mxu0 0.0
    %9612 = vmatprep.subr.mxu0 0.0
    %9613 = vmatpush1.msra.mxu0 0.0
    %9614 = vmatprep.subr.mxu0 0.0
    %9615 = vmatpush1.msra.mxu0 0.0
    %9616 = vmatprep.subr.mxu0 0.0
    %9617 = vmatpush1.msra.mxu0 0.0
    %9618 = vmatprep.subr.mxu0 0.0
    %9619 = vmatpush1.msra.mxu0 0.0
    %9620 = vmatprep.subr.mxu0 0.0
    %9621 = vmatpush1.msra.mxu0 0.0
    %9622 = vmatprep.subr.mxu0 0.0
    %9623 = vmatpush1.msra.mxu0 0.0
    %9624 = vmatprep.subr.mxu0 0.0
    %9625 = vmatpush1.msra.mxu0 0.0
    %9626 = vmatprep.subr.mxu0 0.0
    %9627 = vmatpush1.msra.mxu0 0.0
    %9628 = vmatprep.subr.mxu0 0.0
    %9629 = vmatpush1.msra.mxu0 %v9593
    %9630 = vmatprep.subr.mxu0 0.0
    %9631 = vmatpush1.msra.mxu0 %v9592
    %9632 = vmatprep.subr.mxu0 0.0
    %9633 = vmatpush2.msra.mxu0 0.0
    %9634 = vmatprep.subr.mxu0 0.0
    %9635 = vmatpush2.msra.mxu0 0.0
    %9636 = vmatprep.subr.mxu0 0.0
    %9637 = vmatpush2.msra.mxu0 0.0
    %9638 = vmatprep.subr.mxu0 0.0
    %9639 = vmatpush2.msra.mxu0 0.0
    %9640 = vmatprep.subr.mxu0 0.0
    %9641 = vmatpush2.msra.mxu0 0.0
    %9642 = vmatprep.subr.mxu0 0.0
    %9643 = vmatpush2.msra.mxu0 0.0
    %9644 = vmatprep.subr.mxu0 0.0
    %9645 = vmatpush2.msra.mxu0 0.0
    %9646 = vmatprep.subr.mxu0 0.0
    %9647 = vmatpush2.msra.mxu0 0.0
    %9648 = vmatprep.subr.mxu0 0.0
    %9649 = vmatpush2.msra.mxu0 0.0
    %9650 = vmatprep.subr.mxu0 0.0
    %9651 = vmatpush2.msra.mxu0 0.0
    %9652 = vmatprep.subr.mxu0 0.0
    %9653 = vmatpush2.msra.mxu0 0.0
    %9654 = vmatprep.subr.mxu0 0.0
    %9655 = vmatpush2.msra.mxu0 0.0
    %9656 = vmatprep.subr.mxu0 0.0
    %9657 = vmatpush2.msra.mxu0 0.0
    %9658 = vmatprep.subr.mxu0 0.0
    %9659 = vmatpush2.msra.mxu0 0.0
    %9660 = vmatprep.subr.mxu0 0.0
    %9661 = vmatpush2.msra.mxu0 0.0
    %9662 = vmatprep.subr.mxu0 0.0
    %9663 = vmatpush2.msra.mxu0 0.0
    %9664 = vmatprep.mubr.f32.mxu0 0.0
    %9665 = vmatmul.mubr.f32.gmra.mxu0 %v9598
    %v9666 = vpop.f32.mrf.mxu0
    %v9667 = vadd.f32 0.0, %v9666
    %v9668 = vpop.f32.mrf.mxu0
    %9669 = vdwg.mxu0
    %v9670 = vadd.f32 %v9588, %v9667
    %v9671 = vld [vmem:[%s9424 + $0x3] sm:$0x1]
    %v9672 = vld [vmem:[%s9424 + $0x13] sm:$0x1]
    %s9673 = scalar_lea.vmem %s5, 176
    %v9674 = vld [vmem:[%s9673] sm:$0xff]
    %v9675 = vld [vmem:[%s9673 + $0x8] sm:$0xff]
    %v9678 = vrot.slane %v9672, 7
    %v9679 = vsel %vm8781, %v9678, %v9671
    %v9680 = vsel %vm8712, %v9679, 0
    %9682 = vmatprep.subr.mxu0 0.0
    %9683 = vmatpush1.msra.mxu0 0.0
    %9684 = vmatprep.subr.mxu0 0.0
    %9685 = vmatpush1.msra.mxu0 0.0
    %9686 = vmatprep.subr.mxu0 0.0
    %9687 = vmatpush1.msra.mxu0 0.0
    %9688 = vmatprep.subr.mxu0 0.0
    %9689 = vmatpush1.msra.mxu0 0.0
    %9690 = vmatprep.subr.mxu0 0.0
    %9691 = vmatpush1.msra.mxu0 0.0
    %9692 = vmatprep.subr.mxu0 0.0
    %9693 = vmatpush1.msra.mxu0 0.0
    %9694 = vmatprep.subr.mxu0 0.0
    %9695 = vmatpush1.msra.mxu0 0.0
    %9696 = vmatprep.subr.mxu0 0.0
    %9697 = vmatpush1.msra.mxu0 0.0
    %9698 = vmatprep.subr.mxu0 0.0
    %9699 = vmatpush1.msra.mxu0 0.0
    %9700 = vmatprep.subr.mxu0 0.0
    %9701 = vmatpush1.msra.mxu0 0.0
    %9702 = vmatprep.subr.mxu0 0.0
    %9703 = vmatpush1.msra.mxu0 0.0
    %9704 = vmatprep.subr.mxu0 0.0
    %9705 = vmatpush1.msra.mxu0 0.0
    %9706 = vmatprep.subr.mxu0 0.0
    %9707 = vmatpush1.msra.mxu0 0.0
    %9708 = vmatprep.subr.mxu0 0.0
    %9709 = vmatpush1.msra.mxu0 0.0
    %9710 = vmatprep.subr.mxu0 0.0
    %9711 = vmatpush1.msra.mxu0 %v9675
    %9712 = vmatprep.subr.mxu0 0.0
    %9713 = vmatpush1.msra.mxu0 %v9674
    %9714 = vmatprep.subr.mxu0 0.0
    %9715 = vmatpush2.msra.mxu0 0.0
    %9716 = vmatprep.subr.mxu0 0.0
    %9717 = vmatpush2.msra.mxu0 0.0
    %9718 = vmatprep.subr.mxu0 0.0
    %9719 = vmatpush2.msra.mxu0 0.0
    %9720 = vmatprep.subr.mxu0 0.0
    %9721 = vmatpush2.msra.mxu0 0.0
    %9722 = vmatprep.subr.mxu0 0.0
    %9723 = vmatpush2.msra.mxu0 0.0
    %9724 = vmatprep.subr.mxu0 0.0
    %9725 = vmatpush2.msra.mxu0 0.0
    %9726 = vmatprep.subr.mxu0 0.0
    %9727 = vmatpush2.msra.mxu0 0.0
    %9728 = vmatprep.subr.mxu0 0.0
    %9729 = vmatpush2.msra.mxu0 0.0
    %9730 = vmatprep.subr.mxu0 0.0
    %9731 = vmatpush2.msra.mxu0 0.0
    %9732 = vmatprep.subr.mxu0 0.0
    %9733 = vmatpush2.msra.mxu0 0.0
    %9734 = vmatprep.subr.mxu0 0.0
    %9735 = vmatpush2.msra.mxu0 0.0
    %9736 = vmatprep.subr.mxu0 0.0
    %9737 = vmatpush2.msra.mxu0 0.0
    %9738 = vmatprep.subr.mxu0 0.0
    %9739 = vmatpush2.msra.mxu0 0.0
    %9740 = vmatprep.subr.mxu0 0.0
    %9741 = vmatpush2.msra.mxu0 0.0
    %9742 = vmatprep.subr.mxu0 0.0
    %9743 = vmatpush2.msra.mxu0 0.0
    %9744 = vmatprep.subr.mxu0 0.0
    %9745 = vmatpush2.msra.mxu0 0.0
    %9746 = vmatprep.mubr.f32.mxu0 0.0
    %9747 = vmatmul.mubr.f32.gmra.mxu0 %v9680
    %v9748 = vpop.f32.mrf.mxu0
    %v9749 = vadd.f32 0.0, %v9748
    %v9750 = vpop.f32.mrf.mxu0
    %9751 = vdwg.mxu0
    %v9752 = vadd.f32 %v9670, %v9749
    %s9753 = scalar_lea.vmem [#allocation5], 12
    %v9754 = vld [vmem:[%s9753] sm:$0x1]
    %v9755 = vld [vmem:[%s9753 + $0x10] sm:$0x1]
    %s9756 = scalar_lea.vmem %s5, 192
    %v9757 = vld [vmem:[%s9756] sm:$0xff]
    %v9758 = vld [vmem:[%s9756 + $0x8] sm:$0xff]
    %v9761 = vrot.slane %v9755, 7
    %v9762 = vsel %vm8781, %v9761, %v9754
    %v9763 = vsel %vm8712, %v9762, 0
    %9765 = vmatprep.subr.mxu0 0.0
    %9766 = vmatpush1.msra.mxu0 0.0
    %9767 = vmatprep.subr.mxu0 0.0
    %9768 = vmatpush1.msra.mxu0 0.0
    %9769 = vmatprep.subr.mxu0 0.0
    %9770 = vmatpush1.msra.mxu0 0.0
    %9771 = vmatprep.subr.mxu0 0.0
    %9772 = vmatpush1.msra.mxu0 0.0
    %9773 = vmatprep.subr.mxu0 0.0
    %9774 = vmatpush1.msra.mxu0 0.0
    %9775 = vmatprep.subr.mxu0 0.0
    %9776 = vmatpush1.msra.mxu0 0.0
    %9777 = vmatprep.subr.mxu0 0.0
    %9778 = vmatpush1.msra.mxu0 0.0
    %9779 = vmatprep.subr.mxu0 0.0
    %9780 = vmatpush1.msra.mxu0 0.0
    %9781 = vmatprep.subr.mxu0 0.0
    %9782 = vmatpush1.msra.mxu0 0.0
    %9783 = vmatprep.subr.mxu0 0.0
    %9784 = vmatpush1.msra.mxu0 0.0
    %9785 = vmatprep.subr.mxu0 0.0
    %9786 = vmatpush1.msra.mxu0 0.0
    %9787 = vmatprep.subr.mxu0 0.0
    %9788 = vmatpush1.msra.mxu0 0.0
    %9789 = vmatprep.subr.mxu0 0.0
    %9790 = vmatpush1.msra.mxu0 0.0
    %9791 = vmatprep.subr.mxu0 0.0
    %9792 = vmatpush1.msra.mxu0 0.0
    %9793 = vmatprep.subr.mxu0 0.0
    %9794 = vmatpush1.msra.mxu0 %v9758
    %9795 = vmatprep.subr.mxu0 0.0
    %9796 = vmatpush1.msra.mxu0 %v9757
    %9797 = vmatprep.subr.mxu0 0.0
    %9798 = vmatpush2.msra.mxu0 0.0
    %9799 = vmatprep.subr.mxu0 0.0
    %9800 = vmatpush2.msra.mxu0 0.0
    %9801 = vmatprep.subr.mxu0 0.0
    %9802 = vmatpush2.msra.mxu0 0.0
    %9803 = vmatprep.subr.mxu0 0.0
    %9804 = vmatpush2.msra.mxu0 0.0
    %9805 = vmatprep.subr.mxu0 0.0
    %9806 = vmatpush2.msra.mxu0 0.0
    %9807 = vmatprep.subr.mxu0 0.0
    %9808 = vmatpush2.msra.mxu0 0.0
    %9809 = vmatprep.subr.mxu0 0.0
    %9810 = vmatpush2.msra.mxu0 0.0
    %9811 = vmatprep.subr.mxu0 0.0
    %9812 = vmatpush2.msra.mxu0 0.0
    %9813 = vmatprep.subr.mxu0 0.0
    %9814 = vmatpush2.msra.mxu0 0.0
    %9815 = vmatprep.subr.mxu0 0.0
    %9816 = vmatpush2.msra.mxu0 0.0
    %9817 = vmatprep.subr.mxu0 0.0
    %9818 = vmatpush2.msra.mxu0 0.0
    %9819 = vmatprep.subr.mxu0 0.0
    %9820 = vmatpush2.msra.mxu0 0.0
    %9821 = vmatprep.subr.mxu0 0.0
    %9822 = vmatpush2.msra.mxu0 0.0
    %9823 = vmatprep.subr.mxu0 0.0
    %9824 = vmatpush2.msra.mxu0 0.0
    %9825 = vmatprep.subr.mxu0 0.0
    %9826 = vmatpush2.msra.mxu0 0.0
    %9827 = vmatprep.subr.mxu0 0.0
    %9828 = vmatpush2.msra.mxu0 0.0
    %9829 = vmatprep.mubr.f32.mxu0 0.0
    %9830 = vmatmul.mubr.f32.gmra.mxu0 %v9763
    %v9831 = vpop.f32.mrf.mxu0
    %v9832 = vadd.f32 0.0, %v9831
    %v9833 = vpop.f32.mrf.mxu0
    %9834 = vdwg.mxu0
    %v9835 = vadd.f32 %v9752, %v9832
    %v9836 = vld [vmem:[%s9753 + $0x1] sm:$0x1]
    %v9837 = vld [vmem:[%s9753 + $0x11] sm:$0x1]
    %s9838 = scalar_lea.vmem %s5, 208
    %v9839 = vld [vmem:[%s9838] sm:$0xff]
    %v9840 = vld [vmem:[%s9838 + $0x8] sm:$0xff]
    %v9843 = vrot.slane %v9837, 7
    %v9844 = vsel %vm8781, %v9843, %v9836
    %v9845 = vsel %vm8712, %v9844, 0
    %9847 = vmatprep.subr.mxu0 0.0
    %9848 = vmatpush1.msra.mxu0 0.0
    %9849 = vmatprep.subr.mxu0 0.0
    %9850 = vmatpush1.msra.mxu0 0.0
    %9851 = vmatprep.subr.mxu0 0.0
    %9852 = vmatpush1.msra.mxu0 0.0
    %9853 = vmatprep.subr.mxu0 0.0
    %9854 = vmatpush1.msra.mxu0 0.0
    %9855 = vmatprep.subr.mxu0 0.0
    %9856 = vmatpush1.msra.mxu0 0.0
    %9857 = vmatprep.subr.mxu0 0.0
    %9858 = vmatpush1.msra.mxu0 0.0
    %9859 = vmatprep.subr.mxu0 0.0
    %9860 = vmatpush1.msra.mxu0 0.0
    %9861 = vmatprep.subr.mxu0 0.0
    %9862 = vmatpush1.msra.mxu0 0.0
    %9863 = vmatprep.subr.mxu0 0.0
    %9864 = vmatpush1.msra.mxu0 0.0
    %9865 = vmatprep.subr.mxu0 0.0
    %9866 = vmatpush1.msra.mxu0 0.0
    %9867 = vmatprep.subr.mxu0 0.0
    %9868 = vmatpush1.msra.mxu0 0.0
    %9869 = vmatprep.subr.mxu0 0.0
    %9870 = vmatpush1.msra.mxu0 0.0
    %9871 = vmatprep.subr.mxu0 0.0
    %9872 = vmatpush1.msra.mxu0 0.0
    %9873 = vmatprep.subr.mxu0 0.0
    %9874 = vmatpush1.msra.mxu0 0.0
    %9875 = vmatprep.subr.mxu0 0.0
    %9876 = vmatpush1.msra.mxu0 %v9840
    %9877 = vmatprep.subr.mxu0 0.0
    %9878 = vmatpush1.msra.mxu0 %v9839
    %9879 = vmatprep.subr.mxu0 0.0
    %9880 = vmatpush2.msra.mxu0 0.0
    %9881 = vmatprep.subr.mxu0 0.0
    %9882 = vmatpush2.msra.mxu0 0.0
    %9883 = vmatprep.subr.mxu0 0.0
    %9884 = vmatpush2.msra.mxu0 0.0
    %9885 = vmatprep.subr.mxu0 0.0
    %9886 = vmatpush2.msra.mxu0 0.0
    %9887 = vmatprep.subr.mxu0 0.0
    %9888 = vmatpush2.msra.mxu0 0.0
    %9889 = vmatprep.subr.mxu0 0.0
    %9890 = vmatpush2.msra.mxu0 0.0
    %9891 = vmatprep.subr.mxu0 0.0
    %9892 = vmatpush2.msra.mxu0 0.0
    %9893 = vmatprep.subr.mxu0 0.0
    %9894 = vmatpush2.msra.mxu0 0.0
    %9895 = vmatprep.subr.mxu0 0.0
    %9896 = vmatpush2.msra.mxu0 0.0
    %9897 = vmatprep.subr.mxu0 0.0
    %9898 = vmatpush2.msra.mxu0 0.0
    %9899 = vmatprep.subr.mxu0 0.0
    %9900 = vmatpush2.msra.mxu0 0.0
    %9901 = vmatprep.subr.mxu0 0.0
    %9902 = vmatpush2.msra.mxu0 0.0
    %9903 = vmatprep.subr.mxu0 0.0
    %9904 = vmatpush2.msra.mxu0 0.0
    %9905 = vmatprep.subr.mxu0 0.0
    %9906 = vmatpush2.msra.mxu0 0.0
    %9907 = vmatprep.subr.mxu0 0.0
    %9908 = vmatpush2.msra.mxu0 0.0
    %9909 = vmatprep.subr.mxu0 0.0
    %9910 = vmatpush2.msra.mxu0 0.0
    %9911 = vmatprep.mubr.f32.mxu0 0.0
    %9912 = vmatmul.mubr.f32.gmra.mxu0 %v9845
    %v9913 = vpop.f32.mrf.mxu0
    %v9914 = vadd.f32 0.0, %v9913
    %v9915 = vpop.f32.mrf.mxu0
    %9916 = vdwg.mxu0
    %v9917 = vadd.f32 %v9835, %v9914
    %v9918 = vld [vmem:[%s9753 + $0x2] sm:$0x1]
    %v9919 = vld [vmem:[%s9753 + $0x12] sm:$0x1]
    %s9920 = scalar_lea.vmem %s5, 224
    %v9921 = vld [vmem:[%s9920] sm:$0xff]
    %v9922 = vld [vmem:[%s9920 + $0x8] sm:$0xff]
    %v9925 = vrot.slane %v9919, 7
    %v9926 = vsel %vm8781, %v9925, %v9918
    %v9927 = vsel %vm8712, %v9926, 0
    %9929 = vmatprep.subr.mxu0 0.0
    %9930 = vmatpush1.msra.mxu0 0.0
    %9931 = vmatprep.subr.mxu0 0.0
    %9932 = vmatpush1.msra.mxu0 0.0
    %9933 = vmatprep.subr.mxu0 0.0
    %9934 = vmatpush1.msra.mxu0 0.0
    %9935 = vmatprep.subr.mxu0 0.0
    %9936 = vmatpush1.msra.mxu0 0.0
    %9937 = vmatprep.subr.mxu0 0.0
    %9938 = vmatpush1.msra.mxu0 0.0
    %9939 = vmatprep.subr.mxu0 0.0
    %9940 = vmatpush1.msra.mxu0 0.0
    %9941 = vmatprep.subr.mxu0 0.0
    %9942 = vmatpush1.msra.mxu0 0.0
    %9943 = vmatprep.subr.mxu0 0.0
    %9944 = vmatpush1.msra.mxu0 0.0
    %9945 = vmatprep.subr.mxu0 0.0
    %9946 = vmatpush1.msra.mxu0 0.0
    %9947 = vmatprep.subr.mxu0 0.0
    %9948 = vmatpush1.msra.mxu0 0.0
    %9949 = vmatprep.subr.mxu0 0.0
    %9950 = vmatpush1.msra.mxu0 0.0
    %9951 = vmatprep.subr.mxu0 0.0
    %9952 = vmatpush1.msra.mxu0 0.0
    %9953 = vmatprep.subr.mxu0 0.0
    %9954 = vmatpush1.msra.mxu0 0.0
    %9955 = vmatprep.subr.mxu0 0.0
    %9956 = vmatpush1.msra.mxu0 0.0
    %9957 = vmatprep.subr.mxu0 0.0
    %9958 = vmatpush1.msra.mxu0 %v9922
    %9959 = vmatprep.subr.mxu0 0.0
    %9960 = vmatpush1.msra.mxu0 %v9921
    %9961 = vmatprep.subr.mxu0 0.0
    %9962 = vmatpush2.msra.mxu0 0.0
    %9963 = vmatprep.subr.mxu0 0.0
    %9964 = vmatpush2.msra.mxu0 0.0
    %9965 = vmatprep.subr.mxu0 0.0
    %9966 = vmatpush2.msra.mxu0 0.0
    %9967 = vmatprep.subr.mxu0 0.0
    %9968 = vmatpush2.msra.mxu0 0.0
    %9969 = vmatprep.subr.mxu0 0.0
    %9970 = vmatpush2.msra.mxu0 0.0
    %9971 = vmatprep.subr.mxu0 0.0
    %9972 = vmatpush2.msra.mxu0 0.0
    %9973 = vmatprep.subr.mxu0 0.0
    %9974 = vmatpush2.msra.mxu0 0.0
    %9975 = vmatprep.subr.mxu0 0.0
    %9976 = vmatpush2.msra.mxu0 0.0
    %9977 = vmatprep.subr.mxu0 0.0
    %9978 = vmatpush2.msra.mxu0 0.0
    %9979 = vmatprep.subr.mxu0 0.0
    %9980 = vmatpush2.msra.mxu0 0.0
    %9981 = vmatprep.subr.mxu0 0.0
    %9982 = vmatpush2.msra.mxu0 0.0
    %9983 = vmatprep.subr.mxu0 0.0
    %9984 = vmatpush2.msra.mxu0 0.0
    %9985 = vmatprep.subr.mxu0 0.0
    %9986 = vmatpush2.msra.mxu0 0.0
    %9987 = vmatprep.subr.mxu0 0.0
    %9988 = vmatpush2.msra.mxu0 0.0
    %9989 = vmatprep.subr.mxu0 0.0
    %9990 = vmatpush2.msra.mxu0 0.0
    %9991 = vmatprep.subr.mxu0 0.0
    %9992 = vmatpush2.msra.mxu0 0.0
    %9993 = vmatprep.mubr.f32.mxu0 0.0
    %9994 = vmatmul.mubr.f32.gmra.mxu0 %v9927
    %v9995 = vpop.f32.mrf.mxu0
    %v9996 = vadd.f32 0.0, %v9995
    %v9997 = vpop.f32.mrf.mxu0
    %9998 = vdwg.mxu0
    %v9999 = vadd.f32 %v9917, %v9996
    %v10000 = vld [vmem:[%s9753 + $0x3] sm:$0x1]
    %v10001 = vld [vmem:[%s9753 + $0x13] sm:$0x1]
    %s10002 = scalar_lea.vmem %s5, 240
    %v10003 = vld [vmem:[%s10002] sm:$0xff]
    %v10004 = vld [vmem:[%s10002 + $0x8] sm:$0xff]
    %v10007 = vrot.slane %v10001, 7
    %v10008 = vsel %vm8781, %v10007, %v10000
    %v10009 = vsel %vm8712, %v10008, 0
    %10011 = vmatprep.subr.mxu0 0.0
    %10012 = vmatpush1.msra.mxu0 0.0
    %10013 = vmatprep.subr.mxu0 0.0
    %10014 = vmatpush1.msra.mxu0 0.0
    %10015 = vmatprep.subr.mxu0 0.0
    %10016 = vmatpush1.msra.mxu0 0.0
    %10017 = vmatprep.subr.mxu0 0.0
    %10018 = vmatpush1.msra.mxu0 0.0
    %10019 = vmatprep.subr.mxu0 0.0
    %10020 = vmatpush1.msra.mxu0 0.0
    %10021 = vmatprep.subr.mxu0 0.0
    %10022 = vmatpush1.msra.mxu0 0.0
    %10023 = vmatprep.subr.mxu0 0.0
    %10024 = vmatpush1.msra.mxu0 0.0
    %10025 = vmatprep.subr.mxu0 0.0
    %10026 = vmatpush1.msra.mxu0 0.0
    %10027 = vmatprep.subr.mxu0 0.0
    %10028 = vmatpush1.msra.mxu0 0.0
    %10029 = vmatprep.subr.mxu0 0.0
    %10030 = vmatpush1.msra.mxu0 0.0
    %10031 = vmatprep.subr.mxu0 0.0
    %10032 = vmatpush1.msra.mxu0 0.0
    %10033 = vmatprep.subr.mxu0 0.0
    %10034 = vmatpush1.msra.mxu0 0.0
    %10035 = vmatprep.subr.mxu0 0.0
    %10036 = vmatpush1.msra.mxu0 0.0
    %10037 = vmatprep.subr.mxu0 0.0
    %10038 = vmatpush1.msra.mxu0 0.0
    %10039 = vmatprep.subr.mxu0 0.0
    %10040 = vmatpush1.msra.mxu0 %v10004
    %10041 = vmatprep.subr.mxu0 0.0
    %10042 = vmatpush1.msra.mxu0 %v10003
    %10043 = vmatprep.subr.mxu0 0.0
    %10044 = vmatpush2.msra.mxu0 0.0
    %10045 = vmatprep.subr.mxu0 0.0
    %10046 = vmatpush2.msra.mxu0 0.0
    %10047 = vmatprep.subr.mxu0 0.0
    %10048 = vmatpush2.msra.mxu0 0.0
    %10049 = vmatprep.subr.mxu0 0.0
    %10050 = vmatpush2.msra.mxu0 0.0
    %10051 = vmatprep.subr.mxu0 0.0
    %10052 = vmatpush2.msra.mxu0 0.0
    %10053 = vmatprep.subr.mxu0 0.0
    %10054 = vmatpush2.msra.mxu0 0.0
    %10055 = vmatprep.subr.mxu0 0.0
    %10056 = vmatpush2.msra.mxu0 0.0
    %10057 = vmatprep.subr.mxu0 0.0
    %10058 = vmatpush2.msra.mxu0 0.0
    %10059 = vmatprep.subr.mxu0 0.0
    %10060 = vmatpush2.msra.mxu0 0.0
    %10061 = vmatprep.subr.mxu0 0.0
    %10062 = vmatpush2.msra.mxu0 0.0
    %10063 = vmatprep.subr.mxu0 0.0
    %10064 = vmatpush2.msra.mxu0 0.0
    %10065 = vmatprep.subr.mxu0 0.0
    %10066 = vmatpush2.msra.mxu0 0.0
    %10067 = vmatprep.subr.mxu0 0.0
    %10068 = vmatpush2.msra.mxu0 0.0
    %10069 = vmatprep.subr.mxu0 0.0
    %10070 = vmatpush2.msra.mxu0 0.0
    %10071 = vmatprep.subr.mxu0 0.0
    %10072 = vmatpush2.msra.mxu0 0.0
    %10073 = vmatprep.subr.mxu0 0.0
    %10074 = vmatpush2.msra.mxu0 0.0
    %10075 = vmatprep.mubr.f32.mxu0 0.0
    %10076 = vmatmul.mubr.f32.gmra.mxu0 %v10009
    %v10077 = vpop.f32.mrf.mxu0
    %v10078 = vadd.f32 0.0, %v10077
    %v10079 = vpop.f32.mrf.mxu0
    %10080 = vdwg.mxu0
    %v10081 = vadd.f32 %v9999, %v10078
    %v10082 = vld [vmem:[%s6] sm:$0x1]
    %v10084 = vlaneseq
    %v10085 = vshrl.u32 %v10084, 7
    %v10086 = vsub.s32 0, %v10085
    %v10087 = vrot.slane %v10082, %v10086
    %v10089 = vadd.f32 %v10081, %v10087
    %v10090 = vmax.f32 %v10089, 0.0
    %v10091 = vld [vmem:[%s7] sm:$0xff]
    %v10092 = vld [vmem:[%s7 + $0x8] sm:$0xff]
    %v10093 = vld [vmem:[%s7 + $0x10] sm:$0xff]
    %v10094 = vld [vmem:[%s7 + $0x18] sm:$0xff]
    %v10095 = vld [vmem:[%s8] sm:$0x1]
    %v10097 = vlaneseq
    %v10098 = vshrl.u32 %v10097, 7
    %v10099 = vsub.s32 0, %v10098
    %v10100 = vrot.slane %v10095, %v10099
    %vm10102 = vcmask 261120
    %v10104 = vsel %vm10102, %v10090, 0
    %10106 = vmatprep.subr.mxu0 0.0
    %10107 = vmatpush1.msra.mxu0 0.0
    %10108 = vmatprep.subr.mxu0 0.0
    %10109 = vmatpush1.msra.mxu0 0.0
    %10110 = vmatprep.subr.mxu0 0.0
    %10111 = vmatpush1.msra.mxu0 0.0
    %10112 = vmatprep.subr.mxu0 0.0
    %10113 = vmatpush1.msra.mxu0 0.0
    %10114 = vmatprep.subr.mxu0 0.0
    %10115 = vmatpush1.msra.mxu0 0.0
    %10116 = vmatprep.subr.mxu0 0.0
    %10117 = vmatpush1.msra.mxu0 0.0
    %10118 = vmatprep.subr.mxu0 0.0
    %10119 = vmatpush1.msra.mxu0 0.0
    %10120 = vmatprep.subr.mxu0 0.0
    %10121 = vmatpush1.msra.mxu0 0.0
    %10122 = vmatprep.subr.mxu0 0.0
    %10123 = vmatpush1.msra.mxu0 0.0
    %10124 = vmatprep.subr.mxu0 0.0
    %10125 = vmatpush1.msra.mxu0 0.0
    %10126 = vmatprep.subr.mxu0 0.0
    %10127 = vmatpush1.msra.mxu0 0.0
    %10128 = vmatprep.subr.mxu0 0.0
    %10129 = vmatpush1.msra.mxu0 0.0
    %10130 = vmatprep.subr.mxu0 0.0
    %10131 = vmatpush1.msra.mxu0 %v10094
    %10132 = vmatprep.subr.mxu0 0.0
    %10133 = vmatpush1.msra.mxu0 %v10093
    %10134 = vmatprep.subr.mxu0 0.0
    %10135 = vmatpush1.msra.mxu0 %v10092
    %10136 = vmatprep.subr.mxu0 0.0
    %10137 = vmatpush1.msra.mxu0 %v10091
    %10138 = vmatprep.subr.mxu0 0.0
    %10139 = vmatpush2.msra.mxu0 0.0
    %10140 = vmatprep.subr.mxu0 0.0
    %10141 = vmatpush2.msra.mxu0 0.0
    %10142 = vmatprep.subr.mxu0 0.0
    %10143 = vmatpush2.msra.mxu0 0.0
    %10144 = vmatprep.subr.mxu0 0.0
    %10145 = vmatpush2.msra.mxu0 0.0
    %10146 = vmatprep.subr.mxu0 0.0
    %10147 = vmatpush2.msra.mxu0 0.0
    %10148 = vmatprep.subr.mxu0 0.0
    %10149 = vmatpush2.msra.mxu0 0.0
    %10150 = vmatprep.subr.mxu0 0.0
    %10151 = vmatpush2.msra.mxu0 0.0
    %10152 = vmatprep.subr.mxu0 0.0
    %10153 = vmatpush2.msra.mxu0 0.0
    %10154 = vmatprep.subr.mxu0 0.0
    %10155 = vmatpush2.msra.mxu0 0.0
    %10156 = vmatprep.subr.mxu0 0.0
    %10157 = vmatpush2.msra.mxu0 0.0
    %10158 = vmatprep.subr.mxu0 0.0
    %10159 = vmatpush2.msra.mxu0 0.0
    %10160 = vmatprep.subr.mxu0 0.0
    %10161 = vmatpush2.msra.mxu0 0.0
    %10162 = vmatprep.subr.mxu0 0.0
    %10163 = vmatpush2.msra.mxu0 0.0
    %10164 = vmatprep.subr.mxu0 0.0
    %10165 = vmatpush2.msra.mxu0 0.0
    %10166 = vmatprep.subr.mxu0 0.0
    %10167 = vmatpush2.msra.mxu0 0.0
    %10168 = vmatprep.subr.mxu0 0.0
    %10169 = vmatpush2.msra.mxu0 0.0
    %10170 = vmatprep.mubr.f32.mxu0 0.0
    %10171 = vmatmul.mubr.f32.gmra.mxu0 %v10104
    %v10172 = vpop.f32.mrf.mxu0
    %v10173 = vadd.f32 %v10100, %v10172
    %v10174 = vpop.f32.mrf.mxu0
    %10175 = vdwg.mxu0
    %vm10176 = vcmask 74752
    %10177 = vst.msk [vmem:[#allocation6] sm:$0x3] %vm10176, %v10173
    // Predicated region
    $region38: #{model_forward.1} parent=1 // pred_check
      _
    $region39: #{model_forward.1} parent=1 // pred_check_branch
      %10179 = sbr.rel (0) target = $region41
    $region40: #{model_forward.1} parent=1 // pred_region
      %s10181 = ssub.s32 32, 32
      %10182 = vsyncadd [#allocation7], %s10181
      %s10184 = sshll.u32 [#allocation6], 4
      %s10185 = int_to_ptr.vmem [resolvable:$true] %s10184
      %10187 = dma.vmem_to_hbm [thread:$0]  %s10185, 32, %s9, [#allocation7]
    $region41: #{model_forward.1} parent=1 // pred_fallthru
      _
    // Predicated region
    $region42: #{model_forward.1} parent=1 // pred_check
      _
    $region43: #{model_forward.1} parent=1 // pred_check_branch
      %10189 = sbr.rel (0) target = $region45
    $region44: #{model_forward.1} parent=1 // pred_region
      %10190 = dma.done [#allocation7], 32
    $region45: #{model_forward.1} parent=1 // pred_fallthru
      _
    %10191 = vsyncpa [#allocation7], 1

</llo_original>
